<compile_context>
chip_gen: v6e
topology: v6e:2x2x1
jax: 0.10.0
libtpu: 0.0.40
codegen_flags: <defaults>
</compile_context>

<pallas_src>
import functools
from typing import NamedTuple

import jax
import jax.numpy as jnp
import numpy as np
from jax.experimental import pallas as pl
from jax.experimental.pallas import tpu as pltpu


# ----------------------------------------------------------------------------
# Pallas kernel: tap-decomposed conv (K*K small matmuls) + bias + LeakyReLU
# ----------------------------------------------------------------------------
def conv_taps_bn_lrelu(xflat, w_taps, bias_p, *, K, Wi, Ho, out_dtype):
    """Fused stride-1 KxK conv (tap decomposition) + bias + LeakyReLU(0.2).

    xflat : [B, Mi, Cin]   bf16, flattened (row-major) padded image, with K-1
                           extra slack rows so every tap's row-slice is in-bounds.
    w_taps: [K*K, Cin, Np] bf16, BN scale already folded in, Cout padded to Np.
    bias_p: [1, Np]        f32 folded BN bias (padded).
    Returns [B, M, Np] out_dtype with M = Ho * Wi (over-wide rows; the caller
    slices columns back to Wo and channels back to Cout).
    """
    B, Mi, Cin = xflat.shape
    K2, Cin_w, Np = w_taps.shape
    assert K2 == K * K and Cin_w == Cin and Np % 128 == 0
    M = Ho * Wi
    tn = 512 if (Np > 512 and Np % 512 == 0) else Np
    grid = (Np // tn, B)  # Cout-block OUTER -> weight tile stays resident over b

    def kernel(x_ref, w_ref, b_ref, o_ref):
        # x_ref: (1, Mi, Cin) bf16, w_ref: (K2, Cin, tn) bf16,
        # b_ref: (1, tn) f32,  o_ref: (1, M, tn) out_dtype
        acc = None
        for kh in range(K):
            for kw in range(K):
                t = kh * K + kw
                off = kh * Wi + kw                       # static row offset
                xs = x_ref[0, pl.ds(off, M), :]          # (M, Cin) bf16
                contrib = jnp.dot(xs, w_ref[t],
                                  preferred_element_type=jnp.float32)
                acc = contrib if acc is None else acc + contrib
        y = acc + b_ref[...]
        o_ref[0] = jnp.where(y > 0.0, y, jnp.float32(0.2) * y).astype(o_ref.dtype)

    out_itemsize = jnp.dtype(out_dtype).itemsize
    cost = pl.CostEstimate(
        flops=2 * B * M * Cin * K2 * Np,
        transcendentals=0,
        bytes_accessed=(xflat.size * 2 + w_taps.size * 2
                        + bias_p.size * 4 + B * M * Np * out_itemsize),
    )

    return pl.pallas_call(
        kernel,
        out_shape=jax.ShapeDtypeStruct((B, M, Np), out_dtype),
        grid=grid,
        in_specs=[
            pl.BlockSpec((1, Mi, Cin), lambda n, b: (b, 0, 0)),
            pl.BlockSpec((K2, Cin, tn), lambda n, b: (0, 0, n)),
            pl.BlockSpec((1, tn), lambda n, b: (0, n)),
        ],
        out_specs=pl.BlockSpec((1, M, tn), lambda n, b: (b, 0, n)),
        compiler_params=pltpu.CompilerParams(
            dimension_semantics=("parallel", "parallel")),
        cost_estimate=cost,
    )(xflat, w_taps, bias_p)


# ----------------------------------------------------------------------------
# Glue: padding / space-to-depth (size-preserving, no im2col duplication)
# ----------------------------------------------------------------------------
class LayerCfg(NamedTuple):
    k: int
    stride: int
    pad: int
    cin: int
    cout: int


def conv_block(x_nhwc, w_taps, bias_p, cfg: LayerCfg, *, out_dtype):
    """One Conv -> folded-BN -> LeakyReLU block via the Pallas kernel."""
    B, H, W, C = x_nhwc.shape
    if cfg.stride == 2:
        # 4x4 / stride-2 / pad-1 conv  ==  2x2 / stride-1 conv on space-to-depth
        assert cfg.k == 4 and cfg.pad == 1 and H % 2 == 0 and W % 2 == 0
        Ho, Wo = H // 2, W // 2
        xp = jnp.pad(x_nhwc, ((0, 0), (1, 1), (1, 1), (0, 0)))
        Hs, Ws = (H + 2) // 2, (W + 2) // 2
        xin = (xp.reshape(B, Hs, 2, Ws, 2, C)
                 .transpose(0, 1, 3, 2, 4, 5)
                 .reshape(B, Hs, Ws, 4 * C))
        K, Wi = 2, Ws
    else:
        assert cfg.k == 3 and cfg.stride == 1 and cfg.pad == 1
        Ho, Wo = H, W
        xin = jnp.pad(x_nhwc, ((0, 0), (1, 1), (1, 1), (0, 0)))
        K, Wi = 3, W + 2
    # K-1 slack rows so every tap's flat row-slice stays in bounds.
    xin = jnp.pad(xin, ((0, 0), (0, K - 1), (0, 0), (0, 0)))
    Hi2 = xin.shape[1]
    xflat = xin.reshape(B, Hi2 * Wi, xin.shape[-1]).astype(jnp.bfloat16)

    Np = w_taps.shape[-1]
    out = conv_taps_bn_lrelu(xflat, w_taps, bias_p, K=K, Wi=Wi, Ho=Ho,
                             out_dtype=out_dtype)
    # Over-wide rows (Wi) and padded channels (Np) -> slice back to (Wo, cout).
    return out.reshape(B, Ho, Wi, Np)[:, :, :Wo, :cfg.cout]


# ----------------------------------------------------------------------------
# Parameters: synthetic weights, inference-mode BN folded into (w*scale, bias)
# ----------------------------------------------------------------------------
def _round_up(x, m):
    return ((x + m - 1) // m) * m


def make_params(ndf, key):
    layer_cfgs = [
        LayerCfg(4, 2, 1, 3,        ndf),       # encode_image_by_16times conv1
        LayerCfg(4, 2, 1, ndf,      ndf * 2),   # conv2 + BN
        LayerCfg(4, 2, 1, ndf * 2,  ndf * 4),   # conv3 + BN
        LayerCfg(4, 2, 1, ndf * 4,  ndf * 8),   # conv4 + BN
        LayerCfg(4, 2, 1, ndf * 8,  ndf * 16),  # downBlock + BN
        LayerCfg(3, 1, 1, ndf * 16, ndf * 8),   # Block3x3_leakRelu + BN
    ]
    params = []
    for li, cfg in enumerate(layer_cfgs):
        has_bn = li != 0
        key, kw_, kg, kb, km, kv = jax.random.split(key, 6)
        k, cin, cout = cfg.k, cfg.cin, cfg.cout
        w = 0.05 * jax.random.normal(kw_, (k, k, cin, cout), jnp.float32)  # HWIO
        if has_bn:
            gamma = 1.0 + 0.05 * jax.random.normal(kg, (cout,), jnp.float32)
            beta = 0.05 * jax.random.normal(kb, (cout,), jnp.float32)
            rmean = 0.05 * jax.random.normal(km, (cout,), jnp.float32)
            rvar = 1.0 + 0.1 * jnp.abs(jax.random.normal(kv, (cout,), jnp.float32))
            scale = gamma / jnp.sqrt(rvar + 1e-5)
            bias = beta - rmean * scale
        else:
            scale = jnp.ones((cout,), jnp.float32)
            bias = jnp.zeros((cout,), jnp.float32)

        w_folded = w * scale                      # fold BN scale into weights
        # Tap-major weight layout matching the kernel's decomposition.
        if cfg.stride == 2:                       # 4x4 s2 -> 2x2 taps on s2d channels
            wt = (w_folded.reshape(2, 2, 2, 2, cin, cout)
                          .transpose(0, 2, 1, 3, 4, 5)
                          .reshape(4, 4 * cin, cout))
        else:                                     # 3x3 s1
            wt = w_folded.reshape(k * k, cin, cout)
        Np = _round_up(cout, 128)                 # lane-dense output channels
        wt = jnp.pad(wt, ((0, 0), (0, 0), (0, Np - cout))).astype(jnp.bfloat16)
        bias_p = jnp.pad(bias, (0, Np - cout)).reshape(1, Np).astype(jnp.float32)

        params.append(dict(
            w_taps=wt, bias_p=bias_p,
            # reference-only copies (same folded values, same bf16 cast):
            w_hwio_bf16=w_folded.astype(jnp.bfloat16), bias=bias))
    return tuple(layer_cfgs), params


# ----------------------------------------------------------------------------
# Forward passes
# ----------------------------------------------------------------------------
@functools.partial(jax.jit, static_argnums=(2,))
def d_net128_forward(x_nchw, params, cfgs):
    x = jnp.transpose(x_nchw, (0, 2, 3, 1)).astype(jnp.float32)   # NCHW -> NHWC
    n_layers = len(cfgs)
    for li, (p, cfg) in enumerate(zip(params, cfgs)):
        # Intermediate activations in bf16 (next layer consumes bf16 anyway);
        # final layer in f32.
        out_dtype = jnp.float32 if li == n_layers - 1 else jnp.bfloat16
        x = conv_block(x, p["w_taps"], p["bias_p"], cfg, out_dtype=out_dtype)
    return jnp.transpose(x, (0, 3, 1, 2))                         # back to NCHW


def reference_forward(x_nchw, params, cfgs):
    """lax.conv reference with the same bf16-operand / f32-accumulate precision."""
    x = jnp.transpose(x_nchw, (0, 2, 3, 1)).astype(jnp.float32)
    dn = ("NHWC", "HWIO", "NHWC")
    for p, cfg in zip(params, cfgs):
        y = jax.lax.conv_general_dilated(
            x.astype(jnp.bfloat16), p["w_hwio_bf16"],
            window_strides=(cfg.stride, cfg.stride),
            padding=[(cfg.pad, cfg.pad), (cfg.pad, cfg.pad)],
            dimension_numbers=dn,
            preferred_element_type=jnp.float32)
        y = y + p["bias"]
        x = jnp.where(y > 0, y, 0.2 * y)
    return jnp.transpose(x, (0, 3, 1, 2))


if __name__ == "__main__":
    ndf = 8              # small stand-in for cfg.GAN.DF_DIM
    B, H, W = 2, 64, 64  # small stand-in for the 128x128 input (must be /32)

    key = jax.random.PRNGKey(0)
    kx, kp = jax.random.split(key)
    x = jax.random.normal(kx, (B, 3, H, W), jnp.float32)   # NCHW like torch
    cfgs, params = make_params(ndf, kp)

    out = jax.block_until_ready(d_net128_forward(x, params, cfgs))
    assert out.shape == (B, ndf * 8, H // 32, W // 32), out.shape
    assert bool(jnp.all(jnp.isfinite(out)))

    ref = jax.block_until_ready(reference_forward(x, params, cfgs))
    np.testing.assert_allclose(np.asarray(out), np.asarray(ref),
                               rtol=2e-2, atol=2e-2)

    print("KERNEL_OK")
</pallas_src>

<mosaic_0001>
module attributes {stable_mosaic.version = 11 : i64} {
  func.func @kernel(%arg0: i32, %arg1: i32, %arg2: memref<1x1122x12xbf16, #tpu.memory_space<vmem>>, %arg3: memref<4x12x128xbf16, #tpu.memory_space<vmem>>, %arg4: memref<1x128xf32, #tpu.memory_space<vmem>>, %arg5: memref<1x1056x128xbf16, #tpu.memory_space<vmem>>) attributes {dimension_semantics = [#tpu.dimension_semantics<parallel>, #tpu.dimension_semantics<parallel>], iteration_bounds = array<i64: 1, 2>, scalar_prefetch = 0 : i64, scratch_operands = 0 : i64, tpu.core_type = #tpu.core_type<tc>, window_params = [{transform_indices = @transform_0, window_bounds = array<i64: 1, 1122, 12>}, {transform_indices = @transform_1, window_bounds = array<i64: 4, 12, 128>}, {transform_indices = @transform_2, window_bounds = array<i64: 1, 128>}, {transform_indices = @transform_3, window_bounds = array<i64: 1, 1056, 128>}]} {
    %c0 = arith.constant 0 : index
    %c0_0 = arith.constant 0 : index
    %c0_1 = arith.constant 0 : index
    %0 = vector.load %arg2[%c0, %c0_0, %c0_1] : memref<1x1122x12xbf16, #tpu.memory_space<vmem>>, vector<1x1056x12xbf16>
    %1 = vector.shape_cast %0 : vector<1x1056x12xbf16> to vector<1056x12xbf16>
    %c0_2 = arith.constant 0 : index
    %c0_3 = arith.constant 0 : index
    %c0_4 = arith.constant 0 : index
    %2 = vector.load %arg3[%c0_2, %c0_3, %c0_4] : memref<4x12x128xbf16, #tpu.memory_space<vmem>>, vector<1x12x128xbf16>
    %3 = vector.shape_cast %2 : vector<1x12x128xbf16> to vector<12x128xbf16>
    %cst = arith.constant dense<0.000000e+00> : vector<1056x128xf32>
    %4 = tpu.matmul %1, %3, %cst {dimension_numbers = #tpu.dot_dimension_numbers<[1], [0], [0], [1], [0, 0, 1, 1], [], []>} : vector<1056x12xbf16>, vector<12x128xbf16>, vector<1056x128xf32> -> vector<1056x128xf32>
    %c0_5 = arith.constant 0 : index
    %c1 = arith.constant 1 : index
    %c0_6 = arith.constant 0 : index
    %5 = vector.load %arg2[%c0_5, %c1, %c0_6] : memref<1x1122x12xbf16, #tpu.memory_space<vmem>>, vector<1x1056x12xbf16>
    %6 = vector.shape_cast %5 : vector<1x1056x12xbf16> to vector<1056x12xbf16>
    %c1_7 = arith.constant 1 : index
    %c0_8 = arith.constant 0 : index
    %c0_9 = arith.constant 0 : index
    %7 = vector.load %arg3[%c1_7, %c0_8, %c0_9] : memref<4x12x128xbf16, #tpu.memory_space<vmem>>, vector<1x12x128xbf16>
    %8 = vector.shape_cast %7 : vector<1x12x128xbf16> to vector<12x128xbf16>
    %cst_10 = arith.constant dense<0.000000e+00> : vector<1056x128xf32>
    %9 = tpu.matmul %6, %8, %cst_10 {dimension_numbers = #tpu.dot_dimension_numbers<[1], [0], [0], [1], [0, 0, 1, 1], [], []>} : vector<1056x12xbf16>, vector<12x128xbf16>, vector<1056x128xf32> -> vector<1056x128xf32>
    %10 = arith.addf %4, %9 : vector<1056x128xf32>
    %c0_11 = arith.constant 0 : index
    %c33 = arith.constant 33 : index
    %c0_12 = arith.constant 0 : index
    %11 = vector.load %arg2[%c0_11, %c33, %c0_12] : memref<1x1122x12xbf16, #tpu.memory_space<vmem>>, vector<1x1056x12xbf16>
    %12 = vector.shape_cast %11 : vector<1x1056x12xbf16> to vector<1056x12xbf16>
    %c2 = arith.constant 2 : index
    %c0_13 = arith.constant 0 : index
    %c0_14 = arith.constant 0 : index
    %13 = vector.load %arg3[%c2, %c0_13, %c0_14] : memref<4x12x128xbf16, #tpu.memory_space<vmem>>, vector<1x12x128xbf16>
    %14 = vector.shape_cast %13 : vector<1x12x128xbf16> to vector<12x128xbf16>
    %cst_15 = arith.constant dense<0.000000e+00> : vector<1056x128xf32>
    %15 = tpu.matmul %12, %14, %cst_15 {dimension_numbers = #tpu.dot_dimension_numbers<[1], [0], [0], [1], [0, 0, 1, 1], [], []>} : vector<1056x12xbf16>, vector<12x128xbf16>, vector<1056x128xf32> -> vector<1056x128xf32>
    %16 = arith.addf %10, %15 : vector<1056x128xf32>
    %c0_16 = arith.constant 0 : index
    %c34 = arith.constant 34 : index
    %c0_17 = arith.constant 0 : index
    %17 = vector.load %arg2[%c0_16, %c34, %c0_17] : memref<1x1122x12xbf16, #tpu.memory_space<vmem>>, vector<1x1056x12xbf16>
    %18 = vector.shape_cast %17 : vector<1x1056x12xbf16> to vector<1056x12xbf16>
    %c3 = arith.constant 3 : index
    %c0_18 = arith.constant 0 : index
    %c0_19 = arith.constant 0 : index
    %19 = vector.load %arg3[%c3, %c0_18, %c0_19] : memref<4x12x128xbf16, #tpu.memory_space<vmem>>, vector<1x12x128xbf16>
    %20 = vector.shape_cast %19 : vector<1x12x128xbf16> to vector<12x128xbf16>
    %cst_20 = arith.constant dense<0.000000e+00> : vector<1056x128xf32>
    %21 = tpu.matmul %18, %20, %cst_20 {dimension_numbers = #tpu.dot_dimension_numbers<[1], [0], [0], [1], [0, 0, 1, 1], [], []>} : vector<1056x12xbf16>, vector<12x128xbf16>, vector<1056x128xf32> -> vector<1056x128xf32>
    %22 = arith.addf %16, %21 : vector<1056x128xf32>
    %c0_21 = arith.constant 0 : index
    %c0_22 = arith.constant 0 : index
    %23 = vector.load %arg4[%c0_21, %c0_22] : memref<1x128xf32, #tpu.memory_space<vmem>>, vector<1x128xf32>
    %24 = vector.broadcast %23 : vector<1x128xf32> to vector<1056x128xf32>
    %25 = arith.addf %22, %24 : vector<1056x128xf32>
    %cst_23 = arith.constant 0.000000e+00 : f32
    %26 = vector.broadcast %cst_23 : f32 to vector<1056x128xf32>
    %27 = arith.cmpf ogt, %25, %26 : vector<1056x128xf32>
    %cst_24 = arith.constant 2.000000e-01 : f32
    %28 = vector.broadcast %cst_24 : f32 to vector<1056x128xf32>
    %29 = arith.mulf %28, %25 : vector<1056x128xf32>
    %30 = arith.select %27, %25, %29 : vector<1056x128xi1>, vector<1056x128xf32>
    %31 = arith.truncf %30 : vector<1056x128xf32> to vector<1056x128xbf16>
    %c0_25 = arith.constant 0 : index
    %c0_26 = arith.constant 0 : index
    %c0_27 = arith.constant 0 : index
    %32 = vector.load %arg5[%c0_25, %c0_26, %c0_27] : memref<1x1056x128xbf16, #tpu.memory_space<vmem>>, vector<1x1056x128xbf16>
    %33 = vector.shape_cast %32 : vector<1x1056x128xbf16> to vector<1056x128xbf16>
    %34 = vector.shape_cast %31 : vector<1056x128xbf16> to vector<1x1056x128xbf16>
    tpu.vector_store %arg5[%c0_25, %c0_26, %c0_27], %34 {strides = array<i32>} : memref<1x1056x128xbf16, #tpu.memory_space<vmem>>, vector<1x1056x128xbf16>,
    return
  }
  func.func @transform_0(%arg0: i32, %arg1: i32) -> (i32, i32, i32) {
    %c0_i32 = arith.constant 0 : i32
    %c0_i32_0 = arith.constant 0 : i32
    %c0_i32_1 = arith.constant 0 : i32
    return %arg1, %c0_i32, %c0_i32_0 : i32, i32, i32
  }
  func.func @transform_1(%arg0: i32, %arg1: i32) -> (i32, i32, i32) {
    %c0_i32 = arith.constant 0 : i32
    %c0_i32_0 = arith.constant 0 : i32
    %c0_i32_1 = arith.constant 0 : i32
    return %c0_i32, %c0_i32_0, %arg0 : i32, i32, i32
  }
  func.func @transform_2(%arg0: i32, %arg1: i32) -> (i32, i32) {
    %c0_i32 = arith.constant 0 : i32
    %c0_i32_0 = arith.constant 0 : i32
    return %c0_i32, %arg0 : i32, i32
  }
  func.func @transform_3(%arg0: i32, %arg1: i32) -> (i32, i32, i32) {
    %c0_i32 = arith.constant 0 : i32
    %c0_i32_0 = arith.constant 0 : i32
    return %arg1, %c0_i32, %arg0 : i32, i32, i32
  }
}

module attributes {stable_mosaic.version = 11 : i64} {
  func.func @kernel(%arg0: i32, %arg1: i32, %arg2: memref<1x306x32xbf16, #tpu.memory_space<vmem>>, %arg3: memref<4x32x128xbf16, #tpu.memory_space<vmem>>, %arg4: memref<1x128xf32, #tpu.memory_space<vmem>>, %arg5: memref<1x272x128xbf16, #tpu.memory_space<vmem>>) attributes {dimension_semantics = [#tpu.dimension_semantics<parallel>, #tpu.dimension_semantics<parallel>], iteration_bounds = array<i64: 1, 2>, scalar_prefetch = 0 : i64, scratch_operands = 0 : i64, tpu.core_type = #tpu.core_type<tc>, window_params = [{transform_indices = @transform_0, window_bounds = array<i64: 1, 306, 32>}, {transform_indices = @transform_1, window_bounds = array<i64: 4, 32, 128>}, {transform_indices = @transform_2, window_bounds = array<i64: 1, 128>}, {transform_indices = @transform_3, window_bounds = array<i64: 1, 272, 128>}]} {
    %c0 = arith.constant 0 : index
    %c0_0 = arith.constant 0 : index
    %c0_1 = arith.constant 0 : index
    %0 = vector.load %arg2[%c0, %c0_0, %c0_1] : memref<1x306x32xbf16, #tpu.memory_space<vmem>>, vector<1x272x32xbf16>
    %1 = vector.shape_cast %0 : vector<1x272x32xbf16> to vector<272x32xbf16>
    %c0_2 = arith.constant 0 : index
    %c0_3 = arith.constant 0 : index
    %c0_4 = arith.constant 0 : index
    %2 = vector.load %arg3[%c0_2, %c0_3, %c0_4] : memref<4x32x128xbf16, #tpu.memory_space<vmem>>, vector<1x32x128xbf16>
    %3 = vector.shape_cast %2 : vector<1x32x128xbf16> to vector<32x128xbf16>
    %cst = arith.constant dense<0.000000e+00> : vector<272x128xf32>
    %4 = tpu.matmul %1, %3, %cst {dimension_numbers = #tpu.dot_dimension_numbers<[1], [0], [0], [1], [0, 0, 1, 1], [], []>} : vector<272x32xbf16>, vector<32x128xbf16>, vector<272x128xf32> -> vector<272x128xf32>
    %c0_5 = arith.constant 0 : index
    %c1 = arith.constant 1 : index
    %c0_6 = arith.constant 0 : index
    %5 = vector.load %arg2[%c0_5, %c1, %c0_6] : memref<1x306x32xbf16, #tpu.memory_space<vmem>>, vector<1x272x32xbf16>
    %6 = vector.shape_cast %5 : vector<1x272x32xbf16> to vector<272x32xbf16>
    %c1_7 = arith.constant 1 : index
    %c0_8 = arith.constant 0 : index
    %c0_9 = arith.constant 0 : index
    %7 = vector.load %arg3[%c1_7, %c0_8, %c0_9] : memref<4x32x128xbf16, #tpu.memory_space<vmem>>, vector<1x32x128xbf16>
    %8 = vector.shape_cast %7 : vector<1x32x128xbf16> to vector<32x128xbf16>
    %cst_10 = arith.constant dense<0.000000e+00> : vector<272x128xf32>
    %9 = tpu.matmul %6, %8, %cst_10 {dimension_numbers = #tpu.dot_dimension_numbers<[1], [0], [0], [1], [0, 0, 1, 1], [], []>} : vector<272x32xbf16>, vector<32x128xbf16>, vector<272x128xf32> -> vector<272x128xf32>
    %10 = arith.addf %4, %9 : vector<272x128xf32>
    %c0_11 = arith.constant 0 : index
    %c17 = arith.constant 17 : index
    %c0_12 = arith.constant 0 : index
    %11 = vector.load %arg2[%c0_11, %c17, %c0_12] : memref<1x306x32xbf16, #tpu.memory_space<vmem>>, vector<1x272x32xbf16>
    %12 = vector.shape_cast %11 : vector<1x272x32xbf16> to vector<272x32xbf16>
    %c2 = arith.constant 2 : index
    %c0_13 = arith.constant 0 : index
    %c0_14 = arith.constant 0 : index
    %13 = vector.load %arg3[%c2, %c0_13, %c0_14] : memref<4x32x128xbf16, #tpu.memory_space<vmem>>, vector<1x32x128xbf16>
    %14 = vector.shape_cast %13 : vector<1x32x128xbf16> to vector<32x128xbf16>
    %cst_15 = arith.constant dense<0.000000e+00> : vector<272x128xf32>
    %15 = tpu.matmul %12, %14, %cst_15 {dimension_numbers = #tpu.dot_dimension_numbers<[1], [0], [0], [1], [0, 0, 1, 1], [], []>} : vector<272x32xbf16>, vector<32x128xbf16>, vector<272x128xf32> -> vector<272x128xf32>
    %16 = arith.addf %10, %15 : vector<272x128xf32>
    %c0_16 = arith.constant 0 : index
    %c18 = arith.constant 18 : index
    %c0_17 = arith.constant 0 : index
    %17 = vector.load %arg2[%c0_16, %c18, %c0_17] : memref<1x306x32xbf16, #tpu.memory_space<vmem>>, vector<1x272x32xbf16>
    %18 = vector.shape_cast %17 : vector<1x272x32xbf16> to vector<272x32xbf16>
    %c3 = arith.constant 3 : index
    %c0_18 = arith.constant 0 : index
    %c0_19 = arith.constant 0 : index
    %19 = vector.load %arg3[%c3, %c0_18, %c0_19] : memref<4x32x128xbf16, #tpu.memory_space<vmem>>, vector<1x32x128xbf16>
    %20 = vector.shape_cast %19 : vector<1x32x128xbf16> to vector<32x128xbf16>
    %cst_20 = arith.constant dense<0.000000e+00> : vector<272x128xf32>
    %21 = tpu.matmul %18, %20, %cst_20 {dimension_numbers = #tpu.dot_dimension_numbers<[1], [0], [0], [1], [0, 0, 1, 1], [], []>} : vector<272x32xbf16>, vector<32x128xbf16>, vector<272x128xf32> -> vector<272x128xf32>
    %22 = arith.addf %16, %21 : vector<272x128xf32>
    %c0_21 = arith.constant 0 : index
    %c0_22 = arith.constant 0 : index
    %23 = vector.load %arg4[%c0_21, %c0_22] : memref<1x128xf32, #tpu.memory_space<vmem>>, vector<1x128xf32>
    %24 = vector.broadcast %23 : vector<1x128xf32> to vector<272x128xf32>
    %25 = arith.addf %22, %24 : vector<272x128xf32>
    %cst_23 = arith.constant 0.000000e+00 : f32
    %26 = vector.broadcast %cst_23 : f32 to vector<272x128xf32>
    %27 = arith.cmpf ogt, %25, %26 : vector<272x128xf32>
    %cst_24 = arith.constant 2.000000e-01 : f32
    %28 = vector.broadcast %cst_24 : f32 to vector<272x128xf32>
    %29 = arith.mulf %28, %25 : vector<272x128xf32>
    %30 = arith.select %27, %25, %29 : vector<272x128xi1>, vector<272x128xf32>
    %31 = arith.truncf %30 : vector<272x128xf32> to vector<272x128xbf16>
    %c0_25 = arith.constant 0 : index
    %c0_26 = arith.constant 0 : index
    %c0_27 = arith.constant 0 : index
    %32 = vector.load %arg5[%c0_25, %c0_26, %c0_27] : memref<1x272x128xbf16, #tpu.memory_space<vmem>>, vector<1x272x128xbf16>
    %33 = vector.shape_cast %32 : vector<1x272x128xbf16> to vector<272x128xbf16>
    %34 = vector.shape_cast %31 : vector<272x128xbf16> to vector<1x272x128xbf16>
    tpu.vector_store %arg5[%c0_25, %c0_26, %c0_27], %34 {strides = array<i32>} : memref<1x272x128xbf16, #tpu.memory_space<vmem>>, vector<1x272x128xbf16>,
    return
  }
  func.func @transform_0(%arg0: i32, %arg1: i32) -> (i32, i32, i32) {
    %c0_i32 = arith.constant 0 : i32
    %c0_i32_0 = arith.constant 0 : i32
    %c0_i32_1 = arith.constant 0 : i32
    return %arg1, %c0_i32, %c0_i32_0 : i32, i32, i32
  }
  func.func @transform_1(%arg0: i32, %arg1: i32) -> (i32, i32, i32) {
    %c0_i32 = arith.constant 0 : i32
    %c0_i32_0 = arith.constant 0 : i32
    %c0_i32_1 = arith.constant 0 : i32
    return %c0_i32, %c0_i32_0, %arg0 : i32, i32, i32
  }
  func.func @transform_2(%arg0: i32, %arg1: i32) -> (i32, i32) {
    %c0_i32 = arith.constant 0 : i32
    %c0_i32_0 = arith.constant 0 : i32
    return %c0_i32, %arg0 : i32, i32
  }
  func.func @transform_3(%arg0: i32, %arg1: i32) -> (i32, i32, i32) {
    %c0_i32 = arith.constant 0 : i32
    %c0_i32_0 = arith.constant 0 : i32
    return %arg1, %c0_i32, %arg0 : i32, i32, i32
  }
}

module attributes {stable_mosaic.version = 11 : i64} {
  func.func @kernel(%arg0: i32, %arg1: i32, %arg2: memref<1x90x64xbf16, #tpu.memory_space<vmem>>, %arg3: memref<4x64x128xbf16, #tpu.memory_space<vmem>>, %arg4: memref<1x128xf32, #tpu.memory_space<vmem>>, %arg5: memref<1x72x128xbf16, #tpu.memory_space<vmem>>) attributes {dimension_semantics = [#tpu.dimension_semantics<parallel>, #tpu.dimension_semantics<parallel>], iteration_bounds = array<i64: 1, 2>, scalar_prefetch = 0 : i64, scratch_operands = 0 : i64, tpu.core_type = #tpu.core_type<tc>, window_params = [{transform_indices = @transform_0, window_bounds = array<i64: 1, 90, 64>}, {transform_indices = @transform_1, window_bounds = array<i64: 4, 64, 128>}, {transform_indices = @transform_2, window_bounds = array<i64: 1, 128>}, {transform_indices = @transform_3, window_bounds = array<i64: 1, 72, 128>}]} {
    %c0 = arith.constant 0 : index
    %c0_0 = arith.constant 0 : index
    %c0_1 = arith.constant 0 : index
    %0 = vector.load %arg2[%c0, %c0_0, %c0_1] : memref<1x90x64xbf16, #tpu.memory_space<vmem>>, vector<1x72x64xbf16>
    %1 = vector.shape_cast %0 : vector<1x72x64xbf16> to vector<72x64xbf16>
    %c0_2 = arith.constant 0 : index
    %c0_3 = arith.constant 0 : index
    %c0_4 = arith.constant 0 : index
    %2 = vector.load %arg3[%c0_2, %c0_3, %c0_4] : memref<4x64x128xbf16, #tpu.memory_space<vmem>>, vector<1x64x128xbf16>
    %3 = vector.shape_cast %2 : vector<1x64x128xbf16> to vector<64x128xbf16>
    %cst = arith.constant dense<0.000000e+00> : vector<72x128xf32>
    %4 = tpu.matmul %1, %3, %cst {dimension_numbers = #tpu.dot_dimension_numbers<[1], [0], [0], [1], [0, 0, 1, 1], [], []>} : vector<72x64xbf16>, vector<64x128xbf16>, vector<72x128xf32> -> vector<72x128xf32>
    %c0_5 = arith.constant 0 : index
    %c1 = arith.constant 1 : index
    %c0_6 = arith.constant 0 : index
    %5 = vector.load %arg2[%c0_5, %c1, %c0_6] : memref<1x90x64xbf16, #tpu.memory_space<vmem>>, vector<1x72x64xbf16>
    %6 = vector.shape_cast %5 : vector<1x72x64xbf16> to vector<72x64xbf16>
    %c1_7 = arith.constant 1 : index
    %c0_8 = arith.constant 0 : index
    %c0_9 = arith.constant 0 : index
    %7 = vector.load %arg3[%c1_7, %c0_8, %c0_9] : memref<4x64x128xbf16, #tpu.memory_space<vmem>>, vector<1x64x128xbf16>
    %8 = vector.shape_cast %7 : vector<1x64x128xbf16> to vector<64x128xbf16>
    %cst_10 = arith.constant dense<0.000000e+00> : vector<72x128xf32>
    %9 = tpu.matmul %6, %8, %cst_10 {dimension_numbers = #tpu.dot_dimension_numbers<[1], [0], [0], [1], [0, 0, 1, 1], [], []>} : vector<72x64xbf16>, vector<64x128xbf16>, vector<72x128xf32> -> vector<72x128xf32>
    %10 = arith.addf %4, %9 : vector<72x128xf32>
    %c0_11 = arith.constant 0 : index
    %c9 = arith.constant 9 : index
    %c0_12 = arith.constant 0 : index
    %11 = vector.load %arg2[%c0_11, %c9, %c0_12] : memref<1x90x64xbf16, #tpu.memory_space<vmem>>, vector<1x72x64xbf16>
    %12 = vector.shape_cast %11 : vector<1x72x64xbf16> to vector<72x64xbf16>
    %c2 = arith.constant 2 : index
    %c0_13 = arith.constant 0 : index
    %c0_14 = arith.constant 0 : index
    %13 = vector.load %arg3[%c2, %c0_13, %c0_14] : memref<4x64x128xbf16, #tpu.memory_space<vmem>>, vector<1x64x128xbf16>
    %14 = vector.shape_cast %13 : vector<1x64x128xbf16> to vector<64x128xbf16>
    %cst_15 = arith.constant dense<0.000000e+00> : vector<72x128xf32>
    %15 = tpu.matmul %12, %14, %cst_15 {dimension_numbers = #tpu.dot_dimension_numbers<[1], [0], [0], [1], [0, 0, 1, 1], [], []>} : vector<72x64xbf16>, vector<64x128xbf16>, vector<72x128xf32> -> vector<72x128xf32>
    %16 = arith.addf %10, %15 : vector<72x128xf32>
    %c0_16 = arith.constant 0 : index
    %c10 = arith.constant 10 : index
    %c0_17 = arith.constant 0 : index
    %17 = vector.load %arg2[%c0_16, %c10, %c0_17] : memref<1x90x64xbf16, #tpu.memory_space<vmem>>, vector<1x72x64xbf16>
    %18 = vector.shape_cast %17 : vector<1x72x64xbf16> to vector<72x64xbf16>
    %c3 = arith.constant 3 : index
    %c0_18 = arith.constant 0 : index
    %c0_19 = arith.constant 0 : index
    %19 = vector.load %arg3[%c3, %c0_18, %c0_19] : memref<4x64x128xbf16, #tpu.memory_space<vmem>>, vector<1x64x128xbf16>
    %20 = vector.shape_cast %19 : vector<1x64x128xbf16> to vector<64x128xbf16>
    %cst_20 = arith.constant dense<0.000000e+00> : vector<72x128xf32>
    %21 = tpu.matmul %18, %20, %cst_20 {dimension_numbers = #tpu.dot_dimension_numbers<[1], [0], [0], [1], [0, 0, 1, 1], [], []>} : vector<72x64xbf16>, vector<64x128xbf16>, vector<72x128xf32> -> vector<72x128xf32>
    %22 = arith.addf %16, %21 : vector<72x128xf32>
    %c0_21 = arith.constant 0 : index
    %c0_22 = arith.constant 0 : index
    %23 = vector.load %arg4[%c0_21, %c0_22] : memref<1x128xf32, #tpu.memory_space<vmem>>, vector<1x128xf32>
    %24 = vector.broadcast %23 : vector<1x128xf32> to vector<72x128xf32>
    %25 = arith.addf %22, %24 : vector<72x128xf32>
    %cst_23 = arith.constant 0.000000e+00 : f32
    %26 = vector.broadcast %cst_23 : f32 to vector<72x128xf32>
    %27 = arith.cmpf ogt, %25, %26 : vector<72x128xf32>
    %cst_24 = arith.constant 2.000000e-01 : f32
    %28 = vector.broadcast %cst_24 : f32 to vector<72x128xf32>
    %29 = arith.mulf %28, %25 : vector<72x128xf32>
    %30 = arith.select %27, %25, %29 : vector<72x128xi1>, vector<72x128xf32>
    %31 = arith.truncf %30 : vector<72x128xf32> to vector<72x128xbf16>
    %c0_25 = arith.constant 0 : index
    %c0_26 = arith.constant 0 : index
    %c0_27 = arith.constant 0 : index
    %32 = vector.load %arg5[%c0_25, %c0_26, %c0_27] : memref<1x72x128xbf16, #tpu.memory_space<vmem>>, vector<1x72x128xbf16>
    %33 = vector.shape_cast %32 : vector<1x72x128xbf16> to vector<72x128xbf16>
    %34 = vector.shape_cast %31 : vector<72x128xbf16> to vector<1x72x128xbf16>
    tpu.vector_store %arg5[%c0_25, %c0_26, %c0_27], %34 {strides = array<i32>} : memref<1x72x128xbf16, #tpu.memory_space<vmem>>, vector<1x72x128xbf16>,
    return
  }
  func.func @transform_0(%arg0: i32, %arg1: i32) -> (i32, i32, i32) {
    %c0_i32 = arith.constant 0 : i32
    %c0_i32_0 = arith.constant 0 : i32
    %c0_i32_1 = arith.constant 0 : i32
    return %arg1, %c0_i32, %c0_i32_0 : i32, i32, i32
  }
  func.func @transform_1(%arg0: i32, %arg1: i32) -> (i32, i32, i32) {
    %c0_i32 = arith.constant 0 : i32
    %c0_i32_0 = arith.constant 0 : i32
    %c0_i32_1 = arith.constant 0 : i32
    return %c0_i32, %c0_i32_0, %arg0 : i32, i32, i32
  }
  func.func @transform_2(%arg0: i32, %arg1: i32) -> (i32, i32) {
    %c0_i32 = arith.constant 0 : i32
    %c0_i32_0 = arith.constant 0 : i32
    return %c0_i32, %arg0 : i32, i32
  }
  func.func @transform_3(%arg0: i32, %arg1: i32) -> (i32, i32, i32) {
    %c0_i32 = arith.constant 0 : i32
    %c0_i32_0 = arith.constant 0 : i32
    return %arg1, %c0_i32, %arg0 : i32, i32, i32
  }
}

module attributes {stable_mosaic.version = 11 : i64} {
  func.func @kernel(%arg0: i32, %arg1: i32, %arg2: memref<1x30x128xbf16, #tpu.memory_space<vmem>>, %arg3: memref<4x128x128xbf16, #tpu.memory_space<vmem>>, %arg4: memref<1x128xf32, #tpu.memory_space<vmem>>, %arg5: memref<1x20x128xbf16, #tpu.memory_space<vmem>>) attributes {dimension_semantics = [#tpu.dimension_semantics<parallel>, #tpu.dimension_semantics<parallel>], iteration_bounds = array<i64: 1, 2>, scalar_prefetch = 0 : i64, scratch_operands = 0 : i64, tpu.core_type = #tpu.core_type<tc>, window_params = [{transform_indices = @transform_0, window_bounds = array<i64: 1, 30, 128>}, {transform_indices = @transform_1, window_bounds = array<i64: 4, 128, 128>}, {transform_indices = @transform_2, window_bounds = array<i64: 1, 128>}, {transform_indices = @transform_3, window_bounds = array<i64: 1, 20, 128>}]} {
    %c0 = arith.constant 0 : index
    %c0_0 = arith.constant 0 : index
    %c0_1 = arith.constant 0 : index
    %0 = vector.load %arg2[%c0, %c0_0, %c0_1] : memref<1x30x128xbf16, #tpu.memory_space<vmem>>, vector<1x20x128xbf16>
    %1 = vector.shape_cast %0 : vector<1x20x128xbf16> to vector<20x128xbf16>
    %c0_2 = arith.constant 0 : index
    %c0_3 = arith.constant 0 : index
    %c0_4 = arith.constant 0 : index
    %2 = vector.load %arg3[%c0_2, %c0_3, %c0_4] : memref<4x128x128xbf16, #tpu.memory_space<vmem>>, vector<1x128x128xbf16>
    %3 = vector.shape_cast %2 : vector<1x128x128xbf16> to vector<128x128xbf16>
    %cst = arith.constant dense<0.000000e+00> : vector<20x128xf32>
    %4 = tpu.matmul %1, %3, %cst {dimension_numbers = #tpu.dot_dimension_numbers<[1], [0], [0], [1], [0, 0, 1, 1], [], []>} : vector<20x128xbf16>, vector<128x128xbf16>, vector<20x128xf32> -> vector<20x128xf32>
    %c0_5 = arith.constant 0 : index
    %c1 = arith.constant 1 : index
    %c0_6 = arith.constant 0 : index
    %5 = vector.load %arg2[%c0_5, %c1, %c0_6] : memref<1x30x128xbf16, #tpu.memory_space<vmem>>, vector<1x20x128xbf16>
    %6 = vector.shape_cast %5 : vector<1x20x128xbf16> to vector<20x128xbf16>
    %c1_7 = arith.constant 1 : index
    %c0_8 = arith.constant 0 : index
    %c0_9 = arith.constant 0 : index
    %7 = vector.load %arg3[%c1_7, %c0_8, %c0_9] : memref<4x128x128xbf16, #tpu.memory_space<vmem>>, vector<1x128x128xbf16>
    %8 = vector.shape_cast %7 : vector<1x128x128xbf16> to vector<128x128xbf16>
    %cst_10 = arith.constant dense<0.000000e+00> : vector<20x128xf32>
    %9 = tpu.matmul %6, %8, %cst_10 {dimension_numbers = #tpu.dot_dimension_numbers<[1], [0], [0], [1], [0, 0, 1, 1], [], []>} : vector<20x128xbf16>, vector<128x128xbf16>, vector<20x128xf32> -> vector<20x128xf32>
    %10 = arith.addf %4, %9 : vector<20x128xf32>
    %c0_11 = arith.constant 0 : index
    %c5 = arith.constant 5 : index
    %c0_12 = arith.constant 0 : index
    %11 = vector.load %arg2[%c0_11, %c5, %c0_12] : memref<1x30x128xbf16, #tpu.memory_space<vmem>>, vector<1x20x128xbf16>
    %12 = vector.shape_cast %11 : vector<1x20x128xbf16> to vector<20x128xbf16>
    %c2 = arith.constant 2 : index
    %c0_13 = arith.constant 0 : index
    %c0_14 = arith.constant 0 : index
    %13 = vector.load %arg3[%c2, %c0_13, %c0_14] : memref<4x128x128xbf16, #tpu.memory_space<vmem>>, vector<1x128x128xbf16>
    %14 = vector.shape_cast %13 : vector<1x128x128xbf16> to vector<128x128xbf16>
    %cst_15 = arith.constant dense<0.000000e+00> : vector<20x128xf32>
    %15 = tpu.matmul %12, %14, %cst_15 {dimension_numbers = #tpu.dot_dimension_numbers<[1], [0], [0], [1], [0, 0, 1, 1], [], []>} : vector<20x128xbf16>, vector<128x128xbf16>, vector<20x128xf32> -> vector<20x128xf32>
    %16 = arith.addf %10, %15 : vector<20x128xf32>
    %c0_16 = arith.constant 0 : index
    %c6 = arith.constant 6 : index
    %c0_17 = arith.constant 0 : index
    %17 = vector.load %arg2[%c0_16, %c6, %c0_17] : memref<1x30x128xbf16, #tpu.memory_space<vmem>>, vector<1x20x128xbf16>
    %18 = vector.shape_cast %17 : vector<1x20x128xbf16> to vector<20x128xbf16>
    %c3 = arith.constant 3 : index
    %c0_18 = arith.constant 0 : index
    %c0_19 = arith.constant 0 : index
    %19 = vector.load %arg3[%c3, %c0_18, %c0_19] : memref<4x128x128xbf16, #tpu.memory_space<vmem>>, vector<1x128x128xbf16>
    %20 = vector.shape_cast %19 : vector<1x128x128xbf16> to vector<128x128xbf16>
    %cst_20 = arith.constant dense<0.000000e+00> : vector<20x128xf32>
    %21 = tpu.matmul %18, %20, %cst_20 {dimension_numbers = #tpu.dot_dimension_numbers<[1], [0], [0], [1], [0, 0, 1, 1], [], []>} : vector<20x128xbf16>, vector<128x128xbf16>, vector<20x128xf32> -> vector<20x128xf32>
    %22 = arith.addf %16, %21 : vector<20x128xf32>
    %c0_21 = arith.constant 0 : index
    %c0_22 = arith.constant 0 : index
    %23 = vector.load %arg4[%c0_21, %c0_22] : memref<1x128xf32, #tpu.memory_space<vmem>>, vector<1x128xf32>
    %24 = vector.broadcast %23 : vector<1x128xf32> to vector<20x128xf32>
    %25 = arith.addf %22, %24 : vector<20x128xf32>
    %cst_23 = arith.constant 0.000000e+00 : f32
    %26 = vector.broadcast %cst_23 : f32 to vector<20x128xf32>
    %27 = arith.cmpf ogt, %25, %26 : vector<20x128xf32>
    %cst_24 = arith.constant 2.000000e-01 : f32
    %28 = vector.broadcast %cst_24 : f32 to vector<20x128xf32>
    %29 = arith.mulf %28, %25 : vector<20x128xf32>
    %30 = arith.select %27, %25, %29 : vector<20x128xi1>, vector<20x128xf32>
    %31 = arith.truncf %30 : vector<20x128xf32> to vector<20x128xbf16>
    %c0_25 = arith.constant 0 : index
    %c0_26 = arith.constant 0 : index
    %c0_27 = arith.constant 0 : index
    %32 = vector.load %arg5[%c0_25, %c0_26, %c0_27] : memref<1x20x128xbf16, #tpu.memory_space<vmem>>, vector<1x20x128xbf16>
    %33 = vector.shape_cast %32 : vector<1x20x128xbf16> to vector<20x128xbf16>
    %34 = vector.shape_cast %31 : vector<20x128xbf16> to vector<1x20x128xbf16>
    tpu.vector_store %arg5[%c0_25, %c0_26, %c0_27], %34 {strides = array<i32>} : memref<1x20x128xbf16, #tpu.memory_space<vmem>>, vector<1x20x128xbf16>,
    return
  }
  func.func @transform_0(%arg0: i32, %arg1: i32) -> (i32, i32, i32) {
    %c0_i32 = arith.constant 0 : i32
    %c0_i32_0 = arith.constant 0 : i32
    %c0_i32_1 = arith.constant 0 : i32
    return %arg1, %c0_i32, %c0_i32_0 : i32, i32, i32
  }
  func.func @transform_1(%arg0: i32, %arg1: i32) -> (i32, i32, i32) {
    %c0_i32 = arith.constant 0 : i32
    %c0_i32_0 = arith.constant 0 : i32
    %c0_i32_1 = arith.constant 0 : i32
    return %c0_i32, %c0_i32_0, %arg0 : i32, i32, i32
  }
  func.func @transform_2(%arg0: i32, %arg1: i32) -> (i32, i32) {
    %c0_i32 = arith.constant 0 : i32
    %c0_i32_0 = arith.constant 0 : i32
    return %c0_i32, %arg0 : i32, i32
  }
  func.func @transform_3(%arg0: i32, %arg1: i32) -> (i32, i32, i32) {
    %c0_i32 = arith.constant 0 : i32
    %c0_i32_0 = arith.constant 0 : i32
    return %arg1, %c0_i32, %arg0 : i32, i32, i32
  }
}

module attributes {stable_mosaic.version = 11 : i64} {
  func.func @kernel(%arg0: i32, %arg1: i32, %arg2: memref<1x24x128xbf16, #tpu.memory_space<vmem>>, %arg3: memref<9x128x128xbf16, #tpu.memory_space<vmem>>, %arg4: memref<1x128xf32, #tpu.memory_space<vmem>>, %arg5: memref<1x8x128xf32, #tpu.memory_space<vmem>>) attributes {dimension_semantics = [#tpu.dimension_semantics<parallel>, #tpu.dimension_semantics<parallel>], iteration_bounds = array<i64: 1, 2>, scalar_prefetch = 0 : i64, scratch_operands = 0 : i64, tpu.core_type = #tpu.core_type<tc>, window_params = [{transform_indices = @transform_0, window_bounds = array<i64: 1, 24, 128>}, {transform_indices = @transform_1, window_bounds = array<i64: 9, 128, 128>}, {transform_indices = @transform_2, window_bounds = array<i64: 1, 128>}, {transform_indices = @transform_3, window_bounds = array<i64: 1, 8, 128>}]} {
    %c0 = arith.constant 0 : index
    %c0_0 = arith.constant 0 : index
    %c0_1 = arith.constant 0 : index
    %0 = vector.load %arg2[%c0, %c0_0, %c0_1] : memref<1x24x128xbf16, #tpu.memory_space<vmem>>, vector<1x8x128xbf16>
    %1 = vector.shape_cast %0 : vector<1x8x128xbf16> to vector<8x128xbf16>
    %c0_2 = arith.constant 0 : index
    %c0_3 = arith.constant 0 : index
    %c0_4 = arith.constant 0 : index
    %2 = vector.load %arg3[%c0_2, %c0_3, %c0_4] : memref<9x128x128xbf16, #tpu.memory_space<vmem>>, vector<1x128x128xbf16>
    %3 = vector.shape_cast %2 : vector<1x128x128xbf16> to vector<128x128xbf16>
    %cst = arith.constant dense<0.000000e+00> : vector<8x128xf32>
    %4 = tpu.matmul %1, %3, %cst {dimension_numbers = #tpu.dot_dimension_numbers<[1], [0], [0], [1], [0, 0, 1, 1], [], []>} : vector<8x128xbf16>, vector<128x128xbf16>, vector<8x128xf32> -> vector<8x128xf32>
    %c0_5 = arith.constant 0 : index
    %c1 = arith.constant 1 : index
    %c0_6 = arith.constant 0 : index
    %5 = vector.load %arg2[%c0_5, %c1, %c0_6] : memref<1x24x128xbf16, #tpu.memory_space<vmem>>, vector<1x8x128xbf16>
    %6 = vector.shape_cast %5 : vector<1x8x128xbf16> to vector<8x128xbf16>
    %c1_7 = arith.constant 1 : index
    %c0_8 = arith.constant 0 : index
    %c0_9 = arith.constant 0 : index
    %7 = vector.load %arg3[%c1_7, %c0_8, %c0_9] : memref<9x128x128xbf16, #tpu.memory_space<vmem>>, vector<1x128x128xbf16>
    %8 = vector.shape_cast %7 : vector<1x128x128xbf16> to vector<128x128xbf16>
    %cst_10 = arith.constant dense<0.000000e+00> : vector<8x128xf32>
    %9 = tpu.matmul %6, %8, %cst_10 {dimension_numbers = #tpu.dot_dimension_numbers<[1], [0], [0], [1], [0, 0, 1, 1], [], []>} : vector<8x128xbf16>, vector<128x128xbf16>, vector<8x128xf32> -> vector<8x128xf32>
    %10 = arith.addf %4, %9 : vector<8x128xf32>
    %c0_11 = arith.constant 0 : index
    %c2 = arith.constant 2 : index
    %c0_12 = arith.constant 0 : index
    %11 = vector.load %arg2[%c0_11, %c2, %c0_12] : memref<1x24x128xbf16, #tpu.memory_space<vmem>>, vector<1x8x128xbf16>
    %12 = vector.shape_cast %11 : vector<1x8x128xbf16> to vector<8x128xbf16>
    %c2_13 = arith.constant 2 : index
    %c0_14 = arith.constant 0 : index
    %c0_15 = arith.constant 0 : index
    %13 = vector.load %arg3[%c2_13, %c0_14, %c0_15] : memref<9x128x128xbf16, #tpu.memory_space<vmem>>, vector<1x128x128xbf16>
    %14 = vector.shape_cast %13 : vector<1x128x128xbf16> to vector<128x128xbf16>
    %cst_16 = arith.constant dense<0.000000e+00> : vector<8x128xf32>
    %15 = tpu.matmul %12, %14, %cst_16 {dimension_numbers = #tpu.dot_dimension_numbers<[1], [0], [0], [1], [0, 0, 1, 1], [], []>} : vector<8x128xbf16>, vector<128x128xbf16>, vector<8x128xf32> -> vector<8x128xf32>
    %16 = arith.addf %10, %15 : vector<8x128xf32>
    %c0_17 = arith.constant 0 : index
    %c4 = arith.constant 4 : index
    %c0_18 = arith.constant 0 : index
    %17 = vector.load %arg2[%c0_17, %c4, %c0_18] : memref<1x24x128xbf16, #tpu.memory_space<vmem>>, vector<1x8x128xbf16>
    %18 = vector.shape_cast %17 : vector<1x8x128xbf16> to vector<8x128xbf16>
    %c3 = arith.constant 3 : index
    %c0_19 = arith.constant 0 : index
    %c0_20 = arith.constant 0 : index
    %19 = vector.load %arg3[%c3, %c0_19, %c0_20] : memref<9x128x128xbf16, #tpu.memory_space<vmem>>, vector<1x128x128xbf16>
    %20 = vector.shape_cast %19 : vector<1x128x128xbf16> to vector<128x128xbf16>
    %cst_21 = arith.constant dense<0.000000e+00> : vector<8x128xf32>
    %21 = tpu.matmul %18, %20, %cst_21 {dimension_numbers = #tpu.dot_dimension_numbers<[1], [0], [0], [1], [0, 0, 1, 1], [], []>} : vector<8x128xbf16>, vector<128x128xbf16>, vector<8x128xf32> -> vector<8x128xf32>
    %22 = arith.addf %16, %21 : vector<8x128xf32>
    %c0_22 = arith.constant 0 : index
    %c5 = arith.constant 5 : index
    %c0_23 = arith.constant 0 : index
    %23 = vector.load %arg2[%c0_22, %c5, %c0_23] : memref<1x24x128xbf16, #tpu.memory_space<vmem>>, vector<1x8x128xbf16>
    %24 = vector.shape_cast %23 : vector<1x8x128xbf16> to vector<8x128xbf16>
    %c4_24 = arith.constant 4 : index
    %c0_25 = arith.constant 0 : index
    %c0_26 = arith.constant 0 : index
    %25 = vector.load %arg3[%c4_24, %c0_25, %c0_26] : memref<9x128x128xbf16, #tpu.memory_space<vmem>>, vector<1x128x128xbf16>
    %26 = vector.shape_cast %25 : vector<1x128x128xbf16> to vector<128x128xbf16>
    %cst_27 = arith.constant dense<0.000000e+00> : vector<8x128xf32>
    %27 = tpu.matmul %24, %26, %cst_27 {dimension_numbers = #tpu.dot_dimension_numbers<[1], [0], [0], [1], [0, 0, 1, 1], [], []>} : vector<8x128xbf16>, vector<128x128xbf16>, vector<8x128xf32> -> vector<8x128xf32>
    %28 = arith.addf %22, %27 : vector<8x128xf32>
    %c0_28 = arith.constant 0 : index
    %c6 = arith.constant 6 : index
    %c0_29 = arith.constant 0 : index
    %29 = vector.load %arg2[%c0_28, %c6, %c0_29] : memref<1x24x128xbf16, #tpu.memory_space<vmem>>, vector<1x8x128xbf16>
    %30 = vector.shape_cast %29 : vector<1x8x128xbf16> to vector<8x128xbf16>
    %c5_30 = arith.constant 5 : index
    %c0_31 = arith.constant 0 : index
    %c0_32 = arith.constant 0 : index
    %31 = vector.load %arg3[%c5_30, %c0_31, %c0_32] : memref<9x128x128xbf16, #tpu.memory_space<vmem>>, vector<1x128x128xbf16>
    %32 = vector.shape_cast %31 : vector<1x128x128xbf16> to vector<128x128xbf16>
    %cst_33 = arith.constant dense<0.000000e+00> : vector<8x128xf32>
    %33 = tpu.matmul %30, %32, %cst_33 {dimension_numbers = #tpu.dot_dimension_numbers<[1], [0], [0], [1], [0, 0, 1, 1], [], []>} : vector<8x128xbf16>, vector<128x128xbf16>, vector<8x128xf32> -> vector<8x128xf32>
    %34 = arith.addf %28, %33 : vector<8x128xf32>
    %c0_34 = arith.constant 0 : index
    %c8 = arith.constant 8 : index
    %c0_35 = arith.constant 0 : index
    %35 = vector.load %arg2[%c0_34, %c8, %c0_35] : memref<1x24x128xbf16, #tpu.memory_space<vmem>>, vector<1x8x128xbf16>
    %36 = vector.shape_cast %35 : vector<1x8x128xbf16> to vector<8x128xbf16>
    %c6_36 = arith.constant 6 : index
    %c0_37 = arith.constant 0 : index
    %c0_38 = arith.constant 0 : index
    %37 = vector.load %arg3[%c6_36, %c0_37, %c0_38] : memref<9x128x128xbf16, #tpu.memory_space<vmem>>, vector<1x128x128xbf16>
    %38 = vector.shape_cast %37 : vector<1x128x128xbf16> to vector<128x128xbf16>
    %cst_39 = arith.constant dense<0.000000e+00> : vector<8x128xf32>
    %39 = tpu.matmul %36, %38, %cst_39 {dimension_numbers = #tpu.dot_dimension_numbers<[1], [0], [0], [1], [0, 0, 1, 1], [], []>} : vector<8x128xbf16>, vector<128x128xbf16>, vector<8x128xf32> -> vector<8x128xf32>
    %40 = arith.addf %34, %39 : vector<8x128xf32>
    %c0_40 = arith.constant 0 : index
    %c9 = arith.constant 9 : index
    %c0_41 = arith.constant 0 : index
    %41 = vector.load %arg2[%c0_40, %c9, %c0_41] : memref<1x24x128xbf16, #tpu.memory_space<vmem>>, vector<1x8x128xbf16>
    %42 = vector.shape_cast %41 : vector<1x8x128xbf16> to vector<8x128xbf16>
    %c7 = arith.constant 7 : index
    %c0_42 = arith.constant 0 : index
    %c0_43 = arith.constant 0 : index
    %43 = vector.load %arg3[%c7, %c0_42, %c0_43] : memref<9x128x128xbf16, #tpu.memory_space<vmem>>, vector<1x128x128xbf16>
    %44 = vector.shape_cast %43 : vector<1x128x128xbf16> to vector<128x128xbf16>
    %cst_44 = arith.constant dense<0.000000e+00> : vector<8x128xf32>
    %45 = tpu.matmul %42, %44, %cst_44 {dimension_numbers = #tpu.dot_dimension_numbers<[1], [0], [0], [1], [0, 0, 1, 1], [], []>} : vector<8x128xbf16>, vector<128x128xbf16>, vector<8x128xf32> -> vector<8x128xf32>
    %46 = arith.addf %40, %45 : vector<8x128xf32>
    %c0_45 = arith.constant 0 : index
    %c10 = arith.constant 10 : index
    %c0_46 = arith.constant 0 : index
    %47 = vector.load %arg2[%c0_45, %c10, %c0_46] : memref<1x24x128xbf16, #tpu.memory_space<vmem>>, vector<1x8x128xbf16>
    %48 = vector.shape_cast %47 : vector<1x8x128xbf16> to vector<8x128xbf16>
    %c8_47 = arith.constant 8 : index
    %c0_48 = arith.constant 0 : index
    %c0_49 = arith.constant 0 : index
    %49 = vector.load %arg3[%c8_47, %c0_48, %c0_49] : memref<9x128x128xbf16, #tpu.memory_space<vmem>>, vector<1x128x128xbf16>
    %50 = vector.shape_cast %49 : vector<1x128x128xbf16> to vector<128x128xbf16>
    %cst_50 = arith.constant dense<0.000000e+00> : vector<8x128xf32>
    %51 = tpu.matmul %48, %50, %cst_50 {dimension_numbers = #tpu.dot_dimension_numbers<[1], [0], [0], [1], [0, 0, 1, 1], [], []>} : vector<8x128xbf16>, vector<128x128xbf16>, vector<8x128xf32> -> vector<8x128xf32>
    %52 = arith.addf %46, %51 : vector<8x128xf32>
    %c0_51 = arith.constant 0 : index
    %c0_52 = arith.constant 0 : index
    %53 = vector.load %arg4[%c0_51, %c0_52] : memref<1x128xf32, #tpu.memory_space<vmem>>, vector<1x128xf32>
    %54 = vector.broadcast %53 : vector<1x128xf32> to vector<8x128xf32>
    %55 = arith.addf %52, %54 : vector<8x128xf32>
    %cst_53 = arith.constant 0.000000e+00 : f32
    %56 = vector.broadcast %cst_53 : f32 to vector<8x128xf32>
    %57 = arith.cmpf ogt, %55, %56 : vector<8x128xf32>
    %cst_54 = arith.constant 2.000000e-01 : f32
    %58 = vector.broadcast %cst_54 : f32 to vector<8x128xf32>
    %59 = arith.mulf %58, %55 : vector<8x128xf32>
    %60 = arith.select %57, %55, %59 : vector<8x128xi1>, vector<8x128xf32>
    %c0_55 = arith.constant 0 : index
    %c0_56 = arith.constant 0 : index
    %c0_57 = arith.constant 0 : index
    %61 = vector.load %arg5[%c0_55, %c0_56, %c0_57] : memref<1x8x128xf32, #tpu.memory_space<vmem>>, vector<1x8x128xf32>
    %62 = vector.shape_cast %61 : vector<1x8x128xf32> to vector<8x128xf32>
    %63 = vector.shape_cast %60 : vector<8x128xf32> to vector<1x8x128xf32>
    tpu.vector_store %arg5[%c0_55, %c0_56, %c0_57], %63 {strides = array<i32>} : memref<1x8x128xf32, #tpu.memory_space<vmem>>, vector<1x8x128xf32>,
    return
  }
  func.func @transform_0(%arg0: i32, %arg1: i32) -> (i32, i32, i32) {
    %c0_i32 = arith.constant 0 : i32
    %c0_i32_0 = arith.constant 0 : i32
    %c0_i32_1 = arith.constant 0 : i32
    return %arg1, %c0_i32, %c0_i32_0 : i32, i32, i32
  }
  func.func @transform_1(%arg0: i32, %arg1: i32) -> (i32, i32, i32) {
    %c0_i32 = arith.constant 0 : i32
    %c0_i32_0 = arith.constant 0 : i32
    %c0_i32_1 = arith.constant 0 : i32
    return %c0_i32, %c0_i32_0, %arg0 : i32, i32, i32
  }
  func.func @transform_2(%arg0: i32, %arg1: i32) -> (i32, i32) {
    %c0_i32 = arith.constant 0 : i32
    %c0_i32_0 = arith.constant 0 : i32
    return %c0_i32, %arg0 : i32, i32
  }
  func.func @transform_3(%arg0: i32, %arg1: i32) -> (i32, i32, i32) {
    %c0_i32 = arith.constant 0 : i32
    %c0_i32_0 = arith.constant 0 : i32
    return %arg1, %c0_i32, %arg0 : i32, i32, i32
  }
}

module attributes {stable_mosaic.version = 11 : i64} {
  func.func @kernel(%arg0: i32, %arg1: i32, %arg2: memref<1x12x256xbf16, #tpu.memory_space<vmem>>, %arg3: memref<4x256x128xbf16, #tpu.memory_space<vmem>>, %arg4: memref<1x128xf32, #tpu.memory_space<vmem>>, %arg5: memref<1x6x128xbf16, #tpu.memory_space<vmem>>) attributes {dimension_semantics = [#tpu.dimension_semantics<parallel>, #tpu.dimension_semantics<parallel>], iteration_bounds = array<i64: 1, 2>, scalar_prefetch = 0 : i64, scratch_operands = 0 : i64, tpu.core_type = #tpu.core_type<tc>, window_params = [{transform_indices = @transform_0, window_bounds = array<i64: 1, 12, 256>}, {transform_indices = @transform_1, window_bounds = array<i64: 4, 256, 128>}, {transform_indices = @transform_2, window_bounds = array<i64: 1, 128>}, {transform_indices = @transform_3, window_bounds = array<i64: 1, 6, 128>}]} {
    %c0 = arith.constant 0 : index
    %c0_0 = arith.constant 0 : index
    %c0_1 = arith.constant 0 : index
    %0 = vector.load %arg2[%c0, %c0_0, %c0_1] : memref<1x12x256xbf16, #tpu.memory_space<vmem>>, vector<1x6x256xbf16>
    %1 = vector.shape_cast %0 : vector<1x6x256xbf16> to vector<6x256xbf16>
    %c0_2 = arith.constant 0 : index
    %c0_3 = arith.constant 0 : index
    %c0_4 = arith.constant 0 : index
    %2 = vector.load %arg3[%c0_2, %c0_3, %c0_4] : memref<4x256x128xbf16, #tpu.memory_space<vmem>>, vector<1x256x128xbf16>
    %3 = vector.shape_cast %2 : vector<1x256x128xbf16> to vector<256x128xbf16>
    %cst = arith.constant dense<0.000000e+00> : vector<6x128xf32>
    %4 = tpu.matmul %1, %3, %cst {dimension_numbers = #tpu.dot_dimension_numbers<[1], [0], [0], [1], [0, 0, 1, 1], [], []>} : vector<6x256xbf16>, vector<256x128xbf16>, vector<6x128xf32> -> vector<6x128xf32>
    %c0_5 = arith.constant 0 : index
    %c1 = arith.constant 1 : index
    %c0_6 = arith.constant 0 : index
    %5 = vector.load %arg2[%c0_5, %c1, %c0_6] : memref<1x12x256xbf16, #tpu.memory_space<vmem>>, vector<1x6x256xbf16>
    %6 = vector.shape_cast %5 : vector<1x6x256xbf16> to vector<6x256xbf16>
    %c1_7 = arith.constant 1 : index
    %c0_8 = arith.constant 0 : index
    %c0_9 = arith.constant 0 : index
    %7 = vector.load %arg3[%c1_7, %c0_8, %c0_9] : memref<4x256x128xbf16, #tpu.memory_space<vmem>>, vector<1x256x128xbf16>
    %8 = vector.shape_cast %7 : vector<1x256x128xbf16> to vector<256x128xbf16>
    %cst_10 = arith.constant dense<0.000000e+00> : vector<6x128xf32>
    %9 = tpu.matmul %6, %8, %cst_10 {dimension_numbers = #tpu.dot_dimension_numbers<[1], [0], [0], [1], [0, 0, 1, 1], [], []>} : vector<6x256xbf16>, vector<256x128xbf16>, vector<6x128xf32> -> vector<6x128xf32>
    %10 = arith.addf %4, %9 : vector<6x128xf32>
    %c0_11 = arith.constant 0 : index
    %c3 = arith.constant 3 : index
    %c0_12 = arith.constant 0 : index
    %11 = vector.load %arg2[%c0_11, %c3, %c0_12] : memref<1x12x256xbf16, #tpu.memory_space<vmem>>, vector<1x6x256xbf16>
    %12 = vector.shape_cast %11 : vector<1x6x256xbf16> to vector<6x256xbf16>
    %c2 = arith.constant 2 : index
    %c0_13 = arith.constant 0 : index
    %c0_14 = arith.constant 0 : index
    %13 = vector.load %arg3[%c2, %c0_13, %c0_14] : memref<4x256x128xbf16, #tpu.memory_space<vmem>>, vector<1x256x128xbf16>
    %14 = vector.shape_cast %13 : vector<1x256x128xbf16> to vector<256x128xbf16>
    %cst_15 = arith.constant dense<0.000000e+00> : vector<6x128xf32>
    %15 = tpu.matmul %12, %14, %cst_15 {dimension_numbers = #tpu.dot_dimension_numbers<[1], [0], [0], [1], [0, 0, 1, 1], [], []>} : vector<6x256xbf16>, vector<256x128xbf16>, vector<6x128xf32> -> vector<6x128xf32>
    %16 = arith.addf %10, %15 : vector<6x128xf32>
    %c0_16 = arith.constant 0 : index
    %c4 = arith.constant 4 : index
    %c0_17 = arith.constant 0 : index
    %17 = vector.load %arg2[%c0_16, %c4, %c0_17] : memref<1x12x256xbf16, #tpu.memory_space<vmem>>, vector<1x6x256xbf16>
    %18 = vector.shape_cast %17 : vector<1x6x256xbf16> to vector<6x256xbf16>
    %c3_18 = arith.constant 3 : index
    %c0_19 = arith.constant 0 : index
    %c0_20 = arith.constant 0 : index
    %19 = vector.load %arg3[%c3_18, %c0_19, %c0_20] : memref<4x256x128xbf16, #tpu.memory_space<vmem>>, vector<1x256x128xbf16>
    %20 = vector.shape_cast %19 : vector<1x256x128xbf16> to vector<256x128xbf16>
    %cst_21 = arith.constant dense<0.000000e+00> : vector<6x128xf32>
    %21 = tpu.matmul %18, %20, %cst_21 {dimension_numbers = #tpu.dot_dimension_numbers<[1], [0], [0], [1], [0, 0, 1, 1], [], []>} : vector<6x256xbf16>, vector<256x128xbf16>, vector<6x128xf32> -> vector<6x128xf32>
    %22 = arith.addf %16, %21 : vector<6x128xf32>
    %c0_22 = arith.constant 0 : index
    %c0_23 = arith.constant 0 : index
    %23 = vector.load %arg4[%c0_22, %c0_23] : memref<1x128xf32, #tpu.memory_space<vmem>>, vector<1x128xf32>
    %24 = vector.broadcast %23 : vector<1x128xf32> to vector<6x128xf32>
    %25 = arith.addf %22, %24 : vector<6x128xf32>
    %cst_24 = arith.constant 0.000000e+00 : f32
    %26 = vector.broadcast %cst_24 : f32 to vector<6x128xf32>
    %27 = arith.cmpf ogt, %25, %26 : vector<6x128xf32>
    %cst_25 = arith.constant 2.000000e-01 : f32
    %28 = vector.broadcast %cst_25 : f32 to vector<6x128xf32>
    %29 = arith.mulf %28, %25 : vector<6x128xf32>
    %30 = arith.select %27, %25, %29 : vector<6x128xi1>, vector<6x128xf32>
    %31 = arith.truncf %30 : vector<6x128xf32> to vector<6x128xbf16>
    %c0_26 = arith.constant 0 : index
    %c0_27 = arith.constant 0 : index
    %c0_28 = arith.constant 0 : index
    %32 = vector.load %arg5[%c0_26, %c0_27, %c0_28] : memref<1x6x128xbf16, #tpu.memory_space<vmem>>, vector<1x6x128xbf16>
    %33 = vector.shape_cast %32 : vector<1x6x128xbf16> to vector<6x128xbf16>
    %34 = vector.shape_cast %31 : vector<6x128xbf16> to vector<1x6x128xbf16>
    tpu.vector_store %arg5[%c0_26, %c0_27, %c0_28], %34 {strides = array<i32>} : memref<1x6x128xbf16, #tpu.memory_space<vmem>>, vector<1x6x128xbf16>,
    return
  }
  func.func @transform_0(%arg0: i32, %arg1: i32) -> (i32, i32, i32) {
    %c0_i32 = arith.constant 0 : i32
    %c0_i32_0 = arith.constant 0 : i32
    %c0_i32_1 = arith.constant 0 : i32
    return %arg1, %c0_i32, %c0_i32_0 : i32, i32, i32
  }
  func.func @transform_1(%arg0: i32, %arg1: i32) -> (i32, i32, i32) {
    %c0_i32 = arith.constant 0 : i32
    %c0_i32_0 = arith.constant 0 : i32
    %c0_i32_1 = arith.constant 0 : i32
    return %c0_i32, %c0_i32_0, %arg0 : i32, i32, i32
  }
  func.func @transform_2(%arg0: i32, %arg1: i32) -> (i32, i32) {
    %c0_i32 = arith.constant 0 : i32
    %c0_i32_0 = arith.constant 0 : i32
    return %c0_i32, %arg0 : i32, i32
  }
  func.func @transform_3(%arg0: i32, %arg1: i32) -> (i32, i32, i32) {
    %c0_i32 = arith.constant 0 : i32
    %c0_i32_0 = arith.constant 0 : i32
    return %arg1, %c0_i32, %arg0 : i32, i32, i32
  }
}

</mosaic_0001>

<llo_original>
// kernel: d_net128_forward.6
$region0: #{d_net128_forward.6}
  #allocation0 [shape = 'u32[]', space=smem, size = 0x4, offset = 0x4, fixed_abs, tag = 'smem constant byte address 0x4 - core index']
  #allocation1 [shape = 'u32[144,128]{1,0:T(1,128)}', space=vmem, size = 0x12000, scoped, tag = 'internal scratch']
  %s0 = inlined_call_operand.vmem [shape: bf16[2,1122,12], index: 0, kind: input, shape index: {}]
  %s1 = inlined_call_operand.vmem [shape: bf16[4,12,128], index: 1, kind: input, shape index: {}]
  %s2 = inlined_call_operand.vmem [shape: f32[1,128], index: 2, kind: input, shape index: {}]
  %s3 = inlined_call_operand.vmem [shape: bf16[2,1056,128], index: 3, kind: output, shape index: {}]
  %s4 = sld [smem:[#allocation0]]
  $region45: #{d_net128_forward.6} parent=0
    _
  %s6 = ssub.s32 1, %s4
  %s7 = scalar_select 0, %s6, %s4
  loop: start=0, step=1, limit=4
  $region2: #{d_net128_forward.6} parent=0 // loop_pre_header
    _
  $region3: #{d_net128_forward.6} parent=0 // loop_header
    %s9 = sphi 0, %s13
    %p10 = scmp.ge.s32.totalorder %s9, 4
    %s16 = sphi 0, %s28
    %s17 = sphi 0, %s24
    %s18 = sphi 0, %s16
    %s19 = sphi 0, %s17
    %s20 = sphi 0, %s18
    %s21 = sphi 0, %s19
    %s31 = sphi 0, %s33
    %s34 = sphi 0, %s31
    %s35 = sphi 0, %s34
    %s51 = sphi 0, %s35
    %s57 = sphi 0, %s59
    %s60 = sphi 0, %s57
    %s61 = sphi 0, %s60
    %s77 = sphi 0, %s61
    %s83 = sphi 0, %s85
    %s86 = sphi 0, %s83
    %s87 = sphi 0, %s86
    %s103 = sphi 0, %s87
    %s111 = sphi 0, %s113
    %s114 = sphi 0, %s111
    %s115 = sphi 0, %s114
    %s131 = sphi 0, %s115
  $region4: #{d_net128_forward.6} parent=0 // loop_header_branch
    %12 = sbr.rel (%p10) target = $region8
  $region5: #{d_net128_forward.6} parent=0 // loop_body
    %s14 = ssub.s32 %s9, 1
    %s15 = ssub.s32 %s9, 2
    %s22 = sadd.s32 1, %s17
    %p23 = scmp.ge.s32.totalorder %s22, 2
    %s24 = scalar_select %p23, 0, %s22
    %s25 = sadd.s32 1, %s16
    %s26 = scalar_select %p23, %s25, %s16
    %p27 = scmp.ge.s32.totalorder %s26, 1
    %s28 = scalar_select %p27, 0, %s26
    %s29 = ssub.s32 %s17, %s24
    %p30 = scmp.eq.s32.totalorder %s29, 0
    %s32 = sadd.s32 %s31, 1
    %s33 = scalar_select %p30, %s31, %s32
    %p36 = pneg %p30
    %p37 = scmp.eq.s32.totalorder %s9, 1
    %p38 = por %p36, %p37
    %p39 = scmp.ne.s32.totalorder %s31, %s34
    %p40 = scmp.eq.s32.totalorder %s9, 0
    %p41 = por %p39, %p40
    %p42 = scmp.ne.s32.totalorder %s31, %s34
    %p43 = scmp.eq.s32.totalorder %s14, 1
    %p44 = por %p42, %p43
    %p45 = scmp.ne.s32.totalorder %s34, %s35
    %p46 = scmp.eq.s32.totalorder %s14, 0
    %p47 = por %p45, %p46
    %p48 = scmp.ne.s32.totalorder %s34, %s35
    %p49 = scmp.eq.s32.totalorder %s15, 1
    %p50 = por %p48, %p49
    %p52 = scmp.ne.s32.totalorder %s35, %s51
    %p53 = scmp.eq.s32.totalorder %s15, 0
    %p54 = por %p52, %p53
    %s55 = ssub.s32 %s16, %s28
    %p56 = scmp.eq.s32.totalorder %s55, 0
    %s58 = sadd.s32 %s57, 1
    %s59 = scalar_select %p56, %s57, %s58
    %p62 = pneg %p56
    %p63 = scmp.eq.s32.totalorder %s9, 1
    %p64 = por %p62, %p63
    %p65 = scmp.ne.s32.totalorder %s57, %s60
    %p66 = scmp.eq.s32.totalorder %s9, 0
    %p67 = por %p65, %p66
    %p68 = scmp.ne.s32.totalorder %s57, %s60
    %p69 = scmp.eq.s32.totalorder %s14, 1
    %p70 = por %p68, %p69
    %p71 = scmp.ne.s32.totalorder %s60, %s61
    %p72 = scmp.eq.s32.totalorder %s14, 0
    %p73 = por %p71, %p72
    %p74 = scmp.ne.s32.totalorder %s60, %s61
    %p75 = scmp.eq.s32.totalorder %s15, 1
    %p76 = por %p74, %p75
    %p78 = scmp.ne.s32.totalorder %s61, %s77
    %p79 = scmp.eq.s32.totalorder %s15, 0
    %p80 = por %p78, %p79
    %s81 = ssub.s32 %s16, %s28
    %p82 = scmp.eq.s32.totalorder %s81, 0
    %s84 = sadd.s32 %s83, 1
    %s85 = scalar_select %p82, %s83, %s84
    %p88 = pneg %p82
    %p89 = scmp.eq.s32.totalorder %s9, 1
    %p90 = por %p88, %p89
    %p91 = scmp.ne.s32.totalorder %s83, %s86
    %p92 = scmp.eq.s32.totalorder %s9, 0
    %p93 = por %p91, %p92
    %p94 = scmp.ne.s32.totalorder %s83, %s86
    %p95 = scmp.eq.s32.totalorder %s14, 1
    %p96 = por %p94, %p95
    %p97 = scmp.ne.s32.totalorder %s86, %s87
    %p98 = scmp.eq.s32.totalorder %s14, 0
    %p99 = por %p97, %p98
    %p100 = scmp.ne.s32.totalorder %s86, %s87
    %p101 = scmp.eq.s32.totalorder %s15, 1
    %p102 = por %p100, %p101
    %p104 = scmp.ne.s32.totalorder %s87, %s103
    %p105 = scmp.eq.s32.totalorder %s15, 0
    %p106 = por %p104, %p105
    %s107 = ssub.s32 %s17, %s24
    %s108 = ssub.s32 %s16, %s28
    %s109 = sor.u32 %s107, %s108
    %p110 = scmp.eq.s32.totalorder %s109, 0
    %s112 = sadd.s32 %s111, 1
    %s113 = scalar_select %p110, %s111, %s112
    %p116 = pneg %p110
    %p117 = scmp.eq.s32.totalorder %s9, 1
    %p118 = por %p116, %p117
    %p119 = scmp.ne.s32.totalorder %s111, %s114
    %p120 = scmp.eq.s32.totalorder %s9, 0
    %p121 = por %p119, %p120
    %p122 = scmp.ne.s32.totalorder %s111, %s114
    %p123 = scmp.eq.s32.totalorder %s14, 1
    %p124 = por %p122, %p123
    %p125 = scmp.ne.s32.totalorder %s114, %s115
    %p126 = scmp.eq.s32.totalorder %s14, 0
    %p127 = por %p125, %p126
    %p128 = scmp.ne.s32.totalorder %s114, %s115
    %p129 = scmp.eq.s32.totalorder %s15, 1
    %p130 = por %p128, %p129
    %p132 = scmp.ne.s32.totalorder %s115, %s131
    %p133 = scmp.eq.s32.totalorder %s15, 0
    %p134 = por %p132, %p133
    %p135 = scmp.le.s32.totalorder 1, %s9
    %p136 = scmp.lt.s32.totalorder %s9, 3
    %p137 = pnand %p135, %p136
    %p138 = pneg %p137
    // Predicated region
    $region9: #{d_net128_forward.6} parent=5 // pred_check
      _
    $region10: #{d_net128_forward.6} parent=5 // pred_check_branch
      %140 = sbr.rel (%p137) target = $region12
    $region11: #{d_net128_forward.6} parent=5 // pred_region
      %s141 = ssub.s32 %s9, 1
      // Predicated region
      $region13: #{d_net128_forward.6} parent=11 // pred_check
        %p142 = pneg %p73
      $region14: #{d_net128_forward.6} parent=11 // pred_check_branch
        %144 = sbr.rel (%p142) target = $region16
      $region15: #{d_net128_forward.6} parent=11 // pred_region
        %p145 = scmp.lt.s32.totalorder %s18, 0
        %s146 = scalar_select %p145, %s18, 0
        %s147 = smul.addr %s146, 4
        %s148 = scalar_lea.vmem %s1, %s147
      $region16: #{d_net128_forward.6} parent=11 // pred_fallthru
        _
      // Predicated region
      $region17: #{d_net128_forward.6} parent=11 // pred_check
        %p149 = pneg %p99
      $region18: #{d_net128_forward.6} parent=11 // pred_check_branch
        %151 = sbr.rel (%p149) target = $region20
      $region19: #{d_net128_forward.6} parent=11 // pred_region
        %p152 = scmp.lt.s32.totalorder %s18, 0
        %s153 = scalar_select %p152, %s18, 0
        %s154 = scalar_lea.vmem %s2, %s153
      $region20: #{d_net128_forward.6} parent=11 // pred_fallthru
        _
    $region12: #{d_net128_forward.6} parent=5 // pred_fallthru
      _
    %p155 = scmp.lt.s32.totalorder %s9, 2
    // Predicated region
    $region21: #{d_net128_forward.6} parent=5 // pred_check
      %p156 = pneg %p155
    $region22: #{d_net128_forward.6} parent=5 // pred_check_branch
      %158 = sbr.rel (%p156) target = $region24
    $region23: #{d_net128_forward.6} parent=5 // pred_region
      // Predicated region
      $region25: #{d_net128_forward.6} parent=23 // pred_check
        %p159 = pneg %p41
      $region26: #{d_net128_forward.6} parent=23 // pred_check_branch
        %161 = sbr.rel (%p159) target = $region28
      $region27: #{d_net128_forward.6} parent=23 // pred_region
        %p162 = scmp.lt.s32.totalorder %s17, 1
        %s163 = scalar_select %p162, %s17, 1
        %s164 = smul.addr %s163, 141
        %s165 = smul.addr %s164, 4
        %s166 = scalar_lea.vmem %s0, %s165
      $region28: #{d_net128_forward.6} parent=23 // pred_fallthru
        _
    $region24: #{d_net128_forward.6} parent=5 // pred_fallthru
      _
    %p167 = scmp.le.s32.totalorder 1, %s9
    %p168 = scmp.lt.s32.totalorder %s9, 3
    %p169 = pnand %p167, %p168
    %p170 = pneg %p169
    // Predicated region
    $region29: #{d_net128_forward.6} parent=5 // pred_check
      _
    $region30: #{d_net128_forward.6} parent=5 // pred_check_branch
      %172 = sbr.rel (%p169) target = $region32
    $region31: #{d_net128_forward.6} parent=5 // pred_region
      %s173 = ssub.s32 %s9, 1
      %p174 = scmp.lt.s32.totalorder %s19, 1
      %s175 = scalar_select %p174, %s19, 1
      %s176 = smul.addr %s175, 141
      %s177 = smul.addr %s176, 4
      %s178 = scalar_lea.vmem %s0, %s177
      %p179 = pneg %p47
      %p180 = pneg %p44
      %p181 = scmp.lt.s32.totalorder %s18, 0
      %s182 = scalar_select %p181, %s18, 0
      %s183 = smul.addr %s182, 4
      %s184 = scalar_lea.vmem %s1, %s183
      %p185 = pneg %p73
      %p186 = pneg %p70
      %p187 = scmp.lt.s32.totalorder %s18, 0
      %s188 = scalar_select %p187, %s18, 0
      %s189 = scalar_lea.vmem %s2, %s188
      %p190 = pneg %p99
      %p191 = pneg %p96
      %p192 = pneg %p127
      %p193 = pneg %p124
      %p194 = scmp.lt.s32.totalorder %s19, 1
      %s195 = scalar_select %p194, %s19, 1
      %p196 = scmp.lt.s32.totalorder %s18, 0
      %s197 = scalar_select %p196, %s18, 0
      %s198 = smul.addr %s195, 132
      %s199 = sadd.s32 %s197, %s198
      %s200 = smul.addr %s199, 4
      %s201 = scalar_lea.vmem %s3, %s200
      %p202 = scmp.lt.s32.totalorder %s19, 1
      %s203 = scalar_select %p202, %s19, 1
      %s204 = smul.addr %s203, 141
      %s205 = smul.addr %s204, 4
      %s206 = scalar_lea.vmem %s0, %s205
      %p207 = scmp.lt.s32.totalorder %s18, 0
      %s208 = scalar_select %p207, %s18, 0
      %s209 = smul.addr %s208, 4
      %s210 = scalar_lea.vmem %s1, %s209
      %p211 = scmp.lt.s32.totalorder %s18, 0
      %s212 = scalar_select %p211, %s18, 0
      %s213 = scalar_lea.vmem %s2, %s212
      %p214 = scmp.lt.s32.totalorder %s19, 1
      %s215 = scalar_select %p214, %s19, 1
      %p216 = scmp.lt.s32.totalorder %s18, 0
      %s217 = scalar_select %p216, %s18, 0
      %s218 = smul.addr %s215, 132
      %s219 = sadd.s32 %s217, %s218
      %s220 = smul.addr %s219, 4
      %s221 = scalar_lea.vmem %s3, %s220
      %v223 = vld [vmem:[%s206] sm:$0xf]
      %v224 = vld [vmem:[%s206 + $0x4] sm:$0xf]
      %v225 = vld [vmem:[%s206 + $0x8] sm:$0xf]
      %v226 = vld [vmem:[%s206 + $0xc] sm:$0xf]
      %v227 = vld [vmem:[%s206 + $0x10] sm:$0xf]
      %v228 = vld [vmem:[%s206 + $0x14] sm:$0xf]
      %v229 = vld [vmem:[%s206 + $0x18] sm:$0xf]
      %v230 = vld [vmem:[%s206 + $0x1c] sm:$0xf]
      %v231 = vld [vmem:[%s206 + $0x20] sm:$0xf]
      %v232 = vld [vmem:[%s206 + $0x24] sm:$0xf]
      %v233 = vld [vmem:[%s206 + $0x28] sm:$0xf]
      %v234 = vld [vmem:[%s206 + $0x2c] sm:$0xf]
      %v235 = vld [vmem:[%s206 + $0x30] sm:$0xf]
      %v236 = vld [vmem:[%s206 + $0x34] sm:$0xf]
      %v237 = vld [vmem:[%s206 + $0x38] sm:$0xf]
      %v238 = vld [vmem:[%s206 + $0x3c] sm:$0xf]
      %v239 = vld [vmem:[%s206 + $0x40] sm:$0xf]
      %v240 = vld [vmem:[%s206 + $0x44] sm:$0xf]
      %v241 = vld [vmem:[%s206 + $0x48] sm:$0xf]
      %v242 = vld [vmem:[%s206 + $0x4c] sm:$0xf]
      %v243 = vld [vmem:[%s206 + $0x50] sm:$0xf]
      %v244 = vld [vmem:[%s206 + $0x54] sm:$0xf]
      %v245 = vld [vmem:[%s206 + $0x58] sm:$0xf]
      %v246 = vld [vmem:[%s206 + $0x5c] sm:$0xf]
      %v247 = vld [vmem:[%s206 + $0x60] sm:$0xf]
      %v248 = vld [vmem:[%s206 + $0x64] sm:$0xf]
      %v249 = vld [vmem:[%s206 + $0x68] sm:$0xf]
      %v250 = vld [vmem:[%s206 + $0x6c] sm:$0xf]
      %v251 = vld [vmem:[%s206 + $0x70] sm:$0xf]
      %v252 = vld [vmem:[%s206 + $0x74] sm:$0xf]
      %v253 = vld [vmem:[%s206 + $0x78] sm:$0xf]
      %v254 = vld [vmem:[%s206 + $0x7c] sm:$0xf]
      %v255 = vld [vmem:[%s206 + $0x80] sm:$0xf]
      %v256 = vld [vmem:[%s206 + $0x84] sm:$0xf]
      %v257 = vld [vmem:[%s206 + $0x88] sm:$0xf]
      %v258 = vld [vmem:[%s206 + $0x8c] sm:$0xf]
      %v259 = vld [vmem:[%s206 + $0x90] sm:$0xf]
      %v260 = vld [vmem:[%s206 + $0x94] sm:$0xf]
      %v261 = vld [vmem:[%s206 + $0x98] sm:$0xf]
      %v262 = vld [vmem:[%s206 + $0x9c] sm:$0xf]
      %v263 = vld [vmem:[%s206 + $0xa0] sm:$0xf]
      %v264 = vld [vmem:[%s206 + $0xa4] sm:$0xf]
      %v265 = vld [vmem:[%s206 + $0xa8] sm:$0xf]
      %v266 = vld [vmem:[%s206 + $0xac] sm:$0xf]
      %v267 = vld [vmem:[%s206 + $0xb0] sm:$0xf]
      %v268 = vld [vmem:[%s206 + $0xb4] sm:$0xf]
      %v269 = vld [vmem:[%s206 + $0xb8] sm:$0xf]
      %v270 = vld [vmem:[%s206 + $0xbc] sm:$0xf]
      %v271 = vld [vmem:[%s206 + $0xc0] sm:$0xf]
      %v272 = vld [vmem:[%s206 + $0xc4] sm:$0xf]
      %v273 = vld [vmem:[%s206 + $0xc8] sm:$0xf]
      %v274 = vld [vmem:[%s206 + $0xcc] sm:$0xf]
      %v275 = vld [vmem:[%s206 + $0xd0] sm:$0xf]
      %v276 = vld [vmem:[%s206 + $0xd4] sm:$0xf]
      %v277 = vld [vmem:[%s206 + $0xd8] sm:$0xf]
      %v278 = vld [vmem:[%s206 + $0xdc] sm:$0xf]
      %v279 = vld [vmem:[%s206 + $0xe0] sm:$0xf]
      %v280 = vld [vmem:[%s206 + $0xe4] sm:$0xf]
      %v281 = vld [vmem:[%s206 + $0xe8] sm:$0xf]
      %v282 = vld [vmem:[%s206 + $0xec] sm:$0xf]
      %v283 = vld [vmem:[%s206 + $0xf0] sm:$0xf]
      %v284 = vld [vmem:[%s206 + $0xf4] sm:$0xf]
      %v285 = vld [vmem:[%s206 + $0xf8] sm:$0xf]
      %v286 = vld [vmem:[%s206 + $0xfc] sm:$0xf]
      %v287 = vld [vmem:[%s206 + $0x100] sm:$0xf]
      %v288 = vld [vmem:[%s206 + $0x104] sm:$0xf]
      %v289 = vld [vmem:[%s206 + $0x108] sm:$0xf]
      %v290 = vld [vmem:[%s206 + $0x10c] sm:$0xf]
      %v291 = vld [vmem:[%s206 + $0x110] sm:$0xf]
      %v292 = vld [vmem:[%s206 + $0x114] sm:$0xf]
      %v293 = vld [vmem:[%s206 + $0x118] sm:$0xf]
      %v294 = vld [vmem:[%s206 + $0x11c] sm:$0xf]
      %v295 = vld [vmem:[%s206 + $0x120] sm:$0xf]
      %v296 = vld [vmem:[%s206 + $0x124] sm:$0xf]
      %v297 = vld [vmem:[%s206 + $0x128] sm:$0xf]
      %v298 = vld [vmem:[%s206 + $0x12c] sm:$0xf]
      %v299 = vld [vmem:[%s206 + $0x130] sm:$0xf]
      %v300 = vld [vmem:[%s206 + $0x134] sm:$0xf]
      %v301 = vld [vmem:[%s206 + $0x138] sm:$0xf]
      %v302 = vld [vmem:[%s206 + $0x13c] sm:$0xf]
      %v303 = vld [vmem:[%s206 + $0x140] sm:$0xf]
      %v304 = vld [vmem:[%s206 + $0x144] sm:$0xf]
      %v305 = vld [vmem:[%s206 + $0x148] sm:$0xf]
      %v306 = vld [vmem:[%s206 + $0x14c] sm:$0xf]
      %v307 = vld [vmem:[%s206 + $0x150] sm:$0xf]
      %v308 = vld [vmem:[%s206 + $0x154] sm:$0xf]
      %v309 = vld [vmem:[%s206 + $0x158] sm:$0xf]
      %v310 = vld [vmem:[%s206 + $0x15c] sm:$0xf]
      %v311 = vld [vmem:[%s206 + $0x160] sm:$0xf]
      %v312 = vld [vmem:[%s206 + $0x164] sm:$0xf]
      %v313 = vld [vmem:[%s206 + $0x168] sm:$0xf]
      %v314 = vld [vmem:[%s206 + $0x16c] sm:$0xf]
      %v315 = vld [vmem:[%s206 + $0x170] sm:$0xf]
      %v316 = vld [vmem:[%s206 + $0x174] sm:$0xf]
      %v317 = vld [vmem:[%s206 + $0x178] sm:$0xf]
      %v318 = vld [vmem:[%s206 + $0x17c] sm:$0xf]
      %v319 = vld [vmem:[%s206 + $0x180] sm:$0xf]
      %v320 = vld [vmem:[%s206 + $0x184] sm:$0xf]
      %v321 = vld [vmem:[%s206 + $0x188] sm:$0xf]
      %v322 = vld [vmem:[%s206 + $0x18c] sm:$0xf]
      %v323 = vld [vmem:[%s206 + $0x190] sm:$0xf]
      %v324 = vld [vmem:[%s206 + $0x194] sm:$0xf]
      %v325 = vld [vmem:[%s206 + $0x198] sm:$0xf]
      %v326 = vld [vmem:[%s206 + $0x19c] sm:$0xf]
      %v327 = vld [vmem:[%s206 + $0x1a0] sm:$0xf]
      %v328 = vld [vmem:[%s206 + $0x1a4] sm:$0xf]
      %v329 = vld [vmem:[%s206 + $0x1a8] sm:$0xf]
      %v330 = vld [vmem:[%s206 + $0x1ac] sm:$0xf]
      %v331 = vld [vmem:[%s206 + $0x1b0] sm:$0xf]
      %v332 = vld [vmem:[%s206 + $0x1b4] sm:$0xf]
      %v333 = vld [vmem:[%s206 + $0x1b8] sm:$0xf]
      %v334 = vld [vmem:[%s206 + $0x1bc] sm:$0xf]
      %v335 = vld [vmem:[%s206 + $0x1c0] sm:$0xf]
      %v336 = vld [vmem:[%s206 + $0x1c4] sm:$0xf]
      %v337 = vld [vmem:[%s206 + $0x1c8] sm:$0xf]
      %v338 = vld [vmem:[%s206 + $0x1cc] sm:$0xf]
      %v339 = vld [vmem:[%s206 + $0x1d0] sm:$0xf]
      %v340 = vld [vmem:[%s206 + $0x1d4] sm:$0xf]
      %v341 = vld [vmem:[%s206 + $0x1d8] sm:$0xf]
      %v342 = vld [vmem:[%s206 + $0x1dc] sm:$0xf]
      %v343 = vld [vmem:[%s206 + $0x1e0] sm:$0xf]
      %v344 = vld [vmem:[%s206 + $0x1e4] sm:$0xf]
      %v345 = vld [vmem:[%s206 + $0x1e8] sm:$0xf]
      %v346 = vld [vmem:[%s206 + $0x1ec] sm:$0xf]
      %v347 = vld [vmem:[%s206 + $0x1f0] sm:$0xf]
      %v348 = vld [vmem:[%s206 + $0x1f4] sm:$0xf]
      %v349 = vld [vmem:[%s206 + $0x1f8] sm:$0xf]
      %v350 = vld [vmem:[%s206 + $0x1fc] sm:$0xf]
      %v351 = vld [vmem:[%s206 + $0x200] sm:$0xf]
      %v352 = vld [vmem:[%s206 + $0x204] sm:$0xf]
      %v353 = vld [vmem:[%s206 + $0x208] sm:$0xf]
      %v354 = vld [vmem:[%s206 + $0x20c] sm:$0xf]
      %v355 = vld [vmem:[%s210] sm:$0xf]
      %v356 = vld [vmem:[%s210 + $0x4] sm:$0x3]
      %v357 = vld [vmem:[%s206 + $0x210] sm:$0x1]
      %s358 = scalar_lea.vmem %s210, 8
      %v359 = vld [vmem:[%s358] sm:$0xf]
      %v360 = vld [vmem:[%s358 + $0x4] sm:$0x3]
      %v494 = vunpack.c.l.b16 %v223
      %v495 = vunpack.c.l.b16 %v224
      %v496 = vunpack.c.l.b16 %v225
      %v497 = vunpack.c.l.b16 %v226
      %v498 = vunpack.c.l.b16 %v227
      %v499 = vunpack.c.l.b16 %v228
      %v500 = vunpack.c.l.b16 %v229
      %v501 = vunpack.c.l.b16 %v230
      %v502 = vunpack.c.l.b16 %v231
      %v503 = vunpack.c.l.b16 %v232
      %v504 = vunpack.c.l.b16 %v233
      %v505 = vunpack.c.l.b16 %v234
      %v506 = vunpack.c.l.b16 %v235
      %v507 = vunpack.c.l.b16 %v236
      %v508 = vunpack.c.l.b16 %v237
      %v509 = vunpack.c.l.b16 %v238
      %v510 = vunpack.c.l.b16 %v239
      %v511 = vunpack.c.l.b16 %v240
      %v512 = vunpack.c.l.b16 %v241
      %v513 = vunpack.c.l.b16 %v242
      %v514 = vunpack.c.l.b16 %v243
      %v515 = vunpack.c.l.b16 %v244
      %v516 = vunpack.c.l.b16 %v245
      %v517 = vunpack.c.l.b16 %v246
      %v518 = vunpack.c.l.b16 %v247
      %v519 = vunpack.c.l.b16 %v248
      %v520 = vunpack.c.l.b16 %v249
      %v521 = vunpack.c.l.b16 %v250
      %v522 = vunpack.c.l.b16 %v251
      %v523 = vunpack.c.l.b16 %v252
      %v524 = vunpack.c.l.b16 %v253
      %v525 = vunpack.c.l.b16 %v254
      %v526 = vunpack.c.l.b16 %v255
      %v527 = vunpack.c.l.b16 %v256
      %v528 = vunpack.c.l.b16 %v257
      %v529 = vunpack.c.l.b16 %v258
      %v530 = vunpack.c.l.b16 %v259
      %v531 = vunpack.c.l.b16 %v260
      %v532 = vunpack.c.l.b16 %v261
      %v533 = vunpack.c.l.b16 %v262
      %v534 = vunpack.c.l.b16 %v263
      %v535 = vunpack.c.l.b16 %v264
      %v536 = vunpack.c.l.b16 %v265
      %v537 = vunpack.c.l.b16 %v266
      %v538 = vunpack.c.l.b16 %v267
      %v539 = vunpack.c.l.b16 %v268
      %v540 = vunpack.c.l.b16 %v269
      %v541 = vunpack.c.l.b16 %v270
      %v542 = vunpack.c.l.b16 %v271
      %v543 = vunpack.c.l.b16 %v272
      %v544 = vunpack.c.l.b16 %v273
      %v545 = vunpack.c.l.b16 %v274
      %v546 = vunpack.c.l.b16 %v275
      %v547 = vunpack.c.l.b16 %v276
      %v548 = vunpack.c.l.b16 %v277
      %v549 = vunpack.c.l.b16 %v278
      %v550 = vunpack.c.l.b16 %v279
      %v551 = vunpack.c.l.b16 %v280
      %v552 = vunpack.c.l.b16 %v281
      %v553 = vunpack.c.l.b16 %v282
      %v554 = vunpack.c.l.b16 %v283
      %v555 = vunpack.c.l.b16 %v284
      %v556 = vunpack.c.l.b16 %v285
      %v557 = vunpack.c.l.b16 %v286
      %v558 = vunpack.c.l.b16 %v287
      %v559 = vunpack.c.l.b16 %v288
      %v560 = vunpack.c.l.b16 %v289
      %v561 = vunpack.c.l.b16 %v290
      %v562 = vunpack.c.l.b16 %v291
      %v563 = vunpack.c.l.b16 %v292
      %v564 = vunpack.c.l.b16 %v293
      %v565 = vunpack.c.l.b16 %v294
      %v566 = vunpack.c.l.b16 %v295
      %v567 = vunpack.c.l.b16 %v296
      %v568 = vunpack.c.l.b16 %v297
      %v569 = vunpack.c.l.b16 %v298
      %v570 = vunpack.c.l.b16 %v299
      %v571 = vunpack.c.l.b16 %v300
      %v572 = vunpack.c.l.b16 %v301
      %v573 = vunpack.c.l.b16 %v302
      %v574 = vunpack.c.l.b16 %v303
      %v575 = vunpack.c.l.b16 %v304
      %v576 = vunpack.c.l.b16 %v305
      %v577 = vunpack.c.l.b16 %v306
      %v578 = vunpack.c.l.b16 %v307
      %v579 = vunpack.c.l.b16 %v308
      %v580 = vunpack.c.l.b16 %v309
      %v581 = vunpack.c.l.b16 %v310
      %v582 = vunpack.c.l.b16 %v311
      %v583 = vunpack.c.l.b16 %v312
      %v584 = vunpack.c.l.b16 %v313
      %v585 = vunpack.c.l.b16 %v314
      %v586 = vunpack.c.l.b16 %v315
      %v587 = vunpack.c.l.b16 %v316
      %v588 = vunpack.c.l.b16 %v317
      %v589 = vunpack.c.l.b16 %v318
      %v590 = vunpack.c.l.b16 %v319
      %v591 = vunpack.c.l.b16 %v320
      %v592 = vunpack.c.l.b16 %v321
      %v593 = vunpack.c.l.b16 %v322
      %v594 = vunpack.c.l.b16 %v323
      %v595 = vunpack.c.l.b16 %v324
      %v596 = vunpack.c.l.b16 %v325
      %v597 = vunpack.c.l.b16 %v326
      %v598 = vunpack.c.l.b16 %v327
      %v599 = vunpack.c.l.b16 %v328
      %v600 = vunpack.c.l.b16 %v329
      %v601 = vunpack.c.l.b16 %v330
      %v602 = vunpack.c.l.b16 %v331
      %v603 = vunpack.c.l.b16 %v332
      %v604 = vunpack.c.l.b16 %v333
      %v605 = vunpack.c.l.b16 %v334
      %v606 = vunpack.c.l.b16 %v335
      %v607 = vunpack.c.l.b16 %v336
      %v608 = vunpack.c.l.b16 %v337
      %v609 = vunpack.c.l.b16 %v338
      %v610 = vunpack.c.l.b16 %v339
      %v611 = vunpack.c.l.b16 %v340
      %v612 = vunpack.c.l.b16 %v341
      %v613 = vunpack.c.l.b16 %v342
      %v614 = vunpack.c.l.b16 %v343
      %v615 = vunpack.c.l.b16 %v344
      %v616 = vunpack.c.l.b16 %v345
      %v617 = vunpack.c.l.b16 %v346
      %v618 = vunpack.c.l.b16 %v347
      %v619 = vunpack.c.l.b16 %v348
      %v620 = vunpack.c.l.b16 %v349
      %v621 = vunpack.c.l.b16 %v350
      %v622 = vunpack.c.l.b16 %v351
      %v623 = vunpack.c.l.b16 %v352
      %v624 = vunpack.c.l.b16 %v353
      %v625 = vunpack.c.l.b16 %v354
      %v626 = vunpack.c.l.b16 %v357
      %v627 = vpack.c.b16 %v495, %v494
      %v628 = vpack.c.b16 %v497, %v496
      %v629 = vpack.c.b16 %v499, %v498
      %v630 = vpack.c.b16 %v501, %v500
      %v631 = vpack.c.b16 %v503, %v502
      %v632 = vpack.c.b16 %v505, %v504
      %v633 = vpack.c.b16 %v507, %v506
      %v634 = vpack.c.b16 %v509, %v508
      %v635 = vpack.c.b16 %v511, %v510
      %v636 = vpack.c.b16 %v513, %v512
      %v637 = vpack.c.b16 %v515, %v514
      %v638 = vpack.c.b16 %v517, %v516
      %v639 = vpack.c.b16 %v519, %v518
      %v640 = vpack.c.b16 %v521, %v520
      %v641 = vpack.c.b16 %v523, %v522
      %v642 = vpack.c.b16 %v525, %v524
      %v643 = vpack.c.b16 %v527, %v526
      %v644 = vpack.c.b16 %v529, %v528
      %v645 = vpack.c.b16 %v531, %v530
      %v646 = vpack.c.b16 %v533, %v532
      %v647 = vpack.c.b16 %v535, %v534
      %v648 = vpack.c.b16 %v537, %v536
      %v649 = vpack.c.b16 %v539, %v538
      %v650 = vpack.c.b16 %v541, %v540
      %v651 = vpack.c.b16 %v543, %v542
      %v652 = vpack.c.b16 %v545, %v544
      %v653 = vpack.c.b16 %v547, %v546
      %v654 = vpack.c.b16 %v549, %v548
      %v655 = vpack.c.b16 %v551, %v550
      %v656 = vpack.c.b16 %v553, %v552
      %v657 = vpack.c.b16 %v555, %v554
      %v658 = vpack.c.b16 %v557, %v556
      %v659 = vpack.c.b16 %v559, %v558
      %v660 = vpack.c.b16 %v561, %v560
      %v661 = vpack.c.b16 %v563, %v562
      %v662 = vpack.c.b16 %v565, %v564
      %v663 = vpack.c.b16 %v567, %v566
      %v664 = vpack.c.b16 %v569, %v568
      %v665 = vpack.c.b16 %v571, %v570
      %v666 = vpack.c.b16 %v573, %v572
      %v667 = vpack.c.b16 %v575, %v574
      %v668 = vpack.c.b16 %v577, %v576
      %v669 = vpack.c.b16 %v579, %v578
      %v670 = vpack.c.b16 %v581, %v580
      %v671 = vpack.c.b16 %v583, %v582
      %v672 = vpack.c.b16 %v585, %v584
      %v673 = vpack.c.b16 %v587, %v586
      %v674 = vpack.c.b16 %v589, %v588
      %v675 = vpack.c.b16 %v591, %v590
      %v676 = vpack.c.b16 %v593, %v592
      %v677 = vpack.c.b16 %v595, %v594
      %v678 = vpack.c.b16 %v597, %v596
      %v679 = vpack.c.b16 %v599, %v598
      %v680 = vpack.c.b16 %v601, %v600
      %v681 = vpack.c.b16 %v603, %v602
      %v682 = vpack.c.b16 %v605, %v604
      %v683 = vpack.c.b16 %v607, %v606
      %v684 = vpack.c.b16 %v609, %v608
      %v685 = vpack.c.b16 %v611, %v610
      %v686 = vpack.c.b16 %v613, %v612
      %v687 = vpack.c.b16 %v615, %v614
      %v688 = vpack.c.b16 %v617, %v616
      %v689 = vpack.c.b16 %v619, %v618
      %v690 = vpack.c.b16 %v621, %v620
      %v691 = vpack.c.b16 %v623, %v622
      %v692 = vpack.c.b16 %v625, %v624
      %v693 = vpack.c.b16 %v626, %v626
      %vm694 = vsmask.f32 7424
      %v696 = vshrl.u32 %v627, 16
      %v698 = vshll.u32 %v627, 16
      %v700 = vrot.slane %v698, 1
      %v701 = vor.u32 %v696, %v700
      %v703 = vshll.u32 %v628, 16
      %v705 = vrot.slane %v703, 1
      %v706 = vsel %vm694, %v701, %v705
      %v707 = vshrl.u32 %v628, 16
      %v709 = vor.u32 %v707, %v705
      %v711 = vshll.u32 %v629, 16
      %v713 = vrot.slane %v711, 1
      %v714 = vsel %vm694, %v709, %v713
      %v715 = vshrl.u32 %v629, 16
      %v717 = vor.u32 %v715, %v713
      %v719 = vshll.u32 %v630, 16
      %v721 = vrot.slane %v719, 1
      %v722 = vsel %vm694, %v717, %v721
      %v723 = vshrl.u32 %v630, 16
      %v725 = vor.u32 %v723, %v721
      %v727 = vshll.u32 %v631, 16
      %v729 = vrot.slane %v727, 1
      %v730 = vsel %vm694, %v725, %v729
      %v731 = vshrl.u32 %v631, 16
      %v733 = vor.u32 %v731, %v729
      %v735 = vshll.u32 %v632, 16
      %v737 = vrot.slane %v735, 1
      %v738 = vsel %vm694, %v733, %v737
      %v739 = vshrl.u32 %v632, 16
      %v741 = vor.u32 %v739, %v737
      %v743 = vshll.u32 %v633, 16
      %v745 = vrot.slane %v743, 1
      %v746 = vsel %vm694, %v741, %v745
      %v747 = vshrl.u32 %v633, 16
      %v749 = vor.u32 %v747, %v745
      %v751 = vshll.u32 %v634, 16
      %v753 = vrot.slane %v751, 1
      %v754 = vsel %vm694, %v749, %v753
      %v755 = vshrl.u32 %v634, 16
      %v757 = vor.u32 %v755, %v753
      %v759 = vshll.u32 %v635, 16
      %v761 = vrot.slane %v759, 1
      %v762 = vsel %vm694, %v757, %v761
      %v763 = vshrl.u32 %v635, 16
      %v765 = vor.u32 %v763, %v761
      %v767 = vshll.u32 %v636, 16
      %v769 = vrot.slane %v767, 1
      %v770 = vsel %vm694, %v765, %v769
      %v771 = vshrl.u32 %v636, 16
      %v773 = vor.u32 %v771, %v769
      %v775 = vshll.u32 %v637, 16
      %v777 = vrot.slane %v775, 1
      %v778 = vsel %vm694, %v773, %v777
      %v779 = vshrl.u32 %v637, 16
      %v781 = vor.u32 %v779, %v777
      %v783 = vshll.u32 %v638, 16
      %v785 = vrot.slane %v783, 1
      %v786 = vsel %vm694, %v781, %v785
      %v787 = vshrl.u32 %v638, 16
      %v789 = vor.u32 %v787, %v785
      %v791 = vshll.u32 %v639, 16
      %v793 = vrot.slane %v791, 1
      %v794 = vsel %vm694, %v789, %v793
      %v795 = vshrl.u32 %v639, 16
      %v797 = vor.u32 %v795, %v793
      %v799 = vshll.u32 %v640, 16
      %v801 = vrot.slane %v799, 1
      %v802 = vsel %vm694, %v797, %v801
      %v803 = vshrl.u32 %v640, 16
      %v805 = vor.u32 %v803, %v801
      %v807 = vshll.u32 %v641, 16
      %v809 = vrot.slane %v807, 1
      %v810 = vsel %vm694, %v805, %v809
      %v811 = vshrl.u32 %v641, 16
      %v813 = vor.u32 %v811, %v809
      %v815 = vshll.u32 %v642, 16
      %v817 = vrot.slane %v815, 1
      %v818 = vsel %vm694, %v813, %v817
      %v819 = vshrl.u32 %v642, 16
      %v821 = vor.u32 %v819, %v817
      %v823 = vshll.u32 %v643, 16
      %v825 = vrot.slane %v823, 1
      %v826 = vsel %vm694, %v821, %v825
      %v827 = vshrl.u32 %v643, 16
      %v829 = vor.u32 %v827, %v825
      %v831 = vshll.u32 %v644, 16
      %v833 = vrot.slane %v831, 1
      %v834 = vsel %vm694, %v829, %v833
      %v835 = vshrl.u32 %v644, 16
      %v837 = vor.u32 %v835, %v833
      %v839 = vshll.u32 %v645, 16
      %v841 = vrot.slane %v839, 1
      %v842 = vsel %vm694, %v837, %v841
      %v843 = vshrl.u32 %v645, 16
      %v845 = vor.u32 %v843, %v841
      %v847 = vshll.u32 %v646, 16
      %v849 = vrot.slane %v847, 1
      %v850 = vsel %vm694, %v845, %v849
      %v851 = vshrl.u32 %v646, 16
      %v853 = vor.u32 %v851, %v849
      %v855 = vshll.u32 %v647, 16
      %v857 = vrot.slane %v855, 1
      %v858 = vsel %vm694, %v853, %v857
      %v859 = vshrl.u32 %v647, 16
      %v861 = vor.u32 %v859, %v857
      %v863 = vshll.u32 %v648, 16
      %v865 = vrot.slane %v863, 1
      %v866 = vsel %vm694, %v861, %v865
      %v867 = vshrl.u32 %v648, 16
      %v869 = vor.u32 %v867, %v865
      %v871 = vshll.u32 %v649, 16
      %v873 = vrot.slane %v871, 1
      %v874 = vsel %vm694, %v869, %v873
      %v875 = vshrl.u32 %v649, 16
      %v877 = vor.u32 %v875, %v873
      %v879 = vshll.u32 %v650, 16
      %v881 = vrot.slane %v879, 1
      %v882 = vsel %vm694, %v877, %v881
      %v883 = vshrl.u32 %v650, 16
      %v885 = vor.u32 %v883, %v881
      %v887 = vshll.u32 %v651, 16
      %v889 = vrot.slane %v887, 1
      %v890 = vsel %vm694, %v885, %v889
      %v891 = vshrl.u32 %v651, 16
      %v893 = vor.u32 %v891, %v889
      %v895 = vshll.u32 %v652, 16
      %v897 = vrot.slane %v895, 1
      %v898 = vsel %vm694, %v893, %v897
      %v899 = vshrl.u32 %v652, 16
      %v901 = vor.u32 %v899, %v897
      %v903 = vshll.u32 %v653, 16
      %v905 = vrot.slane %v903, 1
      %v906 = vsel %vm694, %v901, %v905
      %v907 = vshrl.u32 %v653, 16
      %v909 = vor.u32 %v907, %v905
      %v911 = vshll.u32 %v654, 16
      %v913 = vrot.slane %v911, 1
      %v914 = vsel %vm694, %v909, %v913
      %v915 = vshrl.u32 %v654, 16
      %v917 = vor.u32 %v915, %v913
      %v919 = vshll.u32 %v655, 16
      %v921 = vrot.slane %v919, 1
      %v922 = vsel %vm694, %v917, %v921
      %v923 = vshrl.u32 %v655, 16
      %v925 = vor.u32 %v923, %v921
      %v927 = vshll.u32 %v656, 16
      %v929 = vrot.slane %v927, 1
      %v930 = vsel %vm694, %v925, %v929
      %v931 = vshrl.u32 %v656, 16
      %v933 = vor.u32 %v931, %v929
      %v935 = vshll.u32 %v657, 16
      %v937 = vrot.slane %v935, 1
      %v938 = vsel %vm694, %v933, %v937
      %v939 = vshrl.u32 %v657, 16
      %v941 = vor.u32 %v939, %v937
      %v943 = vshll.u32 %v658, 16
      %v945 = vrot.slane %v943, 1
      %v946 = vsel %vm694, %v941, %v945
      %v947 = vshrl.u32 %v658, 16
      %v949 = vor.u32 %v947, %v945
      %v951 = vshll.u32 %v659, 16
      %v953 = vrot.slane %v951, 1
      %v954 = vsel %vm694, %v949, %v953
      %v955 = vshrl.u32 %v659, 16
      %v957 = vor.u32 %v955, %v953
      %v959 = vshll.u32 %v660, 16
      %v961 = vrot.slane %v959, 1
      %v962 = vsel %vm694, %v957, %v961
      %v963 = vshrl.u32 %v660, 16
      %v965 = vor.u32 %v963, %v961
      %v967 = vshll.u32 %v661, 16
      %v969 = vrot.slane %v967, 1
      %v970 = vsel %vm694, %v965, %v969
      %v971 = vshrl.u32 %v661, 16
      %v973 = vor.u32 %v971, %v969
      %v975 = vshll.u32 %v662, 16
      %v977 = vrot.slane %v975, 1
      %v978 = vsel %vm694, %v973, %v977
      %v979 = vshrl.u32 %v662, 16
      %v981 = vor.u32 %v979, %v977
      %v983 = vshll.u32 %v663, 16
      %v985 = vrot.slane %v983, 1
      %v986 = vsel %vm694, %v981, %v985
      %v987 = vshrl.u32 %v663, 16
      %v989 = vor.u32 %v987, %v985
      %v991 = vshll.u32 %v664, 16
      %v993 = vrot.slane %v991, 1
      %v994 = vsel %vm694, %v989, %v993
      %v995 = vshrl.u32 %v664, 16
      %v997 = vor.u32 %v995, %v993
      %v999 = vshll.u32 %v665, 16
      %v1001 = vrot.slane %v999, 1
      %v1002 = vsel %vm694, %v997, %v1001
      %v1003 = vshrl.u32 %v665, 16
      %v1005 = vor.u32 %v1003, %v1001
      %v1007 = vshll.u32 %v666, 16
      %v1009 = vrot.slane %v1007, 1
      %v1010 = vsel %vm694, %v1005, %v1009
      %v1011 = vshrl.u32 %v666, 16
      %v1013 = vor.u32 %v1011, %v1009
      %v1015 = vshll.u32 %v667, 16
      %v1017 = vrot.slane %v1015, 1
      %v1018 = vsel %vm694, %v1013, %v1017
      %v1019 = vshrl.u32 %v667, 16
      %v1021 = vor.u32 %v1019, %v1017
      %v1023 = vshll.u32 %v668, 16
      %v1025 = vrot.slane %v1023, 1
      %v1026 = vsel %vm694, %v1021, %v1025
      %v1027 = vshrl.u32 %v668, 16
      %v1029 = vor.u32 %v1027, %v1025
      %v1031 = vshll.u32 %v669, 16
      %v1033 = vrot.slane %v1031, 1
      %v1034 = vsel %vm694, %v1029, %v1033
      %v1035 = vshrl.u32 %v669, 16
      %v1037 = vor.u32 %v1035, %v1033
      %v1039 = vshll.u32 %v670, 16
      %v1041 = vrot.slane %v1039, 1
      %v1042 = vsel %vm694, %v1037, %v1041
      %v1043 = vshrl.u32 %v670, 16
      %v1045 = vor.u32 %v1043, %v1041
      %v1047 = vshll.u32 %v671, 16
      %v1049 = vrot.slane %v1047, 1
      %v1050 = vsel %vm694, %v1045, %v1049
      %v1051 = vshrl.u32 %v671, 16
      %v1053 = vor.u32 %v1051, %v1049
      %v1055 = vshll.u32 %v672, 16
      %v1057 = vrot.slane %v1055, 1
      %v1058 = vsel %vm694, %v1053, %v1057
      %v1059 = vshrl.u32 %v672, 16
      %v1061 = vor.u32 %v1059, %v1057
      %v1063 = vshll.u32 %v673, 16
      %v1065 = vrot.slane %v1063, 1
      %v1066 = vsel %vm694, %v1061, %v1065
      %v1067 = vshrl.u32 %v673, 16
      %v1069 = vor.u32 %v1067, %v1065
      %v1071 = vshll.u32 %v674, 16
      %v1073 = vrot.slane %v1071, 1
      %v1074 = vsel %vm694, %v1069, %v1073
      %v1075 = vshrl.u32 %v674, 16
      %v1077 = vor.u32 %v1075, %v1073
      %v1079 = vshll.u32 %v675, 16
      %v1081 = vrot.slane %v1079, 1
      %v1082 = vsel %vm694, %v1077, %v1081
      %v1083 = vshrl.u32 %v675, 16
      %v1085 = vor.u32 %v1083, %v1081
      %v1087 = vshll.u32 %v676, 16
      %v1089 = vrot.slane %v1087, 1
      %v1090 = vsel %vm694, %v1085, %v1089
      %v1091 = vshrl.u32 %v676, 16
      %v1093 = vor.u32 %v1091, %v1089
      %v1095 = vshll.u32 %v677, 16
      %v1097 = vrot.slane %v1095, 1
      %v1098 = vsel %vm694, %v1093, %v1097
      %v1099 = vshrl.u32 %v677, 16
      %v1101 = vor.u32 %v1099, %v1097
      %v1103 = vshll.u32 %v678, 16
      %v1105 = vrot.slane %v1103, 1
      %v1106 = vsel %vm694, %v1101, %v1105
      %v1107 = vshrl.u32 %v678, 16
      %v1109 = vor.u32 %v1107, %v1105
      %v1111 = vshll.u32 %v679, 16
      %v1113 = vrot.slane %v1111, 1
      %v1114 = vsel %vm694, %v1109, %v1113
      %v1115 = vshrl.u32 %v679, 16
      %v1117 = vor.u32 %v1115, %v1113
      %v1119 = vshll.u32 %v680, 16
      %v1121 = vrot.slane %v1119, 1
      %v1122 = vsel %vm694, %v1117, %v1121
      %v1123 = vshrl.u32 %v680, 16
      %v1125 = vor.u32 %v1123, %v1121
      %v1127 = vshll.u32 %v681, 16
      %v1129 = vrot.slane %v1127, 1
      %v1130 = vsel %vm694, %v1125, %v1129
      %v1131 = vshrl.u32 %v681, 16
      %v1133 = vor.u32 %v1131, %v1129
      %v1135 = vshll.u32 %v682, 16
      %v1137 = vrot.slane %v1135, 1
      %v1138 = vsel %vm694, %v1133, %v1137
      %v1139 = vshrl.u32 %v682, 16
      %v1141 = vor.u32 %v1139, %v1137
      %v1143 = vshll.u32 %v683, 16
      %v1145 = vrot.slane %v1143, 1
      %v1146 = vsel %vm694, %v1141, %v1145
      %v1147 = vshrl.u32 %v683, 16
      %v1149 = vor.u32 %v1147, %v1145
      %v1151 = vshll.u32 %v684, 16
      %v1153 = vrot.slane %v1151, 1
      %v1154 = vsel %vm694, %v1149, %v1153
      %v1155 = vshrl.u32 %v684, 16
      %v1157 = vor.u32 %v1155, %v1153
      %v1159 = vshll.u32 %v685, 16
      %v1161 = vrot.slane %v1159, 1
      %v1162 = vsel %vm694, %v1157, %v1161
      %v1163 = vshrl.u32 %v685, 16
      %v1165 = vor.u32 %v1163, %v1161
      %v1167 = vshll.u32 %v686, 16
      %v1169 = vrot.slane %v1167, 1
      %v1170 = vsel %vm694, %v1165, %v1169
      %v1171 = vshrl.u32 %v686, 16
      %v1173 = vor.u32 %v1171, %v1169
      %v1175 = vshll.u32 %v687, 16
      %v1177 = vrot.slane %v1175, 1
      %v1178 = vsel %vm694, %v1173, %v1177
      %v1179 = vshrl.u32 %v687, 16
      %v1181 = vor.u32 %v1179, %v1177
      %v1183 = vshll.u32 %v688, 16
      %v1185 = vrot.slane %v1183, 1
      %v1186 = vsel %vm694, %v1181, %v1185
      %v1187 = vshrl.u32 %v688, 16
      %v1189 = vor.u32 %v1187, %v1185
      %v1191 = vshll.u32 %v689, 16
      %v1193 = vrot.slane %v1191, 1
      %v1194 = vsel %vm694, %v1189, %v1193
      %v1195 = vshrl.u32 %v689, 16
      %v1197 = vor.u32 %v1195, %v1193
      %v1199 = vshll.u32 %v690, 16
      %v1201 = vrot.slane %v1199, 1
      %v1202 = vsel %vm694, %v1197, %v1201
      %v1203 = vshrl.u32 %v690, 16
      %v1205 = vor.u32 %v1203, %v1201
      %v1207 = vshll.u32 %v691, 16
      %v1209 = vrot.slane %v1207, 1
      %v1210 = vsel %vm694, %v1205, %v1209
      %v1211 = vshrl.u32 %v691, 16
      %v1213 = vor.u32 %v1211, %v1209
      %v1215 = vshll.u32 %v692, 16
      %v1217 = vrot.slane %v1215, 1
      %v1218 = vsel %vm694, %v1213, %v1217
      %v1219 = vshrl.u32 %v692, 16
      %v1221 = vor.u32 %v1219, %v1217
      %v1223 = vshll.u32 %v693, 16
      %v1225 = vrot.slane %v1223, 1
      %v1226 = vsel %vm694, %v1221, %v1225
      %v1229 = vunpack.c.l.b16 %v359
      %v1230 = vunpack.c.l.b16 %v360
      %v1231 = vpack.c.b16 %v1230, %v1229
      %vm1232 = vcmask 97280
      %v1234 = vsel %vm1232, %v706, 0
      %v1237 = vsel %vm1232, %v714, 0
      %v1240 = vsel %vm1232, %v722, 0
      %v1243 = vsel %vm1232, %v730, 0
      %v1246 = vsel %vm1232, %v738, 0
      %v1249 = vsel %vm1232, %v746, 0
      %v1252 = vsel %vm1232, %v754, 0
      %v1255 = vsel %vm1232, %v762, 0
      %v1258 = vsel %vm1232, %v770, 0
      %v1261 = vsel %vm1232, %v778, 0
      %v1264 = vsel %vm1232, %v786, 0
      %v1267 = vsel %vm1232, %v794, 0
      %v1270 = vsel %vm1232, %v802, 0
      %v1273 = vsel %vm1232, %v810, 0
      %v1276 = vsel %vm1232, %v818, 0
      %v1279 = vsel %vm1232, %v826, 0
      %v1282 = vsel %vm1232, %v834, 0
      %v1285 = vsel %vm1232, %v842, 0
      %v1288 = vsel %vm1232, %v850, 0
      %v1291 = vsel %vm1232, %v858, 0
      %v1294 = vsel %vm1232, %v866, 0
      %v1297 = vsel %vm1232, %v874, 0
      %v1300 = vsel %vm1232, %v882, 0
      %v1303 = vsel %vm1232, %v890, 0
      %v1306 = vsel %vm1232, %v898, 0
      %v1309 = vsel %vm1232, %v906, 0
      %v1312 = vsel %vm1232, %v914, 0
      %v1315 = vsel %vm1232, %v922, 0
      %v1318 = vsel %vm1232, %v930, 0
      %v1321 = vsel %vm1232, %v938, 0
      %v1324 = vsel %vm1232, %v946, 0
      %v1327 = vsel %vm1232, %v954, 0
      %v1330 = vsel %vm1232, %v962, 0
      %v1333 = vsel %vm1232, %v970, 0
      %v1336 = vsel %vm1232, %v978, 0
      %v1339 = vsel %vm1232, %v986, 0
      %v1342 = vsel %vm1232, %v994, 0
      %v1345 = vsel %vm1232, %v1002, 0
      %v1348 = vsel %vm1232, %v1010, 0
      %v1351 = vsel %vm1232, %v1018, 0
      %v1354 = vsel %vm1232, %v1026, 0
      %v1357 = vsel %vm1232, %v1034, 0
      %v1360 = vsel %vm1232, %v1042, 0
      %v1363 = vsel %vm1232, %v1050, 0
      %v1366 = vsel %vm1232, %v1058, 0
      %v1369 = vsel %vm1232, %v1066, 0
      %v1372 = vsel %vm1232, %v1074, 0
      %v1375 = vsel %vm1232, %v1082, 0
      %v1378 = vsel %vm1232, %v1090, 0
      %v1381 = vsel %vm1232, %v1098, 0
      %v1384 = vsel %vm1232, %v1106, 0
      %v1387 = vsel %vm1232, %v1114, 0
      %v1390 = vsel %vm1232, %v1122, 0
      %v1393 = vsel %vm1232, %v1130, 0
      %v1396 = vsel %vm1232, %v1138, 0
      %v1399 = vsel %vm1232, %v1146, 0
      %v1402 = vsel %vm1232, %v1154, 0
      %v1405 = vsel %vm1232, %v1162, 0
      %v1408 = vsel %vm1232, %v1170, 0
      %v1411 = vsel %vm1232, %v1178, 0
      %v1414 = vsel %vm1232, %v1186, 0
      %v1417 = vsel %vm1232, %v1194, 0
      %v1420 = vsel %vm1232, %v1202, 0
      %v1423 = vsel %vm1232, %v1210, 0
      %v1426 = vsel %vm1232, %v1218, 0
      %v1429 = vsel %vm1232, %v1226, 0
      %vm1431 = vcmask 1045504
      %v1433 = vsel %vm1431, %v1231, 0
      %1435 = vmatprep.subr.bf16.mxu0 0
      %1436 = vmatpush1.bf16.msra.mxu0 0
      %1437 = vmatprep.subr.bf16.mxu0 0
      %1438 = vmatpush1.bf16.msra.mxu0 0
      %1439 = vmatprep.subr.bf16.mxu0 0
      %1440 = vmatpush1.bf16.msra.mxu0 0
      %1441 = vmatprep.subr.bf16.mxu0 0
      %1442 = vmatpush1.bf16.msra.mxu0 0
      %1443 = vmatprep.subr.bf16.mxu0 0
      %1444 = vmatpush1.bf16.msra.mxu0 0
      %1445 = vmatprep.subr.bf16.mxu0 0
      %1446 = vmatpush1.bf16.msra.mxu0 0
      %1447 = vmatprep.subr.bf16.mxu0 0
      %1448 = vmatpush1.bf16.msra.mxu0 0
      %1449 = vmatprep.subr.bf16.mxu0 0
      %1450 = vmatpush1.bf16.msra.mxu0 %v1433
      %1451 = vmatprep.subr.bf16.mxu0 0
      %1452 = vmatpush2.bf16.msra.mxu0 0
      %1453 = vmatprep.subr.bf16.mxu0 0
      %1454 = vmatpush2.bf16.msra.mxu0 0
      %1455 = vmatprep.subr.bf16.mxu0 0
      %1456 = vmatpush2.bf16.msra.mxu0 0
      %1457 = vmatprep.subr.bf16.mxu0 0
      %1458 = vmatpush2.bf16.msra.mxu0 0
      %1459 = vmatprep.subr.bf16.mxu0 0
      %1460 = vmatpush2.bf16.msra.mxu0 0
      %1461 = vmatprep.subr.bf16.mxu0 0
      %1462 = vmatpush2.bf16.msra.mxu0 0
      %1463 = vmatprep.subr.bf16.mxu0 0
      %1464 = vmatpush2.bf16.msra.mxu0 0
      %1465 = vmatprep.subr.bf16.mxu0 0
      %1466 = vmatpush2.bf16.msra.mxu0 0
      %1467 = vmatprep.mubr.bf16.mxu0 0
      %1468 = vmatmul.mubr.bf16.gmra.mxu0 %v1234
      %v1469 = vpop.f32.mrf.mxu0
      %v1470 = vadd.f32 0.0, %v1469
      %v1471 = vpop.f32.mrf.mxu0
      %v1472 = vpop.f32.mrf.mxu0
      %v1473 = vadd.f32 0.0, %v1472
      %v1474 = vpop.f32.mrf.mxu0
      %1475 = vmatprep.mubr.bf16.mxu0 0
      %1476 = vmatmul.mubr.bf16.gmra.mxu0 %v1237
      %v1477 = vpop.f32.mrf.mxu0
      %v1478 = vadd.f32 0.0, %v1477
      %v1479 = vpop.f32.mrf.mxu0
      %v1480 = vpop.f32.mrf.mxu0
      %v1481 = vadd.f32 0.0, %v1480
      %v1482 = vpop.f32.mrf.mxu0
      %1483 = vmatprep.mubr.bf16.mxu0 0
      %1484 = vmatmul.mubr.bf16.gmra.mxu0 %v1240
      %v1485 = vpop.f32.mrf.mxu0
      %v1486 = vadd.f32 0.0, %v1485
      %v1487 = vpop.f32.mrf.mxu0
      %v1488 = vpop.f32.mrf.mxu0
      %v1489 = vadd.f32 0.0, %v1488
      %v1490 = vpop.f32.mrf.mxu0
      %1491 = vmatprep.mubr.bf16.mxu0 0
      %1492 = vmatmul.mubr.bf16.gmra.mxu0 %v1243
      %v1493 = vpop.f32.mrf.mxu0
      %v1494 = vadd.f32 0.0, %v1493
      %v1495 = vpop.f32.mrf.mxu0
      %v1496 = vpop.f32.mrf.mxu0
      %v1497 = vadd.f32 0.0, %v1496
      %v1498 = vpop.f32.mrf.mxu0
      %1499 = vmatprep.mubr.bf16.mxu0 0
      %1500 = vmatmul.mubr.bf16.gmra.mxu0 %v1246
      %v1501 = vpop.f32.mrf.mxu0
      %v1502 = vadd.f32 0.0, %v1501
      %v1503 = vpop.f32.mrf.mxu0
      %v1504 = vpop.f32.mrf.mxu0
      %v1505 = vadd.f32 0.0, %v1504
      %v1506 = vpop.f32.mrf.mxu0
      %1507 = vmatprep.mubr.bf16.mxu0 0
      %1508 = vmatmul.mubr.bf16.gmra.mxu0 %v1249
      %v1509 = vpop.f32.mrf.mxu0
      %v1510 = vadd.f32 0.0, %v1509
      %v1511 = vpop.f32.mrf.mxu0
      %v1512 = vpop.f32.mrf.mxu0
      %v1513 = vadd.f32 0.0, %v1512
      %v1514 = vpop.f32.mrf.mxu0
      %1515 = vmatprep.mubr.bf16.mxu0 0
      %1516 = vmatmul.mubr.bf16.gmra.mxu0 %v1252
      %v1517 = vpop.f32.mrf.mxu0
      %v1518 = vadd.f32 0.0, %v1517
      %v1519 = vpop.f32.mrf.mxu0
      %v1520 = vpop.f32.mrf.mxu0
      %v1521 = vadd.f32 0.0, %v1520
      %v1522 = vpop.f32.mrf.mxu0
      %1523 = vmatprep.mubr.bf16.mxu0 0
      %1524 = vmatmul.mubr.bf16.gmra.mxu0 %v1255
      %v1525 = vpop.f32.mrf.mxu0
      %v1526 = vadd.f32 0.0, %v1525
      %v1527 = vpop.f32.mrf.mxu0
      %v1528 = vpop.f32.mrf.mxu0
      %v1529 = vadd.f32 0.0, %v1528
      %v1530 = vpop.f32.mrf.mxu0
      %1531 = vmatprep.mubr.bf16.mxu0 0
      %1532 = vmatmul.mubr.bf16.gmra.mxu0 %v1258
      %v1533 = vpop.f32.mrf.mxu0
      %v1534 = vadd.f32 0.0, %v1533
      %v1535 = vpop.f32.mrf.mxu0
      %v1536 = vpop.f32.mrf.mxu0
      %v1537 = vadd.f32 0.0, %v1536
      %v1538 = vpop.f32.mrf.mxu0
      %1539 = vmatprep.mubr.bf16.mxu0 0
      %1540 = vmatmul.mubr.bf16.gmra.mxu0 %v1261
      %v1541 = vpop.f32.mrf.mxu0
      %v1542 = vadd.f32 0.0, %v1541
      %v1543 = vpop.f32.mrf.mxu0
      %v1544 = vpop.f32.mrf.mxu0
      %v1545 = vadd.f32 0.0, %v1544
      %v1546 = vpop.f32.mrf.mxu0
      %1547 = vmatprep.mubr.bf16.mxu0 0
      %1548 = vmatmul.mubr.bf16.gmra.mxu0 %v1264
      %v1549 = vpop.f32.mrf.mxu0
      %v1550 = vadd.f32 0.0, %v1549
      %v1551 = vpop.f32.mrf.mxu0
      %v1552 = vpop.f32.mrf.mxu0
      %v1553 = vadd.f32 0.0, %v1552
      %v1554 = vpop.f32.mrf.mxu0
      %1555 = vmatprep.mubr.bf16.mxu0 0
      %1556 = vmatmul.mubr.bf16.gmra.mxu0 %v1267
      %v1557 = vpop.f32.mrf.mxu0
      %v1558 = vadd.f32 0.0, %v1557
      %v1559 = vpop.f32.mrf.mxu0
      %v1560 = vpop.f32.mrf.mxu0
      %v1561 = vadd.f32 0.0, %v1560
      %v1562 = vpop.f32.mrf.mxu0
      %1563 = vmatprep.mubr.bf16.mxu0 0
      %1564 = vmatmul.mubr.bf16.gmra.mxu0 %v1270
      %v1565 = vpop.f32.mrf.mxu0
      %v1566 = vadd.f32 0.0, %v1565
      %v1567 = vpop.f32.mrf.mxu0
      %v1568 = vpop.f32.mrf.mxu0
      %v1569 = vadd.f32 0.0, %v1568
      %v1570 = vpop.f32.mrf.mxu0
      %1571 = vmatprep.mubr.bf16.mxu0 0
      %1572 = vmatmul.mubr.bf16.gmra.mxu0 %v1273
      %v1573 = vpop.f32.mrf.mxu0
      %v1574 = vadd.f32 0.0, %v1573
      %v1575 = vpop.f32.mrf.mxu0
      %v1576 = vpop.f32.mrf.mxu0
      %v1577 = vadd.f32 0.0, %v1576
      %v1578 = vpop.f32.mrf.mxu0
      %1579 = vmatprep.mubr.bf16.mxu0 0
      %1580 = vmatmul.mubr.bf16.gmra.mxu0 %v1276
      %v1581 = vpop.f32.mrf.mxu0
      %v1582 = vadd.f32 0.0, %v1581
      %v1583 = vpop.f32.mrf.mxu0
      %v1584 = vpop.f32.mrf.mxu0
      %v1585 = vadd.f32 0.0, %v1584
      %v1586 = vpop.f32.mrf.mxu0
      %1587 = vmatprep.mubr.bf16.mxu0 0
      %1588 = vmatmul.mubr.bf16.gmra.mxu0 %v1279
      %v1589 = vpop.f32.mrf.mxu0
      %v1590 = vadd.f32 0.0, %v1589
      %v1591 = vpop.f32.mrf.mxu0
      %v1592 = vpop.f32.mrf.mxu0
      %v1593 = vadd.f32 0.0, %v1592
      %v1594 = vpop.f32.mrf.mxu0
      %1595 = vmatprep.mubr.bf16.mxu0 0
      %1596 = vmatmul.mubr.bf16.gmra.mxu0 %v1282
      %v1597 = vpop.f32.mrf.mxu0
      %v1598 = vadd.f32 0.0, %v1597
      %v1599 = vpop.f32.mrf.mxu0
      %v1600 = vpop.f32.mrf.mxu0
      %v1601 = vadd.f32 0.0, %v1600
      %v1602 = vpop.f32.mrf.mxu0
      %1603 = vmatprep.mubr.bf16.mxu0 0
      %1604 = vmatmul.mubr.bf16.gmra.mxu0 %v1285
      %v1605 = vpop.f32.mrf.mxu0
      %v1606 = vadd.f32 0.0, %v1605
      %v1607 = vpop.f32.mrf.mxu0
      %v1608 = vpop.f32.mrf.mxu0
      %v1609 = vadd.f32 0.0, %v1608
      %v1610 = vpop.f32.mrf.mxu0
      %1611 = vmatprep.mubr.bf16.mxu0 0
      %1612 = vmatmul.mubr.bf16.gmra.mxu0 %v1288
      %v1613 = vpop.f32.mrf.mxu0
      %v1614 = vadd.f32 0.0, %v1613
      %v1615 = vpop.f32.mrf.mxu0
      %v1616 = vpop.f32.mrf.mxu0
      %v1617 = vadd.f32 0.0, %v1616
      %v1618 = vpop.f32.mrf.mxu0
      %1619 = vmatprep.mubr.bf16.mxu0 0
      %1620 = vmatmul.mubr.bf16.gmra.mxu0 %v1291
      %v1621 = vpop.f32.mrf.mxu0
      %v1622 = vadd.f32 0.0, %v1621
      %v1623 = vpop.f32.mrf.mxu0
      %v1624 = vpop.f32.mrf.mxu0
      %v1625 = vadd.f32 0.0, %v1624
      %v1626 = vpop.f32.mrf.mxu0
      %1627 = vmatprep.mubr.bf16.mxu0 0
      %1628 = vmatmul.mubr.bf16.gmra.mxu0 %v1294
      %v1629 = vpop.f32.mrf.mxu0
      %v1630 = vadd.f32 0.0, %v1629
      %v1631 = vpop.f32.mrf.mxu0
      %v1632 = vpop.f32.mrf.mxu0
      %v1633 = vadd.f32 0.0, %v1632
      %v1634 = vpop.f32.mrf.mxu0
      %1635 = vmatprep.mubr.bf16.mxu0 0
      %1636 = vmatmul.mubr.bf16.gmra.mxu0 %v1297
      %v1637 = vpop.f32.mrf.mxu0
      %v1638 = vadd.f32 0.0, %v1637
      %v1639 = vpop.f32.mrf.mxu0
      %v1640 = vpop.f32.mrf.mxu0
      %v1641 = vadd.f32 0.0, %v1640
      %v1642 = vpop.f32.mrf.mxu0
      %1643 = vmatprep.mubr.bf16.mxu0 0
      %1644 = vmatmul.mubr.bf16.gmra.mxu0 %v1300
      %v1645 = vpop.f32.mrf.mxu0
      %v1646 = vadd.f32 0.0, %v1645
      %v1647 = vpop.f32.mrf.mxu0
      %v1648 = vpop.f32.mrf.mxu0
      %v1649 = vadd.f32 0.0, %v1648
      %v1650 = vpop.f32.mrf.mxu0
      %1651 = vmatprep.mubr.bf16.mxu0 0
      %1652 = vmatmul.mubr.bf16.gmra.mxu0 %v1303
      %v1653 = vpop.f32.mrf.mxu0
      %v1654 = vadd.f32 0.0, %v1653
      %v1655 = vpop.f32.mrf.mxu0
      %v1656 = vpop.f32.mrf.mxu0
      %v1657 = vadd.f32 0.0, %v1656
      %v1658 = vpop.f32.mrf.mxu0
      %1659 = vmatprep.mubr.bf16.mxu0 0
      %1660 = vmatmul.mubr.bf16.gmra.mxu0 %v1306
      %v1661 = vpop.f32.mrf.mxu0
      %v1662 = vadd.f32 0.0, %v1661
      %v1663 = vpop.f32.mrf.mxu0
      %v1664 = vpop.f32.mrf.mxu0
      %v1665 = vadd.f32 0.0, %v1664
      %v1666 = vpop.f32.mrf.mxu0
      %1667 = vmatprep.mubr.bf16.mxu0 0
      %1668 = vmatmul.mubr.bf16.gmra.mxu0 %v1309
      %v1669 = vpop.f32.mrf.mxu0
      %v1670 = vadd.f32 0.0, %v1669
      %v1671 = vpop.f32.mrf.mxu0
      %v1672 = vpop.f32.mrf.mxu0
      %v1673 = vadd.f32 0.0, %v1672
      %v1674 = vpop.f32.mrf.mxu0
      %1675 = vmatprep.mubr.bf16.mxu0 0
      %1676 = vmatmul.mubr.bf16.gmra.mxu0 %v1312
      %v1677 = vpop.f32.mrf.mxu0
      %v1678 = vadd.f32 0.0, %v1677
      %v1679 = vpop.f32.mrf.mxu0
      %v1680 = vpop.f32.mrf.mxu0
      %v1681 = vadd.f32 0.0, %v1680
      %v1682 = vpop.f32.mrf.mxu0
      %1683 = vmatprep.mubr.bf16.mxu0 0
      %1684 = vmatmul.mubr.bf16.gmra.mxu0 %v1315
      %v1685 = vpop.f32.mrf.mxu0
      %v1686 = vadd.f32 0.0, %v1685
      %v1687 = vpop.f32.mrf.mxu0
      %v1688 = vpop.f32.mrf.mxu0
      %v1689 = vadd.f32 0.0, %v1688
      %v1690 = vpop.f32.mrf.mxu0
      %1691 = vmatprep.mubr.bf16.mxu0 0
      %1692 = vmatmul.mubr.bf16.gmra.mxu0 %v1318
      %v1693 = vpop.f32.mrf.mxu0
      %v1694 = vadd.f32 0.0, %v1693
      %v1695 = vpop.f32.mrf.mxu0
      %v1696 = vpop.f32.mrf.mxu0
      %v1697 = vadd.f32 0.0, %v1696
      %v1698 = vpop.f32.mrf.mxu0
      %1699 = vmatprep.mubr.bf16.mxu0 0
      %1700 = vmatmul.mubr.bf16.gmra.mxu0 %v1321
      %v1701 = vpop.f32.mrf.mxu0
      %v1702 = vadd.f32 0.0, %v1701
      %v1703 = vpop.f32.mrf.mxu0
      %v1704 = vpop.f32.mrf.mxu0
      %v1705 = vadd.f32 0.0, %v1704
      %v1706 = vpop.f32.mrf.mxu0
      %1707 = vmatprep.mubr.bf16.mxu0 0
      %1708 = vmatmul.mubr.bf16.gmra.mxu0 %v1324
      %v1709 = vpop.f32.mrf.mxu0
      %v1710 = vadd.f32 0.0, %v1709
      %v1711 = vpop.f32.mrf.mxu0
      %v1712 = vpop.f32.mrf.mxu0
      %v1713 = vadd.f32 0.0, %v1712
      %v1714 = vpop.f32.mrf.mxu0
      %1715 = vmatprep.mubr.bf16.mxu0 0
      %1716 = vmatmul.mubr.bf16.gmra.mxu0 %v1327
      %v1717 = vpop.f32.mrf.mxu0
      %v1718 = vadd.f32 0.0, %v1717
      %v1719 = vpop.f32.mrf.mxu0
      %v1720 = vpop.f32.mrf.mxu0
      %v1721 = vadd.f32 0.0, %v1720
      %v1722 = vpop.f32.mrf.mxu0
      %1723 = vmatprep.mubr.bf16.mxu0 0
      %1724 = vmatmul.mubr.bf16.gmra.mxu0 %v1330
      %v1725 = vpop.f32.mrf.mxu0
      %v1726 = vadd.f32 0.0, %v1725
      %v1727 = vpop.f32.mrf.mxu0
      %v1728 = vpop.f32.mrf.mxu0
      %v1729 = vadd.f32 0.0, %v1728
      %v1730 = vpop.f32.mrf.mxu0
      %1731 = vmatprep.mubr.bf16.mxu0 0
      %1732 = vmatmul.mubr.bf16.gmra.mxu0 %v1333
      %v1733 = vpop.f32.mrf.mxu0
      %v1734 = vadd.f32 0.0, %v1733
      %v1735 = vpop.f32.mrf.mxu0
      %v1736 = vpop.f32.mrf.mxu0
      %v1737 = vadd.f32 0.0, %v1736
      %v1738 = vpop.f32.mrf.mxu0
      %1739 = vmatprep.mubr.bf16.mxu0 0
      %1740 = vmatmul.mubr.bf16.gmra.mxu0 %v1336
      %v1741 = vpop.f32.mrf.mxu0
      %v1742 = vadd.f32 0.0, %v1741
      %v1743 = vpop.f32.mrf.mxu0
      %v1744 = vpop.f32.mrf.mxu0
      %v1745 = vadd.f32 0.0, %v1744
      %v1746 = vpop.f32.mrf.mxu0
      %1747 = vmatprep.mubr.bf16.mxu0 0
      %1748 = vmatmul.mubr.bf16.gmra.mxu0 %v1339
      %v1749 = vpop.f32.mrf.mxu0
      %v1750 = vadd.f32 0.0, %v1749
      %v1751 = vpop.f32.mrf.mxu0
      %v1752 = vpop.f32.mrf.mxu0
      %v1753 = vadd.f32 0.0, %v1752
      %v1754 = vpop.f32.mrf.mxu0
      %1755 = vmatprep.mubr.bf16.mxu0 0
      %1756 = vmatmul.mubr.bf16.gmra.mxu0 %v1342
      %v1757 = vpop.f32.mrf.mxu0
      %v1758 = vadd.f32 0.0, %v1757
      %v1759 = vpop.f32.mrf.mxu0
      %v1760 = vpop.f32.mrf.mxu0
      %v1761 = vadd.f32 0.0, %v1760
      %v1762 = vpop.f32.mrf.mxu0
      %1763 = vmatprep.mubr.bf16.mxu0 0
      %1764 = vmatmul.mubr.bf16.gmra.mxu0 %v1345
      %v1765 = vpop.f32.mrf.mxu0
      %v1766 = vadd.f32 0.0, %v1765
      %v1767 = vpop.f32.mrf.mxu0
      %v1768 = vpop.f32.mrf.mxu0
      %v1769 = vadd.f32 0.0, %v1768
      %v1770 = vpop.f32.mrf.mxu0
      %1771 = vmatprep.mubr.bf16.mxu0 0
      %1772 = vmatmul.mubr.bf16.gmra.mxu0 %v1348
      %v1773 = vpop.f32.mrf.mxu0
      %v1774 = vadd.f32 0.0, %v1773
      %v1775 = vpop.f32.mrf.mxu0
      %v1776 = vpop.f32.mrf.mxu0
      %v1777 = vadd.f32 0.0, %v1776
      %v1778 = vpop.f32.mrf.mxu0
      %1779 = vmatprep.mubr.bf16.mxu0 0
      %1780 = vmatmul.mubr.bf16.gmra.mxu0 %v1351
      %v1781 = vpop.f32.mrf.mxu0
      %v1782 = vadd.f32 0.0, %v1781
      %v1783 = vpop.f32.mrf.mxu0
      %v1784 = vpop.f32.mrf.mxu0
      %v1785 = vadd.f32 0.0, %v1784
      %v1786 = vpop.f32.mrf.mxu0
      %1787 = vmatprep.mubr.bf16.mxu0 0
      %1788 = vmatmul.mubr.bf16.gmra.mxu0 %v1354
      %v1789 = vpop.f32.mrf.mxu0
      %v1790 = vadd.f32 0.0, %v1789
      %v1791 = vpop.f32.mrf.mxu0
      %v1792 = vpop.f32.mrf.mxu0
      %v1793 = vadd.f32 0.0, %v1792
      %v1794 = vpop.f32.mrf.mxu0
      %1795 = vmatprep.mubr.bf16.mxu0 0
      %1796 = vmatmul.mubr.bf16.gmra.mxu0 %v1357
      %v1797 = vpop.f32.mrf.mxu0
      %v1798 = vadd.f32 0.0, %v1797
      %v1799 = vpop.f32.mrf.mxu0
      %v1800 = vpop.f32.mrf.mxu0
      %v1801 = vadd.f32 0.0, %v1800
      %v1802 = vpop.f32.mrf.mxu0
      %1803 = vmatprep.mubr.bf16.mxu0 0
      %1804 = vmatmul.mubr.bf16.gmra.mxu0 %v1360
      %v1805 = vpop.f32.mrf.mxu0
      %v1806 = vadd.f32 0.0, %v1805
      %v1807 = vpop.f32.mrf.mxu0
      %v1808 = vpop.f32.mrf.mxu0
      %v1809 = vadd.f32 0.0, %v1808
      %v1810 = vpop.f32.mrf.mxu0
      %1811 = vmatprep.mubr.bf16.mxu0 0
      %1812 = vmatmul.mubr.bf16.gmra.mxu0 %v1363
      %v1813 = vpop.f32.mrf.mxu0
      %v1814 = vadd.f32 0.0, %v1813
      %v1815 = vpop.f32.mrf.mxu0
      %v1816 = vpop.f32.mrf.mxu0
      %v1817 = vadd.f32 0.0, %v1816
      %v1818 = vpop.f32.mrf.mxu0
      %1819 = vmatprep.mubr.bf16.mxu0 0
      %1820 = vmatmul.mubr.bf16.gmra.mxu0 %v1366
      %v1821 = vpop.f32.mrf.mxu0
      %v1822 = vadd.f32 0.0, %v1821
      %v1823 = vpop.f32.mrf.mxu0
      %v1824 = vpop.f32.mrf.mxu0
      %v1825 = vadd.f32 0.0, %v1824
      %v1826 = vpop.f32.mrf.mxu0
      %1827 = vmatprep.mubr.bf16.mxu0 0
      %1828 = vmatmul.mubr.bf16.gmra.mxu0 %v1369
      %v1829 = vpop.f32.mrf.mxu0
      %v1830 = vadd.f32 0.0, %v1829
      %v1831 = vpop.f32.mrf.mxu0
      %v1832 = vpop.f32.mrf.mxu0
      %v1833 = vadd.f32 0.0, %v1832
      %v1834 = vpop.f32.mrf.mxu0
      %1835 = vmatprep.mubr.bf16.mxu0 0
      %1836 = vmatmul.mubr.bf16.gmra.mxu0 %v1372
      %v1837 = vpop.f32.mrf.mxu0
      %v1838 = vadd.f32 0.0, %v1837
      %v1839 = vpop.f32.mrf.mxu0
      %v1840 = vpop.f32.mrf.mxu0
      %v1841 = vadd.f32 0.0, %v1840
      %v1842 = vpop.f32.mrf.mxu0
      %1843 = vmatprep.mubr.bf16.mxu0 0
      %1844 = vmatmul.mubr.bf16.gmra.mxu0 %v1375
      %v1845 = vpop.f32.mrf.mxu0
      %v1846 = vadd.f32 0.0, %v1845
      %v1847 = vpop.f32.mrf.mxu0
      %v1848 = vpop.f32.mrf.mxu0
      %v1849 = vadd.f32 0.0, %v1848
      %v1850 = vpop.f32.mrf.mxu0
      %1851 = vmatprep.mubr.bf16.mxu0 0
      %1852 = vmatmul.mubr.bf16.gmra.mxu0 %v1378
      %v1853 = vpop.f32.mrf.mxu0
      %v1854 = vadd.f32 0.0, %v1853
      %v1855 = vpop.f32.mrf.mxu0
      %v1856 = vpop.f32.mrf.mxu0
      %v1857 = vadd.f32 0.0, %v1856
      %v1858 = vpop.f32.mrf.mxu0
      %1859 = vmatprep.mubr.bf16.mxu0 0
      %1860 = vmatmul.mubr.bf16.gmra.mxu0 %v1381
      %v1861 = vpop.f32.mrf.mxu0
      %v1862 = vadd.f32 0.0, %v1861
      %v1863 = vpop.f32.mrf.mxu0
      %v1864 = vpop.f32.mrf.mxu0
      %v1865 = vadd.f32 0.0, %v1864
      %v1866 = vpop.f32.mrf.mxu0
      %1867 = vmatprep.mubr.bf16.mxu0 0
      %1868 = vmatmul.mubr.bf16.gmra.mxu0 %v1384
      %v1869 = vpop.f32.mrf.mxu0
      %v1870 = vadd.f32 0.0, %v1869
      %v1871 = vpop.f32.mrf.mxu0
      %v1872 = vpop.f32.mrf.mxu0
      %v1873 = vadd.f32 0.0, %v1872
      %v1874 = vpop.f32.mrf.mxu0
      %1875 = vmatprep.mubr.bf16.mxu0 0
      %1876 = vmatmul.mubr.bf16.gmra.mxu0 %v1387
      %v1877 = vpop.f32.mrf.mxu0
      %v1878 = vadd.f32 0.0, %v1877
      %v1879 = vpop.f32.mrf.mxu0
      %v1880 = vpop.f32.mrf.mxu0
      %v1881 = vadd.f32 0.0, %v1880
      %v1882 = vpop.f32.mrf.mxu0
      %1883 = vmatprep.mubr.bf16.mxu0 0
      %1884 = vmatmul.mubr.bf16.gmra.mxu0 %v1390
      %v1885 = vpop.f32.mrf.mxu0
      %v1886 = vadd.f32 0.0, %v1885
      %v1887 = vpop.f32.mrf.mxu0
      %v1888 = vpop.f32.mrf.mxu0
      %v1889 = vadd.f32 0.0, %v1888
      %v1890 = vpop.f32.mrf.mxu0
      %1891 = vmatprep.mubr.bf16.mxu0 0
      %1892 = vmatmul.mubr.bf16.gmra.mxu0 %v1393
      %v1893 = vpop.f32.mrf.mxu0
      %v1894 = vadd.f32 0.0, %v1893
      %v1895 = vpop.f32.mrf.mxu0
      %v1896 = vpop.f32.mrf.mxu0
      %v1897 = vadd.f32 0.0, %v1896
      %v1898 = vpop.f32.mrf.mxu0
      %1899 = vmatprep.mubr.bf16.mxu0 0
      %1900 = vmatmul.mubr.bf16.gmra.mxu0 %v1396
      %v1901 = vpop.f32.mrf.mxu0
      %v1902 = vadd.f32 0.0, %v1901
      %v1903 = vpop.f32.mrf.mxu0
      %v1904 = vpop.f32.mrf.mxu0
      %v1905 = vadd.f32 0.0, %v1904
      %v1906 = vpop.f32.mrf.mxu0
      %1907 = vmatprep.mubr.bf16.mxu0 0
      %1908 = vmatmul.mubr.bf16.gmra.mxu0 %v1399
      %v1909 = vpop.f32.mrf.mxu0
      %v1910 = vadd.f32 0.0, %v1909
      %v1911 = vpop.f32.mrf.mxu0
      %v1912 = vpop.f32.mrf.mxu0
      %v1913 = vadd.f32 0.0, %v1912
      %v1914 = vpop.f32.mrf.mxu0
      %1915 = vmatprep.mubr.bf16.mxu0 0
      %1916 = vmatmul.mubr.bf16.gmra.mxu0 %v1402
      %v1917 = vpop.f32.mrf.mxu0
      %v1918 = vadd.f32 0.0, %v1917
      %v1919 = vpop.f32.mrf.mxu0
      %v1920 = vpop.f32.mrf.mxu0
      %v1921 = vadd.f32 0.0, %v1920
      %v1922 = vpop.f32.mrf.mxu0
      %1923 = vmatprep.mubr.bf16.mxu0 0
      %1924 = vmatmul.mubr.bf16.gmra.mxu0 %v1405
      %v1925 = vpop.f32.mrf.mxu0
      %v1926 = vadd.f32 0.0, %v1925
      %v1927 = vpop.f32.mrf.mxu0
      %v1928 = vpop.f32.mrf.mxu0
      %v1929 = vadd.f32 0.0, %v1928
      %v1930 = vpop.f32.mrf.mxu0
      %1931 = vmatprep.mubr.bf16.mxu0 0
      %1932 = vmatmul.mubr.bf16.gmra.mxu0 %v1408
      %v1933 = vpop.f32.mrf.mxu0
      %v1934 = vadd.f32 0.0, %v1933
      %v1935 = vpop.f32.mrf.mxu0
      %v1936 = vpop.f32.mrf.mxu0
      %v1937 = vadd.f32 0.0, %v1936
      %v1938 = vpop.f32.mrf.mxu0
      %1939 = vmatprep.mubr.bf16.mxu0 0
      %1940 = vmatmul.mubr.bf16.gmra.mxu0 %v1411
      %v1941 = vpop.f32.mrf.mxu0
      %v1942 = vadd.f32 0.0, %v1941
      %v1943 = vpop.f32.mrf.mxu0
      %v1944 = vpop.f32.mrf.mxu0
      %v1945 = vadd.f32 0.0, %v1944
      %v1946 = vpop.f32.mrf.mxu0
      %1947 = vmatprep.mubr.bf16.mxu0 0
      %1948 = vmatmul.mubr.bf16.gmra.mxu0 %v1414
      %v1949 = vpop.f32.mrf.mxu0
      %v1950 = vadd.f32 0.0, %v1949
      %v1951 = vpop.f32.mrf.mxu0
      %v1952 = vpop.f32.mrf.mxu0
      %v1953 = vadd.f32 0.0, %v1952
      %v1954 = vpop.f32.mrf.mxu0
      %1955 = vmatprep.mubr.bf16.mxu0 0
      %1956 = vmatmul.mubr.bf16.gmra.mxu0 %v1417
      %v1957 = vpop.f32.mrf.mxu0
      %v1958 = vadd.f32 0.0, %v1957
      %v1959 = vpop.f32.mrf.mxu0
      %v1960 = vpop.f32.mrf.mxu0
      %v1961 = vadd.f32 0.0, %v1960
      %v1962 = vpop.f32.mrf.mxu0
      %1963 = vmatprep.mubr.bf16.mxu0 0
      %1964 = vmatmul.mubr.bf16.gmra.mxu0 %v1420
      %v1965 = vpop.f32.mrf.mxu0
      %v1966 = vadd.f32 0.0, %v1965
      %v1967 = vpop.f32.mrf.mxu0
      %v1968 = vpop.f32.mrf.mxu0
      %v1969 = vadd.f32 0.0, %v1968
      %v1970 = vpop.f32.mrf.mxu0
      %1971 = vmatprep.mubr.bf16.mxu0 0
      %1972 = vmatmul.mubr.bf16.gmra.mxu0 %v1423
      %v1973 = vpop.f32.mrf.mxu0
      %v1974 = vadd.f32 0.0, %v1973
      %v1975 = vpop.f32.mrf.mxu0
      %v1976 = vpop.f32.mrf.mxu0
      %v1977 = vadd.f32 0.0, %v1976
      %v1978 = vpop.f32.mrf.mxu0
      %1979 = vmatprep.mubr.bf16.mxu0 0
      %1980 = vmatmul.mubr.bf16.gmra.mxu0 %v1426
      %v1981 = vpop.f32.mrf.mxu0
      %v1982 = vadd.f32 0.0, %v1981
      %v1983 = vpop.f32.mrf.mxu0
      %v1984 = vpop.f32.mrf.mxu0
      %v1985 = vadd.f32 0.0, %v1984
      %v1986 = vpop.f32.mrf.mxu0
      %1987 = vmatprep.mubr.bf16.mxu0 0
      %1988 = vmatmul.mubr.bf16.gmra.mxu0 %v1429
      %v1989 = vpop.f32.mrf.mxu0
      %v1990 = vadd.f32 0.0, %v1989
      %v1991 = vpop.f32.mrf.mxu0
      %v1992 = vpop.f32.mrf.mxu0
      %v1993 = vadd.f32 0.0, %v1992
      %v1994 = vpop.f32.mrf.mxu0
      %1995 = vdwg.mxu0
      %v1998 = vunpack.c.l.b16 %v355
      %v1999 = vunpack.c.l.b16 %v356
      %v2000 = vpack.c.b16 %v1999, %v1998
      %v2001 = vsel %vm1232, %v627, 0
      %v2003 = vsel %vm1232, %v628, 0
      %v2005 = vsel %vm1232, %v629, 0
      %v2007 = vsel %vm1232, %v630, 0
      %v2009 = vsel %vm1232, %v631, 0
      %v2011 = vsel %vm1232, %v632, 0
      %v2013 = vsel %vm1232, %v633, 0
      %v2015 = vsel %vm1232, %v634, 0
      %v2017 = vsel %vm1232, %v635, 0
      %v2019 = vsel %vm1232, %v636, 0
      %v2021 = vsel %vm1232, %v637, 0
      %v2023 = vsel %vm1232, %v638, 0
      %v2025 = vsel %vm1232, %v639, 0
      %v2027 = vsel %vm1232, %v640, 0
      %v2029 = vsel %vm1232, %v641, 0
      %v2031 = vsel %vm1232, %v642, 0
      %v2033 = vsel %vm1232, %v643, 0
      %v2035 = vsel %vm1232, %v644, 0
      %v2037 = vsel %vm1232, %v645, 0
      %v2039 = vsel %vm1232, %v646, 0
      %v2041 = vsel %vm1232, %v647, 0
      %v2043 = vsel %vm1232, %v648, 0
      %v2045 = vsel %vm1232, %v649, 0
      %v2047 = vsel %vm1232, %v650, 0
      %v2049 = vsel %vm1232, %v651, 0
      %v2051 = vsel %vm1232, %v652, 0
      %v2053 = vsel %vm1232, %v653, 0
      %v2055 = vsel %vm1232, %v654, 0
      %v2057 = vsel %vm1232, %v655, 0
      %v2059 = vsel %vm1232, %v656, 0
      %v2061 = vsel %vm1232, %v657, 0
      %v2063 = vsel %vm1232, %v658, 0
      %v2065 = vsel %vm1232, %v659, 0
      %v2067 = vsel %vm1232, %v660, 0
      %v2069 = vsel %vm1232, %v661, 0
      %v2071 = vsel %vm1232, %v662, 0
      %v2073 = vsel %vm1232, %v663, 0
      %v2075 = vsel %vm1232, %v664, 0
      %v2077 = vsel %vm1232, %v665, 0
      %v2079 = vsel %vm1232, %v666, 0
      %v2081 = vsel %vm1232, %v667, 0
      %v2083 = vsel %vm1232, %v668, 0
      %v2085 = vsel %vm1232, %v669, 0
      %v2087 = vsel %vm1232, %v670, 0
      %v2089 = vsel %vm1232, %v671, 0
      %v2091 = vsel %vm1232, %v672, 0
      %v2093 = vsel %vm1232, %v673, 0
      %v2095 = vsel %vm1232, %v674, 0
      %v2097 = vsel %vm1232, %v675, 0
      %v2099 = vsel %vm1232, %v676, 0
      %v2101 = vsel %vm1232, %v677, 0
      %v2103 = vsel %vm1232, %v678, 0
      %v2105 = vsel %vm1232, %v679, 0
      %v2107 = vsel %vm1232, %v680, 0
      %v2109 = vsel %vm1232, %v681, 0
      %v2111 = vsel %vm1232, %v682, 0
      %v2113 = vsel %vm1232, %v683, 0
      %v2115 = vsel %vm1232, %v684, 0
      %v2117 = vsel %vm1232, %v685, 0
      %v2119 = vsel %vm1232, %v686, 0
      %v2121 = vsel %vm1232, %v687, 0
      %v2123 = vsel %vm1232, %v688, 0
      %v2125 = vsel %vm1232, %v689, 0
      %v2127 = vsel %vm1232, %v690, 0
      %v2129 = vsel %vm1232, %v691, 0
      %v2131 = vsel %vm1232, %v692, 0
      %v2134 = vsel %vm1431, %v2000, 0
      %2136 = vmatprep.subr.bf16.mxu0 0
      %2137 = vmatpush1.bf16.msra.mxu0 0
      %2138 = vmatprep.subr.bf16.mxu0 0
      %2139 = vmatpush1.bf16.msra.mxu0 0
      %2140 = vmatprep.subr.bf16.mxu0 0
      %2141 = vmatpush1.bf16.msra.mxu0 0
      %2142 = vmatprep.subr.bf16.mxu0 0
      %2143 = vmatpush1.bf16.msra.mxu0 0
      %2144 = vmatprep.subr.bf16.mxu0 0
      %2145 = vmatpush1.bf16.msra.mxu0 0
      %2146 = vmatprep.subr.bf16.mxu0 0
      %2147 = vmatpush1.bf16.msra.mxu0 0
      %2148 = vmatprep.subr.bf16.mxu0 0
      %2149 = vmatpush1.bf16.msra.mxu0 0
      %2150 = vmatprep.subr.bf16.mxu0 0
      %2151 = vmatpush1.bf16.msra.mxu0 %v2134
      %2152 = vmatprep.subr.bf16.mxu0 0
      %2153 = vmatpush2.bf16.msra.mxu0 0
      %2154 = vmatprep.subr.bf16.mxu0 0
      %2155 = vmatpush2.bf16.msra.mxu0 0
      %2156 = vmatprep.subr.bf16.mxu0 0
      %2157 = vmatpush2.bf16.msra.mxu0 0
      %2158 = vmatprep.subr.bf16.mxu0 0
      %2159 = vmatpush2.bf16.msra.mxu0 0
      %2160 = vmatprep.subr.bf16.mxu0 0
      %2161 = vmatpush2.bf16.msra.mxu0 0
      %2162 = vmatprep.subr.bf16.mxu0 0
      %2163 = vmatpush2.bf16.msra.mxu0 0
      %2164 = vmatprep.subr.bf16.mxu0 0
      %2165 = vmatpush2.bf16.msra.mxu0 0
      %2166 = vmatprep.subr.bf16.mxu0 0
      %2167 = vmatpush2.bf16.msra.mxu0 0
      %2168 = vmatprep.mubr.bf16.mxu0 0
      %2169 = vmatmul.mubr.bf16.gmra.mxu0 %v2001
      %v2170 = vpop.f32.mrf.mxu0
      %v2171 = vadd.f32 %v1470, %v2170
      %v2172 = vpop.f32.mrf.mxu0
      %v2173 = vpop.f32.mrf.mxu0
      %v2174 = vadd.f32 %v1473, %v2173
      %v2175 = vpop.f32.mrf.mxu0
      %2176 = vmatprep.mubr.bf16.mxu0 0
      %2177 = vmatmul.mubr.bf16.gmra.mxu0 %v2003
      %v2178 = vpop.f32.mrf.mxu0
      %v2179 = vadd.f32 %v1478, %v2178
      %v2180 = vpop.f32.mrf.mxu0
      %v2181 = vpop.f32.mrf.mxu0
      %v2182 = vadd.f32 %v1481, %v2181
      %v2183 = vpop.f32.mrf.mxu0
      %2184 = vmatprep.mubr.bf16.mxu0 0
      %2185 = vmatmul.mubr.bf16.gmra.mxu0 %v2005
      %v2186 = vpop.f32.mrf.mxu0
      %v2187 = vadd.f32 %v1486, %v2186
      %v2188 = vpop.f32.mrf.mxu0
      %v2189 = vpop.f32.mrf.mxu0
      %v2190 = vadd.f32 %v1489, %v2189
      %v2191 = vpop.f32.mrf.mxu0
      %2192 = vmatprep.mubr.bf16.mxu0 0
      %2193 = vmatmul.mubr.bf16.gmra.mxu0 %v2007
      %v2194 = vpop.f32.mrf.mxu0
      %v2195 = vadd.f32 %v1494, %v2194
      %v2196 = vpop.f32.mrf.mxu0
      %v2197 = vpop.f32.mrf.mxu0
      %v2198 = vadd.f32 %v1497, %v2197
      %v2199 = vpop.f32.mrf.mxu0
      %2200 = vmatprep.mubr.bf16.mxu0 0
      %2201 = vmatmul.mubr.bf16.gmra.mxu0 %v2009
      %v2202 = vpop.f32.mrf.mxu0
      %v2203 = vadd.f32 %v1502, %v2202
      %v2204 = vpop.f32.mrf.mxu0
      %v2205 = vpop.f32.mrf.mxu0
      %v2206 = vadd.f32 %v1505, %v2205
      %v2207 = vpop.f32.mrf.mxu0
      %2208 = vmatprep.mubr.bf16.mxu0 0
      %2209 = vmatmul.mubr.bf16.gmra.mxu0 %v2011
      %v2210 = vpop.f32.mrf.mxu0
      %v2211 = vadd.f32 %v1510, %v2210
      %v2212 = vpop.f32.mrf.mxu0
      %v2213 = vpop.f32.mrf.mxu0
      %v2214 = vadd.f32 %v1513, %v2213
      %v2215 = vpop.f32.mrf.mxu0
      %2216 = vmatprep.mubr.bf16.mxu0 0
      %2217 = vmatmul.mubr.bf16.gmra.mxu0 %v2013
      %v2218 = vpop.f32.mrf.mxu0
      %v2219 = vadd.f32 %v1518, %v2218
      %v2220 = vpop.f32.mrf.mxu0
      %v2221 = vpop.f32.mrf.mxu0
      %v2222 = vadd.f32 %v1521, %v2221
      %v2223 = vpop.f32.mrf.mxu0
      %2224 = vmatprep.mubr.bf16.mxu0 0
      %2225 = vmatmul.mubr.bf16.gmra.mxu0 %v2015
      %v2226 = vpop.f32.mrf.mxu0
      %v2227 = vadd.f32 %v1526, %v2226
      %v2228 = vpop.f32.mrf.mxu0
      %v2229 = vpop.f32.mrf.mxu0
      %v2230 = vadd.f32 %v1529, %v2229
      %v2231 = vpop.f32.mrf.mxu0
      %2232 = vmatprep.mubr.bf16.mxu0 0
      %2233 = vmatmul.mubr.bf16.gmra.mxu0 %v2017
      %v2234 = vpop.f32.mrf.mxu0
      %v2235 = vadd.f32 %v1534, %v2234
      %v2236 = vpop.f32.mrf.mxu0
      %v2237 = vpop.f32.mrf.mxu0
      %v2238 = vadd.f32 %v1537, %v2237
      %v2239 = vpop.f32.mrf.mxu0
      %2240 = vmatprep.mubr.bf16.mxu0 0
      %2241 = vmatmul.mubr.bf16.gmra.mxu0 %v2019
      %v2242 = vpop.f32.mrf.mxu0
      %v2243 = vadd.f32 %v1542, %v2242
      %v2244 = vpop.f32.mrf.mxu0
      %v2245 = vpop.f32.mrf.mxu0
      %v2246 = vadd.f32 %v1545, %v2245
      %v2247 = vpop.f32.mrf.mxu0
      %2248 = vmatprep.mubr.bf16.mxu0 0
      %2249 = vmatmul.mubr.bf16.gmra.mxu0 %v2021
      %v2250 = vpop.f32.mrf.mxu0
      %v2251 = vadd.f32 %v1550, %v2250
      %v2252 = vpop.f32.mrf.mxu0
      %v2253 = vpop.f32.mrf.mxu0
      %v2254 = vadd.f32 %v1553, %v2253
      %v2255 = vpop.f32.mrf.mxu0
      %2256 = vmatprep.mubr.bf16.mxu0 0
      %2257 = vmatmul.mubr.bf16.gmra.mxu0 %v2023
      %v2258 = vpop.f32.mrf.mxu0
      %v2259 = vadd.f32 %v1558, %v2258
      %v2260 = vpop.f32.mrf.mxu0
      %v2261 = vpop.f32.mrf.mxu0
      %v2262 = vadd.f32 %v1561, %v2261
      %v2263 = vpop.f32.mrf.mxu0
      %2264 = vmatprep.mubr.bf16.mxu0 0
      %2265 = vmatmul.mubr.bf16.gmra.mxu0 %v2025
      %v2266 = vpop.f32.mrf.mxu0
      %v2267 = vadd.f32 %v1566, %v2266
      %v2268 = vpop.f32.mrf.mxu0
      %v2269 = vpop.f32.mrf.mxu0
      %v2270 = vadd.f32 %v1569, %v2269
      %v2271 = vpop.f32.mrf.mxu0
      %2272 = vmatprep.mubr.bf16.mxu0 0
      %2273 = vmatmul.mubr.bf16.gmra.mxu0 %v2027
      %v2274 = vpop.f32.mrf.mxu0
      %v2275 = vadd.f32 %v1574, %v2274
      %v2276 = vpop.f32.mrf.mxu0
      %v2277 = vpop.f32.mrf.mxu0
      %v2278 = vadd.f32 %v1577, %v2277
      %v2279 = vpop.f32.mrf.mxu0
      %2280 = vmatprep.mubr.bf16.mxu0 0
      %2281 = vmatmul.mubr.bf16.gmra.mxu0 %v2029
      %v2282 = vpop.f32.mrf.mxu0
      %v2283 = vadd.f32 %v1582, %v2282
      %v2284 = vpop.f32.mrf.mxu0
      %v2285 = vpop.f32.mrf.mxu0
      %v2286 = vadd.f32 %v1585, %v2285
      %v2287 = vpop.f32.mrf.mxu0
      %2288 = vmatprep.mubr.bf16.mxu0 0
      %2289 = vmatmul.mubr.bf16.gmra.mxu0 %v2031
      %v2290 = vpop.f32.mrf.mxu0
      %v2291 = vadd.f32 %v1590, %v2290
      %v2292 = vpop.f32.mrf.mxu0
      %v2293 = vpop.f32.mrf.mxu0
      %v2294 = vadd.f32 %v1593, %v2293
      %v2295 = vpop.f32.mrf.mxu0
      %2296 = vmatprep.mubr.bf16.mxu0 0
      %2297 = vmatmul.mubr.bf16.gmra.mxu0 %v2033
      %v2298 = vpop.f32.mrf.mxu0
      %v2299 = vadd.f32 %v1598, %v2298
      %v2300 = vpop.f32.mrf.mxu0
      %v2301 = vpop.f32.mrf.mxu0
      %v2302 = vadd.f32 %v1601, %v2301
      %v2303 = vpop.f32.mrf.mxu0
      %2304 = vmatprep.mubr.bf16.mxu0 0
      %2305 = vmatmul.mubr.bf16.gmra.mxu0 %v2035
      %v2306 = vpop.f32.mrf.mxu0
      %v2307 = vadd.f32 %v1606, %v2306
      %v2308 = vpop.f32.mrf.mxu0
      %v2309 = vpop.f32.mrf.mxu0
      %v2310 = vadd.f32 %v1609, %v2309
      %v2311 = vpop.f32.mrf.mxu0
      %2312 = vmatprep.mubr.bf16.mxu0 0
      %2313 = vmatmul.mubr.bf16.gmra.mxu0 %v2037
      %v2314 = vpop.f32.mrf.mxu0
      %v2315 = vadd.f32 %v1614, %v2314
      %v2316 = vpop.f32.mrf.mxu0
      %v2317 = vpop.f32.mrf.mxu0
      %v2318 = vadd.f32 %v1617, %v2317
      %v2319 = vpop.f32.mrf.mxu0
      %2320 = vmatprep.mubr.bf16.mxu0 0
      %2321 = vmatmul.mubr.bf16.gmra.mxu0 %v2039
      %v2322 = vpop.f32.mrf.mxu0
      %v2323 = vadd.f32 %v1622, %v2322
      %v2324 = vpop.f32.mrf.mxu0
      %v2325 = vpop.f32.mrf.mxu0
      %v2326 = vadd.f32 %v1625, %v2325
      %v2327 = vpop.f32.mrf.mxu0
      %2328 = vmatprep.mubr.bf16.mxu0 0
      %2329 = vmatmul.mubr.bf16.gmra.mxu0 %v2041
      %v2330 = vpop.f32.mrf.mxu0
      %v2331 = vadd.f32 %v1630, %v2330
      %v2332 = vpop.f32.mrf.mxu0
      %v2333 = vpop.f32.mrf.mxu0
      %v2334 = vadd.f32 %v1633, %v2333
      %v2335 = vpop.f32.mrf.mxu0
      %2336 = vmatprep.mubr.bf16.mxu0 0
      %2337 = vmatmul.mubr.bf16.gmra.mxu0 %v2043
      %v2338 = vpop.f32.mrf.mxu0
      %v2339 = vadd.f32 %v1638, %v2338
      %v2340 = vpop.f32.mrf.mxu0
      %v2341 = vpop.f32.mrf.mxu0
      %v2342 = vadd.f32 %v1641, %v2341
      %v2343 = vpop.f32.mrf.mxu0
      %2344 = vmatprep.mubr.bf16.mxu0 0
      %2345 = vmatmul.mubr.bf16.gmra.mxu0 %v2045
      %v2346 = vpop.f32.mrf.mxu0
      %v2347 = vadd.f32 %v1646, %v2346
      %v2348 = vpop.f32.mrf.mxu0
      %v2349 = vpop.f32.mrf.mxu0
      %v2350 = vadd.f32 %v1649, %v2349
      %v2351 = vpop.f32.mrf.mxu0
      %2352 = vmatprep.mubr.bf16.mxu0 0
      %2353 = vmatmul.mubr.bf16.gmra.mxu0 %v2047
      %v2354 = vpop.f32.mrf.mxu0
      %v2355 = vadd.f32 %v1654, %v2354
      %v2356 = vpop.f32.mrf.mxu0
      %v2357 = vpop.f32.mrf.mxu0
      %v2358 = vadd.f32 %v1657, %v2357
      %v2359 = vpop.f32.mrf.mxu0
      %2360 = vmatprep.mubr.bf16.mxu0 0
      %2361 = vmatmul.mubr.bf16.gmra.mxu0 %v2049
      %v2362 = vpop.f32.mrf.mxu0
      %v2363 = vadd.f32 %v1662, %v2362
      %v2364 = vpop.f32.mrf.mxu0
      %v2365 = vpop.f32.mrf.mxu0
      %v2366 = vadd.f32 %v1665, %v2365
      %v2367 = vpop.f32.mrf.mxu0
      %2368 = vmatprep.mubr.bf16.mxu0 0
      %2369 = vmatmul.mubr.bf16.gmra.mxu0 %v2051
      %v2370 = vpop.f32.mrf.mxu0
      %v2371 = vadd.f32 %v1670, %v2370
      %v2372 = vpop.f32.mrf.mxu0
      %v2373 = vpop.f32.mrf.mxu0
      %v2374 = vadd.f32 %v1673, %v2373
      %v2375 = vpop.f32.mrf.mxu0
      %2376 = vmatprep.mubr.bf16.mxu0 0
      %2377 = vmatmul.mubr.bf16.gmra.mxu0 %v2053
      %v2378 = vpop.f32.mrf.mxu0
      %v2379 = vadd.f32 %v1678, %v2378
      %v2380 = vpop.f32.mrf.mxu0
      %v2381 = vpop.f32.mrf.mxu0
      %v2382 = vadd.f32 %v1681, %v2381
      %v2383 = vpop.f32.mrf.mxu0
      %2384 = vmatprep.mubr.bf16.mxu0 0
      %2385 = vmatmul.mubr.bf16.gmra.mxu0 %v2055
      %v2386 = vpop.f32.mrf.mxu0
      %v2387 = vadd.f32 %v1686, %v2386
      %v2388 = vpop.f32.mrf.mxu0
      %v2389 = vpop.f32.mrf.mxu0
      %v2390 = vadd.f32 %v1689, %v2389
      %v2391 = vpop.f32.mrf.mxu0
      %2392 = vmatprep.mubr.bf16.mxu0 0
      %2393 = vmatmul.mubr.bf16.gmra.mxu0 %v2057
      %v2394 = vpop.f32.mrf.mxu0
      %v2395 = vadd.f32 %v1694, %v2394
      %v2396 = vpop.f32.mrf.mxu0
      %v2397 = vpop.f32.mrf.mxu0
      %v2398 = vadd.f32 %v1697, %v2397
      %v2399 = vpop.f32.mrf.mxu0
      %2400 = vmatprep.mubr.bf16.mxu0 0
      %2401 = vmatmul.mubr.bf16.gmra.mxu0 %v2059
      %v2402 = vpop.f32.mrf.mxu0
      %v2403 = vadd.f32 %v1702, %v2402
      %v2404 = vpop.f32.mrf.mxu0
      %v2405 = vpop.f32.mrf.mxu0
      %v2406 = vadd.f32 %v1705, %v2405
      %v2407 = vpop.f32.mrf.mxu0
      %2408 = vmatprep.mubr.bf16.mxu0 0
      %2409 = vmatmul.mubr.bf16.gmra.mxu0 %v2061
      %v2410 = vpop.f32.mrf.mxu0
      %v2411 = vadd.f32 %v1710, %v2410
      %v2412 = vpop.f32.mrf.mxu0
      %v2413 = vpop.f32.mrf.mxu0
      %v2414 = vadd.f32 %v1713, %v2413
      %v2415 = vpop.f32.mrf.mxu0
      %2416 = vmatprep.mubr.bf16.mxu0 0
      %2417 = vmatmul.mubr.bf16.gmra.mxu0 %v2063
      %v2418 = vpop.f32.mrf.mxu0
      %v2419 = vadd.f32 %v1718, %v2418
      %v2420 = vpop.f32.mrf.mxu0
      %v2421 = vpop.f32.mrf.mxu0
      %v2422 = vadd.f32 %v1721, %v2421
      %v2423 = vpop.f32.mrf.mxu0
      %2424 = vmatprep.mubr.bf16.mxu0 0
      %2425 = vmatmul.mubr.bf16.gmra.mxu0 %v2065
      %v2426 = vpop.f32.mrf.mxu0
      %v2427 = vadd.f32 %v1726, %v2426
      %v2428 = vpop.f32.mrf.mxu0
      %v2429 = vpop.f32.mrf.mxu0
      %v2430 = vadd.f32 %v1729, %v2429
      %v2431 = vpop.f32.mrf.mxu0
      %2432 = vmatprep.mubr.bf16.mxu0 0
      %2433 = vmatmul.mubr.bf16.gmra.mxu0 %v2067
      %v2434 = vpop.f32.mrf.mxu0
      %v2435 = vadd.f32 %v1734, %v2434
      %v2436 = vpop.f32.mrf.mxu0
      %v2437 = vpop.f32.mrf.mxu0
      %v2438 = vadd.f32 %v1737, %v2437
      %v2439 = vpop.f32.mrf.mxu0
      %2440 = vmatprep.mubr.bf16.mxu0 0
      %2441 = vmatmul.mubr.bf16.gmra.mxu0 %v2069
      %v2442 = vpop.f32.mrf.mxu0
      %v2443 = vadd.f32 %v1742, %v2442
      %v2444 = vpop.f32.mrf.mxu0
      %v2445 = vpop.f32.mrf.mxu0
      %v2446 = vadd.f32 %v1745, %v2445
      %v2447 = vpop.f32.mrf.mxu0
      %2448 = vmatprep.mubr.bf16.mxu0 0
      %2449 = vmatmul.mubr.bf16.gmra.mxu0 %v2071
      %v2450 = vpop.f32.mrf.mxu0
      %v2451 = vadd.f32 %v1750, %v2450
      %v2452 = vpop.f32.mrf.mxu0
      %v2453 = vpop.f32.mrf.mxu0
      %v2454 = vadd.f32 %v1753, %v2453
      %v2455 = vpop.f32.mrf.mxu0
      %2456 = vmatprep.mubr.bf16.mxu0 0
      %2457 = vmatmul.mubr.bf16.gmra.mxu0 %v2073
      %v2458 = vpop.f32.mrf.mxu0
      %v2459 = vadd.f32 %v1758, %v2458
      %v2460 = vpop.f32.mrf.mxu0
      %v2461 = vpop.f32.mrf.mxu0
      %v2462 = vadd.f32 %v1761, %v2461
      %v2463 = vpop.f32.mrf.mxu0
      %2464 = vmatprep.mubr.bf16.mxu0 0
      %2465 = vmatmul.mubr.bf16.gmra.mxu0 %v2075
      %v2466 = vpop.f32.mrf.mxu0
      %v2467 = vadd.f32 %v1766, %v2466
      %v2468 = vpop.f32.mrf.mxu0
      %v2469 = vpop.f32.mrf.mxu0
      %v2470 = vadd.f32 %v1769, %v2469
      %v2471 = vpop.f32.mrf.mxu0
      %2472 = vmatprep.mubr.bf16.mxu0 0
      %2473 = vmatmul.mubr.bf16.gmra.mxu0 %v2077
      %v2474 = vpop.f32.mrf.mxu0
      %v2475 = vadd.f32 %v1774, %v2474
      %v2476 = vpop.f32.mrf.mxu0
      %v2477 = vpop.f32.mrf.mxu0
      %v2478 = vadd.f32 %v1777, %v2477
      %v2479 = vpop.f32.mrf.mxu0
      %2480 = vmatprep.mubr.bf16.mxu0 0
      %2481 = vmatmul.mubr.bf16.gmra.mxu0 %v2079
      %v2482 = vpop.f32.mrf.mxu0
      %v2483 = vadd.f32 %v1782, %v2482
      %v2484 = vpop.f32.mrf.mxu0
      %v2485 = vpop.f32.mrf.mxu0
      %v2486 = vadd.f32 %v1785, %v2485
      %v2487 = vpop.f32.mrf.mxu0
      %2488 = vmatprep.mubr.bf16.mxu0 0
      %2489 = vmatmul.mubr.bf16.gmra.mxu0 %v2081
      %v2490 = vpop.f32.mrf.mxu0
      %v2491 = vadd.f32 %v1790, %v2490
      %v2492 = vpop.f32.mrf.mxu0
      %v2493 = vpop.f32.mrf.mxu0
      %v2494 = vadd.f32 %v1793, %v2493
      %v2495 = vpop.f32.mrf.mxu0
      %2496 = vmatprep.mubr.bf16.mxu0 0
      %2497 = vmatmul.mubr.bf16.gmra.mxu0 %v2083
      %v2498 = vpop.f32.mrf.mxu0
      %v2499 = vadd.f32 %v1798, %v2498
      %v2500 = vpop.f32.mrf.mxu0
      %v2501 = vpop.f32.mrf.mxu0
      %v2502 = vadd.f32 %v1801, %v2501
      %v2503 = vpop.f32.mrf.mxu0
      %2504 = vmatprep.mubr.bf16.mxu0 0
      %2505 = vmatmul.mubr.bf16.gmra.mxu0 %v2085
      %v2506 = vpop.f32.mrf.mxu0
      %v2507 = vadd.f32 %v1806, %v2506
      %v2508 = vpop.f32.mrf.mxu0
      %v2509 = vpop.f32.mrf.mxu0
      %v2510 = vadd.f32 %v1809, %v2509
      %v2511 = vpop.f32.mrf.mxu0
      %2512 = vmatprep.mubr.bf16.mxu0 0
      %2513 = vmatmul.mubr.bf16.gmra.mxu0 %v2087
      %v2514 = vpop.f32.mrf.mxu0
      %v2515 = vadd.f32 %v1814, %v2514
      %v2516 = vpop.f32.mrf.mxu0
      %v2517 = vpop.f32.mrf.mxu0
      %v2518 = vadd.f32 %v1817, %v2517
      %v2519 = vpop.f32.mrf.mxu0
      %2520 = vmatprep.mubr.bf16.mxu0 0
      %2521 = vmatmul.mubr.bf16.gmra.mxu0 %v2089
      %v2522 = vpop.f32.mrf.mxu0
      %v2523 = vadd.f32 %v1822, %v2522
      %v2524 = vpop.f32.mrf.mxu0
      %v2525 = vpop.f32.mrf.mxu0
      %v2526 = vadd.f32 %v1825, %v2525
      %v2527 = vpop.f32.mrf.mxu0
      %2528 = vmatprep.mubr.bf16.mxu0 0
      %2529 = vmatmul.mubr.bf16.gmra.mxu0 %v2091
      %v2530 = vpop.f32.mrf.mxu0
      %v2531 = vadd.f32 %v1830, %v2530
      %v2532 = vpop.f32.mrf.mxu0
      %v2533 = vpop.f32.mrf.mxu0
      %v2534 = vadd.f32 %v1833, %v2533
      %v2535 = vpop.f32.mrf.mxu0
      %2536 = vmatprep.mubr.bf16.mxu0 0
      %2537 = vmatmul.mubr.bf16.gmra.mxu0 %v2093
      %v2538 = vpop.f32.mrf.mxu0
      %v2539 = vadd.f32 %v1838, %v2538
      %v2540 = vpop.f32.mrf.mxu0
      %v2541 = vpop.f32.mrf.mxu0
      %v2542 = vadd.f32 %v1841, %v2541
      %v2543 = vpop.f32.mrf.mxu0
      %2544 = vmatprep.mubr.bf16.mxu0 0
      %2545 = vmatmul.mubr.bf16.gmra.mxu0 %v2095
      %v2546 = vpop.f32.mrf.mxu0
      %v2547 = vadd.f32 %v1846, %v2546
      %v2548 = vpop.f32.mrf.mxu0
      %v2549 = vpop.f32.mrf.mxu0
      %v2550 = vadd.f32 %v1849, %v2549
      %v2551 = vpop.f32.mrf.mxu0
      %2552 = vmatprep.mubr.bf16.mxu0 0
      %2553 = vmatmul.mubr.bf16.gmra.mxu0 %v2097
      %v2554 = vpop.f32.mrf.mxu0
      %v2555 = vadd.f32 %v1854, %v2554
      %v2556 = vpop.f32.mrf.mxu0
      %v2557 = vpop.f32.mrf.mxu0
      %v2558 = vadd.f32 %v1857, %v2557
      %v2559 = vpop.f32.mrf.mxu0
      %2560 = vmatprep.mubr.bf16.mxu0 0
      %2561 = vmatmul.mubr.bf16.gmra.mxu0 %v2099
      %v2562 = vpop.f32.mrf.mxu0
      %v2563 = vadd.f32 %v1862, %v2562
      %v2564 = vpop.f32.mrf.mxu0
      %v2565 = vpop.f32.mrf.mxu0
      %v2566 = vadd.f32 %v1865, %v2565
      %v2567 = vpop.f32.mrf.mxu0
      %2568 = vmatprep.mubr.bf16.mxu0 0
      %2569 = vmatmul.mubr.bf16.gmra.mxu0 %v2101
      %v2570 = vpop.f32.mrf.mxu0
      %v2571 = vadd.f32 %v1870, %v2570
      %v2572 = vpop.f32.mrf.mxu0
      %v2573 = vpop.f32.mrf.mxu0
      %v2574 = vadd.f32 %v1873, %v2573
      %v2575 = vpop.f32.mrf.mxu0
      %2576 = vmatprep.mubr.bf16.mxu0 0
      %2577 = vmatmul.mubr.bf16.gmra.mxu0 %v2103
      %v2578 = vpop.f32.mrf.mxu0
      %v2579 = vadd.f32 %v1878, %v2578
      %v2580 = vpop.f32.mrf.mxu0
      %v2581 = vpop.f32.mrf.mxu0
      %v2582 = vadd.f32 %v1881, %v2581
      %v2583 = vpop.f32.mrf.mxu0
      %2584 = vmatprep.mubr.bf16.mxu0 0
      %2585 = vmatmul.mubr.bf16.gmra.mxu0 %v2105
      %v2586 = vpop.f32.mrf.mxu0
      %v2587 = vadd.f32 %v1886, %v2586
      %v2588 = vpop.f32.mrf.mxu0
      %v2589 = vpop.f32.mrf.mxu0
      %v2590 = vadd.f32 %v1889, %v2589
      %v2591 = vpop.f32.mrf.mxu0
      %2592 = vmatprep.mubr.bf16.mxu0 0
      %2593 = vmatmul.mubr.bf16.gmra.mxu0 %v2107
      %v2594 = vpop.f32.mrf.mxu0
      %v2595 = vadd.f32 %v1894, %v2594
      %v2596 = vpop.f32.mrf.mxu0
      %v2597 = vpop.f32.mrf.mxu0
      %v2598 = vadd.f32 %v1897, %v2597
      %v2599 = vpop.f32.mrf.mxu0
      %2600 = vmatprep.mubr.bf16.mxu0 0
      %2601 = vmatmul.mubr.bf16.gmra.mxu0 %v2109
      %v2602 = vpop.f32.mrf.mxu0
      %v2603 = vadd.f32 %v1902, %v2602
      %v2604 = vpop.f32.mrf.mxu0
      %v2605 = vpop.f32.mrf.mxu0
      %v2606 = vadd.f32 %v1905, %v2605
      %v2607 = vpop.f32.mrf.mxu0
      %2608 = vmatprep.mubr.bf16.mxu0 0
      %2609 = vmatmul.mubr.bf16.gmra.mxu0 %v2111
      %v2610 = vpop.f32.mrf.mxu0
      %v2611 = vadd.f32 %v1910, %v2610
      %v2612 = vpop.f32.mrf.mxu0
      %v2613 = vpop.f32.mrf.mxu0
      %v2614 = vadd.f32 %v1913, %v2613
      %v2615 = vpop.f32.mrf.mxu0
      %2616 = vmatprep.mubr.bf16.mxu0 0
      %2617 = vmatmul.mubr.bf16.gmra.mxu0 %v2113
      %v2618 = vpop.f32.mrf.mxu0
      %v2619 = vadd.f32 %v1918, %v2618
      %v2620 = vpop.f32.mrf.mxu0
      %v2621 = vpop.f32.mrf.mxu0
      %v2622 = vadd.f32 %v1921, %v2621
      %v2623 = vpop.f32.mrf.mxu0
      %2624 = vmatprep.mubr.bf16.mxu0 0
      %2625 = vmatmul.mubr.bf16.gmra.mxu0 %v2115
      %v2626 = vpop.f32.mrf.mxu0
      %v2627 = vadd.f32 %v1926, %v2626
      %v2628 = vpop.f32.mrf.mxu0
      %v2629 = vpop.f32.mrf.mxu0
      %v2630 = vadd.f32 %v1929, %v2629
      %v2631 = vpop.f32.mrf.mxu0
      %2632 = vmatprep.mubr.bf16.mxu0 0
      %2633 = vmatmul.mubr.bf16.gmra.mxu0 %v2117
      %v2634 = vpop.f32.mrf.mxu0
      %v2635 = vadd.f32 %v1934, %v2634
      %v2636 = vpop.f32.mrf.mxu0
      %v2637 = vpop.f32.mrf.mxu0
      %v2638 = vadd.f32 %v1937, %v2637
      %v2639 = vpop.f32.mrf.mxu0
      %2640 = vmatprep.mubr.bf16.mxu0 0
      %2641 = vmatmul.mubr.bf16.gmra.mxu0 %v2119
      %v2642 = vpop.f32.mrf.mxu0
      %v2643 = vadd.f32 %v1942, %v2642
      %v2644 = vpop.f32.mrf.mxu0
      %v2645 = vpop.f32.mrf.mxu0
      %v2646 = vadd.f32 %v1945, %v2645
      %v2647 = vpop.f32.mrf.mxu0
      %2648 = vmatprep.mubr.bf16.mxu0 0
      %2649 = vmatmul.mubr.bf16.gmra.mxu0 %v2121
      %v2650 = vpop.f32.mrf.mxu0
      %v2651 = vadd.f32 %v1950, %v2650
      %v2652 = vpop.f32.mrf.mxu0
      %v2653 = vpop.f32.mrf.mxu0
      %v2654 = vadd.f32 %v1953, %v2653
      %v2655 = vpop.f32.mrf.mxu0
      %2656 = vmatprep.mubr.bf16.mxu0 0
      %2657 = vmatmul.mubr.bf16.gmra.mxu0 %v2123
      %v2658 = vpop.f32.mrf.mxu0
      %v2659 = vadd.f32 %v1958, %v2658
      %v2660 = vpop.f32.mrf.mxu0
      %v2661 = vpop.f32.mrf.mxu0
      %v2662 = vadd.f32 %v1961, %v2661
      %v2663 = vpop.f32.mrf.mxu0
      %2664 = vmatprep.mubr.bf16.mxu0 0
      %2665 = vmatmul.mubr.bf16.gmra.mxu0 %v2125
      %v2666 = vpop.f32.mrf.mxu0
      %v2667 = vadd.f32 %v1966, %v2666
      %v2668 = vpop.f32.mrf.mxu0
      %v2669 = vpop.f32.mrf.mxu0
      %v2670 = vadd.f32 %v1969, %v2669
      %v2671 = vpop.f32.mrf.mxu0
      %2672 = vmatprep.mubr.bf16.mxu0 0
      %2673 = vmatmul.mubr.bf16.gmra.mxu0 %v2127
      %v2674 = vpop.f32.mrf.mxu0
      %v2675 = vadd.f32 %v1974, %v2674
      %v2676 = vpop.f32.mrf.mxu0
      %v2677 = vpop.f32.mrf.mxu0
      %v2678 = vadd.f32 %v1977, %v2677
      %v2679 = vpop.f32.mrf.mxu0
      %2680 = vmatprep.mubr.bf16.mxu0 0
      %2681 = vmatmul.mubr.bf16.gmra.mxu0 %v2129
      %v2682 = vpop.f32.mrf.mxu0
      %v2683 = vadd.f32 %v1982, %v2682
      %v2684 = vpop.f32.mrf.mxu0
      %v2685 = vpop.f32.mrf.mxu0
      %v2686 = vadd.f32 %v1985, %v2685
      %v2687 = vpop.f32.mrf.mxu0
      %2688 = vmatprep.mubr.bf16.mxu0 0
      %2689 = vmatmul.mubr.bf16.gmra.mxu0 %v2131
      %v2690 = vpop.f32.mrf.mxu0
      %v2691 = vadd.f32 %v1990, %v2690
      %v2692 = vpop.f32.mrf.mxu0
      %v2693 = vpop.f32.mrf.mxu0
      %v2694 = vadd.f32 %v1993, %v2693
      %v2695 = vpop.f32.mrf.mxu0
      %2696 = vdwg.mxu0
      %v2697 = vld [vmem:[%s206 + $0x10] sm:$0xf]
      %v2698 = vld [vmem:[%s206 + $0x14] sm:$0xf]
      %v2699 = vld [vmem:[%s206 + $0x18] sm:$0xf]
      %v2700 = vld [vmem:[%s206 + $0x1c] sm:$0xf]
      %v2701 = vld [vmem:[%s206 + $0x20] sm:$0xf]
      %v2702 = vld [vmem:[%s206 + $0x24] sm:$0xf]
      %v2703 = vld [vmem:[%s206 + $0x28] sm:$0xf]
      %v2704 = vld [vmem:[%s206 + $0x2c] sm:$0xf]
      %v2705 = vld [vmem:[%s206 + $0x30] sm:$0xf]
      %v2706 = vld [vmem:[%s206 + $0x34] sm:$0xf]
      %v2707 = vld [vmem:[%s206 + $0x38] sm:$0xf]
      %v2708 = vld [vmem:[%s206 + $0x3c] sm:$0xf]
      %v2709 = vld [vmem:[%s206 + $0x40] sm:$0xf]
      %v2710 = vld [vmem:[%s206 + $0x44] sm:$0xf]
      %v2711 = vld [vmem:[%s206 + $0x48] sm:$0xf]
      %v2712 = vld [vmem:[%s206 + $0x4c] sm:$0xf]
      %v2713 = vld [vmem:[%s206 + $0x50] sm:$0xf]
      %v2714 = vld [vmem:[%s206 + $0x54] sm:$0xf]
      %v2715 = vld [vmem:[%s206 + $0x58] sm:$0xf]
      %v2716 = vld [vmem:[%s206 + $0x5c] sm:$0xf]
      %v2717 = vld [vmem:[%s206 + $0x60] sm:$0xf]
      %v2718 = vld [vmem:[%s206 + $0x64] sm:$0xf]
      %v2719 = vld [vmem:[%s206 + $0x68] sm:$0xf]
      %v2720 = vld [vmem:[%s206 + $0x6c] sm:$0xf]
      %v2721 = vld [vmem:[%s206 + $0x70] sm:$0xf]
      %v2722 = vld [vmem:[%s206 + $0x74] sm:$0xf]
      %v2723 = vld [vmem:[%s206 + $0x78] sm:$0xf]
      %v2724 = vld [vmem:[%s206 + $0x7c] sm:$0xf]
      %v2725 = vld [vmem:[%s206 + $0x80] sm:$0xf]
      %v2726 = vld [vmem:[%s206 + $0x84] sm:$0xf]
      %v2727 = vld [vmem:[%s206 + $0x88] sm:$0xf]
      %v2728 = vld [vmem:[%s206 + $0x8c] sm:$0xf]
      %v2729 = vld [vmem:[%s206 + $0x90] sm:$0xf]
      %v2730 = vld [vmem:[%s206 + $0x94] sm:$0xf]
      %v2731 = vld [vmem:[%s206 + $0x98] sm:$0xf]
      %v2732 = vld [vmem:[%s206 + $0x9c] sm:$0xf]
      %v2733 = vld [vmem:[%s206 + $0xa0] sm:$0xf]
      %v2734 = vld [vmem:[%s206 + $0xa4] sm:$0xf]
      %v2735 = vld [vmem:[%s206 + $0xa8] sm:$0xf]
      %v2736 = vld [vmem:[%s206 + $0xac] sm:$0xf]
      %v2737 = vld [vmem:[%s206 + $0xb0] sm:$0xf]
      %v2738 = vld [vmem:[%s206 + $0xb4] sm:$0xf]
      %v2739 = vld [vmem:[%s206 + $0xb8] sm:$0xf]
      %v2740 = vld [vmem:[%s206 + $0xbc] sm:$0xf]
      %v2741 = vld [vmem:[%s206 + $0xc0] sm:$0xf]
      %v2742 = vld [vmem:[%s206 + $0xc4] sm:$0xf]
      %v2743 = vld [vmem:[%s206 + $0xc8] sm:$0xf]
      %v2744 = vld [vmem:[%s206 + $0xcc] sm:$0xf]
      %v2745 = vld [vmem:[%s206 + $0xd0] sm:$0xf]
      %v2746 = vld [vmem:[%s206 + $0xd4] sm:$0xf]
      %v2747 = vld [vmem:[%s206 + $0xd8] sm:$0xf]
      %v2748 = vld [vmem:[%s206 + $0xdc] sm:$0xf]
      %v2749 = vld [vmem:[%s206 + $0xe0] sm:$0xf]
      %v2750 = vld [vmem:[%s206 + $0xe4] sm:$0xf]
      %v2751 = vld [vmem:[%s206 + $0xe8] sm:$0xf]
      %v2752 = vld [vmem:[%s206 + $0xec] sm:$0xf]
      %v2753 = vld [vmem:[%s206 + $0xf0] sm:$0xf]
      %v2754 = vld [vmem:[%s206 + $0xf4] sm:$0xf]
      %v2755 = vld [vmem:[%s206 + $0xf8] sm:$0xf]
      %v2756 = vld [vmem:[%s206 + $0xfc] sm:$0xf]
      %v2757 = vld [vmem:[%s206 + $0x100] sm:$0xf]
      %v2758 = vld [vmem:[%s206 + $0x104] sm:$0xf]
      %v2759 = vld [vmem:[%s206 + $0x108] sm:$0xf]
      %v2760 = vld [vmem:[%s206 + $0x10c] sm:$0xf]
      %v2761 = vld [vmem:[%s206 + $0x110] sm:$0xf]
      %v2762 = vld [vmem:[%s206 + $0x114] sm:$0xf]
      %v2763 = vld [vmem:[%s206 + $0x118] sm:$0xf]
      %v2764 = vld [vmem:[%s206 + $0x11c] sm:$0xf]
      %v2765 = vld [vmem:[%s206 + $0x120] sm:$0xf]
      %v2766 = vld [vmem:[%s206 + $0x124] sm:$0xf]
      %v2767 = vld [vmem:[%s206 + $0x128] sm:$0xf]
      %v2768 = vld [vmem:[%s206 + $0x12c] sm:$0xf]
      %v2769 = vld [vmem:[%s206 + $0x130] sm:$0xf]
      %v2770 = vld [vmem:[%s206 + $0x134] sm:$0xf]
      %v2771 = vld [vmem:[%s206 + $0x138] sm:$0xf]
      %v2772 = vld [vmem:[%s206 + $0x13c] sm:$0xf]
      %v2773 = vld [vmem:[%s206 + $0x140] sm:$0xf]
      %v2774 = vld [vmem:[%s206 + $0x144] sm:$0xf]
      %v2775 = vld [vmem:[%s206 + $0x148] sm:$0xf]
      %v2776 = vld [vmem:[%s206 + $0x14c] sm:$0xf]
      %v2777 = vld [vmem:[%s206 + $0x150] sm:$0xf]
      %v2778 = vld [vmem:[%s206 + $0x154] sm:$0xf]
      %v2779 = vld [vmem:[%s206 + $0x158] sm:$0xf]
      %v2780 = vld [vmem:[%s206 + $0x15c] sm:$0xf]
      %v2781 = vld [vmem:[%s206 + $0x160] sm:$0xf]
      %v2782 = vld [vmem:[%s206 + $0x164] sm:$0xf]
      %v2783 = vld [vmem:[%s206 + $0x168] sm:$0xf]
      %v2784 = vld [vmem:[%s206 + $0x16c] sm:$0xf]
      %v2785 = vld [vmem:[%s206 + $0x170] sm:$0xf]
      %v2786 = vld [vmem:[%s206 + $0x174] sm:$0xf]
      %v2787 = vld [vmem:[%s206 + $0x178] sm:$0xf]
      %v2788 = vld [vmem:[%s206 + $0x17c] sm:$0xf]
      %v2789 = vld [vmem:[%s206 + $0x180] sm:$0xf]
      %v2790 = vld [vmem:[%s206 + $0x184] sm:$0xf]
      %v2791 = vld [vmem:[%s206 + $0x188] sm:$0xf]
      %v2792 = vld [vmem:[%s206 + $0x18c] sm:$0xf]
      %v2793 = vld [vmem:[%s206 + $0x190] sm:$0xf]
      %v2794 = vld [vmem:[%s206 + $0x194] sm:$0xf]
      %v2795 = vld [vmem:[%s206 + $0x198] sm:$0xf]
      %v2796 = vld [vmem:[%s206 + $0x19c] sm:$0xf]
      %v2797 = vld [vmem:[%s206 + $0x1a0] sm:$0xf]
      %v2798 = vld [vmem:[%s206 + $0x1a4] sm:$0xf]
      %v2799 = vld [vmem:[%s206 + $0x1a8] sm:$0xf]
      %v2800 = vld [vmem:[%s206 + $0x1ac] sm:$0xf]
      %v2801 = vld [vmem:[%s206 + $0x1b0] sm:$0xf]
      %v2802 = vld [vmem:[%s206 + $0x1b4] sm:$0xf]
      %v2803 = vld [vmem:[%s206 + $0x1b8] sm:$0xf]
      %v2804 = vld [vmem:[%s206 + $0x1bc] sm:$0xf]
      %v2805 = vld [vmem:[%s206 + $0x1c0] sm:$0xf]
      %v2806 = vld [vmem:[%s206 + $0x1c4] sm:$0xf]
      %v2807 = vld [vmem:[%s206 + $0x1c8] sm:$0xf]
      %v2808 = vld [vmem:[%s206 + $0x1cc] sm:$0xf]
      %v2809 = vld [vmem:[%s206 + $0x1d0] sm:$0xf]
      %v2810 = vld [vmem:[%s206 + $0x1d4] sm:$0xf]
      %v2811 = vld [vmem:[%s206 + $0x1d8] sm:$0xf]
      %v2812 = vld [vmem:[%s206 + $0x1dc] sm:$0xf]
      %v2813 = vld [vmem:[%s206 + $0x1e0] sm:$0xf]
      %v2814 = vld [vmem:[%s206 + $0x1e4] sm:$0xf]
      %v2815 = vld [vmem:[%s206 + $0x1e8] sm:$0xf]
      %v2816 = vld [vmem:[%s206 + $0x1ec] sm:$0xf]
      %v2817 = vld [vmem:[%s206 + $0x1f0] sm:$0xf]
      %v2818 = vld [vmem:[%s206 + $0x1f4] sm:$0xf]
      %v2819 = vld [vmem:[%s206 + $0x1f8] sm:$0xf]
      %v2820 = vld [vmem:[%s206 + $0x1fc] sm:$0xf]
      %v2821 = vld [vmem:[%s206 + $0x200] sm:$0xf]
      %v2822 = vld [vmem:[%s206 + $0x204] sm:$0xf]
      %v2823 = vld [vmem:[%s206 + $0x208] sm:$0xf]
      %v2824 = vld [vmem:[%s206 + $0x20c] sm:$0xf]
      %v2825 = vld [vmem:[%s206 + $0x210] sm:$0xf]
      %v2826 = vld [vmem:[%s206 + $0x214] sm:$0xf]
      %v2827 = vld [vmem:[%s206 + $0x218] sm:$0xf]
      %v2828 = vld [vmem:[%s206 + $0x21c] sm:$0xf]
      %v2829 = vld [vmem:[%s206 + $0x220] sm:$0x1]
      %s2830 = scalar_lea.vmem %s210, 16
      %v2831 = vld [vmem:[%s2830] sm:$0xf]
      %v2832 = vld [vmem:[%s2830 + $0x4] sm:$0x3]
      %v2966 = vunpack.c.l.b16 %v2697
      %v2967 = vunpack.c.l.b16 %v2698
      %v2968 = vunpack.c.l.b16 %v2699
      %v2969 = vunpack.c.l.b16 %v2700
      %v2970 = vunpack.c.l.b16 %v2701
      %v2971 = vunpack.c.l.b16 %v2702
      %v2972 = vunpack.c.l.b16 %v2703
      %v2973 = vunpack.c.l.b16 %v2704
      %v2974 = vunpack.c.l.b16 %v2705
      %v2975 = vunpack.c.l.b16 %v2706
      %v2976 = vunpack.c.l.b16 %v2707
      %v2977 = vunpack.c.l.b16 %v2708
      %v2978 = vunpack.c.l.b16 %v2709
      %v2979 = vunpack.c.l.b16 %v2710
      %v2980 = vunpack.c.l.b16 %v2711
      %v2981 = vunpack.c.l.b16 %v2712
      %v2982 = vunpack.c.l.b16 %v2713
      %v2983 = vunpack.c.l.b16 %v2714
      %v2984 = vunpack.c.l.b16 %v2715
      %v2985 = vunpack.c.l.b16 %v2716
      %v2986 = vunpack.c.l.b16 %v2717
      %v2987 = vunpack.c.l.b16 %v2718
      %v2988 = vunpack.c.l.b16 %v2719
      %v2989 = vunpack.c.l.b16 %v2720
      %v2990 = vunpack.c.l.b16 %v2721
      %v2991 = vunpack.c.l.b16 %v2722
      %v2992 = vunpack.c.l.b16 %v2723
      %v2993 = vunpack.c.l.b16 %v2724
      %v2994 = vunpack.c.l.b16 %v2725
      %v2995 = vunpack.c.l.b16 %v2726
      %v2996 = vunpack.c.l.b16 %v2727
      %v2997 = vunpack.c.l.b16 %v2728
      %v2998 = vunpack.c.l.b16 %v2729
      %v2999 = vunpack.c.l.b16 %v2730
      %v3000 = vunpack.c.l.b16 %v2731
      %v3001 = vunpack.c.l.b16 %v2732
      %v3002 = vunpack.c.l.b16 %v2733
      %v3003 = vunpack.c.l.b16 %v2734
      %v3004 = vunpack.c.l.b16 %v2735
      %v3005 = vunpack.c.l.b16 %v2736
      %v3006 = vunpack.c.l.b16 %v2737
      %v3007 = vunpack.c.l.b16 %v2738
      %v3008 = vunpack.c.l.b16 %v2739
      %v3009 = vunpack.c.l.b16 %v2740
      %v3010 = vunpack.c.l.b16 %v2741
      %v3011 = vunpack.c.l.b16 %v2742
      %v3012 = vunpack.c.l.b16 %v2743
      %v3013 = vunpack.c.l.b16 %v2744
      %v3014 = vunpack.c.l.b16 %v2745
      %v3015 = vunpack.c.l.b16 %v2746
      %v3016 = vunpack.c.l.b16 %v2747
      %v3017 = vunpack.c.l.b16 %v2748
      %v3018 = vunpack.c.l.b16 %v2749
      %v3019 = vunpack.c.l.b16 %v2750
      %v3020 = vunpack.c.l.b16 %v2751
      %v3021 = vunpack.c.l.b16 %v2752
      %v3022 = vunpack.c.l.b16 %v2753
      %v3023 = vunpack.c.l.b16 %v2754
      %v3024 = vunpack.c.l.b16 %v2755
      %v3025 = vunpack.c.l.b16 %v2756
      %v3026 = vunpack.c.l.b16 %v2757
      %v3027 = vunpack.c.l.b16 %v2758
      %v3028 = vunpack.c.l.b16 %v2759
      %v3029 = vunpack.c.l.b16 %v2760
      %v3030 = vunpack.c.l.b16 %v2761
      %v3031 = vunpack.c.l.b16 %v2762
      %v3032 = vunpack.c.l.b16 %v2763
      %v3033 = vunpack.c.l.b16 %v2764
      %v3034 = vunpack.c.l.b16 %v2765
      %v3035 = vunpack.c.l.b16 %v2766
      %v3036 = vunpack.c.l.b16 %v2767
      %v3037 = vunpack.c.l.b16 %v2768
      %v3038 = vunpack.c.l.b16 %v2769
      %v3039 = vunpack.c.l.b16 %v2770
      %v3040 = vunpack.c.l.b16 %v2771
      %v3041 = vunpack.c.l.b16 %v2772
      %v3042 = vunpack.c.l.b16 %v2773
      %v3043 = vunpack.c.l.b16 %v2774
      %v3044 = vunpack.c.l.b16 %v2775
      %v3045 = vunpack.c.l.b16 %v2776
      %v3046 = vunpack.c.l.b16 %v2777
      %v3047 = vunpack.c.l.b16 %v2778
      %v3048 = vunpack.c.l.b16 %v2779
      %v3049 = vunpack.c.l.b16 %v2780
      %v3050 = vunpack.c.l.b16 %v2781
      %v3051 = vunpack.c.l.b16 %v2782
      %v3052 = vunpack.c.l.b16 %v2783
      %v3053 = vunpack.c.l.b16 %v2784
      %v3054 = vunpack.c.l.b16 %v2785
      %v3055 = vunpack.c.l.b16 %v2786
      %v3056 = vunpack.c.l.b16 %v2787
      %v3057 = vunpack.c.l.b16 %v2788
      %v3058 = vunpack.c.l.b16 %v2789
      %v3059 = vunpack.c.l.b16 %v2790
      %v3060 = vunpack.c.l.b16 %v2791
      %v3061 = vunpack.c.l.b16 %v2792
      %v3062 = vunpack.c.l.b16 %v2793
      %v3063 = vunpack.c.l.b16 %v2794
      %v3064 = vunpack.c.l.b16 %v2795
      %v3065 = vunpack.c.l.b16 %v2796
      %v3066 = vunpack.c.l.b16 %v2797
      %v3067 = vunpack.c.l.b16 %v2798
      %v3068 = vunpack.c.l.b16 %v2799
      %v3069 = vunpack.c.l.b16 %v2800
      %v3070 = vunpack.c.l.b16 %v2801
      %v3071 = vunpack.c.l.b16 %v2802
      %v3072 = vunpack.c.l.b16 %v2803
      %v3073 = vunpack.c.l.b16 %v2804
      %v3074 = vunpack.c.l.b16 %v2805
      %v3075 = vunpack.c.l.b16 %v2806
      %v3076 = vunpack.c.l.b16 %v2807
      %v3077 = vunpack.c.l.b16 %v2808
      %v3078 = vunpack.c.l.b16 %v2809
      %v3079 = vunpack.c.l.b16 %v2810
      %v3080 = vunpack.c.l.b16 %v2811
      %v3081 = vunpack.c.l.b16 %v2812
      %v3082 = vunpack.c.l.b16 %v2813
      %v3083 = vunpack.c.l.b16 %v2814
      %v3084 = vunpack.c.l.b16 %v2815
      %v3085 = vunpack.c.l.b16 %v2816
      %v3086 = vunpack.c.l.b16 %v2817
      %v3087 = vunpack.c.l.b16 %v2818
      %v3088 = vunpack.c.l.b16 %v2819
      %v3089 = vunpack.c.l.b16 %v2820
      %v3090 = vunpack.c.l.b16 %v2821
      %v3091 = vunpack.c.l.b16 %v2822
      %v3092 = vunpack.c.l.b16 %v2823
      %v3093 = vunpack.c.l.b16 %v2824
      %v3094 = vunpack.c.l.b16 %v2825
      %v3095 = vunpack.c.l.b16 %v2826
      %v3096 = vunpack.c.l.b16 %v2827
      %v3097 = vunpack.c.l.b16 %v2828
      %v3098 = vunpack.c.l.b16 %v2829
      %v3099 = vpack.c.b16 %v2967, %v2966
      %v3100 = vpack.c.b16 %v2969, %v2968
      %v3101 = vpack.c.b16 %v2971, %v2970
      %v3102 = vpack.c.b16 %v2973, %v2972
      %v3103 = vpack.c.b16 %v2975, %v2974
      %v3104 = vpack.c.b16 %v2977, %v2976
      %v3105 = vpack.c.b16 %v2979, %v2978
      %v3106 = vpack.c.b16 %v2981, %v2980
      %v3107 = vpack.c.b16 %v2983, %v2982
      %v3108 = vpack.c.b16 %v2985, %v2984
      %v3109 = vpack.c.b16 %v2987, %v2986
      %v3110 = vpack.c.b16 %v2989, %v2988
      %v3111 = vpack.c.b16 %v2991, %v2990
      %v3112 = vpack.c.b16 %v2993, %v2992
      %v3113 = vpack.c.b16 %v2995, %v2994
      %v3114 = vpack.c.b16 %v2997, %v2996
      %v3115 = vpack.c.b16 %v2999, %v2998
      %v3116 = vpack.c.b16 %v3001, %v3000
      %v3117 = vpack.c.b16 %v3003, %v3002
      %v3118 = vpack.c.b16 %v3005, %v3004
      %v3119 = vpack.c.b16 %v3007, %v3006
      %v3120 = vpack.c.b16 %v3009, %v3008
      %v3121 = vpack.c.b16 %v3011, %v3010
      %v3122 = vpack.c.b16 %v3013, %v3012
      %v3123 = vpack.c.b16 %v3015, %v3014
      %v3124 = vpack.c.b16 %v3017, %v3016
      %v3125 = vpack.c.b16 %v3019, %v3018
      %v3126 = vpack.c.b16 %v3021, %v3020
      %v3127 = vpack.c.b16 %v3023, %v3022
      %v3128 = vpack.c.b16 %v3025, %v3024
      %v3129 = vpack.c.b16 %v3027, %v3026
      %v3130 = vpack.c.b16 %v3029, %v3028
      %v3131 = vpack.c.b16 %v3031, %v3030
      %v3132 = vpack.c.b16 %v3033, %v3032
      %v3133 = vpack.c.b16 %v3035, %v3034
      %v3134 = vpack.c.b16 %v3037, %v3036
      %v3135 = vpack.c.b16 %v3039, %v3038
      %v3136 = vpack.c.b16 %v3041, %v3040
      %v3137 = vpack.c.b16 %v3043, %v3042
      %v3138 = vpack.c.b16 %v3045, %v3044
      %v3139 = vpack.c.b16 %v3047, %v3046
      %v3140 = vpack.c.b16 %v3049, %v3048
      %v3141 = vpack.c.b16 %v3051, %v3050
      %v3142 = vpack.c.b16 %v3053, %v3052
      %v3143 = vpack.c.b16 %v3055, %v3054
      %v3144 = vpack.c.b16 %v3057, %v3056
      %v3145 = vpack.c.b16 %v3059, %v3058
      %v3146 = vpack.c.b16 %v3061, %v3060
      %v3147 = vpack.c.b16 %v3063, %v3062
      %v3148 = vpack.c.b16 %v3065, %v3064
      %v3149 = vpack.c.b16 %v3067, %v3066
      %v3150 = vpack.c.b16 %v3069, %v3068
      %v3151 = vpack.c.b16 %v3071, %v3070
      %v3152 = vpack.c.b16 %v3073, %v3072
      %v3153 = vpack.c.b16 %v3075, %v3074
      %v3154 = vpack.c.b16 %v3077, %v3076
      %v3155 = vpack.c.b16 %v3079, %v3078
      %v3156 = vpack.c.b16 %v3081, %v3080
      %v3157 = vpack.c.b16 %v3083, %v3082
      %v3158 = vpack.c.b16 %v3085, %v3084
      %v3159 = vpack.c.b16 %v3087, %v3086
      %v3160 = vpack.c.b16 %v3089, %v3088
      %v3161 = vpack.c.b16 %v3091, %v3090
      %v3162 = vpack.c.b16 %v3093, %v3092
      %v3163 = vpack.c.b16 %v3095, %v3094
      %v3164 = vpack.c.b16 %v3097, %v3096
      %v3165 = vpack.c.b16 %v3098, %v3098
      %v3167 = vshrl.u32 %v3099, 16
      %v3169 = vshll.u32 %v3099, 16
      %v3171 = vrot.slane %v3169, 1
      %v3172 = vor.u32 %v3167, %v3171
      %v3174 = vshll.u32 %v3100, 16
      %v3176 = vrot.slane %v3174, 1
      %v3177 = vsel %vm694, %v3172, %v3176
      %v3178 = vshrl.u32 %v3100, 16
      %v3180 = vor.u32 %v3178, %v3176
      %v3182 = vshll.u32 %v3101, 16
      %v3184 = vrot.slane %v3182, 1
      %v3185 = vsel %vm694, %v3180, %v3184
      %v3186 = vshrl.u32 %v3101, 16
      %v3188 = vor.u32 %v3186, %v3184
      %v3190 = vshll.u32 %v3102, 16
      %v3192 = vrot.slane %v3190, 1
      %v3193 = vsel %vm694, %v3188, %v3192
      %v3194 = vshrl.u32 %v3102, 16
      %v3196 = vor.u32 %v3194, %v3192
      %v3198 = vshll.u32 %v3103, 16
      %v3200 = vrot.slane %v3198, 1
      %v3201 = vsel %vm694, %v3196, %v3200
      %v3202 = vshrl.u32 %v3103, 16
      %v3204 = vor.u32 %v3202, %v3200
      %v3206 = vshll.u32 %v3104, 16
      %v3208 = vrot.slane %v3206, 1
      %v3209 = vsel %vm694, %v3204, %v3208
      %v3210 = vshrl.u32 %v3104, 16
      %v3212 = vor.u32 %v3210, %v3208
      %v3214 = vshll.u32 %v3105, 16
      %v3216 = vrot.slane %v3214, 1
      %v3217 = vsel %vm694, %v3212, %v3216
      %v3218 = vshrl.u32 %v3105, 16
      %v3220 = vor.u32 %v3218, %v3216
      %v3222 = vshll.u32 %v3106, 16
      %v3224 = vrot.slane %v3222, 1
      %v3225 = vsel %vm694, %v3220, %v3224
      %v3226 = vshrl.u32 %v3106, 16
      %v3228 = vor.u32 %v3226, %v3224
      %v3230 = vshll.u32 %v3107, 16
      %v3232 = vrot.slane %v3230, 1
      %v3233 = vsel %vm694, %v3228, %v3232
      %v3234 = vshrl.u32 %v3107, 16
      %v3236 = vor.u32 %v3234, %v3232
      %v3238 = vshll.u32 %v3108, 16
      %v3240 = vrot.slane %v3238, 1
      %v3241 = vsel %vm694, %v3236, %v3240
      %v3242 = vshrl.u32 %v3108, 16
      %v3244 = vor.u32 %v3242, %v3240
      %v3246 = vshll.u32 %v3109, 16
      %v3248 = vrot.slane %v3246, 1
      %v3249 = vsel %vm694, %v3244, %v3248
      %v3250 = vshrl.u32 %v3109, 16
      %v3252 = vor.u32 %v3250, %v3248
      %v3254 = vshll.u32 %v3110, 16
      %v3256 = vrot.slane %v3254, 1
      %v3257 = vsel %vm694, %v3252, %v3256
      %v3258 = vshrl.u32 %v3110, 16
      %v3260 = vor.u32 %v3258, %v3256
      %v3262 = vshll.u32 %v3111, 16
      %v3264 = vrot.slane %v3262, 1
      %v3265 = vsel %vm694, %v3260, %v3264
      %v3266 = vshrl.u32 %v3111, 16
      %v3268 = vor.u32 %v3266, %v3264
      %v3270 = vshll.u32 %v3112, 16
      %v3272 = vrot.slane %v3270, 1
      %v3273 = vsel %vm694, %v3268, %v3272
      %v3274 = vshrl.u32 %v3112, 16
      %v3276 = vor.u32 %v3274, %v3272
      %v3278 = vshll.u32 %v3113, 16
      %v3280 = vrot.slane %v3278, 1
      %v3281 = vsel %vm694, %v3276, %v3280
      %v3282 = vshrl.u32 %v3113, 16
      %v3284 = vor.u32 %v3282, %v3280
      %v3286 = vshll.u32 %v3114, 16
      %v3288 = vrot.slane %v3286, 1
      %v3289 = vsel %vm694, %v3284, %v3288
      %v3290 = vshrl.u32 %v3114, 16
      %v3292 = vor.u32 %v3290, %v3288
      %v3294 = vshll.u32 %v3115, 16
      %v3296 = vrot.slane %v3294, 1
      %v3297 = vsel %vm694, %v3292, %v3296
      %v3298 = vshrl.u32 %v3115, 16
      %v3300 = vor.u32 %v3298, %v3296
      %v3302 = vshll.u32 %v3116, 16
      %v3304 = vrot.slane %v3302, 1
      %v3305 = vsel %vm694, %v3300, %v3304
      %v3306 = vshrl.u32 %v3116, 16
      %v3308 = vor.u32 %v3306, %v3304
      %v3310 = vshll.u32 %v3117, 16
      %v3312 = vrot.slane %v3310, 1
      %v3313 = vsel %vm694, %v3308, %v3312
      %v3314 = vshrl.u32 %v3117, 16
      %v3316 = vor.u32 %v3314, %v3312
      %v3318 = vshll.u32 %v3118, 16
      %v3320 = vrot.slane %v3318, 1
      %v3321 = vsel %vm694, %v3316, %v3320
      %v3322 = vshrl.u32 %v3118, 16
      %v3324 = vor.u32 %v3322, %v3320
      %v3326 = vshll.u32 %v3119, 16
      %v3328 = vrot.slane %v3326, 1
      %v3329 = vsel %vm694, %v3324, %v3328
      %v3330 = vshrl.u32 %v3119, 16
      %v3332 = vor.u32 %v3330, %v3328
      %v3334 = vshll.u32 %v3120, 16
      %v3336 = vrot.slane %v3334, 1
      %v3337 = vsel %vm694, %v3332, %v3336
      %v3338 = vshrl.u32 %v3120, 16
      %v3340 = vor.u32 %v3338, %v3336
      %v3342 = vshll.u32 %v3121, 16
      %v3344 = vrot.slane %v3342, 1
      %v3345 = vsel %vm694, %v3340, %v3344
      %v3346 = vshrl.u32 %v3121, 16
      %v3348 = vor.u32 %v3346, %v3344
      %v3350 = vshll.u32 %v3122, 16
      %v3352 = vrot.slane %v3350, 1
      %v3353 = vsel %vm694, %v3348, %v3352
      %v3354 = vshrl.u32 %v3122, 16
      %v3356 = vor.u32 %v3354, %v3352
      %v3358 = vshll.u32 %v3123, 16
      %v3360 = vrot.slane %v3358, 1
      %v3361 = vsel %vm694, %v3356, %v3360
      %v3362 = vshrl.u32 %v3123, 16
      %v3364 = vor.u32 %v3362, %v3360
      %v3366 = vshll.u32 %v3124, 16
      %v3368 = vrot.slane %v3366, 1
      %v3369 = vsel %vm694, %v3364, %v3368
      %v3370 = vshrl.u32 %v3124, 16
      %v3372 = vor.u32 %v3370, %v3368
      %v3374 = vshll.u32 %v3125, 16
      %v3376 = vrot.slane %v3374, 1
      %v3377 = vsel %vm694, %v3372, %v3376
      %v3378 = vshrl.u32 %v3125, 16
      %v3380 = vor.u32 %v3378, %v3376
      %v3382 = vshll.u32 %v3126, 16
      %v3384 = vrot.slane %v3382, 1
      %v3385 = vsel %vm694, %v3380, %v3384
      %v3386 = vshrl.u32 %v3126, 16
      %v3388 = vor.u32 %v3386, %v3384
      %v3390 = vshll.u32 %v3127, 16
      %v3392 = vrot.slane %v3390, 1
      %v3393 = vsel %vm694, %v3388, %v3392
      %v3394 = vshrl.u32 %v3127, 16
      %v3396 = vor.u32 %v3394, %v3392
      %v3398 = vshll.u32 %v3128, 16
      %v3400 = vrot.slane %v3398, 1
      %v3401 = vsel %vm694, %v3396, %v3400
      %v3402 = vshrl.u32 %v3128, 16
      %v3404 = vor.u32 %v3402, %v3400
      %v3406 = vshll.u32 %v3129, 16
      %v3408 = vrot.slane %v3406, 1
      %v3409 = vsel %vm694, %v3404, %v3408
      %v3410 = vshrl.u32 %v3129, 16
      %v3412 = vor.u32 %v3410, %v3408
      %v3414 = vshll.u32 %v3130, 16
      %v3416 = vrot.slane %v3414, 1
      %v3417 = vsel %vm694, %v3412, %v3416
      %v3418 = vshrl.u32 %v3130, 16
      %v3420 = vor.u32 %v3418, %v3416
      %v3422 = vshll.u32 %v3131, 16
      %v3424 = vrot.slane %v3422, 1
      %v3425 = vsel %vm694, %v3420, %v3424
      %v3426 = vshrl.u32 %v3131, 16
      %v3428 = vor.u32 %v3426, %v3424
      %v3430 = vshll.u32 %v3132, 16
      %v3432 = vrot.slane %v3430, 1
      %v3433 = vsel %vm694, %v3428, %v3432
      %v3434 = vshrl.u32 %v3132, 16
      %v3436 = vor.u32 %v3434, %v3432
      %v3438 = vshll.u32 %v3133, 16
      %v3440 = vrot.slane %v3438, 1
      %v3441 = vsel %vm694, %v3436, %v3440
      %v3442 = vshrl.u32 %v3133, 16
      %v3444 = vor.u32 %v3442, %v3440
      %v3446 = vshll.u32 %v3134, 16
      %v3448 = vrot.slane %v3446, 1
      %v3449 = vsel %vm694, %v3444, %v3448
      %v3450 = vshrl.u32 %v3134, 16
      %v3452 = vor.u32 %v3450, %v3448
      %v3454 = vshll.u32 %v3135, 16
      %v3456 = vrot.slane %v3454, 1
      %v3457 = vsel %vm694, %v3452, %v3456
      %v3458 = vshrl.u32 %v3135, 16
      %v3460 = vor.u32 %v3458, %v3456
      %v3462 = vshll.u32 %v3136, 16
      %v3464 = vrot.slane %v3462, 1
      %v3465 = vsel %vm694, %v3460, %v3464
      %v3466 = vshrl.u32 %v3136, 16
      %v3468 = vor.u32 %v3466, %v3464
      %v3470 = vshll.u32 %v3137, 16
      %v3472 = vrot.slane %v3470, 1
      %v3473 = vsel %vm694, %v3468, %v3472
      %v3474 = vshrl.u32 %v3137, 16
      %v3476 = vor.u32 %v3474, %v3472
      %v3478 = vshll.u32 %v3138, 16
      %v3480 = vrot.slane %v3478, 1
      %v3481 = vsel %vm694, %v3476, %v3480
      %v3482 = vshrl.u32 %v3138, 16
      %v3484 = vor.u32 %v3482, %v3480
      %v3486 = vshll.u32 %v3139, 16
      %v3488 = vrot.slane %v3486, 1
      %v3489 = vsel %vm694, %v3484, %v3488
      %v3490 = vshrl.u32 %v3139, 16
      %v3492 = vor.u32 %v3490, %v3488
      %v3494 = vshll.u32 %v3140, 16
      %v3496 = vrot.slane %v3494, 1
      %v3497 = vsel %vm694, %v3492, %v3496
      %v3498 = vshrl.u32 %v3140, 16
      %v3500 = vor.u32 %v3498, %v3496
      %v3502 = vshll.u32 %v3141, 16
      %v3504 = vrot.slane %v3502, 1
      %v3505 = vsel %vm694, %v3500, %v3504
      %v3506 = vshrl.u32 %v3141, 16
      %v3508 = vor.u32 %v3506, %v3504
      %v3510 = vshll.u32 %v3142, 16
      %v3512 = vrot.slane %v3510, 1
      %v3513 = vsel %vm694, %v3508, %v3512
      %v3514 = vshrl.u32 %v3142, 16
      %v3516 = vor.u32 %v3514, %v3512
      %v3518 = vshll.u32 %v3143, 16
      %v3520 = vrot.slane %v3518, 1
      %v3521 = vsel %vm694, %v3516, %v3520
      %v3522 = vshrl.u32 %v3143, 16
      %v3524 = vor.u32 %v3522, %v3520
      %v3526 = vshll.u32 %v3144, 16
      %v3528 = vrot.slane %v3526, 1
      %v3529 = vsel %vm694, %v3524, %v3528
      %v3530 = vshrl.u32 %v3144, 16
      %v3532 = vor.u32 %v3530, %v3528
      %v3534 = vshll.u32 %v3145, 16
      %v3536 = vrot.slane %v3534, 1
      %v3537 = vsel %vm694, %v3532, %v3536
      %v3538 = vshrl.u32 %v3145, 16
      %v3540 = vor.u32 %v3538, %v3536
      %v3542 = vshll.u32 %v3146, 16
      %v3544 = vrot.slane %v3542, 1
      %v3545 = vsel %vm694, %v3540, %v3544
      %v3546 = vshrl.u32 %v3146, 16
      %v3548 = vor.u32 %v3546, %v3544
      %v3550 = vshll.u32 %v3147, 16
      %v3552 = vrot.slane %v3550, 1
      %v3553 = vsel %vm694, %v3548, %v3552
      %v3554 = vshrl.u32 %v3147, 16
      %v3556 = vor.u32 %v3554, %v3552
      %v3558 = vshll.u32 %v3148, 16
      %v3560 = vrot.slane %v3558, 1
      %v3561 = vsel %vm694, %v3556, %v3560
      %v3562 = vshrl.u32 %v3148, 16
      %v3564 = vor.u32 %v3562, %v3560
      %v3566 = vshll.u32 %v3149, 16
      %v3568 = vrot.slane %v3566, 1
      %v3569 = vsel %vm694, %v3564, %v3568
      %v3570 = vshrl.u32 %v3149, 16
      %v3572 = vor.u32 %v3570, %v3568
      %v3574 = vshll.u32 %v3150, 16
      %v3576 = vrot.slane %v3574, 1
      %v3577 = vsel %vm694, %v3572, %v3576
      %v3578 = vshrl.u32 %v3150, 16
      %v3580 = vor.u32 %v3578, %v3576
      %v3582 = vshll.u32 %v3151, 16
      %v3584 = vrot.slane %v3582, 1
      %v3585 = vsel %vm694, %v3580, %v3584
      %v3586 = vshrl.u32 %v3151, 16
      %v3588 = vor.u32 %v3586, %v3584
      %v3590 = vshll.u32 %v3152, 16
      %v3592 = vrot.slane %v3590, 1
      %v3593 = vsel %vm694, %v3588, %v3592
      %v3594 = vshrl.u32 %v3152, 16
      %v3596 = vor.u32 %v3594, %v3592
      %v3598 = vshll.u32 %v3153, 16
      %v3600 = vrot.slane %v3598, 1
      %v3601 = vsel %vm694, %v3596, %v3600
      %v3602 = vshrl.u32 %v3153, 16
      %v3604 = vor.u32 %v3602, %v3600
      %v3606 = vshll.u32 %v3154, 16
      %v3608 = vrot.slane %v3606, 1
      %v3609 = vsel %vm694, %v3604, %v3608
      %v3610 = vshrl.u32 %v3154, 16
      %v3612 = vor.u32 %v3610, %v3608
      %v3614 = vshll.u32 %v3155, 16
      %v3616 = vrot.slane %v3614, 1
      %v3617 = vsel %vm694, %v3612, %v3616
      %v3618 = vshrl.u32 %v3155, 16
      %v3620 = vor.u32 %v3618, %v3616
      %v3622 = vshll.u32 %v3156, 16
      %v3624 = vrot.slane %v3622, 1
      %v3625 = vsel %vm694, %v3620, %v3624
      %v3626 = vshrl.u32 %v3156, 16
      %v3628 = vor.u32 %v3626, %v3624
      %v3630 = vshll.u32 %v3157, 16
      %v3632 = vrot.slane %v3630, 1
      %v3633 = vsel %vm694, %v3628, %v3632
      %v3634 = vshrl.u32 %v3157, 16
      %v3636 = vor.u32 %v3634, %v3632
      %v3638 = vshll.u32 %v3158, 16
      %v3640 = vrot.slane %v3638, 1
      %v3641 = vsel %vm694, %v3636, %v3640
      %v3642 = vshrl.u32 %v3158, 16
      %v3644 = vor.u32 %v3642, %v3640
      %v3646 = vshll.u32 %v3159, 16
      %v3648 = vrot.slane %v3646, 1
      %v3649 = vsel %vm694, %v3644, %v3648
      %v3650 = vshrl.u32 %v3159, 16
      %v3652 = vor.u32 %v3650, %v3648
      %v3654 = vshll.u32 %v3160, 16
      %v3656 = vrot.slane %v3654, 1
      %v3657 = vsel %vm694, %v3652, %v3656
      %v3658 = vshrl.u32 %v3160, 16
      %v3660 = vor.u32 %v3658, %v3656
      %v3662 = vshll.u32 %v3161, 16
      %v3664 = vrot.slane %v3662, 1
      %v3665 = vsel %vm694, %v3660, %v3664
      %v3666 = vshrl.u32 %v3161, 16
      %v3668 = vor.u32 %v3666, %v3664
      %v3670 = vshll.u32 %v3162, 16
      %v3672 = vrot.slane %v3670, 1
      %v3673 = vsel %vm694, %v3668, %v3672
      %v3674 = vshrl.u32 %v3162, 16
      %v3676 = vor.u32 %v3674, %v3672
      %v3678 = vshll.u32 %v3163, 16
      %v3680 = vrot.slane %v3678, 1
      %v3681 = vsel %vm694, %v3676, %v3680
      %v3682 = vshrl.u32 %v3163, 16
      %v3684 = vor.u32 %v3682, %v3680
      %v3686 = vshll.u32 %v3164, 16
      %v3688 = vrot.slane %v3686, 1
      %v3689 = vsel %vm694, %v3684, %v3688
      %v3690 = vshrl.u32 %v3164, 16
      %v3692 = vor.u32 %v3690, %v3688
      %v3694 = vshll.u32 %v3165, 16
      %v3696 = vrot.slane %v3694, 1
      %v3697 = vsel %vm694, %v3692, %v3696
      %v3700 = vunpack.c.l.b16 %v2831
      %v3701 = vunpack.c.l.b16 %v2832
      %v3702 = vpack.c.b16 %v3701, %v3700
      %v3704 = vsel %vm1232, %v3177, 0
      %v3707 = vsel %vm1232, %v3185, 0
      %v3710 = vsel %vm1232, %v3193, 0
      %v3713 = vsel %vm1232, %v3201, 0
      %v3716 = vsel %vm1232, %v3209, 0
      %v3719 = vsel %vm1232, %v3217, 0
      %v3722 = vsel %vm1232, %v3225, 0
      %v3725 = vsel %vm1232, %v3233, 0
      %v3728 = vsel %vm1232, %v3241, 0
      %v3731 = vsel %vm1232, %v3249, 0
      %v3734 = vsel %vm1232, %v3257, 0
      %v3737 = vsel %vm1232, %v3265, 0
      %v3740 = vsel %vm1232, %v3273, 0
      %v3743 = vsel %vm1232, %v3281, 0
      %v3746 = vsel %vm1232, %v3289, 0
      %v3749 = vsel %vm1232, %v3297, 0
      %v3752 = vsel %vm1232, %v3305, 0
      %v3755 = vsel %vm1232, %v3313, 0
      %v3758 = vsel %vm1232, %v3321, 0
      %v3761 = vsel %vm1232, %v3329, 0
      %v3764 = vsel %vm1232, %v3337, 0
      %v3767 = vsel %vm1232, %v3345, 0
      %v3770 = vsel %vm1232, %v3353, 0
      %v3773 = vsel %vm1232, %v3361, 0
      %v3776 = vsel %vm1232, %v3369, 0
      %v3779 = vsel %vm1232, %v3377, 0
      %v3782 = vsel %vm1232, %v3385, 0
      %v3785 = vsel %vm1232, %v3393, 0
      %v3788 = vsel %vm1232, %v3401, 0
      %v3791 = vsel %vm1232, %v3409, 0
      %v3794 = vsel %vm1232, %v3417, 0
      %v3797 = vsel %vm1232, %v3425, 0
      %v3800 = vsel %vm1232, %v3433, 0
      %v3803 = vsel %vm1232, %v3441, 0
      %v3806 = vsel %vm1232, %v3449, 0
      %v3809 = vsel %vm1232, %v3457, 0
      %v3812 = vsel %vm1232, %v3465, 0
      %v3815 = vsel %vm1232, %v3473, 0
      %v3818 = vsel %vm1232, %v3481, 0
      %v3821 = vsel %vm1232, %v3489, 0
      %v3824 = vsel %vm1232, %v3497, 0
      %v3827 = vsel %vm1232, %v3505, 0
      %v3830 = vsel %vm1232, %v3513, 0
      %v3833 = vsel %vm1232, %v3521, 0
      %v3836 = vsel %vm1232, %v3529, 0
      %v3839 = vsel %vm1232, %v3537, 0
      %v3842 = vsel %vm1232, %v3545, 0
      %v3845 = vsel %vm1232, %v3553, 0
      %v3848 = vsel %vm1232, %v3561, 0
      %v3851 = vsel %vm1232, %v3569, 0
      %v3854 = vsel %vm1232, %v3577, 0
      %v3857 = vsel %vm1232, %v3585, 0
      %v3860 = vsel %vm1232, %v3593, 0
      %v3863 = vsel %vm1232, %v3601, 0
      %v3866 = vsel %vm1232, %v3609, 0
      %v3869 = vsel %vm1232, %v3617, 0
      %v3872 = vsel %vm1232, %v3625, 0
      %v3875 = vsel %vm1232, %v3633, 0
      %v3878 = vsel %vm1232, %v3641, 0
      %v3881 = vsel %vm1232, %v3649, 0
      %v3884 = vsel %vm1232, %v3657, 0
      %v3887 = vsel %vm1232, %v3665, 0
      %v3890 = vsel %vm1232, %v3673, 0
      %v3893 = vsel %vm1232, %v3681, 0
      %v3896 = vsel %vm1232, %v3689, 0
      %v3899 = vsel %vm1232, %v3697, 0
      %v3902 = vsel %vm1431, %v3702, 0
      %3904 = vmatprep.subr.bf16.mxu0 0
      %3905 = vmatpush1.bf16.msra.mxu0 0
      %3906 = vmatprep.subr.bf16.mxu0 0
      %3907 = vmatpush1.bf16.msra.mxu0 0
      %3908 = vmatprep.subr.bf16.mxu0 0
      %3909 = vmatpush1.bf16.msra.mxu0 0
      %3910 = vmatprep.subr.bf16.mxu0 0
      %3911 = vmatpush1.bf16.msra.mxu0 0
      %3912 = vmatprep.subr.bf16.mxu0 0
      %3913 = vmatpush1.bf16.msra.mxu0 0
      %3914 = vmatprep.subr.bf16.mxu0 0
      %3915 = vmatpush1.bf16.msra.mxu0 0
      %3916 = vmatprep.subr.bf16.mxu0 0
      %3917 = vmatpush1.bf16.msra.mxu0 0
      %3918 = vmatprep.subr.bf16.mxu0 0
      %3919 = vmatpush1.bf16.msra.mxu0 %v3902
      %3920 = vmatprep.subr.bf16.mxu0 0
      %3921 = vmatpush2.bf16.msra.mxu0 0
      %3922 = vmatprep.subr.bf16.mxu0 0
      %3923 = vmatpush2.bf16.msra.mxu0 0
      %3924 = vmatprep.subr.bf16.mxu0 0
      %3925 = vmatpush2.bf16.msra.mxu0 0
      %3926 = vmatprep.subr.bf16.mxu0 0
      %3927 = vmatpush2.bf16.msra.mxu0 0
      %3928 = vmatprep.subr.bf16.mxu0 0
      %3929 = vmatpush2.bf16.msra.mxu0 0
      %3930 = vmatprep.subr.bf16.mxu0 0
      %3931 = vmatpush2.bf16.msra.mxu0 0
      %3932 = vmatprep.subr.bf16.mxu0 0
      %3933 = vmatpush2.bf16.msra.mxu0 0
      %3934 = vmatprep.subr.bf16.mxu0 0
      %3935 = vmatpush2.bf16.msra.mxu0 0
      %3936 = vmatprep.mubr.bf16.mxu0 0
      %3937 = vmatmul.mubr.bf16.gmra.mxu0 %v3704
      %v3938 = vpop.f32.mrf.mxu0
      %v3939 = vadd.f32 0.0, %v3938
      %v3940 = vpop.f32.mrf.mxu0
      %v3941 = vpop.f32.mrf.mxu0
      %v3942 = vadd.f32 0.0, %v3941
      %v3943 = vpop.f32.mrf.mxu0
      %3944 = vmatprep.mubr.bf16.mxu0 0
      %3945 = vmatmul.mubr.bf16.gmra.mxu0 %v3707
      %v3946 = vpop.f32.mrf.mxu0
      %v3947 = vadd.f32 0.0, %v3946
      %v3948 = vpop.f32.mrf.mxu0
      %v3949 = vpop.f32.mrf.mxu0
      %v3950 = vadd.f32 0.0, %v3949
      %v3951 = vpop.f32.mrf.mxu0
      %3952 = vmatprep.mubr.bf16.mxu0 0
      %3953 = vmatmul.mubr.bf16.gmra.mxu0 %v3710
      %v3954 = vpop.f32.mrf.mxu0
      %v3955 = vadd.f32 0.0, %v3954
      %v3956 = vpop.f32.mrf.mxu0
      %v3957 = vpop.f32.mrf.mxu0
      %v3958 = vadd.f32 0.0, %v3957
      %v3959 = vpop.f32.mrf.mxu0
      %3960 = vmatprep.mubr.bf16.mxu0 0
      %3961 = vmatmul.mubr.bf16.gmra.mxu0 %v3713
      %v3962 = vpop.f32.mrf.mxu0
      %v3963 = vadd.f32 0.0, %v3962
      %v3964 = vpop.f32.mrf.mxu0
      %v3965 = vpop.f32.mrf.mxu0
      %v3966 = vadd.f32 0.0, %v3965
      %v3967 = vpop.f32.mrf.mxu0
      %3968 = vmatprep.mubr.bf16.mxu0 0
      %3969 = vmatmul.mubr.bf16.gmra.mxu0 %v3716
      %v3970 = vpop.f32.mrf.mxu0
      %v3971 = vadd.f32 0.0, %v3970
      %v3972 = vpop.f32.mrf.mxu0
      %v3973 = vpop.f32.mrf.mxu0
      %v3974 = vadd.f32 0.0, %v3973
      %v3975 = vpop.f32.mrf.mxu0
      %3976 = vmatprep.mubr.bf16.mxu0 0
      %3977 = vmatmul.mubr.bf16.gmra.mxu0 %v3719
      %v3978 = vpop.f32.mrf.mxu0
      %v3979 = vadd.f32 0.0, %v3978
      %v3980 = vpop.f32.mrf.mxu0
      %v3981 = vpop.f32.mrf.mxu0
      %v3982 = vadd.f32 0.0, %v3981
      %v3983 = vpop.f32.mrf.mxu0
      %3984 = vmatprep.mubr.bf16.mxu0 0
      %3985 = vmatmul.mubr.bf16.gmra.mxu0 %v3722
      %v3986 = vpop.f32.mrf.mxu0
      %v3987 = vadd.f32 0.0, %v3986
      %v3988 = vpop.f32.mrf.mxu0
      %v3989 = vpop.f32.mrf.mxu0
      %v3990 = vadd.f32 0.0, %v3989
      %v3991 = vpop.f32.mrf.mxu0
      %3992 = vmatprep.mubr.bf16.mxu0 0
      %3993 = vmatmul.mubr.bf16.gmra.mxu0 %v3725
      %v3994 = vpop.f32.mrf.mxu0
      %v3995 = vadd.f32 0.0, %v3994
      %v3996 = vpop.f32.mrf.mxu0
      %v3997 = vpop.f32.mrf.mxu0
      %v3998 = vadd.f32 0.0, %v3997
      %v3999 = vpop.f32.mrf.mxu0
      %4000 = vmatprep.mubr.bf16.mxu0 0
      %4001 = vmatmul.mubr.bf16.gmra.mxu0 %v3728
      %v4002 = vpop.f32.mrf.mxu0
      %v4003 = vadd.f32 0.0, %v4002
      %v4004 = vpop.f32.mrf.mxu0
      %v4005 = vpop.f32.mrf.mxu0
      %v4006 = vadd.f32 0.0, %v4005
      %v4007 = vpop.f32.mrf.mxu0
      %4008 = vmatprep.mubr.bf16.mxu0 0
      %4009 = vmatmul.mubr.bf16.gmra.mxu0 %v3731
      %v4010 = vpop.f32.mrf.mxu0
      %v4011 = vadd.f32 0.0, %v4010
      %v4012 = vpop.f32.mrf.mxu0
      %v4013 = vpop.f32.mrf.mxu0
      %v4014 = vadd.f32 0.0, %v4013
      %v4015 = vpop.f32.mrf.mxu0
      %4016 = vmatprep.mubr.bf16.mxu0 0
      %4017 = vmatmul.mubr.bf16.gmra.mxu0 %v3734
      %v4018 = vpop.f32.mrf.mxu0
      %v4019 = vadd.f32 0.0, %v4018
      %v4020 = vpop.f32.mrf.mxu0
      %v4021 = vpop.f32.mrf.mxu0
      %v4022 = vadd.f32 0.0, %v4021
      %v4023 = vpop.f32.mrf.mxu0
      %4024 = vmatprep.mubr.bf16.mxu0 0
      %4025 = vmatmul.mubr.bf16.gmra.mxu0 %v3737
      %v4026 = vpop.f32.mrf.mxu0
      %v4027 = vadd.f32 0.0, %v4026
      %v4028 = vpop.f32.mrf.mxu0
      %v4029 = vpop.f32.mrf.mxu0
      %v4030 = vadd.f32 0.0, %v4029
      %v4031 = vpop.f32.mrf.mxu0
      %4032 = vmatprep.mubr.bf16.mxu0 0
      %4033 = vmatmul.mubr.bf16.gmra.mxu0 %v3740
      %v4034 = vpop.f32.mrf.mxu0
      %v4035 = vadd.f32 0.0, %v4034
      %v4036 = vpop.f32.mrf.mxu0
      %v4037 = vpop.f32.mrf.mxu0
      %v4038 = vadd.f32 0.0, %v4037
      %v4039 = vpop.f32.mrf.mxu0
      %4040 = vmatprep.mubr.bf16.mxu0 0
      %4041 = vmatmul.mubr.bf16.gmra.mxu0 %v3743
      %v4042 = vpop.f32.mrf.mxu0
      %v4043 = vadd.f32 0.0, %v4042
      %v4044 = vpop.f32.mrf.mxu0
      %v4045 = vpop.f32.mrf.mxu0
      %v4046 = vadd.f32 0.0, %v4045
      %v4047 = vpop.f32.mrf.mxu0
      %4048 = vmatprep.mubr.bf16.mxu0 0
      %4049 = vmatmul.mubr.bf16.gmra.mxu0 %v3746
      %v4050 = vpop.f32.mrf.mxu0
      %v4051 = vadd.f32 0.0, %v4050
      %v4052 = vpop.f32.mrf.mxu0
      %v4053 = vpop.f32.mrf.mxu0
      %v4054 = vadd.f32 0.0, %v4053
      %v4055 = vpop.f32.mrf.mxu0
      %4056 = vmatprep.mubr.bf16.mxu0 0
      %4057 = vmatmul.mubr.bf16.gmra.mxu0 %v3749
      %v4058 = vpop.f32.mrf.mxu0
      %v4059 = vadd.f32 0.0, %v4058
      %v4060 = vpop.f32.mrf.mxu0
      %v4061 = vpop.f32.mrf.mxu0
      %v4062 = vadd.f32 0.0, %v4061
      %v4063 = vpop.f32.mrf.mxu0
      %4064 = vmatprep.mubr.bf16.mxu0 0
      %4065 = vmatmul.mubr.bf16.gmra.mxu0 %v3752
      %v4066 = vpop.f32.mrf.mxu0
      %v4067 = vadd.f32 0.0, %v4066
      %v4068 = vpop.f32.mrf.mxu0
      %v4069 = vpop.f32.mrf.mxu0
      %v4070 = vadd.f32 0.0, %v4069
      %v4071 = vpop.f32.mrf.mxu0
      %4072 = vmatprep.mubr.bf16.mxu0 0
      %4073 = vmatmul.mubr.bf16.gmra.mxu0 %v3755
      %v4074 = vpop.f32.mrf.mxu0
      %v4075 = vadd.f32 0.0, %v4074
      %v4076 = vpop.f32.mrf.mxu0
      %v4077 = vpop.f32.mrf.mxu0
      %v4078 = vadd.f32 0.0, %v4077
      %v4079 = vpop.f32.mrf.mxu0
      %4080 = vmatprep.mubr.bf16.mxu0 0
      %4081 = vmatmul.mubr.bf16.gmra.mxu0 %v3758
      %v4082 = vpop.f32.mrf.mxu0
      %v4083 = vadd.f32 0.0, %v4082
      %v4084 = vpop.f32.mrf.mxu0
      %v4085 = vpop.f32.mrf.mxu0
      %v4086 = vadd.f32 0.0, %v4085
      %v4087 = vpop.f32.mrf.mxu0
      %4088 = vmatprep.mubr.bf16.mxu0 0
      %4089 = vmatmul.mubr.bf16.gmra.mxu0 %v3761
      %v4090 = vpop.f32.mrf.mxu0
      %v4091 = vadd.f32 0.0, %v4090
      %v4092 = vpop.f32.mrf.mxu0
      %v4093 = vpop.f32.mrf.mxu0
      %v4094 = vadd.f32 0.0, %v4093
      %v4095 = vpop.f32.mrf.mxu0
      %4096 = vmatprep.mubr.bf16.mxu0 0
      %4097 = vmatmul.mubr.bf16.gmra.mxu0 %v3764
      %v4098 = vpop.f32.mrf.mxu0
      %v4099 = vadd.f32 0.0, %v4098
      %v4100 = vpop.f32.mrf.mxu0
      %v4101 = vpop.f32.mrf.mxu0
      %v4102 = vadd.f32 0.0, %v4101
      %v4103 = vpop.f32.mrf.mxu0
      %4104 = vmatprep.mubr.bf16.mxu0 0
      %4105 = vmatmul.mubr.bf16.gmra.mxu0 %v3767
      %v4106 = vpop.f32.mrf.mxu0
      %v4107 = vadd.f32 0.0, %v4106
      %v4108 = vpop.f32.mrf.mxu0
      %v4109 = vpop.f32.mrf.mxu0
      %v4110 = vadd.f32 0.0, %v4109
      %v4111 = vpop.f32.mrf.mxu0
      %4112 = vmatprep.mubr.bf16.mxu0 0
      %4113 = vmatmul.mubr.bf16.gmra.mxu0 %v3770
      %v4114 = vpop.f32.mrf.mxu0
      %v4115 = vadd.f32 0.0, %v4114
      %v4116 = vpop.f32.mrf.mxu0
      %v4117 = vpop.f32.mrf.mxu0
      %v4118 = vadd.f32 0.0, %v4117
      %v4119 = vpop.f32.mrf.mxu0
      %4120 = vmatprep.mubr.bf16.mxu0 0
      %4121 = vmatmul.mubr.bf16.gmra.mxu0 %v3773
      %v4122 = vpop.f32.mrf.mxu0
      %v4123 = vadd.f32 0.0, %v4122
      %v4124 = vpop.f32.mrf.mxu0
      %v4125 = vpop.f32.mrf.mxu0
      %v4126 = vadd.f32 0.0, %v4125
      %v4127 = vpop.f32.mrf.mxu0
      %4128 = vmatprep.mubr.bf16.mxu0 0
      %4129 = vmatmul.mubr.bf16.gmra.mxu0 %v3776
      %v4130 = vpop.f32.mrf.mxu0
      %v4131 = vadd.f32 0.0, %v4130
      %v4132 = vpop.f32.mrf.mxu0
      %v4133 = vpop.f32.mrf.mxu0
      %v4134 = vadd.f32 0.0, %v4133
      %v4135 = vpop.f32.mrf.mxu0
      %4136 = vmatprep.mubr.bf16.mxu0 0
      %4137 = vmatmul.mubr.bf16.gmra.mxu0 %v3779
      %v4138 = vpop.f32.mrf.mxu0
      %v4139 = vadd.f32 0.0, %v4138
      %v4140 = vpop.f32.mrf.mxu0
      %v4141 = vpop.f32.mrf.mxu0
      %v4142 = vadd.f32 0.0, %v4141
      %v4143 = vpop.f32.mrf.mxu0
      %4144 = vmatprep.mubr.bf16.mxu0 0
      %4145 = vmatmul.mubr.bf16.gmra.mxu0 %v3782
      %v4146 = vpop.f32.mrf.mxu0
      %v4147 = vadd.f32 0.0, %v4146
      %v4148 = vpop.f32.mrf.mxu0
      %v4149 = vpop.f32.mrf.mxu0
      %v4150 = vadd.f32 0.0, %v4149
      %v4151 = vpop.f32.mrf.mxu0
      %4152 = vmatprep.mubr.bf16.mxu0 0
      %4153 = vmatmul.mubr.bf16.gmra.mxu0 %v3785
      %v4154 = vpop.f32.mrf.mxu0
      %v4155 = vadd.f32 0.0, %v4154
      %v4156 = vpop.f32.mrf.mxu0
      %v4157 = vpop.f32.mrf.mxu0
      %v4158 = vadd.f32 0.0, %v4157
      %v4159 = vpop.f32.mrf.mxu0
      %4160 = vmatprep.mubr.bf16.mxu0 0
      %4161 = vmatmul.mubr.bf16.gmra.mxu0 %v3788
      %v4162 = vpop.f32.mrf.mxu0
      %v4163 = vadd.f32 0.0, %v4162
      %v4164 = vpop.f32.mrf.mxu0
      %v4165 = vpop.f32.mrf.mxu0
      %v4166 = vadd.f32 0.0, %v4165
      %v4167 = vpop.f32.mrf.mxu0
      %4168 = vmatprep.mubr.bf16.mxu0 0
      %4169 = vmatmul.mubr.bf16.gmra.mxu0 %v3791
      %v4170 = vpop.f32.mrf.mxu0
      %v4171 = vadd.f32 0.0, %v4170
      %v4172 = vpop.f32.mrf.mxu0
      %v4173 = vpop.f32.mrf.mxu0
      %v4174 = vadd.f32 0.0, %v4173
      %v4175 = vpop.f32.mrf.mxu0
      %4176 = vmatprep.mubr.bf16.mxu0 0
      %4177 = vmatmul.mubr.bf16.gmra.mxu0 %v3794
      %v4178 = vpop.f32.mrf.mxu0
      %v4179 = vadd.f32 0.0, %v4178
      %v4180 = vpop.f32.mrf.mxu0
      %v4181 = vpop.f32.mrf.mxu0
      %v4182 = vadd.f32 0.0, %v4181
      %v4183 = vpop.f32.mrf.mxu0
      %4184 = vmatprep.mubr.bf16.mxu0 0
      %4185 = vmatmul.mubr.bf16.gmra.mxu0 %v3797
      %v4186 = vpop.f32.mrf.mxu0
      %v4187 = vadd.f32 0.0, %v4186
      %v4188 = vpop.f32.mrf.mxu0
      %v4189 = vpop.f32.mrf.mxu0
      %v4190 = vadd.f32 0.0, %v4189
      %v4191 = vpop.f32.mrf.mxu0
      %4192 = vmatprep.mubr.bf16.mxu0 0
      %4193 = vmatmul.mubr.bf16.gmra.mxu0 %v3800
      %v4194 = vpop.f32.mrf.mxu0
      %v4195 = vadd.f32 0.0, %v4194
      %v4196 = vpop.f32.mrf.mxu0
      %v4197 = vpop.f32.mrf.mxu0
      %v4198 = vadd.f32 0.0, %v4197
      %v4199 = vpop.f32.mrf.mxu0
      %4200 = vmatprep.mubr.bf16.mxu0 0
      %4201 = vmatmul.mubr.bf16.gmra.mxu0 %v3803
      %v4202 = vpop.f32.mrf.mxu0
      %v4203 = vadd.f32 0.0, %v4202
      %v4204 = vpop.f32.mrf.mxu0
      %v4205 = vpop.f32.mrf.mxu0
      %v4206 = vadd.f32 0.0, %v4205
      %v4207 = vpop.f32.mrf.mxu0
      %4208 = vmatprep.mubr.bf16.mxu0 0
      %4209 = vmatmul.mubr.bf16.gmra.mxu0 %v3806
      %v4210 = vpop.f32.mrf.mxu0
      %v4211 = vadd.f32 0.0, %v4210
      %v4212 = vpop.f32.mrf.mxu0
      %v4213 = vpop.f32.mrf.mxu0
      %v4214 = vadd.f32 0.0, %v4213
      %v4215 = vpop.f32.mrf.mxu0
      %4216 = vmatprep.mubr.bf16.mxu0 0
      %4217 = vmatmul.mubr.bf16.gmra.mxu0 %v3809
      %v4218 = vpop.f32.mrf.mxu0
      %v4219 = vadd.f32 0.0, %v4218
      %v4220 = vpop.f32.mrf.mxu0
      %v4221 = vpop.f32.mrf.mxu0
      %v4222 = vadd.f32 0.0, %v4221
      %v4223 = vpop.f32.mrf.mxu0
      %4224 = vmatprep.mubr.bf16.mxu0 0
      %4225 = vmatmul.mubr.bf16.gmra.mxu0 %v3812
      %v4226 = vpop.f32.mrf.mxu0
      %v4227 = vadd.f32 0.0, %v4226
      %v4228 = vpop.f32.mrf.mxu0
      %v4229 = vpop.f32.mrf.mxu0
      %v4230 = vadd.f32 0.0, %v4229
      %v4231 = vpop.f32.mrf.mxu0
      %4232 = vmatprep.mubr.bf16.mxu0 0
      %4233 = vmatmul.mubr.bf16.gmra.mxu0 %v3815
      %v4234 = vpop.f32.mrf.mxu0
      %v4235 = vadd.f32 0.0, %v4234
      %v4236 = vpop.f32.mrf.mxu0
      %v4237 = vpop.f32.mrf.mxu0
      %v4238 = vadd.f32 0.0, %v4237
      %v4239 = vpop.f32.mrf.mxu0
      %4240 = vmatprep.mubr.bf16.mxu0 0
      %4241 = vmatmul.mubr.bf16.gmra.mxu0 %v3818
      %v4242 = vpop.f32.mrf.mxu0
      %v4243 = vadd.f32 0.0, %v4242
      %v4244 = vpop.f32.mrf.mxu0
      %v4245 = vpop.f32.mrf.mxu0
      %v4246 = vadd.f32 0.0, %v4245
      %v4247 = vpop.f32.mrf.mxu0
      %4248 = vmatprep.mubr.bf16.mxu0 0
      %4249 = vmatmul.mubr.bf16.gmra.mxu0 %v3821
      %v4250 = vpop.f32.mrf.mxu0
      %v4251 = vadd.f32 0.0, %v4250
      %v4252 = vpop.f32.mrf.mxu0
      %v4253 = vpop.f32.mrf.mxu0
      %v4254 = vadd.f32 0.0, %v4253
      %v4255 = vpop.f32.mrf.mxu0
      %4256 = vmatprep.mubr.bf16.mxu0 0
      %4257 = vmatmul.mubr.bf16.gmra.mxu0 %v3824
      %v4258 = vpop.f32.mrf.mxu0
      %v4259 = vadd.f32 0.0, %v4258
      %v4260 = vpop.f32.mrf.mxu0
      %v4261 = vpop.f32.mrf.mxu0
      %v4262 = vadd.f32 0.0, %v4261
      %v4263 = vpop.f32.mrf.mxu0
      %4264 = vmatprep.mubr.bf16.mxu0 0
      %4265 = vmatmul.mubr.bf16.gmra.mxu0 %v3827
      %v4266 = vpop.f32.mrf.mxu0
      %v4267 = vadd.f32 0.0, %v4266
      %v4268 = vpop.f32.mrf.mxu0
      %v4269 = vpop.f32.mrf.mxu0
      %v4270 = vadd.f32 0.0, %v4269
      %v4271 = vpop.f32.mrf.mxu0
      %4272 = vmatprep.mubr.bf16.mxu0 0
      %4273 = vmatmul.mubr.bf16.gmra.mxu0 %v3830
      %v4274 = vpop.f32.mrf.mxu0
      %v4275 = vadd.f32 0.0, %v4274
      %v4276 = vpop.f32.mrf.mxu0
      %v4277 = vpop.f32.mrf.mxu0
      %v4278 = vadd.f32 0.0, %v4277
      %v4279 = vpop.f32.mrf.mxu0
      %4280 = vmatprep.mubr.bf16.mxu0 0
      %4281 = vmatmul.mubr.bf16.gmra.mxu0 %v3833
      %v4282 = vpop.f32.mrf.mxu0
      %v4283 = vadd.f32 0.0, %v4282
      %v4284 = vpop.f32.mrf.mxu0
      %v4285 = vpop.f32.mrf.mxu0
      %v4286 = vadd.f32 0.0, %v4285
      %v4287 = vpop.f32.mrf.mxu0
      %4288 = vmatprep.mubr.bf16.mxu0 0
      %4289 = vmatmul.mubr.bf16.gmra.mxu0 %v3836
      %v4290 = vpop.f32.mrf.mxu0
      %v4291 = vadd.f32 0.0, %v4290
      %v4292 = vpop.f32.mrf.mxu0
      %v4293 = vpop.f32.mrf.mxu0
      %v4294 = vadd.f32 0.0, %v4293
      %v4295 = vpop.f32.mrf.mxu0
      %4296 = vmatprep.mubr.bf16.mxu0 0
      %4297 = vmatmul.mubr.bf16.gmra.mxu0 %v3839
      %v4298 = vpop.f32.mrf.mxu0
      %v4299 = vadd.f32 0.0, %v4298
      %v4300 = vpop.f32.mrf.mxu0
      %v4301 = vpop.f32.mrf.mxu0
      %v4302 = vadd.f32 0.0, %v4301
      %v4303 = vpop.f32.mrf.mxu0
      %4304 = vmatprep.mubr.bf16.mxu0 0
      %4305 = vmatmul.mubr.bf16.gmra.mxu0 %v3842
      %v4306 = vpop.f32.mrf.mxu0
      %v4307 = vadd.f32 0.0, %v4306
      %v4308 = vpop.f32.mrf.mxu0
      %v4309 = vpop.f32.mrf.mxu0
      %v4310 = vadd.f32 0.0, %v4309
      %v4311 = vpop.f32.mrf.mxu0
      %4312 = vmatprep.mubr.bf16.mxu0 0
      %4313 = vmatmul.mubr.bf16.gmra.mxu0 %v3845
      %v4314 = vpop.f32.mrf.mxu0
      %v4315 = vadd.f32 0.0, %v4314
      %v4316 = vpop.f32.mrf.mxu0
      %v4317 = vpop.f32.mrf.mxu0
      %v4318 = vadd.f32 0.0, %v4317
      %v4319 = vpop.f32.mrf.mxu0
      %4320 = vmatprep.mubr.bf16.mxu0 0
      %4321 = vmatmul.mubr.bf16.gmra.mxu0 %v3848
      %v4322 = vpop.f32.mrf.mxu0
      %v4323 = vadd.f32 0.0, %v4322
      %v4324 = vpop.f32.mrf.mxu0
      %v4325 = vpop.f32.mrf.mxu0
      %v4326 = vadd.f32 0.0, %v4325
      %v4327 = vpop.f32.mrf.mxu0
      %4328 = vmatprep.mubr.bf16.mxu0 0
      %4329 = vmatmul.mubr.bf16.gmra.mxu0 %v3851
      %v4330 = vpop.f32.mrf.mxu0
      %v4331 = vadd.f32 0.0, %v4330
      %v4332 = vpop.f32.mrf.mxu0
      %v4333 = vpop.f32.mrf.mxu0
      %v4334 = vadd.f32 0.0, %v4333
      %v4335 = vpop.f32.mrf.mxu0
      %4336 = vmatprep.mubr.bf16.mxu0 0
      %4337 = vmatmul.mubr.bf16.gmra.mxu0 %v3854
      %v4338 = vpop.f32.mrf.mxu0
      %v4339 = vadd.f32 0.0, %v4338
      %v4340 = vpop.f32.mrf.mxu0
      %v4341 = vpop.f32.mrf.mxu0
      %v4342 = vadd.f32 0.0, %v4341
      %v4343 = vpop.f32.mrf.mxu0
      %4344 = vmatprep.mubr.bf16.mxu0 0
      %4345 = vmatmul.mubr.bf16.gmra.mxu0 %v3857
      %v4346 = vpop.f32.mrf.mxu0
      %v4347 = vadd.f32 0.0, %v4346
      %v4348 = vpop.f32.mrf.mxu0
      %v4349 = vpop.f32.mrf.mxu0
      %v4350 = vadd.f32 0.0, %v4349
      %v4351 = vpop.f32.mrf.mxu0
      %4352 = vmatprep.mubr.bf16.mxu0 0
      %4353 = vmatmul.mubr.bf16.gmra.mxu0 %v3860
      %v4354 = vpop.f32.mrf.mxu0
      %v4355 = vadd.f32 0.0, %v4354
      %v4356 = vpop.f32.mrf.mxu0
      %v4357 = vpop.f32.mrf.mxu0
      %v4358 = vadd.f32 0.0, %v4357
      %v4359 = vpop.f32.mrf.mxu0
      %4360 = vmatprep.mubr.bf16.mxu0 0
      %4361 = vmatmul.mubr.bf16.gmra.mxu0 %v3863
      %v4362 = vpop.f32.mrf.mxu0
      %v4363 = vadd.f32 0.0, %v4362
      %v4364 = vpop.f32.mrf.mxu0
      %v4365 = vpop.f32.mrf.mxu0
      %v4366 = vadd.f32 0.0, %v4365
      %v4367 = vpop.f32.mrf.mxu0
      %4368 = vmatprep.mubr.bf16.mxu0 0
      %4369 = vmatmul.mubr.bf16.gmra.mxu0 %v3866
      %v4370 = vpop.f32.mrf.mxu0
      %v4371 = vadd.f32 0.0, %v4370
      %v4372 = vpop.f32.mrf.mxu0
      %v4373 = vpop.f32.mrf.mxu0
      %v4374 = vadd.f32 0.0, %v4373
      %v4375 = vpop.f32.mrf.mxu0
      %4376 = vmatprep.mubr.bf16.mxu0 0
      %4377 = vmatmul.mubr.bf16.gmra.mxu0 %v3869
      %v4378 = vpop.f32.mrf.mxu0
      %v4379 = vadd.f32 0.0, %v4378
      %v4380 = vpop.f32.mrf.mxu0
      %v4381 = vpop.f32.mrf.mxu0
      %v4382 = vadd.f32 0.0, %v4381
      %v4383 = vpop.f32.mrf.mxu0
      %4384 = vmatprep.mubr.bf16.mxu0 0
      %4385 = vmatmul.mubr.bf16.gmra.mxu0 %v3872
      %v4386 = vpop.f32.mrf.mxu0
      %v4387 = vadd.f32 0.0, %v4386
      %v4388 = vpop.f32.mrf.mxu0
      %v4389 = vpop.f32.mrf.mxu0
      %v4390 = vadd.f32 0.0, %v4389
      %v4391 = vpop.f32.mrf.mxu0
      %4392 = vmatprep.mubr.bf16.mxu0 0
      %4393 = vmatmul.mubr.bf16.gmra.mxu0 %v3875
      %v4394 = vpop.f32.mrf.mxu0
      %v4395 = vadd.f32 0.0, %v4394
      %v4396 = vpop.f32.mrf.mxu0
      %v4397 = vpop.f32.mrf.mxu0
      %v4398 = vadd.f32 0.0, %v4397
      %v4399 = vpop.f32.mrf.mxu0
      %4400 = vmatprep.mubr.bf16.mxu0 0
      %4401 = vmatmul.mubr.bf16.gmra.mxu0 %v3878
      %v4402 = vpop.f32.mrf.mxu0
      %v4403 = vadd.f32 0.0, %v4402
      %v4404 = vpop.f32.mrf.mxu0
      %v4405 = vpop.f32.mrf.mxu0
      %v4406 = vadd.f32 0.0, %v4405
      %v4407 = vpop.f32.mrf.mxu0
      %4408 = vmatprep.mubr.bf16.mxu0 0
      %4409 = vmatmul.mubr.bf16.gmra.mxu0 %v3881
      %v4410 = vpop.f32.mrf.mxu0
      %v4411 = vadd.f32 0.0, %v4410
      %v4412 = vpop.f32.mrf.mxu0
      %v4413 = vpop.f32.mrf.mxu0
      %v4414 = vadd.f32 0.0, %v4413
      %v4415 = vpop.f32.mrf.mxu0
      %4416 = vmatprep.mubr.bf16.mxu0 0
      %4417 = vmatmul.mubr.bf16.gmra.mxu0 %v3884
      %v4418 = vpop.f32.mrf.mxu0
      %v4419 = vadd.f32 0.0, %v4418
      %v4420 = vpop.f32.mrf.mxu0
      %v4421 = vpop.f32.mrf.mxu0
      %v4422 = vadd.f32 0.0, %v4421
      %v4423 = vpop.f32.mrf.mxu0
      %4424 = vmatprep.mubr.bf16.mxu0 0
      %4425 = vmatmul.mubr.bf16.gmra.mxu0 %v3887
      %v4426 = vpop.f32.mrf.mxu0
      %v4427 = vadd.f32 0.0, %v4426
      %v4428 = vpop.f32.mrf.mxu0
      %v4429 = vpop.f32.mrf.mxu0
      %v4430 = vadd.f32 0.0, %v4429
      %v4431 = vpop.f32.mrf.mxu0
      %4432 = vmatprep.mubr.bf16.mxu0 0
      %4433 = vmatmul.mubr.bf16.gmra.mxu0 %v3890
      %v4434 = vpop.f32.mrf.mxu0
      %v4435 = vadd.f32 0.0, %v4434
      %v4436 = vpop.f32.mrf.mxu0
      %v4437 = vpop.f32.mrf.mxu0
      %v4438 = vadd.f32 0.0, %v4437
      %v4439 = vpop.f32.mrf.mxu0
      %4440 = vmatprep.mubr.bf16.mxu0 0
      %4441 = vmatmul.mubr.bf16.gmra.mxu0 %v3893
      %v4442 = vpop.f32.mrf.mxu0
      %v4443 = vadd.f32 0.0, %v4442
      %v4444 = vpop.f32.mrf.mxu0
      %v4445 = vpop.f32.mrf.mxu0
      %v4446 = vadd.f32 0.0, %v4445
      %v4447 = vpop.f32.mrf.mxu0
      %4448 = vmatprep.mubr.bf16.mxu0 0
      %4449 = vmatmul.mubr.bf16.gmra.mxu0 %v3896
      %v4450 = vpop.f32.mrf.mxu0
      %v4451 = vadd.f32 0.0, %v4450
      %v4452 = vpop.f32.mrf.mxu0
      %v4453 = vpop.f32.mrf.mxu0
      %v4454 = vadd.f32 0.0, %v4453
      %v4455 = vpop.f32.mrf.mxu0
      %4456 = vmatprep.mubr.bf16.mxu0 0
      %4457 = vmatmul.mubr.bf16.gmra.mxu0 %v3899
      %v4458 = vpop.f32.mrf.mxu0
      %v4459 = vadd.f32 0.0, %v4458
      %v4460 = vpop.f32.mrf.mxu0
      %v4461 = vpop.f32.mrf.mxu0
      %v4462 = vadd.f32 0.0, %v4461
      %v4463 = vpop.f32.mrf.mxu0
      %4464 = vdwg.mxu0
      %v4465 = vadd.f32 %v2171, %v3939
      %v4466 = vadd.f32 %v2174, %v3942
      %v4467 = vadd.f32 %v2179, %v3947
      %v4468 = vadd.f32 %v2182, %v3950
      %v4469 = vadd.f32 %v2187, %v3955
      %v4470 = vadd.f32 %v2190, %v3958
      %v4471 = vadd.f32 %v2195, %v3963
      %v4472 = vadd.f32 %v2198, %v3966
      %v4473 = vadd.f32 %v2203, %v3971
      %v4474 = vadd.f32 %v2206, %v3974
      %v4475 = vadd.f32 %v2211, %v3979
      %v4476 = vadd.f32 %v2214, %v3982
      %v4477 = vadd.f32 %v2219, %v3987
      %v4478 = vadd.f32 %v2222, %v3990
      %v4479 = vadd.f32 %v2227, %v3995
      %v4480 = vadd.f32 %v2230, %v3998
      %v4481 = vadd.f32 %v2235, %v4003
      %v4482 = vadd.f32 %v2238, %v4006
      %v4483 = vadd.f32 %v2243, %v4011
      %v4484 = vadd.f32 %v2246, %v4014
      %v4485 = vadd.f32 %v2251, %v4019
      %v4486 = vadd.f32 %v2254, %v4022
      %v4487 = vadd.f32 %v2259, %v4027
      %v4488 = vadd.f32 %v2262, %v4030
      %v4489 = vadd.f32 %v2267, %v4035
      %v4490 = vadd.f32 %v2270, %v4038
      %v4491 = vadd.f32 %v2275, %v4043
      %v4492 = vadd.f32 %v2278, %v4046
      %v4493 = vadd.f32 %v2283, %v4051
      %v4494 = vadd.f32 %v2286, %v4054
      %v4495 = vadd.f32 %v2291, %v4059
      %v4496 = vadd.f32 %v2294, %v4062
      %v4497 = vadd.f32 %v2299, %v4067
      %v4498 = vadd.f32 %v2302, %v4070
      %v4499 = vadd.f32 %v2307, %v4075
      %v4500 = vadd.f32 %v2310, %v4078
      %v4501 = vadd.f32 %v2315, %v4083
      %v4502 = vadd.f32 %v2318, %v4086
      %v4503 = vadd.f32 %v2323, %v4091
      %v4504 = vadd.f32 %v2326, %v4094
      %v4505 = vadd.f32 %v2331, %v4099
      %v4506 = vadd.f32 %v2334, %v4102
      %v4507 = vadd.f32 %v2339, %v4107
      %v4508 = vadd.f32 %v2342, %v4110
      %v4509 = vadd.f32 %v2347, %v4115
      %v4510 = vadd.f32 %v2350, %v4118
      %v4511 = vadd.f32 %v2355, %v4123
      %v4512 = vadd.f32 %v2358, %v4126
      %v4513 = vadd.f32 %v2363, %v4131
      %v4514 = vadd.f32 %v2366, %v4134
      %v4515 = vadd.f32 %v2371, %v4139
      %v4516 = vadd.f32 %v2374, %v4142
      %v4517 = vadd.f32 %v2379, %v4147
      %v4518 = vadd.f32 %v2382, %v4150
      %v4519 = vadd.f32 %v2387, %v4155
      %v4520 = vadd.f32 %v2390, %v4158
      %v4521 = vadd.f32 %v2395, %v4163
      %v4522 = vadd.f32 %v2398, %v4166
      %v4523 = vadd.f32 %v2403, %v4171
      %v4524 = vadd.f32 %v2406, %v4174
      %v4525 = vadd.f32 %v2411, %v4179
      %v4526 = vadd.f32 %v2414, %v4182
      %v4527 = vadd.f32 %v2419, %v4187
      %v4528 = vadd.f32 %v2422, %v4190
      %v4529 = vadd.f32 %v2427, %v4195
      %v4530 = vadd.f32 %v2430, %v4198
      %v4531 = vadd.f32 %v2435, %v4203
      %v4532 = vadd.f32 %v2438, %v4206
      %v4533 = vadd.f32 %v2443, %v4211
      %v4534 = vadd.f32 %v2446, %v4214
      %v4535 = vadd.f32 %v2451, %v4219
      %v4536 = vadd.f32 %v2454, %v4222
      %v4537 = vadd.f32 %v2459, %v4227
      %v4538 = vadd.f32 %v2462, %v4230
      %v4539 = vadd.f32 %v2467, %v4235
      %v4540 = vadd.f32 %v2470, %v4238
      %v4541 = vadd.f32 %v2475, %v4243
      %v4542 = vadd.f32 %v2478, %v4246
      %v4543 = vadd.f32 %v2483, %v4251
      %v4544 = vadd.f32 %v2486, %v4254
      %v4545 = vadd.f32 %v2491, %v4259
      %v4546 = vadd.f32 %v2494, %v4262
      %v4547 = vadd.f32 %v2499, %v4267
      %v4548 = vadd.f32 %v2502, %v4270
      %v4549 = vadd.f32 %v2507, %v4275
      %v4550 = vadd.f32 %v2510, %v4278
      %v4551 = vadd.f32 %v2515, %v4283
      %v4552 = vadd.f32 %v2518, %v4286
      %v4553 = vadd.f32 %v2523, %v4291
      %v4554 = vadd.f32 %v2526, %v4294
      %v4555 = vadd.f32 %v2531, %v4299
      %v4556 = vadd.f32 %v2534, %v4302
      %v4557 = vadd.f32 %v2539, %v4307
      %v4558 = vadd.f32 %v2542, %v4310
      %v4559 = vadd.f32 %v2547, %v4315
      %v4560 = vadd.f32 %v2550, %v4318
      %v4561 = vadd.f32 %v2555, %v4323
      %v4562 = vadd.f32 %v2558, %v4326
      %v4563 = vadd.f32 %v2563, %v4331
      %v4564 = vadd.f32 %v2566, %v4334
      %v4565 = vadd.f32 %v2571, %v4339
      %v4566 = vadd.f32 %v2574, %v4342
      %v4567 = vadd.f32 %v2579, %v4347
      %v4568 = vadd.f32 %v2582, %v4350
      %v4569 = vadd.f32 %v2587, %v4355
      %v4570 = vadd.f32 %v2590, %v4358
      %v4571 = vadd.f32 %v2595, %v4363
      %v4572 = vadd.f32 %v2598, %v4366
      %v4573 = vadd.f32 %v2603, %v4371
      %v4574 = vadd.f32 %v2606, %v4374
      %v4575 = vadd.f32 %v2611, %v4379
      %v4576 = vadd.f32 %v2614, %v4382
      %v4577 = vadd.f32 %v2619, %v4387
      %v4578 = vadd.f32 %v2622, %v4390
      %v4579 = vadd.f32 %v2627, %v4395
      %v4580 = vadd.f32 %v2630, %v4398
      %v4581 = vadd.f32 %v2635, %v4403
      %v4582 = vadd.f32 %v2638, %v4406
      %v4583 = vadd.f32 %v2643, %v4411
      %v4584 = vadd.f32 %v2646, %v4414
      %v4585 = vadd.f32 %v2651, %v4419
      %v4586 = vadd.f32 %v2654, %v4422
      %v4587 = vadd.f32 %v2659, %v4427
      %v4588 = vadd.f32 %v2662, %v4430
      %v4589 = vadd.f32 %v2667, %v4435
      %v4590 = vadd.f32 %v2670, %v4438
      %v4591 = vadd.f32 %v2675, %v4443
      %v4592 = vadd.f32 %v2678, %v4446
      %v4593 = vadd.f32 %v2683, %v4451
      %v4594 = vadd.f32 %v2686, %v4454
      %v4595 = vadd.f32 %v2691, %v4459
      %v4596 = vadd.f32 %v2694, %v4462
      %v4597 = vld [vmem:[%s206 + $0x10] sm:$0xe]
      %s4598 = scalar_lea.vmem %s210, 24
      %v4599 = vld [vmem:[%s4598] sm:$0xf]
      %v4600 = vld [vmem:[%s4598 + $0x4] sm:$0x3]
      %v4602 = vunpack.c.l.b16 %v4597
      %v4603 = vpack.c.b16 %v2967, %v4602
      %vm4604 = vcmask 1046528
      %v4605 = vrot.slane %v4603, 1
      %v4606 = vrot.slane %v3100, 1
      %v4607 = vsel %vm4604, %v4605, %v4606
      %v4608 = vrot.slane %v3101, 1
      %v4609 = vsel %vm4604, %v4606, %v4608
      %v4610 = vrot.slane %v3102, 1
      %v4611 = vsel %vm4604, %v4608, %v4610
      %v4612 = vrot.slane %v3103, 1
      %v4613 = vsel %vm4604, %v4610, %v4612
      %v4614 = vrot.slane %v3104, 1
      %v4615 = vsel %vm4604, %v4612, %v4614
      %v4616 = vrot.slane %v3105, 1
      %v4617 = vsel %vm4604, %v4614, %v4616
      %v4618 = vrot.slane %v3106, 1
      %v4619 = vsel %vm4604, %v4616, %v4618
      %v4620 = vrot.slane %v3107, 1
      %v4621 = vsel %vm4604, %v4618, %v4620
      %v4622 = vrot.slane %v3108, 1
      %v4623 = vsel %vm4604, %v4620, %v4622
      %v4624 = vrot.slane %v3109, 1
      %v4625 = vsel %vm4604, %v4622, %v4624
      %v4626 = vrot.slane %v3110, 1
      %v4627 = vsel %vm4604, %v4624, %v4626
      %v4628 = vrot.slane %v3111, 1
      %v4629 = vsel %vm4604, %v4626, %v4628
      %v4630 = vrot.slane %v3112, 1
      %v4631 = vsel %vm4604, %v4628, %v4630
      %v4632 = vrot.slane %v3113, 1
      %v4633 = vsel %vm4604, %v4630, %v4632
      %v4634 = vrot.slane %v3114, 1
      %v4635 = vsel %vm4604, %v4632, %v4634
      %v4636 = vrot.slane %v3115, 1
      %v4637 = vsel %vm4604, %v4634, %v4636
      %v4638 = vrot.slane %v3116, 1
      %v4639 = vsel %vm4604, %v4636, %v4638
      %v4640 = vrot.slane %v3117, 1
      %v4641 = vsel %vm4604, %v4638, %v4640
      %v4642 = vrot.slane %v3118, 1
      %v4643 = vsel %vm4604, %v4640, %v4642
      %v4644 = vrot.slane %v3119, 1
      %v4645 = vsel %vm4604, %v4642, %v4644
      %v4646 = vrot.slane %v3120, 1
      %v4647 = vsel %vm4604, %v4644, %v4646
      %v4648 = vrot.slane %v3121, 1
      %v4649 = vsel %vm4604, %v4646, %v4648
      %v4650 = vrot.slane %v3122, 1
      %v4651 = vsel %vm4604, %v4648, %v4650
      %v4652 = vrot.slane %v3123, 1
      %v4653 = vsel %vm4604, %v4650, %v4652
      %v4654 = vrot.slane %v3124, 1
      %v4655 = vsel %vm4604, %v4652, %v4654
      %v4656 = vrot.slane %v3125, 1
      %v4657 = vsel %vm4604, %v4654, %v4656
      %v4658 = vrot.slane %v3126, 1
      %v4659 = vsel %vm4604, %v4656, %v4658
      %v4660 = vrot.slane %v3127, 1
      %v4661 = vsel %vm4604, %v4658, %v4660
      %v4662 = vrot.slane %v3128, 1
      %v4663 = vsel %vm4604, %v4660, %v4662
      %v4664 = vrot.slane %v3129, 1
      %v4665 = vsel %vm4604, %v4662, %v4664
      %v4666 = vrot.slane %v3130, 1
      %v4667 = vsel %vm4604, %v4664, %v4666
      %v4668 = vrot.slane %v3131, 1
      %v4669 = vsel %vm4604, %v4666, %v4668
      %v4670 = vrot.slane %v3132, 1
      %v4671 = vsel %vm4604, %v4668, %v4670
      %v4672 = vrot.slane %v3133, 1
      %v4673 = vsel %vm4604, %v4670, %v4672
      %v4674 = vrot.slane %v3134, 1
      %v4675 = vsel %vm4604, %v4672, %v4674
      %v4676 = vrot.slane %v3135, 1
      %v4677 = vsel %vm4604, %v4674, %v4676
      %v4678 = vrot.slane %v3136, 1
      %v4679 = vsel %vm4604, %v4676, %v4678
      %v4680 = vrot.slane %v3137, 1
      %v4681 = vsel %vm4604, %v4678, %v4680
      %v4682 = vrot.slane %v3138, 1
      %v4683 = vsel %vm4604, %v4680, %v4682
      %v4684 = vrot.slane %v3139, 1
      %v4685 = vsel %vm4604, %v4682, %v4684
      %v4686 = vrot.slane %v3140, 1
      %v4687 = vsel %vm4604, %v4684, %v4686
      %v4688 = vrot.slane %v3141, 1
      %v4689 = vsel %vm4604, %v4686, %v4688
      %v4690 = vrot.slane %v3142, 1
      %v4691 = vsel %vm4604, %v4688, %v4690
      %v4692 = vrot.slane %v3143, 1
      %v4693 = vsel %vm4604, %v4690, %v4692
      %v4694 = vrot.slane %v3144, 1
      %v4695 = vsel %vm4604, %v4692, %v4694
      %v4696 = vrot.slane %v3145, 1
      %v4697 = vsel %vm4604, %v4694, %v4696
      %v4698 = vrot.slane %v3146, 1
      %v4699 = vsel %vm4604, %v4696, %v4698
      %v4700 = vrot.slane %v3147, 1
      %v4701 = vsel %vm4604, %v4698, %v4700
      %v4702 = vrot.slane %v3148, 1
      %v4703 = vsel %vm4604, %v4700, %v4702
      %v4704 = vrot.slane %v3149, 1
      %v4705 = vsel %vm4604, %v4702, %v4704
      %v4706 = vrot.slane %v3150, 1
      %v4707 = vsel %vm4604, %v4704, %v4706
      %v4708 = vrot.slane %v3151, 1
      %v4709 = vsel %vm4604, %v4706, %v4708
      %v4710 = vrot.slane %v3152, 1
      %v4711 = vsel %vm4604, %v4708, %v4710
      %v4712 = vrot.slane %v3153, 1
      %v4713 = vsel %vm4604, %v4710, %v4712
      %v4714 = vrot.slane %v3154, 1
      %v4715 = vsel %vm4604, %v4712, %v4714
      %v4716 = vrot.slane %v3155, 1
      %v4717 = vsel %vm4604, %v4714, %v4716
      %v4718 = vrot.slane %v3156, 1
      %v4719 = vsel %vm4604, %v4716, %v4718
      %v4720 = vrot.slane %v3157, 1
      %v4721 = vsel %vm4604, %v4718, %v4720
      %v4722 = vrot.slane %v3158, 1
      %v4723 = vsel %vm4604, %v4720, %v4722
      %v4724 = vrot.slane %v3159, 1
      %v4725 = vsel %vm4604, %v4722, %v4724
      %v4726 = vrot.slane %v3160, 1
      %v4727 = vsel %vm4604, %v4724, %v4726
      %v4728 = vrot.slane %v3161, 1
      %v4729 = vsel %vm4604, %v4726, %v4728
      %v4730 = vrot.slane %v3162, 1
      %v4731 = vsel %vm4604, %v4728, %v4730
      %v4732 = vrot.slane %v3163, 1
      %v4733 = vsel %vm4604, %v4730, %v4732
      %v4734 = vrot.slane %v3164, 1
      %v4735 = vsel %vm4604, %v4732, %v4734
      %v4736 = vrot.slane %v3165, 1
      %v4737 = vsel %vm4604, %v4734, %v4736
      %v4740 = vunpack.c.l.b16 %v4599
      %v4741 = vunpack.c.l.b16 %v4600
      %v4742 = vpack.c.b16 %v4741, %v4740
      %v4744 = vsel %vm1232, %v4607, 0
      %v4747 = vsel %vm1232, %v4609, 0
      %v4750 = vsel %vm1232, %v4611, 0
      %v4753 = vsel %vm1232, %v4613, 0
      %v4756 = vsel %vm1232, %v4615, 0
      %v4759 = vsel %vm1232, %v4617, 0
      %v4762 = vsel %vm1232, %v4619, 0
      %v4765 = vsel %vm1232, %v4621, 0
      %v4768 = vsel %vm1232, %v4623, 0
      %v4771 = vsel %vm1232, %v4625, 0
      %v4774 = vsel %vm1232, %v4627, 0
      %v4777 = vsel %vm1232, %v4629, 0
      %v4780 = vsel %vm1232, %v4631, 0
      %v4783 = vsel %vm1232, %v4633, 0
      %v4786 = vsel %vm1232, %v4635, 0
      %v4789 = vsel %vm1232, %v4637, 0
      %v4792 = vsel %vm1232, %v4639, 0
      %v4795 = vsel %vm1232, %v4641, 0
      %v4798 = vsel %vm1232, %v4643, 0
      %v4801 = vsel %vm1232, %v4645, 0
      %v4804 = vsel %vm1232, %v4647, 0
      %v4807 = vsel %vm1232, %v4649, 0
      %v4810 = vsel %vm1232, %v4651, 0
      %v4813 = vsel %vm1232, %v4653, 0
      %v4816 = vsel %vm1232, %v4655, 0
      %v4819 = vsel %vm1232, %v4657, 0
      %v4822 = vsel %vm1232, %v4659, 0
      %v4825 = vsel %vm1232, %v4661, 0
      %v4828 = vsel %vm1232, %v4663, 0
      %v4831 = vsel %vm1232, %v4665, 0
      %v4834 = vsel %vm1232, %v4667, 0
      %v4837 = vsel %vm1232, %v4669, 0
      %v4840 = vsel %vm1232, %v4671, 0
      %v4843 = vsel %vm1232, %v4673, 0
      %v4846 = vsel %vm1232, %v4675, 0
      %v4849 = vsel %vm1232, %v4677, 0
      %v4852 = vsel %vm1232, %v4679, 0
      %v4855 = vsel %vm1232, %v4681, 0
      %v4858 = vsel %vm1232, %v4683, 0
      %v4861 = vsel %vm1232, %v4685, 0
      %v4864 = vsel %vm1232, %v4687, 0
      %v4867 = vsel %vm1232, %v4689, 0
      %v4870 = vsel %vm1232, %v4691, 0
      %v4873 = vsel %vm1232, %v4693, 0
      %v4876 = vsel %vm1232, %v4695, 0
      %v4879 = vsel %vm1232, %v4697, 0
      %v4882 = vsel %vm1232, %v4699, 0
      %v4885 = vsel %vm1232, %v4701, 0
      %v4888 = vsel %vm1232, %v4703, 0
      %v4891 = vsel %vm1232, %v4705, 0
      %v4894 = vsel %vm1232, %v4707, 0
      %v4897 = vsel %vm1232, %v4709, 0
      %v4900 = vsel %vm1232, %v4711, 0
      %v4903 = vsel %vm1232, %v4713, 0
      %v4906 = vsel %vm1232, %v4715, 0
      %v4909 = vsel %vm1232, %v4717, 0
      %v4912 = vsel %vm1232, %v4719, 0
      %v4915 = vsel %vm1232, %v4721, 0
      %v4918 = vsel %vm1232, %v4723, 0
      %v4921 = vsel %vm1232, %v4725, 0
      %v4924 = vsel %vm1232, %v4727, 0
      %v4927 = vsel %vm1232, %v4729, 0
      %v4930 = vsel %vm1232, %v4731, 0
      %v4933 = vsel %vm1232, %v4733, 0
      %v4936 = vsel %vm1232, %v4735, 0
      %v4939 = vsel %vm1232, %v4737, 0
      %v4942 = vsel %vm1431, %v4742, 0
      %4944 = vmatprep.subr.bf16.mxu0 0
      %4945 = vmatpush1.bf16.msra.mxu0 0
      %4946 = vmatprep.subr.bf16.mxu0 0
      %4947 = vmatpush1.bf16.msra.mxu0 0
      %4948 = vmatprep.subr.bf16.mxu0 0
      %4949 = vmatpush1.bf16.msra.mxu0 0
      %4950 = vmatprep.subr.bf16.mxu0 0
      %4951 = vmatpush1.bf16.msra.mxu0 0
      %4952 = vmatprep.subr.bf16.mxu0 0
      %4953 = vmatpush1.bf16.msra.mxu0 0
      %4954 = vmatprep.subr.bf16.mxu0 0
      %4955 = vmatpush1.bf16.msra.mxu0 0
      %4956 = vmatprep.subr.bf16.mxu0 0
      %4957 = vmatpush1.bf16.msra.mxu0 0
      %4958 = vmatprep.subr.bf16.mxu0 0
      %4959 = vmatpush1.bf16.msra.mxu0 %v4942
      %4960 = vmatprep.subr.bf16.mxu0 0
      %4961 = vmatpush2.bf16.msra.mxu0 0
      %4962 = vmatprep.subr.bf16.mxu0 0
      %4963 = vmatpush2.bf16.msra.mxu0 0
      %4964 = vmatprep.subr.bf16.mxu0 0
      %4965 = vmatpush2.bf16.msra.mxu0 0
      %4966 = vmatprep.subr.bf16.mxu0 0
      %4967 = vmatpush2.bf16.msra.mxu0 0
      %4968 = vmatprep.subr.bf16.mxu0 0
      %4969 = vmatpush2.bf16.msra.mxu0 0
      %4970 = vmatprep.subr.bf16.mxu0 0
      %4971 = vmatpush2.bf16.msra.mxu0 0
      %4972 = vmatprep.subr.bf16.mxu0 0
      %4973 = vmatpush2.bf16.msra.mxu0 0
      %4974 = vmatprep.subr.bf16.mxu0 0
      %4975 = vmatpush2.bf16.msra.mxu0 0
      %4976 = vmatprep.mubr.bf16.mxu0 0
      %4977 = vmatmul.mubr.bf16.gmra.mxu0 %v4744
      %v4978 = vpop.f32.mrf.mxu0
      %v4979 = vadd.f32 0.0, %v4978
      %v4980 = vpop.f32.mrf.mxu0
      %v4981 = vpop.f32.mrf.mxu0
      %v4982 = vadd.f32 0.0, %v4981
      %v4983 = vpop.f32.mrf.mxu0
      %4984 = vmatprep.mubr.bf16.mxu0 0
      %4985 = vmatmul.mubr.bf16.gmra.mxu0 %v4747
      %v4986 = vpop.f32.mrf.mxu0
      %v4987 = vadd.f32 0.0, %v4986
      %v4988 = vpop.f32.mrf.mxu0
      %v4989 = vpop.f32.mrf.mxu0
      %v4990 = vadd.f32 0.0, %v4989
      %v4991 = vpop.f32.mrf.mxu0
      %4992 = vmatprep.mubr.bf16.mxu0 0
      %4993 = vmatmul.mubr.bf16.gmra.mxu0 %v4750
      %v4994 = vpop.f32.mrf.mxu0
      %v4995 = vadd.f32 0.0, %v4994
      %v4996 = vpop.f32.mrf.mxu0
      %v4997 = vpop.f32.mrf.mxu0
      %v4998 = vadd.f32 0.0, %v4997
      %v4999 = vpop.f32.mrf.mxu0
      %5000 = vmatprep.mubr.bf16.mxu0 0
      %5001 = vmatmul.mubr.bf16.gmra.mxu0 %v4753
      %v5002 = vpop.f32.mrf.mxu0
      %v5003 = vadd.f32 0.0, %v5002
      %v5004 = vpop.f32.mrf.mxu0
      %v5005 = vpop.f32.mrf.mxu0
      %v5006 = vadd.f32 0.0, %v5005
      %v5007 = vpop.f32.mrf.mxu0
      %5008 = vmatprep.mubr.bf16.mxu0 0
      %5009 = vmatmul.mubr.bf16.gmra.mxu0 %v4756
      %v5010 = vpop.f32.mrf.mxu0
      %v5011 = vadd.f32 0.0, %v5010
      %v5012 = vpop.f32.mrf.mxu0
      %v5013 = vpop.f32.mrf.mxu0
      %v5014 = vadd.f32 0.0, %v5013
      %v5015 = vpop.f32.mrf.mxu0
      %5016 = vmatprep.mubr.bf16.mxu0 0
      %5017 = vmatmul.mubr.bf16.gmra.mxu0 %v4759
      %v5018 = vpop.f32.mrf.mxu0
      %v5019 = vadd.f32 0.0, %v5018
      %v5020 = vpop.f32.mrf.mxu0
      %v5021 = vpop.f32.mrf.mxu0
      %v5022 = vadd.f32 0.0, %v5021
      %v5023 = vpop.f32.mrf.mxu0
      %5024 = vmatprep.mubr.bf16.mxu0 0
      %5025 = vmatmul.mubr.bf16.gmra.mxu0 %v4762
      %v5026 = vpop.f32.mrf.mxu0
      %v5027 = vadd.f32 0.0, %v5026
      %v5028 = vpop.f32.mrf.mxu0
      %v5029 = vpop.f32.mrf.mxu0
      %v5030 = vadd.f32 0.0, %v5029
      %v5031 = vpop.f32.mrf.mxu0
      %5032 = vmatprep.mubr.bf16.mxu0 0
      %5033 = vmatmul.mubr.bf16.gmra.mxu0 %v4765
      %v5034 = vpop.f32.mrf.mxu0
      %v5035 = vadd.f32 0.0, %v5034
      %v5036 = vpop.f32.mrf.mxu0
      %v5037 = vpop.f32.mrf.mxu0
      %v5038 = vadd.f32 0.0, %v5037
      %v5039 = vpop.f32.mrf.mxu0
      %5040 = vmatprep.mubr.bf16.mxu0 0
      %5041 = vmatmul.mubr.bf16.gmra.mxu0 %v4768
      %v5042 = vpop.f32.mrf.mxu0
      %v5043 = vadd.f32 0.0, %v5042
      %v5044 = vpop.f32.mrf.mxu0
      %v5045 = vpop.f32.mrf.mxu0
      %v5046 = vadd.f32 0.0, %v5045
      %v5047 = vpop.f32.mrf.mxu0
      %5048 = vmatprep.mubr.bf16.mxu0 0
      %5049 = vmatmul.mubr.bf16.gmra.mxu0 %v4771
      %v5050 = vpop.f32.mrf.mxu0
      %v5051 = vadd.f32 0.0, %v5050
      %v5052 = vpop.f32.mrf.mxu0
      %v5053 = vpop.f32.mrf.mxu0
      %v5054 = vadd.f32 0.0, %v5053
      %v5055 = vpop.f32.mrf.mxu0
      %5056 = vmatprep.mubr.bf16.mxu0 0
      %5057 = vmatmul.mubr.bf16.gmra.mxu0 %v4774
      %v5058 = vpop.f32.mrf.mxu0
      %v5059 = vadd.f32 0.0, %v5058
      %v5060 = vpop.f32.mrf.mxu0
      %v5061 = vpop.f32.mrf.mxu0
      %v5062 = vadd.f32 0.0, %v5061
      %v5063 = vpop.f32.mrf.mxu0
      %5064 = vmatprep.mubr.bf16.mxu0 0
      %5065 = vmatmul.mubr.bf16.gmra.mxu0 %v4777
      %v5066 = vpop.f32.mrf.mxu0
      %v5067 = vadd.f32 0.0, %v5066
      %v5068 = vpop.f32.mrf.mxu0
      %v5069 = vpop.f32.mrf.mxu0
      %v5070 = vadd.f32 0.0, %v5069
      %v5071 = vpop.f32.mrf.mxu0
      %5072 = vmatprep.mubr.bf16.mxu0 0
      %5073 = vmatmul.mubr.bf16.gmra.mxu0 %v4780
      %v5074 = vpop.f32.mrf.mxu0
      %v5075 = vadd.f32 0.0, %v5074
      %v5076 = vpop.f32.mrf.mxu0
      %v5077 = vpop.f32.mrf.mxu0
      %v5078 = vadd.f32 0.0, %v5077
      %v5079 = vpop.f32.mrf.mxu0
      %5080 = vmatprep.mubr.bf16.mxu0 0
      %5081 = vmatmul.mubr.bf16.gmra.mxu0 %v4783
      %v5082 = vpop.f32.mrf.mxu0
      %v5083 = vadd.f32 0.0, %v5082
      %v5084 = vpop.f32.mrf.mxu0
      %v5085 = vpop.f32.mrf.mxu0
      %v5086 = vadd.f32 0.0, %v5085
      %v5087 = vpop.f32.mrf.mxu0
      %5088 = vmatprep.mubr.bf16.mxu0 0
      %5089 = vmatmul.mubr.bf16.gmra.mxu0 %v4786
      %v5090 = vpop.f32.mrf.mxu0
      %v5091 = vadd.f32 0.0, %v5090
      %v5092 = vpop.f32.mrf.mxu0
      %v5093 = vpop.f32.mrf.mxu0
      %v5094 = vadd.f32 0.0, %v5093
      %v5095 = vpop.f32.mrf.mxu0
      %5096 = vmatprep.mubr.bf16.mxu0 0
      %5097 = vmatmul.mubr.bf16.gmra.mxu0 %v4789
      %v5098 = vpop.f32.mrf.mxu0
      %v5099 = vadd.f32 0.0, %v5098
      %v5100 = vpop.f32.mrf.mxu0
      %v5101 = vpop.f32.mrf.mxu0
      %v5102 = vadd.f32 0.0, %v5101
      %v5103 = vpop.f32.mrf.mxu0
      %5104 = vmatprep.mubr.bf16.mxu0 0
      %5105 = vmatmul.mubr.bf16.gmra.mxu0 %v4792
      %v5106 = vpop.f32.mrf.mxu0
      %v5107 = vadd.f32 0.0, %v5106
      %v5108 = vpop.f32.mrf.mxu0
      %v5109 = vpop.f32.mrf.mxu0
      %v5110 = vadd.f32 0.0, %v5109
      %v5111 = vpop.f32.mrf.mxu0
      %5112 = vmatprep.mubr.bf16.mxu0 0
      %5113 = vmatmul.mubr.bf16.gmra.mxu0 %v4795
      %v5114 = vpop.f32.mrf.mxu0
      %v5115 = vadd.f32 0.0, %v5114
      %v5116 = vpop.f32.mrf.mxu0
      %v5117 = vpop.f32.mrf.mxu0
      %v5118 = vadd.f32 0.0, %v5117
      %v5119 = vpop.f32.mrf.mxu0
      %5120 = vmatprep.mubr.bf16.mxu0 0
      %5121 = vmatmul.mubr.bf16.gmra.mxu0 %v4798
      %v5122 = vpop.f32.mrf.mxu0
      %v5123 = vadd.f32 0.0, %v5122
      %v5124 = vpop.f32.mrf.mxu0
      %v5125 = vpop.f32.mrf.mxu0
      %v5126 = vadd.f32 0.0, %v5125
      %v5127 = vpop.f32.mrf.mxu0
      %5128 = vmatprep.mubr.bf16.mxu0 0
      %5129 = vmatmul.mubr.bf16.gmra.mxu0 %v4801
      %v5130 = vpop.f32.mrf.mxu0
      %v5131 = vadd.f32 0.0, %v5130
      %v5132 = vpop.f32.mrf.mxu0
      %v5133 = vpop.f32.mrf.mxu0
      %v5134 = vadd.f32 0.0, %v5133
      %v5135 = vpop.f32.mrf.mxu0
      %5136 = vmatprep.mubr.bf16.mxu0 0
      %5137 = vmatmul.mubr.bf16.gmra.mxu0 %v4804
      %v5138 = vpop.f32.mrf.mxu0
      %v5139 = vadd.f32 0.0, %v5138
      %v5140 = vpop.f32.mrf.mxu0
      %v5141 = vpop.f32.mrf.mxu0
      %v5142 = vadd.f32 0.0, %v5141
      %v5143 = vpop.f32.mrf.mxu0
      %5144 = vmatprep.mubr.bf16.mxu0 0
      %5145 = vmatmul.mubr.bf16.gmra.mxu0 %v4807
      %v5146 = vpop.f32.mrf.mxu0
      %v5147 = vadd.f32 0.0, %v5146
      %v5148 = vpop.f32.mrf.mxu0
      %v5149 = vpop.f32.mrf.mxu0
      %v5150 = vadd.f32 0.0, %v5149
      %v5151 = vpop.f32.mrf.mxu0
      %5152 = vmatprep.mubr.bf16.mxu0 0
      %5153 = vmatmul.mubr.bf16.gmra.mxu0 %v4810
      %v5154 = vpop.f32.mrf.mxu0
      %v5155 = vadd.f32 0.0, %v5154
      %v5156 = vpop.f32.mrf.mxu0
      %v5157 = vpop.f32.mrf.mxu0
      %v5158 = vadd.f32 0.0, %v5157
      %v5159 = vpop.f32.mrf.mxu0
      %5160 = vmatprep.mubr.bf16.mxu0 0
      %5161 = vmatmul.mubr.bf16.gmra.mxu0 %v4813
      %v5162 = vpop.f32.mrf.mxu0
      %v5163 = vadd.f32 0.0, %v5162
      %v5164 = vpop.f32.mrf.mxu0
      %v5165 = vpop.f32.mrf.mxu0
      %v5166 = vadd.f32 0.0, %v5165
      %v5167 = vpop.f32.mrf.mxu0
      %5168 = vmatprep.mubr.bf16.mxu0 0
      %5169 = vmatmul.mubr.bf16.gmra.mxu0 %v4816
      %v5170 = vpop.f32.mrf.mxu0
      %v5171 = vadd.f32 0.0, %v5170
      %v5172 = vpop.f32.mrf.mxu0
      %v5173 = vpop.f32.mrf.mxu0
      %v5174 = vadd.f32 0.0, %v5173
      %v5175 = vpop.f32.mrf.mxu0
      %5176 = vmatprep.mubr.bf16.mxu0 0
      %5177 = vmatmul.mubr.bf16.gmra.mxu0 %v4819
      %v5178 = vpop.f32.mrf.mxu0
      %v5179 = vadd.f32 0.0, %v5178
      %v5180 = vpop.f32.mrf.mxu0
      %v5181 = vpop.f32.mrf.mxu0
      %v5182 = vadd.f32 0.0, %v5181
      %v5183 = vpop.f32.mrf.mxu0
      %5184 = vmatprep.mubr.bf16.mxu0 0
      %5185 = vmatmul.mubr.bf16.gmra.mxu0 %v4822
      %v5186 = vpop.f32.mrf.mxu0
      %v5187 = vadd.f32 0.0, %v5186
      %v5188 = vpop.f32.mrf.mxu0
      %v5189 = vpop.f32.mrf.mxu0
      %v5190 = vadd.f32 0.0, %v5189
      %v5191 = vpop.f32.mrf.mxu0
      %5192 = vmatprep.mubr.bf16.mxu0 0
      %5193 = vmatmul.mubr.bf16.gmra.mxu0 %v4825
      %v5194 = vpop.f32.mrf.mxu0
      %v5195 = vadd.f32 0.0, %v5194
      %v5196 = vpop.f32.mrf.mxu0
      %v5197 = vpop.f32.mrf.mxu0
      %v5198 = vadd.f32 0.0, %v5197
      %v5199 = vpop.f32.mrf.mxu0
      %5200 = vmatprep.mubr.bf16.mxu0 0
      %5201 = vmatmul.mubr.bf16.gmra.mxu0 %v4828
      %v5202 = vpop.f32.mrf.mxu0
      %v5203 = vadd.f32 0.0, %v5202
      %v5204 = vpop.f32.mrf.mxu0
      %v5205 = vpop.f32.mrf.mxu0
      %v5206 = vadd.f32 0.0, %v5205
      %v5207 = vpop.f32.mrf.mxu0
      %5208 = vmatprep.mubr.bf16.mxu0 0
      %5209 = vmatmul.mubr.bf16.gmra.mxu0 %v4831
      %v5210 = vpop.f32.mrf.mxu0
      %v5211 = vadd.f32 0.0, %v5210
      %v5212 = vpop.f32.mrf.mxu0
      %v5213 = vpop.f32.mrf.mxu0
      %v5214 = vadd.f32 0.0, %v5213
      %v5215 = vpop.f32.mrf.mxu0
      %5216 = vmatprep.mubr.bf16.mxu0 0
      %5217 = vmatmul.mubr.bf16.gmra.mxu0 %v4834
      %v5218 = vpop.f32.mrf.mxu0
      %v5219 = vadd.f32 0.0, %v5218
      %v5220 = vpop.f32.mrf.mxu0
      %v5221 = vpop.f32.mrf.mxu0
      %v5222 = vadd.f32 0.0, %v5221
      %v5223 = vpop.f32.mrf.mxu0
      %5224 = vmatprep.mubr.bf16.mxu0 0
      %5225 = vmatmul.mubr.bf16.gmra.mxu0 %v4837
      %v5226 = vpop.f32.mrf.mxu0
      %v5227 = vadd.f32 0.0, %v5226
      %v5228 = vpop.f32.mrf.mxu0
      %v5229 = vpop.f32.mrf.mxu0
      %v5230 = vadd.f32 0.0, %v5229
      %v5231 = vpop.f32.mrf.mxu0
      %5232 = vmatprep.mubr.bf16.mxu0 0
      %5233 = vmatmul.mubr.bf16.gmra.mxu0 %v4840
      %v5234 = vpop.f32.mrf.mxu0
      %v5235 = vadd.f32 0.0, %v5234
      %v5236 = vpop.f32.mrf.mxu0
      %v5237 = vpop.f32.mrf.mxu0
      %v5238 = vadd.f32 0.0, %v5237
      %v5239 = vpop.f32.mrf.mxu0
      %5240 = vmatprep.mubr.bf16.mxu0 0
      %5241 = vmatmul.mubr.bf16.gmra.mxu0 %v4843
      %v5242 = vpop.f32.mrf.mxu0
      %v5243 = vadd.f32 0.0, %v5242
      %v5244 = vpop.f32.mrf.mxu0
      %v5245 = vpop.f32.mrf.mxu0
      %v5246 = vadd.f32 0.0, %v5245
      %v5247 = vpop.f32.mrf.mxu0
      %5248 = vmatprep.mubr.bf16.mxu0 0
      %5249 = vmatmul.mubr.bf16.gmra.mxu0 %v4846
      %v5250 = vpop.f32.mrf.mxu0
      %v5251 = vadd.f32 0.0, %v5250
      %v5252 = vpop.f32.mrf.mxu0
      %v5253 = vpop.f32.mrf.mxu0
      %v5254 = vadd.f32 0.0, %v5253
      %v5255 = vpop.f32.mrf.mxu0
      %5256 = vmatprep.mubr.bf16.mxu0 0
      %5257 = vmatmul.mubr.bf16.gmra.mxu0 %v4849
      %v5258 = vpop.f32.mrf.mxu0
      %v5259 = vadd.f32 0.0, %v5258
      %v5260 = vpop.f32.mrf.mxu0
      %v5261 = vpop.f32.mrf.mxu0
      %v5262 = vadd.f32 0.0, %v5261
      %v5263 = vpop.f32.mrf.mxu0
      %5264 = vmatprep.mubr.bf16.mxu0 0
      %5265 = vmatmul.mubr.bf16.gmra.mxu0 %v4852
      %v5266 = vpop.f32.mrf.mxu0
      %v5267 = vadd.f32 0.0, %v5266
      %v5268 = vpop.f32.mrf.mxu0
      %v5269 = vpop.f32.mrf.mxu0
      %v5270 = vadd.f32 0.0, %v5269
      %v5271 = vpop.f32.mrf.mxu0
      %5272 = vmatprep.mubr.bf16.mxu0 0
      %5273 = vmatmul.mubr.bf16.gmra.mxu0 %v4855
      %v5274 = vpop.f32.mrf.mxu0
      %v5275 = vadd.f32 0.0, %v5274
      %v5276 = vpop.f32.mrf.mxu0
      %v5277 = vpop.f32.mrf.mxu0
      %v5278 = vadd.f32 0.0, %v5277
      %v5279 = vpop.f32.mrf.mxu0
      %5280 = vmatprep.mubr.bf16.mxu0 0
      %5281 = vmatmul.mubr.bf16.gmra.mxu0 %v4858
      %v5282 = vpop.f32.mrf.mxu0
      %v5283 = vadd.f32 0.0, %v5282
      %v5284 = vpop.f32.mrf.mxu0
      %v5285 = vpop.f32.mrf.mxu0
      %v5286 = vadd.f32 0.0, %v5285
      %v5287 = vpop.f32.mrf.mxu0
      %5288 = vmatprep.mubr.bf16.mxu0 0
      %5289 = vmatmul.mubr.bf16.gmra.mxu0 %v4861
      %v5290 = vpop.f32.mrf.mxu0
      %v5291 = vadd.f32 0.0, %v5290
      %v5292 = vpop.f32.mrf.mxu0
      %v5293 = vpop.f32.mrf.mxu0
      %v5294 = vadd.f32 0.0, %v5293
      %v5295 = vpop.f32.mrf.mxu0
      %5296 = vmatprep.mubr.bf16.mxu0 0
      %5297 = vmatmul.mubr.bf16.gmra.mxu0 %v4864
      %v5298 = vpop.f32.mrf.mxu0
      %v5299 = vadd.f32 0.0, %v5298
      %v5300 = vpop.f32.mrf.mxu0
      %v5301 = vpop.f32.mrf.mxu0
      %v5302 = vadd.f32 0.0, %v5301
      %v5303 = vpop.f32.mrf.mxu0
      %5304 = vmatprep.mubr.bf16.mxu0 0
      %5305 = vmatmul.mubr.bf16.gmra.mxu0 %v4867
      %v5306 = vpop.f32.mrf.mxu0
      %v5307 = vadd.f32 0.0, %v5306
      %v5308 = vpop.f32.mrf.mxu0
      %v5309 = vpop.f32.mrf.mxu0
      %v5310 = vadd.f32 0.0, %v5309
      %v5311 = vpop.f32.mrf.mxu0
      %5312 = vmatprep.mubr.bf16.mxu0 0
      %5313 = vmatmul.mubr.bf16.gmra.mxu0 %v4870
      %v5314 = vpop.f32.mrf.mxu0
      %v5315 = vadd.f32 0.0, %v5314
      %v5316 = vpop.f32.mrf.mxu0
      %v5317 = vpop.f32.mrf.mxu0
      %v5318 = vadd.f32 0.0, %v5317
      %v5319 = vpop.f32.mrf.mxu0
      %5320 = vmatprep.mubr.bf16.mxu0 0
      %5321 = vmatmul.mubr.bf16.gmra.mxu0 %v4873
      %v5322 = vpop.f32.mrf.mxu0
      %v5323 = vadd.f32 0.0, %v5322
      %v5324 = vpop.f32.mrf.mxu0
      %v5325 = vpop.f32.mrf.mxu0
      %v5326 = vadd.f32 0.0, %v5325
      %v5327 = vpop.f32.mrf.mxu0
      %5328 = vmatprep.mubr.bf16.mxu0 0
      %5329 = vmatmul.mubr.bf16.gmra.mxu0 %v4876
      %v5330 = vpop.f32.mrf.mxu0
      %v5331 = vadd.f32 0.0, %v5330
      %v5332 = vpop.f32.mrf.mxu0
      %v5333 = vpop.f32.mrf.mxu0
      %v5334 = vadd.f32 0.0, %v5333
      %v5335 = vpop.f32.mrf.mxu0
      %5336 = vmatprep.mubr.bf16.mxu0 0
      %5337 = vmatmul.mubr.bf16.gmra.mxu0 %v4879
      %v5338 = vpop.f32.mrf.mxu0
      %v5339 = vadd.f32 0.0, %v5338
      %v5340 = vpop.f32.mrf.mxu0
      %v5341 = vpop.f32.mrf.mxu0
      %v5342 = vadd.f32 0.0, %v5341
      %v5343 = vpop.f32.mrf.mxu0
      %5344 = vmatprep.mubr.bf16.mxu0 0
      %5345 = vmatmul.mubr.bf16.gmra.mxu0 %v4882
      %v5346 = vpop.f32.mrf.mxu0
      %v5347 = vadd.f32 0.0, %v5346
      %v5348 = vpop.f32.mrf.mxu0
      %v5349 = vpop.f32.mrf.mxu0
      %v5350 = vadd.f32 0.0, %v5349
      %v5351 = vpop.f32.mrf.mxu0
      %5352 = vmatprep.mubr.bf16.mxu0 0
      %5353 = vmatmul.mubr.bf16.gmra.mxu0 %v4885
      %v5354 = vpop.f32.mrf.mxu0
      %v5355 = vadd.f32 0.0, %v5354
      %v5356 = vpop.f32.mrf.mxu0
      %v5357 = vpop.f32.mrf.mxu0
      %v5358 = vadd.f32 0.0, %v5357
      %v5359 = vpop.f32.mrf.mxu0
      %5360 = vmatprep.mubr.bf16.mxu0 0
      %5361 = vmatmul.mubr.bf16.gmra.mxu0 %v4888
      %v5362 = vpop.f32.mrf.mxu0
      %v5363 = vadd.f32 0.0, %v5362
      %v5364 = vpop.f32.mrf.mxu0
      %v5365 = vpop.f32.mrf.mxu0
      %v5366 = vadd.f32 0.0, %v5365
      %v5367 = vpop.f32.mrf.mxu0
      %5368 = vmatprep.mubr.bf16.mxu0 0
      %5369 = vmatmul.mubr.bf16.gmra.mxu0 %v4891
      %v5370 = vpop.f32.mrf.mxu0
      %v5371 = vadd.f32 0.0, %v5370
      %v5372 = vpop.f32.mrf.mxu0
      %v5373 = vpop.f32.mrf.mxu0
      %v5374 = vadd.f32 0.0, %v5373
      %v5375 = vpop.f32.mrf.mxu0
      %5376 = vmatprep.mubr.bf16.mxu0 0
      %5377 = vmatmul.mubr.bf16.gmra.mxu0 %v4894
      %v5378 = vpop.f32.mrf.mxu0
      %v5379 = vadd.f32 0.0, %v5378
      %v5380 = vpop.f32.mrf.mxu0
      %v5381 = vpop.f32.mrf.mxu0
      %v5382 = vadd.f32 0.0, %v5381
      %v5383 = vpop.f32.mrf.mxu0
      %5384 = vmatprep.mubr.bf16.mxu0 0
      %5385 = vmatmul.mubr.bf16.gmra.mxu0 %v4897
      %v5386 = vpop.f32.mrf.mxu0
      %v5387 = vadd.f32 0.0, %v5386
      %v5388 = vpop.f32.mrf.mxu0
      %v5389 = vpop.f32.mrf.mxu0
      %v5390 = vadd.f32 0.0, %v5389
      %v5391 = vpop.f32.mrf.mxu0
      %5392 = vmatprep.mubr.bf16.mxu0 0
      %5393 = vmatmul.mubr.bf16.gmra.mxu0 %v4900
      %v5394 = vpop.f32.mrf.mxu0
      %v5395 = vadd.f32 0.0, %v5394
      %v5396 = vpop.f32.mrf.mxu0
      %v5397 = vpop.f32.mrf.mxu0
      %v5398 = vadd.f32 0.0, %v5397
      %v5399 = vpop.f32.mrf.mxu0
      %5400 = vmatprep.mubr.bf16.mxu0 0
      %5401 = vmatmul.mubr.bf16.gmra.mxu0 %v4903
      %v5402 = vpop.f32.mrf.mxu0
      %v5403 = vadd.f32 0.0, %v5402
      %v5404 = vpop.f32.mrf.mxu0
      %v5405 = vpop.f32.mrf.mxu0
      %v5406 = vadd.f32 0.0, %v5405
      %v5407 = vpop.f32.mrf.mxu0
      %5408 = vmatprep.mubr.bf16.mxu0 0
      %5409 = vmatmul.mubr.bf16.gmra.mxu0 %v4906
      %v5410 = vpop.f32.mrf.mxu0
      %v5411 = vadd.f32 0.0, %v5410
      %v5412 = vpop.f32.mrf.mxu0
      %v5413 = vpop.f32.mrf.mxu0
      %v5414 = vadd.f32 0.0, %v5413
      %v5415 = vpop.f32.mrf.mxu0
      %5416 = vmatprep.mubr.bf16.mxu0 0
      %5417 = vmatmul.mubr.bf16.gmra.mxu0 %v4909
      %v5418 = vpop.f32.mrf.mxu0
      %v5419 = vadd.f32 0.0, %v5418
      %v5420 = vpop.f32.mrf.mxu0
      %v5421 = vpop.f32.mrf.mxu0
      %v5422 = vadd.f32 0.0, %v5421
      %v5423 = vpop.f32.mrf.mxu0
      %5424 = vmatprep.mubr.bf16.mxu0 0
      %5425 = vmatmul.mubr.bf16.gmra.mxu0 %v4912
      %v5426 = vpop.f32.mrf.mxu0
      %v5427 = vadd.f32 0.0, %v5426
      %v5428 = vpop.f32.mrf.mxu0
      %v5429 = vpop.f32.mrf.mxu0
      %v5430 = vadd.f32 0.0, %v5429
      %v5431 = vpop.f32.mrf.mxu0
      %5432 = vmatprep.mubr.bf16.mxu0 0
      %5433 = vmatmul.mubr.bf16.gmra.mxu0 %v4915
      %v5434 = vpop.f32.mrf.mxu0
      %v5435 = vadd.f32 0.0, %v5434
      %v5436 = vpop.f32.mrf.mxu0
      %v5437 = vpop.f32.mrf.mxu0
      %v5438 = vadd.f32 0.0, %v5437
      %v5439 = vpop.f32.mrf.mxu0
      %5440 = vmatprep.mubr.bf16.mxu0 0
      %5441 = vmatmul.mubr.bf16.gmra.mxu0 %v4918
      %v5442 = vpop.f32.mrf.mxu0
      %v5443 = vadd.f32 0.0, %v5442
      %v5444 = vpop.f32.mrf.mxu0
      %v5445 = vpop.f32.mrf.mxu0
      %v5446 = vadd.f32 0.0, %v5445
      %v5447 = vpop.f32.mrf.mxu0
      %5448 = vmatprep.mubr.bf16.mxu0 0
      %5449 = vmatmul.mubr.bf16.gmra.mxu0 %v4921
      %v5450 = vpop.f32.mrf.mxu0
      %v5451 = vadd.f32 0.0, %v5450
      %v5452 = vpop.f32.mrf.mxu0
      %v5453 = vpop.f32.mrf.mxu0
      %v5454 = vadd.f32 0.0, %v5453
      %v5455 = vpop.f32.mrf.mxu0
      %5456 = vmatprep.mubr.bf16.mxu0 0
      %5457 = vmatmul.mubr.bf16.gmra.mxu0 %v4924
      %v5458 = vpop.f32.mrf.mxu0
      %v5459 = vadd.f32 0.0, %v5458
      %v5460 = vpop.f32.mrf.mxu0
      %v5461 = vpop.f32.mrf.mxu0
      %v5462 = vadd.f32 0.0, %v5461
      %v5463 = vpop.f32.mrf.mxu0
      %5464 = vmatprep.mubr.bf16.mxu0 0
      %5465 = vmatmul.mubr.bf16.gmra.mxu0 %v4927
      %v5466 = vpop.f32.mrf.mxu0
      %v5467 = vadd.f32 0.0, %v5466
      %v5468 = vpop.f32.mrf.mxu0
      %v5469 = vpop.f32.mrf.mxu0
      %v5470 = vadd.f32 0.0, %v5469
      %v5471 = vpop.f32.mrf.mxu0
      %5472 = vmatprep.mubr.bf16.mxu0 0
      %5473 = vmatmul.mubr.bf16.gmra.mxu0 %v4930
      %v5474 = vpop.f32.mrf.mxu0
      %v5475 = vadd.f32 0.0, %v5474
      %v5476 = vpop.f32.mrf.mxu0
      %v5477 = vpop.f32.mrf.mxu0
      %v5478 = vadd.f32 0.0, %v5477
      %v5479 = vpop.f32.mrf.mxu0
      %5480 = vmatprep.mubr.bf16.mxu0 0
      %5481 = vmatmul.mubr.bf16.gmra.mxu0 %v4933
      %v5482 = vpop.f32.mrf.mxu0
      %v5483 = vadd.f32 0.0, %v5482
      %v5484 = vpop.f32.mrf.mxu0
      %v5485 = vpop.f32.mrf.mxu0
      %v5486 = vadd.f32 0.0, %v5485
      %v5487 = vpop.f32.mrf.mxu0
      %5488 = vmatprep.mubr.bf16.mxu0 0
      %5489 = vmatmul.mubr.bf16.gmra.mxu0 %v4936
      %v5490 = vpop.f32.mrf.mxu0
      %v5491 = vadd.f32 0.0, %v5490
      %v5492 = vpop.f32.mrf.mxu0
      %v5493 = vpop.f32.mrf.mxu0
      %v5494 = vadd.f32 0.0, %v5493
      %v5495 = vpop.f32.mrf.mxu0
      %5496 = vmatprep.mubr.bf16.mxu0 0
      %5497 = vmatmul.mubr.bf16.gmra.mxu0 %v4939
      %v5498 = vpop.f32.mrf.mxu0
      %v5499 = vadd.f32 0.0, %v5498
      %v5500 = vpop.f32.mrf.mxu0
      %v5501 = vpop.f32.mrf.mxu0
      %v5502 = vadd.f32 0.0, %v5501
      %v5503 = vpop.f32.mrf.mxu0
      %5504 = vdwg.mxu0
      %v5505 = vadd.f32 %v4465, %v4979
      %v5506 = vadd.f32 %v4466, %v4982
      %v5507 = vadd.f32 %v4467, %v4987
      %v5508 = vadd.f32 %v4468, %v4990
      %v5509 = vadd.f32 %v4469, %v4995
      %v5510 = vadd.f32 %v4470, %v4998
      %v5511 = vadd.f32 %v4471, %v5003
      %v5512 = vadd.f32 %v4472, %v5006
      %v5513 = vadd.f32 %v4473, %v5011
      %v5514 = vadd.f32 %v4474, %v5014
      %v5515 = vadd.f32 %v4475, %v5019
      %v5516 = vadd.f32 %v4476, %v5022
      %v5517 = vadd.f32 %v4477, %v5027
      %v5518 = vadd.f32 %v4478, %v5030
      %v5519 = vadd.f32 %v4479, %v5035
      %v5520 = vadd.f32 %v4480, %v5038
      %v5521 = vadd.f32 %v4481, %v5043
      %v5522 = vadd.f32 %v4482, %v5046
      %v5523 = vadd.f32 %v4483, %v5051
      %v5524 = vadd.f32 %v4484, %v5054
      %v5525 = vadd.f32 %v4485, %v5059
      %v5526 = vadd.f32 %v4486, %v5062
      %v5527 = vadd.f32 %v4487, %v5067
      %v5528 = vadd.f32 %v4488, %v5070
      %v5529 = vadd.f32 %v4489, %v5075
      %v5530 = vadd.f32 %v4490, %v5078
      %v5531 = vadd.f32 %v4491, %v5083
      %v5532 = vadd.f32 %v4492, %v5086
      %v5533 = vadd.f32 %v4493, %v5091
      %v5534 = vadd.f32 %v4494, %v5094
      %v5535 = vadd.f32 %v4495, %v5099
      %v5536 = vadd.f32 %v4496, %v5102
      %v5537 = vadd.f32 %v4497, %v5107
      %v5538 = vadd.f32 %v4498, %v5110
      %v5539 = vadd.f32 %v4499, %v5115
      %v5540 = vadd.f32 %v4500, %v5118
      %v5541 = vadd.f32 %v4501, %v5123
      %v5542 = vadd.f32 %v4502, %v5126
      %v5543 = vadd.f32 %v4503, %v5131
      %v5544 = vadd.f32 %v4504, %v5134
      %v5545 = vadd.f32 %v4505, %v5139
      %v5546 = vadd.f32 %v4506, %v5142
      %v5547 = vadd.f32 %v4507, %v5147
      %v5548 = vadd.f32 %v4508, %v5150
      %v5549 = vadd.f32 %v4509, %v5155
      %v5550 = vadd.f32 %v4510, %v5158
      %v5551 = vadd.f32 %v4511, %v5163
      %v5552 = vadd.f32 %v4512, %v5166
      %v5553 = vadd.f32 %v4513, %v5171
      %v5554 = vadd.f32 %v4514, %v5174
      %v5555 = vadd.f32 %v4515, %v5179
      %v5556 = vadd.f32 %v4516, %v5182
      %v5557 = vadd.f32 %v4517, %v5187
      %v5558 = vadd.f32 %v4518, %v5190
      %v5559 = vadd.f32 %v4519, %v5195
      %v5560 = vadd.f32 %v4520, %v5198
      %v5561 = vadd.f32 %v4521, %v5203
      %v5562 = vadd.f32 %v4522, %v5206
      %v5563 = vadd.f32 %v4523, %v5211
      %v5564 = vadd.f32 %v4524, %v5214
      %v5565 = vadd.f32 %v4525, %v5219
      %v5566 = vadd.f32 %v4526, %v5222
      %v5567 = vadd.f32 %v4527, %v5227
      %v5568 = vadd.f32 %v4528, %v5230
      %v5569 = vadd.f32 %v4529, %v5235
      %v5570 = vadd.f32 %v4530, %v5238
      %v5571 = vadd.f32 %v4531, %v5243
      %v5572 = vadd.f32 %v4532, %v5246
      %v5573 = vadd.f32 %v4533, %v5251
      %v5574 = vadd.f32 %v4534, %v5254
      %v5575 = vadd.f32 %v4535, %v5259
      %v5576 = vadd.f32 %v4536, %v5262
      %v5577 = vadd.f32 %v4537, %v5267
      %v5578 = vadd.f32 %v4538, %v5270
      %v5579 = vadd.f32 %v4539, %v5275
      %v5580 = vadd.f32 %v4540, %v5278
      %v5581 = vadd.f32 %v4541, %v5283
      %v5582 = vadd.f32 %v4542, %v5286
      %v5583 = vadd.f32 %v4543, %v5291
      %v5584 = vadd.f32 %v4544, %v5294
      %v5585 = vadd.f32 %v4545, %v5299
      %v5586 = vadd.f32 %v4546, %v5302
      %v5587 = vadd.f32 %v4547, %v5307
      %v5588 = vadd.f32 %v4548, %v5310
      %v5589 = vadd.f32 %v4549, %v5315
      %v5590 = vadd.f32 %v4550, %v5318
      %v5591 = vadd.f32 %v4551, %v5323
      %v5592 = vadd.f32 %v4552, %v5326
      %v5593 = vadd.f32 %v4553, %v5331
      %v5594 = vadd.f32 %v4554, %v5334
      %v5595 = vadd.f32 %v4555, %v5339
      %v5596 = vadd.f32 %v4556, %v5342
      %v5597 = vadd.f32 %v4557, %v5347
      %v5598 = vadd.f32 %v4558, %v5350
      %v5599 = vadd.f32 %v4559, %v5355
      %v5600 = vadd.f32 %v4560, %v5358
      %v5601 = vadd.f32 %v4561, %v5363
      %v5602 = vadd.f32 %v4562, %v5366
      %v5603 = vadd.f32 %v4563, %v5371
      %v5604 = vadd.f32 %v4564, %v5374
      %v5605 = vadd.f32 %v4565, %v5379
      %v5606 = vadd.f32 %v4566, %v5382
      %v5607 = vadd.f32 %v4567, %v5387
      %v5608 = vadd.f32 %v4568, %v5390
      %v5609 = vadd.f32 %v4569, %v5395
      %v5610 = vadd.f32 %v4570, %v5398
      %v5611 = vadd.f32 %v4571, %v5403
      %v5612 = vadd.f32 %v4572, %v5406
      %v5613 = vadd.f32 %v4573, %v5411
      %v5614 = vadd.f32 %v4574, %v5414
      %v5615 = vadd.f32 %v4575, %v5419
      %v5616 = vadd.f32 %v4576, %v5422
      %v5617 = vadd.f32 %v4577, %v5427
      %v5618 = vadd.f32 %v4578, %v5430
      %v5619 = vadd.f32 %v4579, %v5435
      %v5620 = vadd.f32 %v4580, %v5438
      %v5621 = vadd.f32 %v4581, %v5443
      %v5622 = vadd.f32 %v4582, %v5446
      %v5623 = vadd.f32 %v4583, %v5451
      %v5624 = vadd.f32 %v4584, %v5454
      %v5625 = vadd.f32 %v4585, %v5459
      %v5626 = vadd.f32 %v4586, %v5462
      %v5627 = vadd.f32 %v4587, %v5467
      %v5628 = vadd.f32 %v4588, %v5470
      %v5629 = vadd.f32 %v4589, %v5475
      %v5630 = vadd.f32 %v4590, %v5478
      %v5631 = vadd.f32 %v4591, %v5483
      %v5632 = vadd.f32 %v4592, %v5486
      %v5633 = vadd.f32 %v4593, %v5491
      %v5634 = vadd.f32 %v4594, %v5494
      %v5635 = vadd.f32 %v4595, %v5499
      %v5636 = vadd.f32 %v4596, %v5502
      %v5637 = vld [vmem:[%s213] sm:$0x1]
      %v5639 = vlaneseq
      %v5640 = vshrl.u32 %v5639, 7
      %v5641 = vsub.s32 0, %v5640
      %v5642 = vrot.slane %v5637, %v5641
      %v5644 = vadd.f32 %v5505, %v5642
      %v5645 = vadd.f32 %v5506, %v5642
      %v5646 = vadd.f32 %v5507, %v5642
      %v5647 = vadd.f32 %v5508, %v5642
      %v5648 = vadd.f32 %v5509, %v5642
      %v5649 = vadd.f32 %v5510, %v5642
      %v5650 = vadd.f32 %v5511, %v5642
      %v5651 = vadd.f32 %v5512, %v5642
      %v5652 = vadd.f32 %v5513, %v5642
      %v5653 = vadd.f32 %v5514, %v5642
      %v5654 = vadd.f32 %v5515, %v5642
      %v5655 = vadd.f32 %v5516, %v5642
      %v5656 = vadd.f32 %v5517, %v5642
      %v5657 = vadd.f32 %v5518, %v5642
      %v5658 = vadd.f32 %v5519, %v5642
      %v5659 = vadd.f32 %v5520, %v5642
      %v5660 = vadd.f32 %v5521, %v5642
      %v5661 = vadd.f32 %v5522, %v5642
      %v5662 = vadd.f32 %v5523, %v5642
      %v5663 = vadd.f32 %v5524, %v5642
      %v5664 = vadd.f32 %v5525, %v5642
      %v5665 = vadd.f32 %v5526, %v5642
      %v5666 = vadd.f32 %v5527, %v5642
      %v5667 = vadd.f32 %v5528, %v5642
      %v5668 = vadd.f32 %v5529, %v5642
      %v5669 = vadd.f32 %v5530, %v5642
      %v5670 = vadd.f32 %v5531, %v5642
      %v5671 = vadd.f32 %v5532, %v5642
      %v5672 = vadd.f32 %v5533, %v5642
      %v5673 = vadd.f32 %v5534, %v5642
      %v5674 = vadd.f32 %v5535, %v5642
      %v5675 = vadd.f32 %v5536, %v5642
      %v5676 = vadd.f32 %v5537, %v5642
      %v5677 = vadd.f32 %v5538, %v5642
      %v5678 = vadd.f32 %v5539, %v5642
      %v5679 = vadd.f32 %v5540, %v5642
      %v5680 = vadd.f32 %v5541, %v5642
      %v5681 = vadd.f32 %v5542, %v5642
      %v5682 = vadd.f32 %v5543, %v5642
      %v5683 = vadd.f32 %v5544, %v5642
      %v5684 = vadd.f32 %v5545, %v5642
      %v5685 = vadd.f32 %v5546, %v5642
      %v5686 = vadd.f32 %v5547, %v5642
      %v5687 = vadd.f32 %v5548, %v5642
      %v5688 = vadd.f32 %v5549, %v5642
      %v5689 = vadd.f32 %v5550, %v5642
      %v5690 = vadd.f32 %v5551, %v5642
      %v5691 = vadd.f32 %v5552, %v5642
      %v5692 = vadd.f32 %v5553, %v5642
      %v5693 = vadd.f32 %v5554, %v5642
      %v5694 = vadd.f32 %v5555, %v5642
      %v5695 = vadd.f32 %v5556, %v5642
      %v5696 = vadd.f32 %v5557, %v5642
      %v5697 = vadd.f32 %v5558, %v5642
      %v5698 = vadd.f32 %v5559, %v5642
      %v5699 = vadd.f32 %v5560, %v5642
      %v5700 = vadd.f32 %v5561, %v5642
      %v5701 = vadd.f32 %v5562, %v5642
      %v5702 = vadd.f32 %v5563, %v5642
      %v5703 = vadd.f32 %v5564, %v5642
      %v5704 = vadd.f32 %v5565, %v5642
      %v5705 = vadd.f32 %v5566, %v5642
      %v5706 = vadd.f32 %v5567, %v5642
      %v5707 = vadd.f32 %v5568, %v5642
      %v5708 = vadd.f32 %v5569, %v5642
      %v5709 = vadd.f32 %v5570, %v5642
      %v5710 = vadd.f32 %v5571, %v5642
      %v5711 = vadd.f32 %v5572, %v5642
      %v5712 = vadd.f32 %v5573, %v5642
      %v5713 = vadd.f32 %v5574, %v5642
      %v5714 = vadd.f32 %v5575, %v5642
      %v5715 = vadd.f32 %v5576, %v5642
      %v5716 = vadd.f32 %v5577, %v5642
      %v5717 = vadd.f32 %v5578, %v5642
      %v5718 = vadd.f32 %v5579, %v5642
      %v5719 = vadd.f32 %v5580, %v5642
      %v5720 = vadd.f32 %v5581, %v5642
      %v5721 = vadd.f32 %v5582, %v5642
      %v5722 = vadd.f32 %v5583, %v5642
      %v5723 = vadd.f32 %v5584, %v5642
      %v5724 = vadd.f32 %v5585, %v5642
      %v5725 = vadd.f32 %v5586, %v5642
      %v5726 = vadd.f32 %v5587, %v5642
      %v5727 = vadd.f32 %v5588, %v5642
      %v5728 = vadd.f32 %v5589, %v5642
      %v5729 = vadd.f32 %v5590, %v5642
      %v5730 = vadd.f32 %v5591, %v5642
      %v5731 = vadd.f32 %v5592, %v5642
      %v5732 = vadd.f32 %v5593, %v5642
      %v5733 = vadd.f32 %v5594, %v5642
      %v5734 = vadd.f32 %v5595, %v5642
      %v5735 = vadd.f32 %v5596, %v5642
      %v5736 = vadd.f32 %v5597, %v5642
      %v5737 = vadd.f32 %v5598, %v5642
      %v5738 = vadd.f32 %v5599, %v5642
      %v5739 = vadd.f32 %v5600, %v5642
      %v5740 = vadd.f32 %v5601, %v5642
      %v5741 = vadd.f32 %v5602, %v5642
      %v5742 = vadd.f32 %v5603, %v5642
      %v5743 = vadd.f32 %v5604, %v5642
      %v5744 = vadd.f32 %v5605, %v5642
      %v5745 = vadd.f32 %v5606, %v5642
      %v5746 = vadd.f32 %v5607, %v5642
      %v5747 = vadd.f32 %v5608, %v5642
      %v5748 = vadd.f32 %v5609, %v5642
      %v5749 = vadd.f32 %v5610, %v5642
      %v5750 = vadd.f32 %v5611, %v5642
      %v5751 = vadd.f32 %v5612, %v5642
      %v5752 = vadd.f32 %v5613, %v5642
      %v5753 = vadd.f32 %v5614, %v5642
      %v5754 = vadd.f32 %v5615, %v5642
      %v5755 = vadd.f32 %v5616, %v5642
      %v5756 = vadd.f32 %v5617, %v5642
      %v5757 = vadd.f32 %v5618, %v5642
      %v5758 = vadd.f32 %v5619, %v5642
      %v5759 = vadd.f32 %v5620, %v5642
      %v5760 = vadd.f32 %v5621, %v5642
      %v5761 = vadd.f32 %v5622, %v5642
      %v5762 = vadd.f32 %v5623, %v5642
      %v5763 = vadd.f32 %v5624, %v5642
      %v5764 = vadd.f32 %v5625, %v5642
      %v5765 = vadd.f32 %v5626, %v5642
      %v5766 = vadd.f32 %v5627, %v5642
      %v5767 = vadd.f32 %v5628, %v5642
      %v5768 = vadd.f32 %v5629, %v5642
      %v5769 = vadd.f32 %v5630, %v5642
      %v5770 = vadd.f32 %v5631, %v5642
      %v5771 = vadd.f32 %v5632, %v5642
      %v5772 = vadd.f32 %v5633, %v5642
      %v5773 = vadd.f32 %v5634, %v5642
      %v5774 = vadd.f32 %v5635, %v5642
      %v5775 = vadd.f32 %v5636, %v5642
      %vm5776 = vcmp.gt.f32.partialorder %v5644, 0.0
      %vm5777 = vcmp.gt.f32.partialorder %v5645, 0.0
      %vm5778 = vcmp.gt.f32.partialorder %v5646, 0.0
      %vm5779 = vcmp.gt.f32.partialorder %v5647, 0.0
      %vm5780 = vcmp.gt.f32.partialorder %v5648, 0.0
      %vm5781 = vcmp.gt.f32.partialorder %v5649, 0.0
      %vm5782 = vcmp.gt.f32.partialorder %v5650, 0.0
      %vm5783 = vcmp.gt.f32.partialorder %v5651, 0.0
      %vm5784 = vcmp.gt.f32.partialorder %v5652, 0.0
      %vm5785 = vcmp.gt.f32.partialorder %v5653, 0.0
      %vm5786 = vcmp.gt.f32.partialorder %v5654, 0.0
      %vm5787 = vcmp.gt.f32.partialorder %v5655, 0.0
      %vm5788 = vcmp.gt.f32.partialorder %v5656, 0.0
      %vm5789 = vcmp.gt.f32.partialorder %v5657, 0.0
      %vm5790 = vcmp.gt.f32.partialorder %v5658, 0.0
      %vm5791 = vcmp.gt.f32.partialorder %v5659, 0.0
      %vm5792 = vcmp.gt.f32.partialorder %v5660, 0.0
      %vm5793 = vcmp.gt.f32.partialorder %v5661, 0.0
      %vm5794 = vcmp.gt.f32.partialorder %v5662, 0.0
      %vm5795 = vcmp.gt.f32.partialorder %v5663, 0.0
      %vm5796 = vcmp.gt.f32.partialorder %v5664, 0.0
      %vm5797 = vcmp.gt.f32.partialorder %v5665, 0.0
      %vm5798 = vcmp.gt.f32.partialorder %v5666, 0.0
      %vm5799 = vcmp.gt.f32.partialorder %v5667, 0.0
      %vm5800 = vcmp.gt.f32.partialorder %v5668, 0.0
      %vm5801 = vcmp.gt.f32.partialorder %v5669, 0.0
      %vm5802 = vcmp.gt.f32.partialorder %v5670, 0.0
      %vm5803 = vcmp.gt.f32.partialorder %v5671, 0.0
      %vm5804 = vcmp.gt.f32.partialorder %v5672, 0.0
      %vm5805 = vcmp.gt.f32.partialorder %v5673, 0.0
      %vm5806 = vcmp.gt.f32.partialorder %v5674, 0.0
      %vm5807 = vcmp.gt.f32.partialorder %v5675, 0.0
      %vm5808 = vcmp.gt.f32.partialorder %v5676, 0.0
      %vm5809 = vcmp.gt.f32.partialorder %v5677, 0.0
      %vm5810 = vcmp.gt.f32.partialorder %v5678, 0.0
      %vm5811 = vcmp.gt.f32.partialorder %v5679, 0.0
      %vm5812 = vcmp.gt.f32.partialorder %v5680, 0.0
      %vm5813 = vcmp.gt.f32.partialorder %v5681, 0.0
      %vm5814 = vcmp.gt.f32.partialorder %v5682, 0.0
      %vm5815 = vcmp.gt.f32.partialorder %v5683, 0.0
      %vm5816 = vcmp.gt.f32.partialorder %v5684, 0.0
      %vm5817 = vcmp.gt.f32.partialorder %v5685, 0.0
      %vm5818 = vcmp.gt.f32.partialorder %v5686, 0.0
      %vm5819 = vcmp.gt.f32.partialorder %v5687, 0.0
      %vm5820 = vcmp.gt.f32.partialorder %v5688, 0.0
      %vm5821 = vcmp.gt.f32.partialorder %v5689, 0.0
      %vm5822 = vcmp.gt.f32.partialorder %v5690, 0.0
      %vm5823 = vcmp.gt.f32.partialorder %v5691, 0.0
      %vm5824 = vcmp.gt.f32.partialorder %v5692, 0.0
      %vm5825 = vcmp.gt.f32.partialorder %v5693, 0.0
      %vm5826 = vcmp.gt.f32.partialorder %v5694, 0.0
      %vm5827 = vcmp.gt.f32.partialorder %v5695, 0.0
      %vm5828 = vcmp.gt.f32.partialorder %v5696, 0.0
      %vm5829 = vcmp.gt.f32.partialorder %v5697, 0.0
      %vm5830 = vcmp.gt.f32.partialorder %v5698, 0.0
      %vm5831 = vcmp.gt.f32.partialorder %v5699, 0.0
      %vm5832 = vcmp.gt.f32.partialorder %v5700, 0.0
      %vm5833 = vcmp.gt.f32.partialorder %v5701, 0.0
      %vm5834 = vcmp.gt.f32.partialorder %v5702, 0.0
      %vm5835 = vcmp.gt.f32.partialorder %v5703, 0.0
      %vm5836 = vcmp.gt.f32.partialorder %v5704, 0.0
      %vm5837 = vcmp.gt.f32.partialorder %v5705, 0.0
      %vm5838 = vcmp.gt.f32.partialorder %v5706, 0.0
      %vm5839 = vcmp.gt.f32.partialorder %v5707, 0.0
      %vm5840 = vcmp.gt.f32.partialorder %v5708, 0.0
      %vm5841 = vcmp.gt.f32.partialorder %v5709, 0.0
      %vm5842 = vcmp.gt.f32.partialorder %v5710, 0.0
      %vm5843 = vcmp.gt.f32.partialorder %v5711, 0.0
      %vm5844 = vcmp.gt.f32.partialorder %v5712, 0.0
      %vm5845 = vcmp.gt.f32.partialorder %v5713, 0.0
      %vm5846 = vcmp.gt.f32.partialorder %v5714, 0.0
      %vm5847 = vcmp.gt.f32.partialorder %v5715, 0.0
      %vm5848 = vcmp.gt.f32.partialorder %v5716, 0.0
      %vm5849 = vcmp.gt.f32.partialorder %v5717, 0.0
      %vm5850 = vcmp.gt.f32.partialorder %v5718, 0.0
      %vm5851 = vcmp.gt.f32.partialorder %v5719, 0.0
      %vm5852 = vcmp.gt.f32.partialorder %v5720, 0.0
      %vm5853 = vcmp.gt.f32.partialorder %v5721, 0.0
      %vm5854 = vcmp.gt.f32.partialorder %v5722, 0.0
      %vm5855 = vcmp.gt.f32.partialorder %v5723, 0.0
      %vm5856 = vcmp.gt.f32.partialorder %v5724, 0.0
      %vm5857 = vcmp.gt.f32.partialorder %v5725, 0.0
      %vm5858 = vcmp.gt.f32.partialorder %v5726, 0.0
      %vm5859 = vcmp.gt.f32.partialorder %v5727, 0.0
      %vm5860 = vcmp.gt.f32.partialorder %v5728, 0.0
      %vm5861 = vcmp.gt.f32.partialorder %v5729, 0.0
      %vm5862 = vcmp.gt.f32.partialorder %v5730, 0.0
      %vm5863 = vcmp.gt.f32.partialorder %v5731, 0.0
      %vm5864 = vcmp.gt.f32.partialorder %v5732, 0.0
      %vm5865 = vcmp.gt.f32.partialorder %v5733, 0.0
      %vm5866 = vcmp.gt.f32.partialorder %v5734, 0.0
      %vm5867 = vcmp.gt.f32.partialorder %v5735, 0.0
      %vm5868 = vcmp.gt.f32.partialorder %v5736, 0.0
      %vm5869 = vcmp.gt.f32.partialorder %v5737, 0.0
      %vm5870 = vcmp.gt.f32.partialorder %v5738, 0.0
      %vm5871 = vcmp.gt.f32.partialorder %v5739, 0.0
      %vm5872 = vcmp.gt.f32.partialorder %v5740, 0.0
      %vm5873 = vcmp.gt.f32.partialorder %v5741, 0.0
      %vm5874 = vcmp.gt.f32.partialorder %v5742, 0.0
      %vm5875 = vcmp.gt.f32.partialorder %v5743, 0.0
      %vm5876 = vcmp.gt.f32.partialorder %v5744, 0.0
      %vm5877 = vcmp.gt.f32.partialorder %v5745, 0.0
      %vm5878 = vcmp.gt.f32.partialorder %v5746, 0.0
      %vm5879 = vcmp.gt.f32.partialorder %v5747, 0.0
      %vm5880 = vcmp.gt.f32.partialorder %v5748, 0.0
      %vm5881 = vcmp.gt.f32.partialorder %v5749, 0.0
      %vm5882 = vcmp.gt.f32.partialorder %v5750, 0.0
      %vm5883 = vcmp.gt.f32.partialorder %v5751, 0.0
      %vm5884 = vcmp.gt.f32.partialorder %v5752, 0.0
      %vm5885 = vcmp.gt.f32.partialorder %v5753, 0.0
      %vm5886 = vcmp.gt.f32.partialorder %v5754, 0.0
      %vm5887 = vcmp.gt.f32.partialorder %v5755, 0.0
      %vm5888 = vcmp.gt.f32.partialorder %v5756, 0.0
      %vm5889 = vcmp.gt.f32.partialorder %v5757, 0.0
      %vm5890 = vcmp.gt.f32.partialorder %v5758, 0.0
      %vm5891 = vcmp.gt.f32.partialorder %v5759, 0.0
      %vm5892 = vcmp.gt.f32.partialorder %v5760, 0.0
      %vm5893 = vcmp.gt.f32.partialorder %v5761, 0.0
      %vm5894 = vcmp.gt.f32.partialorder %v5762, 0.0
      %vm5895 = vcmp.gt.f32.partialorder %v5763, 0.0
      %vm5896 = vcmp.gt.f32.partialorder %v5764, 0.0
      %vm5897 = vcmp.gt.f32.partialorder %v5765, 0.0
      %vm5898 = vcmp.gt.f32.partialorder %v5766, 0.0
      %vm5899 = vcmp.gt.f32.partialorder %v5767, 0.0
      %vm5900 = vcmp.gt.f32.partialorder %v5768, 0.0
      %vm5901 = vcmp.gt.f32.partialorder %v5769, 0.0
      %vm5902 = vcmp.gt.f32.partialorder %v5770, 0.0
      %vm5903 = vcmp.gt.f32.partialorder %v5771, 0.0
      %vm5904 = vcmp.gt.f32.partialorder %v5772, 0.0
      %vm5905 = vcmp.gt.f32.partialorder %v5773, 0.0
      %vm5906 = vcmp.gt.f32.partialorder %v5774, 0.0
      %vm5907 = vcmp.gt.f32.partialorder %v5775, 0.0
      %v5908 = vmul.f32 %v5644, 0.2
      %v5909 = vmul.f32 %v5645, 0.2
      %v5910 = vmul.f32 %v5646, 0.2
      %v5911 = vmul.f32 %v5647, 0.2
      %v5912 = vmul.f32 %v5648, 0.2
      %v5913 = vmul.f32 %v5649, 0.2
      %v5914 = vmul.f32 %v5650, 0.2
      %v5915 = vmul.f32 %v5651, 0.2
      %v5916 = vmul.f32 %v5652, 0.2
      %v5917 = vmul.f32 %v5653, 0.2
      %v5918 = vmul.f32 %v5654, 0.2
      %v5919 = vmul.f32 %v5655, 0.2
      %v5920 = vmul.f32 %v5656, 0.2
      %v5921 = vmul.f32 %v5657, 0.2
      %v5922 = vmul.f32 %v5658, 0.2
      %v5923 = vmul.f32 %v5659, 0.2
      %v5924 = vmul.f32 %v5660, 0.2
      %v5925 = vmul.f32 %v5661, 0.2
      %v5926 = vmul.f32 %v5662, 0.2
      %v5927 = vmul.f32 %v5663, 0.2
      %v5928 = vmul.f32 %v5664, 0.2
      %v5929 = vmul.f32 %v5665, 0.2
      %v5930 = vmul.f32 %v5666, 0.2
      %v5931 = vmul.f32 %v5667, 0.2
      %v5932 = vmul.f32 %v5668, 0.2
      %v5933 = vmul.f32 %v5669, 0.2
      %v5934 = vmul.f32 %v5670, 0.2
      %v5935 = vmul.f32 %v5671, 0.2
      %v5936 = vmul.f32 %v5672, 0.2
      %v5937 = vmul.f32 %v5673, 0.2
      %v5938 = vmul.f32 %v5674, 0.2
      %v5939 = vmul.f32 %v5675, 0.2
      %v5940 = vmul.f32 %v5676, 0.2
      %v5941 = vmul.f32 %v5677, 0.2
      %v5942 = vmul.f32 %v5678, 0.2
      %v5943 = vmul.f32 %v5679, 0.2
      %v5944 = vmul.f32 %v5680, 0.2
      %v5945 = vmul.f32 %v5681, 0.2
      %v5946 = vmul.f32 %v5682, 0.2
      %v5947 = vmul.f32 %v5683, 0.2
      %v5948 = vmul.f32 %v5684, 0.2
      %v5949 = vmul.f32 %v5685, 0.2
      %v5950 = vmul.f32 %v5686, 0.2
      %v5951 = vmul.f32 %v5687, 0.2
      %v5952 = vmul.f32 %v5688, 0.2
      %v5953 = vmul.f32 %v5689, 0.2
      %v5954 = vmul.f32 %v5690, 0.2
      %v5955 = vmul.f32 %v5691, 0.2
      %v5956 = vmul.f32 %v5692, 0.2
      %v5957 = vmul.f32 %v5693, 0.2
      %v5958 = vmul.f32 %v5694, 0.2
      %v5959 = vmul.f32 %v5695, 0.2
      %v5960 = vmul.f32 %v5696, 0.2
      %v5961 = vmul.f32 %v5697, 0.2
      %v5962 = vmul.f32 %v5698, 0.2
      %v5963 = vmul.f32 %v5699, 0.2
      %v5964 = vmul.f32 %v5700, 0.2
      %v5965 = vmul.f32 %v5701, 0.2
      %v5966 = vmul.f32 %v5702, 0.2
      %v5967 = vmul.f32 %v5703, 0.2
      %v5968 = vmul.f32 %v5704, 0.2
      %v5969 = vmul.f32 %v5705, 0.2
      %v5970 = vmul.f32 %v5706, 0.2
      %v5971 = vmul.f32 %v5707, 0.2
      %v5972 = vmul.f32 %v5708, 0.2
      %v5973 = vmul.f32 %v5709, 0.2
      %v5974 = vmul.f32 %v5710, 0.2
      %v5975 = vmul.f32 %v5711, 0.2
      %v5976 = vmul.f32 %v5712, 0.2
      %v5977 = vmul.f32 %v5713, 0.2
      %v5978 = vmul.f32 %v5714, 0.2
      %v5979 = vmul.f32 %v5715, 0.2
      %v5980 = vmul.f32 %v5716, 0.2
      %v5981 = vmul.f32 %v5717, 0.2
      %v5982 = vmul.f32 %v5718, 0.2
      %v5983 = vmul.f32 %v5719, 0.2
      %v5984 = vmul.f32 %v5720, 0.2
      %v5985 = vmul.f32 %v5721, 0.2
      %v5986 = vmul.f32 %v5722, 0.2
      %v5987 = vmul.f32 %v5723, 0.2
      %v5988 = vmul.f32 %v5724, 0.2
      %v5989 = vmul.f32 %v5725, 0.2
      %v5990 = vmul.f32 %v5726, 0.2
      %v5991 = vmul.f32 %v5727, 0.2
      %v5992 = vmul.f32 %v5728, 0.2
      %v5993 = vmul.f32 %v5729, 0.2
      %v5994 = vmul.f32 %v5730, 0.2
      %v5995 = vmul.f32 %v5731, 0.2
      %v5996 = vmul.f32 %v5732, 0.2
      %v5997 = vmul.f32 %v5733, 0.2
      %v5998 = vmul.f32 %v5734, 0.2
      %v5999 = vmul.f32 %v5735, 0.2
      %v6000 = vmul.f32 %v5736, 0.2
      %v6001 = vmul.f32 %v5737, 0.2
      %v6002 = vmul.f32 %v5738, 0.2
      %v6003 = vmul.f32 %v5739, 0.2
      %v6004 = vmul.f32 %v5740, 0.2
      %v6005 = vmul.f32 %v5741, 0.2
      %v6006 = vmul.f32 %v5742, 0.2
      %v6007 = vmul.f32 %v5743, 0.2
      %v6008 = vmul.f32 %v5744, 0.2
      %v6009 = vmul.f32 %v5745, 0.2
      %v6010 = vmul.f32 %v5746, 0.2
      %v6011 = vmul.f32 %v5747, 0.2
      %v6012 = vmul.f32 %v5748, 0.2
      %v6013 = vmul.f32 %v5749, 0.2
      %v6014 = vmul.f32 %v5750, 0.2
      %v6015 = vmul.f32 %v5751, 0.2
      %v6016 = vmul.f32 %v5752, 0.2
      %v6017 = vmul.f32 %v5753, 0.2
      %v6018 = vmul.f32 %v5754, 0.2
      %v6019 = vmul.f32 %v5755, 0.2
      %v6020 = vmul.f32 %v5756, 0.2
      %v6021 = vmul.f32 %v5757, 0.2
      %v6022 = vmul.f32 %v5758, 0.2
      %v6023 = vmul.f32 %v5759, 0.2
      %v6024 = vmul.f32 %v5760, 0.2
      %v6025 = vmul.f32 %v5761, 0.2
      %v6026 = vmul.f32 %v5762, 0.2
      %v6027 = vmul.f32 %v5763, 0.2
      %v6028 = vmul.f32 %v5764, 0.2
      %v6029 = vmul.f32 %v5765, 0.2
      %v6030 = vmul.f32 %v5766, 0.2
      %v6031 = vmul.f32 %v5767, 0.2
      %v6032 = vmul.f32 %v5768, 0.2
      %v6033 = vmul.f32 %v5769, 0.2
      %v6034 = vmul.f32 %v5770, 0.2
      %v6035 = vmul.f32 %v5771, 0.2
      %v6036 = vmul.f32 %v5772, 0.2
      %v6037 = vmul.f32 %v5773, 0.2
      %v6038 = vmul.f32 %v5774, 0.2
      %v6039 = vmul.f32 %v5775, 0.2
      %v6040 = vsel %vm5776, %v5644, %v5908
      %v6041 = vsel %vm5777, %v5645, %v5909
      %v6042 = vsel %vm5778, %v5646, %v5910
      %v6043 = vsel %vm5779, %v5647, %v5911
      %v6044 = vsel %vm5780, %v5648, %v5912
      %v6045 = vsel %vm5781, %v5649, %v5913
      %v6046 = vsel %vm5782, %v5650, %v5914
      %v6047 = vsel %vm5783, %v5651, %v5915
      %v6048 = vsel %vm5784, %v5652, %v5916
      %v6049 = vsel %vm5785, %v5653, %v5917
      %v6050 = vsel %vm5786, %v5654, %v5918
      %v6051 = vsel %vm5787, %v5655, %v5919
      %v6052 = vsel %vm5788, %v5656, %v5920
      %v6053 = vsel %vm5789, %v5657, %v5921
      %v6054 = vsel %vm5790, %v5658, %v5922
      %v6055 = vsel %vm5791, %v5659, %v5923
      %v6056 = vsel %vm5792, %v5660, %v5924
      %v6057 = vsel %vm5793, %v5661, %v5925
      %v6058 = vsel %vm5794, %v5662, %v5926
      %v6059 = vsel %vm5795, %v5663, %v5927
      %v6060 = vsel %vm5796, %v5664, %v5928
      %v6061 = vsel %vm5797, %v5665, %v5929
      %v6062 = vsel %vm5798, %v5666, %v5930
      %v6063 = vsel %vm5799, %v5667, %v5931
      %v6064 = vsel %vm5800, %v5668, %v5932
      %v6065 = vsel %vm5801, %v5669, %v5933
      %v6066 = vsel %vm5802, %v5670, %v5934
      %v6067 = vsel %vm5803, %v5671, %v5935
      %v6068 = vsel %vm5804, %v5672, %v5936
      %v6069 = vsel %vm5805, %v5673, %v5937
      %v6070 = vsel %vm5806, %v5674, %v5938
      %v6071 = vsel %vm5807, %v5675, %v5939
      %v6072 = vsel %vm5808, %v5676, %v5940
      %v6073 = vsel %vm5809, %v5677, %v5941
      %v6074 = vsel %vm5810, %v5678, %v5942
      %v6075 = vsel %vm5811, %v5679, %v5943
      %v6076 = vsel %vm5812, %v5680, %v5944
      %v6077 = vsel %vm5813, %v5681, %v5945
      %v6078 = vsel %vm5814, %v5682, %v5946
      %v6079 = vsel %vm5815, %v5683, %v5947
      %v6080 = vsel %vm5816, %v5684, %v5948
      %v6081 = vsel %vm5817, %v5685, %v5949
      %v6082 = vsel %vm5818, %v5686, %v5950
      %v6083 = vsel %vm5819, %v5687, %v5951
      %v6084 = vsel %vm5820, %v5688, %v5952
      %v6085 = vsel %vm5821, %v5689, %v5953
      %v6086 = vsel %vm5822, %v5690, %v5954
      %v6087 = vsel %vm5823, %v5691, %v5955
      %v6088 = vsel %vm5824, %v5692, %v5956
      %v6089 = vsel %vm5825, %v5693, %v5957
      %v6090 = vsel %vm5826, %v5694, %v5958
      %v6091 = vsel %vm5827, %v5695, %v5959
      %v6092 = vsel %vm5828, %v5696, %v5960
      %v6093 = vsel %vm5829, %v5697, %v5961
      %v6094 = vsel %vm5830, %v5698, %v5962
      %v6095 = vsel %vm5831, %v5699, %v5963
      %v6096 = vsel %vm5832, %v5700, %v5964
      %v6097 = vsel %vm5833, %v5701, %v5965
      %v6098 = vsel %vm5834, %v5702, %v5966
      %v6099 = vsel %vm5835, %v5703, %v5967
      %v6100 = vsel %vm5836, %v5704, %v5968
      %v6101 = vsel %vm5837, %v5705, %v5969
      %v6102 = vsel %vm5838, %v5706, %v5970
      %v6103 = vsel %vm5839, %v5707, %v5971
      %v6104 = vsel %vm5840, %v5708, %v5972
      %v6105 = vsel %vm5841, %v5709, %v5973
      %v6106 = vsel %vm5842, %v5710, %v5974
      %v6107 = vsel %vm5843, %v5711, %v5975
      %v6108 = vsel %vm5844, %v5712, %v5976
      %v6109 = vsel %vm5845, %v5713, %v5977
      %v6110 = vsel %vm5846, %v5714, %v5978
      %v6111 = vsel %vm5847, %v5715, %v5979
      %v6112 = vsel %vm5848, %v5716, %v5980
      %v6113 = vsel %vm5849, %v5717, %v5981
      %v6114 = vsel %vm5850, %v5718, %v5982
      %v6115 = vsel %vm5851, %v5719, %v5983
      %v6116 = vsel %vm5852, %v5720, %v5984
      %v6117 = vsel %vm5853, %v5721, %v5985
      %v6118 = vsel %vm5854, %v5722, %v5986
      %v6119 = vsel %vm5855, %v5723, %v5987
      %v6120 = vsel %vm5856, %v5724, %v5988
      %v6121 = vsel %vm5857, %v5725, %v5989
      %v6122 = vsel %vm5858, %v5726, %v5990
      %v6123 = vsel %vm5859, %v5727, %v5991
      %v6124 = vsel %vm5860, %v5728, %v5992
      %v6125 = vsel %vm5861, %v5729, %v5993
      %v6126 = vsel %vm5862, %v5730, %v5994
      %v6127 = vsel %vm5863, %v5731, %v5995
      %v6128 = vsel %vm5864, %v5732, %v5996
      %v6129 = vsel %vm5865, %v5733, %v5997
      %v6130 = vsel %vm5866, %v5734, %v5998
      %v6131 = vsel %vm5867, %v5735, %v5999
      %v6132 = vsel %vm5868, %v5736, %v6000
      %v6133 = vsel %vm5869, %v5737, %v6001
      %v6134 = vsel %vm5870, %v5738, %v6002
      %v6135 = vsel %vm5871, %v5739, %v6003
      %v6136 = vsel %vm5872, %v5740, %v6004
      %v6137 = vsel %vm5873, %v5741, %v6005
      %v6138 = vsel %vm5874, %v5742, %v6006
      %v6139 = vsel %vm5875, %v5743, %v6007
      %v6140 = vsel %vm5876, %v5744, %v6008
      %v6141 = vsel %vm5877, %v5745, %v6009
      %v6142 = vsel %vm5878, %v5746, %v6010
      %v6143 = vsel %vm5879, %v5747, %v6011
      %v6144 = vsel %vm5880, %v5748, %v6012
      %v6145 = vsel %vm5881, %v5749, %v6013
      %v6146 = vsel %vm5882, %v5750, %v6014
      %v6147 = vsel %vm5883, %v5751, %v6015
      %v6148 = vsel %vm5884, %v5752, %v6016
      %v6149 = vsel %vm5885, %v5753, %v6017
      %v6150 = vsel %vm5886, %v5754, %v6018
      %v6151 = vsel %vm5887, %v5755, %v6019
      %v6152 = vsel %vm5888, %v5756, %v6020
      %v6153 = vsel %vm5889, %v5757, %v6021
      %v6154 = vsel %vm5890, %v5758, %v6022
      %v6155 = vsel %vm5891, %v5759, %v6023
      %v6156 = vsel %vm5892, %v5760, %v6024
      %v6157 = vsel %vm5893, %v5761, %v6025
      %v6158 = vsel %vm5894, %v5762, %v6026
      %v6159 = vsel %vm5895, %v5763, %v6027
      %v6160 = vsel %vm5896, %v5764, %v6028
      %v6161 = vsel %vm5897, %v5765, %v6029
      %v6162 = vsel %vm5898, %v5766, %v6030
      %v6163 = vsel %vm5899, %v5767, %v6031
      %v6164 = vsel %vm5900, %v5768, %v6032
      %v6165 = vsel %vm5901, %v5769, %v6033
      %v6166 = vsel %vm5902, %v5770, %v6034
      %v6167 = vsel %vm5903, %v5771, %v6035
      %v6168 = vsel %vm5904, %v5772, %v6036
      %v6169 = vsel %vm5905, %v5773, %v6037
      %v6170 = vsel %vm5906, %v5774, %v6038
      %v6171 = vsel %vm5907, %v5775, %v6039
      %v6172 = vpack.c.bf16 %v6041, %v6040
      %v6173 = vpack.c.bf16 %v6043, %v6042
      %v6174 = vpack.c.bf16 %v6045, %v6044
      %v6175 = vpack.c.bf16 %v6047, %v6046
      %v6176 = vpack.c.bf16 %v6049, %v6048
      %v6177 = vpack.c.bf16 %v6051, %v6050
      %v6178 = vpack.c.bf16 %v6053, %v6052
      %v6179 = vpack.c.bf16 %v6055, %v6054
      %v6180 = vpack.c.bf16 %v6057, %v6056
      %v6181 = vpack.c.bf16 %v6059, %v6058
      %v6182 = vpack.c.bf16 %v6061, %v6060
      %v6183 = vpack.c.bf16 %v6063, %v6062
      %v6184 = vpack.c.bf16 %v6065, %v6064
      %v6185 = vpack.c.bf16 %v6067, %v6066
      %v6186 = vpack.c.bf16 %v6069, %v6068
      %v6187 = vpack.c.bf16 %v6071, %v6070
      %v6188 = vpack.c.bf16 %v6073, %v6072
      %v6189 = vpack.c.bf16 %v6075, %v6074
      %v6190 = vpack.c.bf16 %v6077, %v6076
      %v6191 = vpack.c.bf16 %v6079, %v6078
      %v6192 = vpack.c.bf16 %v6081, %v6080
      %v6193 = vpack.c.bf16 %v6083, %v6082
      %v6194 = vpack.c.bf16 %v6085, %v6084
      %v6195 = vpack.c.bf16 %v6087, %v6086
      %v6196 = vpack.c.bf16 %v6089, %v6088
      %v6197 = vpack.c.bf16 %v6091, %v6090
      %v6198 = vpack.c.bf16 %v6093, %v6092
      %v6199 = vpack.c.bf16 %v6095, %v6094
      %v6200 = vpack.c.bf16 %v6097, %v6096
      %v6201 = vpack.c.bf16 %v6099, %v6098
      %v6202 = vpack.c.bf16 %v6101, %v6100
      %v6203 = vpack.c.bf16 %v6103, %v6102
      %v6204 = vpack.c.bf16 %v6105, %v6104
      %v6205 = vpack.c.bf16 %v6107, %v6106
      %v6206 = vpack.c.bf16 %v6109, %v6108
      %v6207 = vpack.c.bf16 %v6111, %v6110
      %v6208 = vpack.c.bf16 %v6113, %v6112
      %v6209 = vpack.c.bf16 %v6115, %v6114
      %v6210 = vpack.c.bf16 %v6117, %v6116
      %v6211 = vpack.c.bf16 %v6119, %v6118
      %v6212 = vpack.c.bf16 %v6121, %v6120
      %v6213 = vpack.c.bf16 %v6123, %v6122
      %v6214 = vpack.c.bf16 %v6125, %v6124
      %v6215 = vpack.c.bf16 %v6127, %v6126
      %v6216 = vpack.c.bf16 %v6129, %v6128
      %v6217 = vpack.c.bf16 %v6131, %v6130
      %v6218 = vpack.c.bf16 %v6133, %v6132
      %v6219 = vpack.c.bf16 %v6135, %v6134
      %v6220 = vpack.c.bf16 %v6137, %v6136
      %v6221 = vpack.c.bf16 %v6139, %v6138
      %v6222 = vpack.c.bf16 %v6141, %v6140
      %v6223 = vpack.c.bf16 %v6143, %v6142
      %v6224 = vpack.c.bf16 %v6145, %v6144
      %v6225 = vpack.c.bf16 %v6147, %v6146
      %v6226 = vpack.c.bf16 %v6149, %v6148
      %v6227 = vpack.c.bf16 %v6151, %v6150
      %v6228 = vpack.c.bf16 %v6153, %v6152
      %v6229 = vpack.c.bf16 %v6155, %v6154
      %v6230 = vpack.c.bf16 %v6157, %v6156
      %v6231 = vpack.c.bf16 %v6159, %v6158
      %v6232 = vpack.c.bf16 %v6161, %v6160
      %v6233 = vpack.c.bf16 %v6163, %v6162
      %v6234 = vpack.c.bf16 %v6165, %v6164
      %v6235 = vpack.c.bf16 %v6167, %v6166
      %v6236 = vpack.c.bf16 %v6169, %v6168
      %v6237 = vpack.c.bf16 %v6171, %v6170
      %v6304 = vunpack.c.l.b16 %v6172
      %v6305 = vunpack.c.h.b16 %v6172
      %v6306 = vunpack.c.l.b16 %v6173
      %v6307 = vunpack.c.h.b16 %v6173
      %v6308 = vunpack.c.l.b16 %v6174
      %v6309 = vunpack.c.h.b16 %v6174
      %v6310 = vunpack.c.l.b16 %v6175
      %v6311 = vunpack.c.h.b16 %v6175
      %v6312 = vunpack.c.l.b16 %v6176
      %v6313 = vunpack.c.h.b16 %v6176
      %v6314 = vunpack.c.l.b16 %v6177
      %v6315 = vunpack.c.h.b16 %v6177
      %v6316 = vunpack.c.l.b16 %v6178
      %v6317 = vunpack.c.h.b16 %v6178
      %v6318 = vunpack.c.l.b16 %v6179
      %v6319 = vunpack.c.h.b16 %v6179
      %v6320 = vunpack.c.l.b16 %v6180
      %v6321 = vunpack.c.h.b16 %v6180
      %v6322 = vunpack.c.l.b16 %v6181
      %v6323 = vunpack.c.h.b16 %v6181
      %v6324 = vunpack.c.l.b16 %v6182
      %v6325 = vunpack.c.h.b16 %v6182
      %v6326 = vunpack.c.l.b16 %v6183
      %v6327 = vunpack.c.h.b16 %v6183
      %v6328 = vunpack.c.l.b16 %v6184
      %v6329 = vunpack.c.h.b16 %v6184
      %v6330 = vunpack.c.l.b16 %v6185
      %v6331 = vunpack.c.h.b16 %v6185
      %v6332 = vunpack.c.l.b16 %v6186
      %v6333 = vunpack.c.h.b16 %v6186
      %v6334 = vunpack.c.l.b16 %v6187
      %v6335 = vunpack.c.h.b16 %v6187
      %v6336 = vunpack.c.l.b16 %v6188
      %v6337 = vunpack.c.h.b16 %v6188
      %v6338 = vunpack.c.l.b16 %v6189
      %v6339 = vunpack.c.h.b16 %v6189
      %v6340 = vunpack.c.l.b16 %v6190
      %v6341 = vunpack.c.h.b16 %v6190
      %v6342 = vunpack.c.l.b16 %v6191
      %v6343 = vunpack.c.h.b16 %v6191
      %v6344 = vunpack.c.l.b16 %v6192
      %v6345 = vunpack.c.h.b16 %v6192
      %v6346 = vunpack.c.l.b16 %v6193
      %v6347 = vunpack.c.h.b16 %v6193
      %v6348 = vunpack.c.l.b16 %v6194
      %v6349 = vunpack.c.h.b16 %v6194
      %v6350 = vunpack.c.l.b16 %v6195
      %v6351 = vunpack.c.h.b16 %v6195
      %v6352 = vunpack.c.l.b16 %v6196
      %v6353 = vunpack.c.h.b16 %v6196
      %v6354 = vunpack.c.l.b16 %v6197
      %v6355 = vunpack.c.h.b16 %v6197
      %v6356 = vunpack.c.l.b16 %v6198
      %v6357 = vunpack.c.h.b16 %v6198
      %v6358 = vunpack.c.l.b16 %v6199
      %v6359 = vunpack.c.h.b16 %v6199
      %v6360 = vunpack.c.l.b16 %v6200
      %v6361 = vunpack.c.h.b16 %v6200
      %v6362 = vunpack.c.l.b16 %v6201
      %v6363 = vunpack.c.h.b16 %v6201
      %v6364 = vunpack.c.l.b16 %v6202
      %v6365 = vunpack.c.h.b16 %v6202
      %v6366 = vunpack.c.l.b16 %v6203
      %v6367 = vunpack.c.h.b16 %v6203
      %v6368 = vunpack.c.l.b16 %v6204
      %v6369 = vunpack.c.h.b16 %v6204
      %v6370 = vunpack.c.l.b16 %v6205
      %v6371 = vunpack.c.h.b16 %v6205
      %v6372 = vunpack.c.l.b16 %v6206
      %v6373 = vunpack.c.h.b16 %v6206
      %v6374 = vunpack.c.l.b16 %v6207
      %v6375 = vunpack.c.h.b16 %v6207
      %v6376 = vunpack.c.l.b16 %v6208
      %v6377 = vunpack.c.h.b16 %v6208
      %v6378 = vunpack.c.l.b16 %v6209
      %v6379 = vunpack.c.h.b16 %v6209
      %v6380 = vunpack.c.l.b16 %v6210
      %v6381 = vunpack.c.h.b16 %v6210
      %v6382 = vunpack.c.l.b16 %v6211
      %v6383 = vunpack.c.h.b16 %v6211
      %v6384 = vunpack.c.l.b16 %v6212
      %v6385 = vunpack.c.h.b16 %v6212
      %v6386 = vunpack.c.l.b16 %v6213
      %v6387 = vunpack.c.h.b16 %v6213
      %v6388 = vunpack.c.l.b16 %v6214
      %v6389 = vunpack.c.h.b16 %v6214
      %v6390 = vunpack.c.l.b16 %v6215
      %v6391 = vunpack.c.h.b16 %v6215
      %v6392 = vunpack.c.l.b16 %v6216
      %v6393 = vunpack.c.h.b16 %v6216
      %v6394 = vunpack.c.l.b16 %v6217
      %v6395 = vunpack.c.h.b16 %v6217
      %v6396 = vunpack.c.l.b16 %v6218
      %v6397 = vunpack.c.h.b16 %v6218
      %v6398 = vunpack.c.l.b16 %v6219
      %v6399 = vunpack.c.h.b16 %v6219
      %v6400 = vunpack.c.l.b16 %v6220
      %v6401 = vunpack.c.h.b16 %v6220
      %v6402 = vunpack.c.l.b16 %v6221
      %v6403 = vunpack.c.h.b16 %v6221
      %v6404 = vunpack.c.l.b16 %v6222
      %v6405 = vunpack.c.h.b16 %v6222
      %v6406 = vunpack.c.l.b16 %v6223
      %v6407 = vunpack.c.h.b16 %v6223
      %v6408 = vunpack.c.l.b16 %v6224
      %v6409 = vunpack.c.h.b16 %v6224
      %v6410 = vunpack.c.l.b16 %v6225
      %v6411 = vunpack.c.h.b16 %v6225
      %v6412 = vunpack.c.l.b16 %v6226
      %v6413 = vunpack.c.h.b16 %v6226
      %v6414 = vunpack.c.l.b16 %v6227
      %v6415 = vunpack.c.h.b16 %v6227
      %v6416 = vunpack.c.l.b16 %v6228
      %v6417 = vunpack.c.h.b16 %v6228
      %v6418 = vunpack.c.l.b16 %v6229
      %v6419 = vunpack.c.h.b16 %v6229
      %v6420 = vunpack.c.l.b16 %v6230
      %v6421 = vunpack.c.h.b16 %v6230
      %v6422 = vunpack.c.l.b16 %v6231
      %v6423 = vunpack.c.h.b16 %v6231
      %v6424 = vunpack.c.l.b16 %v6232
      %v6425 = vunpack.c.h.b16 %v6232
      %v6426 = vunpack.c.l.b16 %v6233
      %v6427 = vunpack.c.h.b16 %v6233
      %v6428 = vunpack.c.l.b16 %v6234
      %v6429 = vunpack.c.h.b16 %v6234
      %v6430 = vunpack.c.l.b16 %v6235
      %v6431 = vunpack.c.h.b16 %v6235
      %v6432 = vunpack.c.l.b16 %v6236
      %v6433 = vunpack.c.h.b16 %v6236
      %v6434 = vunpack.c.l.b16 %v6237
      %v6435 = vunpack.c.h.b16 %v6237
      %v6436 = vpack.c.b16 %v6304, %v6304
      %v6437 = vpack.c.b16 %v6305, %v6305
      %v6438 = vpack.c.b16 %v6306, %v6306
      %v6439 = vpack.c.b16 %v6307, %v6307
      %v6440 = vpack.c.b16 %v6308, %v6308
      %v6441 = vpack.c.b16 %v6309, %v6309
      %v6442 = vpack.c.b16 %v6310, %v6310
      %v6443 = vpack.c.b16 %v6311, %v6311
      %v6444 = vpack.c.b16 %v6312, %v6312
      %v6445 = vpack.c.b16 %v6313, %v6313
      %v6446 = vpack.c.b16 %v6314, %v6314
      %v6447 = vpack.c.b16 %v6315, %v6315
      %v6448 = vpack.c.b16 %v6316, %v6316
      %v6449 = vpack.c.b16 %v6317, %v6317
      %v6450 = vpack.c.b16 %v6318, %v6318
      %v6451 = vpack.c.b16 %v6319, %v6319
      %v6452 = vpack.c.b16 %v6320, %v6320
      %v6453 = vpack.c.b16 %v6321, %v6321
      %v6454 = vpack.c.b16 %v6322, %v6322
      %v6455 = vpack.c.b16 %v6323, %v6323
      %v6456 = vpack.c.b16 %v6324, %v6324
      %v6457 = vpack.c.b16 %v6325, %v6325
      %v6458 = vpack.c.b16 %v6326, %v6326
      %v6459 = vpack.c.b16 %v6327, %v6327
      %v6460 = vpack.c.b16 %v6328, %v6328
      %v6461 = vpack.c.b16 %v6329, %v6329
      %v6462 = vpack.c.b16 %v6330, %v6330
      %v6463 = vpack.c.b16 %v6331, %v6331
      %v6464 = vpack.c.b16 %v6332, %v6332
      %v6465 = vpack.c.b16 %v6333, %v6333
      %v6466 = vpack.c.b16 %v6334, %v6334
      %v6467 = vpack.c.b16 %v6335, %v6335
      %v6468 = vpack.c.b16 %v6336, %v6336
      %v6469 = vpack.c.b16 %v6337, %v6337
      %v6470 = vpack.c.b16 %v6338, %v6338
      %v6471 = vpack.c.b16 %v6339, %v6339
      %v6472 = vpack.c.b16 %v6340, %v6340
      %v6473 = vpack.c.b16 %v6341, %v6341
      %v6474 = vpack.c.b16 %v6342, %v6342
      %v6475 = vpack.c.b16 %v6343, %v6343
      %v6476 = vpack.c.b16 %v6344, %v6344
      %v6477 = vpack.c.b16 %v6345, %v6345
      %v6478 = vpack.c.b16 %v6346, %v6346
      %v6479 = vpack.c.b16 %v6347, %v6347
      %v6480 = vpack.c.b16 %v6348, %v6348
      %v6481 = vpack.c.b16 %v6349, %v6349
      %v6482 = vpack.c.b16 %v6350, %v6350
      %v6483 = vpack.c.b16 %v6351, %v6351
      %v6484 = vpack.c.b16 %v6352, %v6352
      %v6485 = vpack.c.b16 %v6353, %v6353
      %v6486 = vpack.c.b16 %v6354, %v6354
      %v6487 = vpack.c.b16 %v6355, %v6355
      %v6488 = vpack.c.b16 %v6356, %v6356
      %v6489 = vpack.c.b16 %v6357, %v6357
      %v6490 = vpack.c.b16 %v6358, %v6358
      %v6491 = vpack.c.b16 %v6359, %v6359
      %v6492 = vpack.c.b16 %v6360, %v6360
      %v6493 = vpack.c.b16 %v6361, %v6361
      %v6494 = vpack.c.b16 %v6362, %v6362
      %v6495 = vpack.c.b16 %v6363, %v6363
      %v6496 = vpack.c.b16 %v6364, %v6364
      %v6497 = vpack.c.b16 %v6365, %v6365
      %v6498 = vpack.c.b16 %v6366, %v6366
      %v6499 = vpack.c.b16 %v6367, %v6367
      %v6500 = vpack.c.b16 %v6368, %v6368
      %v6501 = vpack.c.b16 %v6369, %v6369
      %v6502 = vpack.c.b16 %v6370, %v6370
      %v6503 = vpack.c.b16 %v6371, %v6371
      %v6504 = vpack.c.b16 %v6372, %v6372
      %v6505 = vpack.c.b16 %v6373, %v6373
      %v6506 = vpack.c.b16 %v6374, %v6374
      %v6507 = vpack.c.b16 %v6375, %v6375
      %v6508 = vpack.c.b16 %v6376, %v6376
      %v6509 = vpack.c.b16 %v6377, %v6377
      %v6510 = vpack.c.b16 %v6378, %v6378
      %v6511 = vpack.c.b16 %v6379, %v6379
      %v6512 = vpack.c.b16 %v6380, %v6380
      %v6513 = vpack.c.b16 %v6381, %v6381
      %v6514 = vpack.c.b16 %v6382, %v6382
      %v6515 = vpack.c.b16 %v6383, %v6383
      %v6516 = vpack.c.b16 %v6384, %v6384
      %v6517 = vpack.c.b16 %v6385, %v6385
      %v6518 = vpack.c.b16 %v6386, %v6386
      %v6519 = vpack.c.b16 %v6387, %v6387
      %v6520 = vpack.c.b16 %v6388, %v6388
      %v6521 = vpack.c.b16 %v6389, %v6389
      %v6522 = vpack.c.b16 %v6390, %v6390
      %v6523 = vpack.c.b16 %v6391, %v6391
      %v6524 = vpack.c.b16 %v6392, %v6392
      %v6525 = vpack.c.b16 %v6393, %v6393
      %v6526 = vpack.c.b16 %v6394, %v6394
      %v6527 = vpack.c.b16 %v6395, %v6395
      %v6528 = vpack.c.b16 %v6396, %v6396
      %v6529 = vpack.c.b16 %v6397, %v6397
      %v6530 = vpack.c.b16 %v6398, %v6398
      %v6531 = vpack.c.b16 %v6399, %v6399
      %v6532 = vpack.c.b16 %v6400, %v6400
      %v6533 = vpack.c.b16 %v6401, %v6401
      %v6534 = vpack.c.b16 %v6402, %v6402
      %v6535 = vpack.c.b16 %v6403, %v6403
      %v6536 = vpack.c.b16 %v6404, %v6404
      %v6537 = vpack.c.b16 %v6405, %v6405
      %v6538 = vpack.c.b16 %v6406, %v6406
      %v6539 = vpack.c.b16 %v6407, %v6407
      %v6540 = vpack.c.b16 %v6408, %v6408
      %v6541 = vpack.c.b16 %v6409, %v6409
      %v6542 = vpack.c.b16 %v6410, %v6410
      %v6543 = vpack.c.b16 %v6411, %v6411
      %v6544 = vpack.c.b16 %v6412, %v6412
      %v6545 = vpack.c.b16 %v6413, %v6413
      %v6546 = vpack.c.b16 %v6414, %v6414
      %v6547 = vpack.c.b16 %v6415, %v6415
      %v6548 = vpack.c.b16 %v6416, %v6416
      %v6549 = vpack.c.b16 %v6417, %v6417
      %v6550 = vpack.c.b16 %v6418, %v6418
      %v6551 = vpack.c.b16 %v6419, %v6419
      %v6552 = vpack.c.b16 %v6420, %v6420
      %v6553 = vpack.c.b16 %v6421, %v6421
      %v6554 = vpack.c.b16 %v6422, %v6422
      %v6555 = vpack.c.b16 %v6423, %v6423
      %v6556 = vpack.c.b16 %v6424, %v6424
      %v6557 = vpack.c.b16 %v6425, %v6425
      %v6558 = vpack.c.b16 %v6426, %v6426
      %v6559 = vpack.c.b16 %v6427, %v6427
      %v6560 = vpack.c.b16 %v6428, %v6428
      %v6561 = vpack.c.b16 %v6429, %v6429
      %v6562 = vpack.c.b16 %v6430, %v6430
      %v6563 = vpack.c.b16 %v6431, %v6431
      %v6564 = vpack.c.b16 %v6432, %v6432
      %v6565 = vpack.c.b16 %v6433, %v6433
      %v6566 = vpack.c.b16 %v6434, %v6434
      %v6567 = vpack.c.b16 %v6435, %v6435
      %6700 = vst [vmem:[%s221] sm:$0xf] %v6436
      %6701 = vst [vmem:[%s221 + $0x4] sm:$0xf] %v6437
      %6702 = vst [vmem:[%s221 + $0x8] sm:$0xf] %v6438
      %6703 = vst [vmem:[%s221 + $0xc] sm:$0xf] %v6439
      %6704 = vst [vmem:[%s221 + $0x10] sm:$0xf] %v6440
      %6705 = vst [vmem:[%s221 + $0x14] sm:$0xf] %v6441
      %6706 = vst [vmem:[%s221 + $0x18] sm:$0xf] %v6442
      %6707 = vst [vmem:[%s221 + $0x1c] sm:$0xf] %v6443
      %6708 = vst [vmem:[%s221 + $0x20] sm:$0xf] %v6444
      %6709 = vst [vmem:[%s221 + $0x24] sm:$0xf] %v6445
      %6710 = vst [vmem:[%s221 + $0x28] sm:$0xf] %v6446
      %6711 = vst [vmem:[%s221 + $0x2c] sm:$0xf] %v6447
      %6712 = vst [vmem:[%s221 + $0x30] sm:$0xf] %v6448
      %6713 = vst [vmem:[%s221 + $0x34] sm:$0xf] %v6449
      %6714 = vst [vmem:[%s221 + $0x38] sm:$0xf] %v6450
      %6715 = vst [vmem:[%s221 + $0x3c] sm:$0xf] %v6451
      %6716 = vst [vmem:[%s221 + $0x40] sm:$0xf] %v6452
      %6717 = vst [vmem:[%s221 + $0x44] sm:$0xf] %v6453
      %6718 = vst [vmem:[%s221 + $0x48] sm:$0xf] %v6454
      %6719 = vst [vmem:[%s221 + $0x4c] sm:$0xf] %v6455
      %6720 = vst [vmem:[%s221 + $0x50] sm:$0xf] %v6456
      %6721 = vst [vmem:[%s221 + $0x54] sm:$0xf] %v6457
      %6722 = vst [vmem:[%s221 + $0x58] sm:$0xf] %v6458
      %6723 = vst [vmem:[%s221 + $0x5c] sm:$0xf] %v6459
      %6724 = vst [vmem:[%s221 + $0x60] sm:$0xf] %v6460
      %6725 = vst [vmem:[%s221 + $0x64] sm:$0xf] %v6461
      %6726 = vst [vmem:[%s221 + $0x68] sm:$0xf] %v6462
      %6727 = vst [vmem:[%s221 + $0x6c] sm:$0xf] %v6463
      %6728 = vst [vmem:[%s221 + $0x70] sm:$0xf] %v6464
      %6729 = vst [vmem:[%s221 + $0x74] sm:$0xf] %v6465
      %6730 = vst [vmem:[%s221 + $0x78] sm:$0xf] %v6466
      %6731 = vst [vmem:[%s221 + $0x7c] sm:$0xf] %v6467
      %6732 = vst [vmem:[%s221 + $0x80] sm:$0xf] %v6468
      %6733 = vst [vmem:[%s221 + $0x84] sm:$0xf] %v6469
      %6734 = vst [vmem:[%s221 + $0x88] sm:$0xf] %v6470
      %6735 = vst [vmem:[%s221 + $0x8c] sm:$0xf] %v6471
      %6736 = vst [vmem:[%s221 + $0x90] sm:$0xf] %v6472
      %6737 = vst [vmem:[%s221 + $0x94] sm:$0xf] %v6473
      %6738 = vst [vmem:[%s221 + $0x98] sm:$0xf] %v6474
      %6739 = vst [vmem:[%s221 + $0x9c] sm:$0xf] %v6475
      %6740 = vst [vmem:[%s221 + $0xa0] sm:$0xf] %v6476
      %6741 = vst [vmem:[%s221 + $0xa4] sm:$0xf] %v6477
      %6742 = vst [vmem:[%s221 + $0xa8] sm:$0xf] %v6478
      %6743 = vst [vmem:[%s221 + $0xac] sm:$0xf] %v6479
      %6744 = vst [vmem:[%s221 + $0xb0] sm:$0xf] %v6480
      %6745 = vst [vmem:[%s221 + $0xb4] sm:$0xf] %v6481
      %6746 = vst [vmem:[%s221 + $0xb8] sm:$0xf] %v6482
      %6747 = vst [vmem:[%s221 + $0xbc] sm:$0xf] %v6483
      %6748 = vst [vmem:[%s221 + $0xc0] sm:$0xf] %v6484
      %6749 = vst [vmem:[%s221 + $0xc4] sm:$0xf] %v6485
      %6750 = vst [vmem:[%s221 + $0xc8] sm:$0xf] %v6486
      %6751 = vst [vmem:[%s221 + $0xcc] sm:$0xf] %v6487
      %6752 = vst [vmem:[%s221 + $0xd0] sm:$0xf] %v6488
      %6753 = vst [vmem:[%s221 + $0xd4] sm:$0xf] %v6489
      %6754 = vst [vmem:[%s221 + $0xd8] sm:$0xf] %v6490
      %6755 = vst [vmem:[%s221 + $0xdc] sm:$0xf] %v6491
      %6756 = vst [vmem:[%s221 + $0xe0] sm:$0xf] %v6492
      %6757 = vst [vmem:[%s221 + $0xe4] sm:$0xf] %v6493
      %6758 = vst [vmem:[%s221 + $0xe8] sm:$0xf] %v6494
      %6759 = vst [vmem:[%s221 + $0xec] sm:$0xf] %v6495
      %6760 = vst [vmem:[%s221 + $0xf0] sm:$0xf] %v6496
      %6761 = vst [vmem:[%s221 + $0xf4] sm:$0xf] %v6497
      %6762 = vst [vmem:[%s221 + $0xf8] sm:$0xf] %v6498
      %6763 = vst [vmem:[%s221 + $0xfc] sm:$0xf] %v6499
      %6764 = vst [vmem:[%s221 + $0x100] sm:$0xf] %v6500
      %6765 = vst [vmem:[%s221 + $0x104] sm:$0xf] %v6501
      %6766 = vst [vmem:[%s221 + $0x108] sm:$0xf] %v6502
      %6767 = vst [vmem:[%s221 + $0x10c] sm:$0xf] %v6503
      %6768 = vst [vmem:[%s221 + $0x110] sm:$0xf] %v6504
      %6769 = vst [vmem:[%s221 + $0x114] sm:$0xf] %v6505
      %6770 = vst [vmem:[%s221 + $0x118] sm:$0xf] %v6506
      %6771 = vst [vmem:[%s221 + $0x11c] sm:$0xf] %v6507
      %6772 = vst [vmem:[%s221 + $0x120] sm:$0xf] %v6508
      %6773 = vst [vmem:[%s221 + $0x124] sm:$0xf] %v6509
      %6774 = vst [vmem:[%s221 + $0x128] sm:$0xf] %v6510
      %6775 = vst [vmem:[%s221 + $0x12c] sm:$0xf] %v6511
      %6776 = vst [vmem:[%s221 + $0x130] sm:$0xf] %v6512
      %6777 = vst [vmem:[%s221 + $0x134] sm:$0xf] %v6513
      %6778 = vst [vmem:[%s221 + $0x138] sm:$0xf] %v6514
      %6779 = vst [vmem:[%s221 + $0x13c] sm:$0xf] %v6515
      %6780 = vst [vmem:[%s221 + $0x140] sm:$0xf] %v6516
      %6781 = vst [vmem:[%s221 + $0x144] sm:$0xf] %v6517
      %6782 = vst [vmem:[%s221 + $0x148] sm:$0xf] %v6518
      %6783 = vst [vmem:[%s221 + $0x14c] sm:$0xf] %v6519
      %6784 = vst [vmem:[%s221 + $0x150] sm:$0xf] %v6520
      %6785 = vst [vmem:[%s221 + $0x154] sm:$0xf] %v6521
      %6786 = vst [vmem:[%s221 + $0x158] sm:$0xf] %v6522
      %6787 = vst [vmem:[%s221 + $0x15c] sm:$0xf] %v6523
      %6788 = vst [vmem:[%s221 + $0x160] sm:$0xf] %v6524
      %6789 = vst [vmem:[%s221 + $0x164] sm:$0xf] %v6525
      %6790 = vst [vmem:[%s221 + $0x168] sm:$0xf] %v6526
      %6791 = vst [vmem:[%s221 + $0x16c] sm:$0xf] %v6527
      %6792 = vst [vmem:[%s221 + $0x170] sm:$0xf] %v6528
      %6793 = vst [vmem:[%s221 + $0x174] sm:$0xf] %v6529
      %6794 = vst [vmem:[%s221 + $0x178] sm:$0xf] %v6530
      %6795 = vst [vmem:[%s221 + $0x17c] sm:$0xf] %v6531
      %6796 = vst [vmem:[%s221 + $0x180] sm:$0xf] %v6532
      %6797 = vst [vmem:[%s221 + $0x184] sm:$0xf] %v6533
      %6798 = vst [vmem:[%s221 + $0x188] sm:$0xf] %v6534
      %6799 = vst [vmem:[%s221 + $0x18c] sm:$0xf] %v6535
      %6800 = vst [vmem:[%s221 + $0x190] sm:$0xf] %v6536
      %6801 = vst [vmem:[%s221 + $0x194] sm:$0xf] %v6537
      %6802 = vst [vmem:[%s221 + $0x198] sm:$0xf] %v6538
      %6803 = vst [vmem:[%s221 + $0x19c] sm:$0xf] %v6539
      %6804 = vst [vmem:[%s221 + $0x1a0] sm:$0xf] %v6540
      %6805 = vst [vmem:[%s221 + $0x1a4] sm:$0xf] %v6541
      %6806 = vst [vmem:[%s221 + $0x1a8] sm:$0xf] %v6542
      %6807 = vst [vmem:[%s221 + $0x1ac] sm:$0xf] %v6543
      %6808 = vst [vmem:[%s221 + $0x1b0] sm:$0xf] %v6544
      %6809 = vst [vmem:[%s221 + $0x1b4] sm:$0xf] %v6545
      %6810 = vst [vmem:[%s221 + $0x1b8] sm:$0xf] %v6546
      %6811 = vst [vmem:[%s221 + $0x1bc] sm:$0xf] %v6547
      %6812 = vst [vmem:[%s221 + $0x1c0] sm:$0xf] %v6548
      %6813 = vst [vmem:[%s221 + $0x1c4] sm:$0xf] %v6549
      %6814 = vst [vmem:[%s221 + $0x1c8] sm:$0xf] %v6550
      %6815 = vst [vmem:[%s221 + $0x1cc] sm:$0xf] %v6551
      %6816 = vst [vmem:[%s221 + $0x1d0] sm:$0xf] %v6552
      %6817 = vst [vmem:[%s221 + $0x1d4] sm:$0xf] %v6553
      %6818 = vst [vmem:[%s221 + $0x1d8] sm:$0xf] %v6554
      %6819 = vst [vmem:[%s221 + $0x1dc] sm:$0xf] %v6555
      %6820 = vst [vmem:[%s221 + $0x1e0] sm:$0xf] %v6556
      %6821 = vst [vmem:[%s221 + $0x1e4] sm:$0xf] %v6557
      %6822 = vst [vmem:[%s221 + $0x1e8] sm:$0xf] %v6558
      %6823 = vst [vmem:[%s221 + $0x1ec] sm:$0xf] %v6559
      %6824 = vst [vmem:[%s221 + $0x1f0] sm:$0xf] %v6560
      %6825 = vst [vmem:[%s221 + $0x1f4] sm:$0xf] %v6561
      %6826 = vst [vmem:[%s221 + $0x1f8] sm:$0xf] %v6562
      %6827 = vst [vmem:[%s221 + $0x1fc] sm:$0xf] %v6563
      %6828 = vst [vmem:[%s221 + $0x200] sm:$0xf] %v6564
      %6829 = vst [vmem:[%s221 + $0x204] sm:$0xf] %v6565
      %6830 = vst [vmem:[%s221 + $0x208] sm:$0xf] %v6566
      %6831 = vst [vmem:[%s221 + $0x20c] sm:$0xf] %v6567
      %p6832 = scmp.lt.s32.totalorder %s19, 1
      %s6833 = scalar_select %p6832, %s19, 1
      %p6834 = scmp.lt.s32.totalorder %s18, 0
      %s6835 = scalar_select %p6834, %s18, 0
      %s6836 = smul.addr %s6833, 132
      %s6837 = sadd.s32 %s6835, %s6836
      %s6838 = smul.addr %s6837, 4
      %s6839 = scalar_lea.vmem %s3, %s6838
      // Predicated region
      $region33: #{d_net128_forward.6} parent=31 // pred_check
        %p6840 = pneg %p124
      $region34: #{d_net128_forward.6} parent=31 // pred_check_branch
        %6842 = sbr.rel (%p6840) target = $region36
      $region35: #{d_net128_forward.6} parent=31 // pred_region
        _
      $region36: #{d_net128_forward.6} parent=31 // pred_fallthru
        _
    $region32: #{d_net128_forward.6} parent=5 // pred_fallthru
      _
    %p6843 = scmp.le.s32.totalorder 2, %s9
    // Predicated region
    $region37: #{d_net128_forward.6} parent=5 // pred_check
      %p6844 = pneg %p6843
    $region38: #{d_net128_forward.6} parent=5 // pred_check_branch
      %6846 = sbr.rel (%p6844) target = $region40
    $region39: #{d_net128_forward.6} parent=5 // pred_region
      %s6847 = ssub.s32 %s9, 2
      // Predicated region
      $region41: #{d_net128_forward.6} parent=39 // pred_check
        %p6848 = pneg %p130
      $region42: #{d_net128_forward.6} parent=39 // pred_check_branch
        %6850 = sbr.rel (%p6848) target = $region44
      $region43: #{d_net128_forward.6} parent=39 // pred_region
        %p6851 = scmp.lt.s32.totalorder %s21, 1
        %s6852 = scalar_select %p6851, %s21, 1
        %p6853 = scmp.lt.s32.totalorder %s20, 0
        %s6854 = scalar_select %p6853, %s20, 0
        %s6855 = smul.addr %s6852, 132
        %s6856 = sadd.s32 %s6854, %s6855
        %s6857 = smul.addr %s6856, 4
        %s6858 = scalar_lea.vmem %s3, %s6857
      $region44: #{d_net128_forward.6} parent=39 // pred_fallthru
        _
    $region40: #{d_net128_forward.6} parent=5 // pred_fallthru
      _
  $region6: #{d_net128_forward.6} parent=0 // loop_footer
    %s13 = sadd.s32 1, %s9
  $region7: #{d_net128_forward.6} parent=0 // loop_footer_branch
    %8 = sbr.rel target = $region3
  $region8: #{d_net128_forward.6} parent=0 // loop_exit
    _

// kernel: d_net128_forward.7
$region0: #{d_net128_forward.7}
  #allocation0 [shape = 'u32[]', space=smem, size = 0x4, offset = 0x4, fixed_abs, tag = 'smem constant byte address 0x4 - core index']
  #allocation1 [shape = 'u32[144,128]{1,0:T(1,128)}', space=vmem, size = 0x12000, scoped, tag = 'internal scratch']
  %s0 = inlined_call_operand.vmem [shape: bf16[2,306,32], index: 0, kind: input, shape index: {}]
  %s1 = inlined_call_operand.vmem [shape: bf16[4,32,128], index: 1, kind: input, shape index: {}]
  %s2 = inlined_call_operand.vmem [shape: f32[1,128], index: 2, kind: input, shape index: {}]
  %s3 = inlined_call_operand.vmem [shape: bf16[2,272,128], index: 3, kind: output, shape index: {}]
  %s4 = sld [smem:[#allocation0]]
  $region45: #{d_net128_forward.7} parent=0
    _
  %s6 = ssub.s32 1, %s4
  %s7 = scalar_select 0, %s6, %s4
  loop: start=0, step=1, limit=4
  $region2: #{d_net128_forward.7} parent=0 // loop_pre_header
    _
  $region3: #{d_net128_forward.7} parent=0 // loop_header
    %s9 = sphi 0, %s13
    %p10 = scmp.ge.s32.totalorder %s9, 4
    %s16 = sphi 0, %s28
    %s17 = sphi 0, %s24
    %s18 = sphi 0, %s16
    %s19 = sphi 0, %s17
    %s20 = sphi 0, %s18
    %s21 = sphi 0, %s19
    %s31 = sphi 0, %s33
    %s34 = sphi 0, %s31
    %s35 = sphi 0, %s34
    %s51 = sphi 0, %s35
    %s57 = sphi 0, %s59
    %s60 = sphi 0, %s57
    %s61 = sphi 0, %s60
    %s77 = sphi 0, %s61
    %s83 = sphi 0, %s85
    %s86 = sphi 0, %s83
    %s87 = sphi 0, %s86
    %s103 = sphi 0, %s87
    %s111 = sphi 0, %s113
    %s114 = sphi 0, %s111
    %s115 = sphi 0, %s114
    %s131 = sphi 0, %s115
  $region4: #{d_net128_forward.7} parent=0 // loop_header_branch
    %12 = sbr.rel (%p10) target = $region8
  $region5: #{d_net128_forward.7} parent=0 // loop_body
    %s14 = ssub.s32 %s9, 1
    %s15 = ssub.s32 %s9, 2
    %s22 = sadd.s32 1, %s17
    %p23 = scmp.ge.s32.totalorder %s22, 2
    %s24 = scalar_select %p23, 0, %s22
    %s25 = sadd.s32 1, %s16
    %s26 = scalar_select %p23, %s25, %s16
    %p27 = scmp.ge.s32.totalorder %s26, 1
    %s28 = scalar_select %p27, 0, %s26
    %s29 = ssub.s32 %s17, %s24
    %p30 = scmp.eq.s32.totalorder %s29, 0
    %s32 = sadd.s32 %s31, 1
    %s33 = scalar_select %p30, %s31, %s32
    %p36 = pneg %p30
    %p37 = scmp.eq.s32.totalorder %s9, 1
    %p38 = por %p36, %p37
    %p39 = scmp.ne.s32.totalorder %s31, %s34
    %p40 = scmp.eq.s32.totalorder %s9, 0
    %p41 = por %p39, %p40
    %p42 = scmp.ne.s32.totalorder %s31, %s34
    %p43 = scmp.eq.s32.totalorder %s14, 1
    %p44 = por %p42, %p43
    %p45 = scmp.ne.s32.totalorder %s34, %s35
    %p46 = scmp.eq.s32.totalorder %s14, 0
    %p47 = por %p45, %p46
    %p48 = scmp.ne.s32.totalorder %s34, %s35
    %p49 = scmp.eq.s32.totalorder %s15, 1
    %p50 = por %p48, %p49
    %p52 = scmp.ne.s32.totalorder %s35, %s51
    %p53 = scmp.eq.s32.totalorder %s15, 0
    %p54 = por %p52, %p53
    %s55 = ssub.s32 %s16, %s28
    %p56 = scmp.eq.s32.totalorder %s55, 0
    %s58 = sadd.s32 %s57, 1
    %s59 = scalar_select %p56, %s57, %s58
    %p62 = pneg %p56
    %p63 = scmp.eq.s32.totalorder %s9, 1
    %p64 = por %p62, %p63
    %p65 = scmp.ne.s32.totalorder %s57, %s60
    %p66 = scmp.eq.s32.totalorder %s9, 0
    %p67 = por %p65, %p66
    %p68 = scmp.ne.s32.totalorder %s57, %s60
    %p69 = scmp.eq.s32.totalorder %s14, 1
    %p70 = por %p68, %p69
    %p71 = scmp.ne.s32.totalorder %s60, %s61
    %p72 = scmp.eq.s32.totalorder %s14, 0
    %p73 = por %p71, %p72
    %p74 = scmp.ne.s32.totalorder %s60, %s61
    %p75 = scmp.eq.s32.totalorder %s15, 1
    %p76 = por %p74, %p75
    %p78 = scmp.ne.s32.totalorder %s61, %s77
    %p79 = scmp.eq.s32.totalorder %s15, 0
    %p80 = por %p78, %p79
    %s81 = ssub.s32 %s16, %s28
    %p82 = scmp.eq.s32.totalorder %s81, 0
    %s84 = sadd.s32 %s83, 1
    %s85 = scalar_select %p82, %s83, %s84
    %p88 = pneg %p82
    %p89 = scmp.eq.s32.totalorder %s9, 1
    %p90 = por %p88, %p89
    %p91 = scmp.ne.s32.totalorder %s83, %s86
    %p92 = scmp.eq.s32.totalorder %s9, 0
    %p93 = por %p91, %p92
    %p94 = scmp.ne.s32.totalorder %s83, %s86
    %p95 = scmp.eq.s32.totalorder %s14, 1
    %p96 = por %p94, %p95
    %p97 = scmp.ne.s32.totalorder %s86, %s87
    %p98 = scmp.eq.s32.totalorder %s14, 0
    %p99 = por %p97, %p98
    %p100 = scmp.ne.s32.totalorder %s86, %s87
    %p101 = scmp.eq.s32.totalorder %s15, 1
    %p102 = por %p100, %p101
    %p104 = scmp.ne.s32.totalorder %s87, %s103
    %p105 = scmp.eq.s32.totalorder %s15, 0
    %p106 = por %p104, %p105
    %s107 = ssub.s32 %s17, %s24
    %s108 = ssub.s32 %s16, %s28
    %s109 = sor.u32 %s107, %s108
    %p110 = scmp.eq.s32.totalorder %s109, 0
    %s112 = sadd.s32 %s111, 1
    %s113 = scalar_select %p110, %s111, %s112
    %p116 = pneg %p110
    %p117 = scmp.eq.s32.totalorder %s9, 1
    %p118 = por %p116, %p117
    %p119 = scmp.ne.s32.totalorder %s111, %s114
    %p120 = scmp.eq.s32.totalorder %s9, 0
    %p121 = por %p119, %p120
    %p122 = scmp.ne.s32.totalorder %s111, %s114
    %p123 = scmp.eq.s32.totalorder %s14, 1
    %p124 = por %p122, %p123
    %p125 = scmp.ne.s32.totalorder %s114, %s115
    %p126 = scmp.eq.s32.totalorder %s14, 0
    %p127 = por %p125, %p126
    %p128 = scmp.ne.s32.totalorder %s114, %s115
    %p129 = scmp.eq.s32.totalorder %s15, 1
    %p130 = por %p128, %p129
    %p132 = scmp.ne.s32.totalorder %s115, %s131
    %p133 = scmp.eq.s32.totalorder %s15, 0
    %p134 = por %p132, %p133
    %p135 = scmp.le.s32.totalorder 1, %s9
    %p136 = scmp.lt.s32.totalorder %s9, 3
    %p137 = pnand %p135, %p136
    %p138 = pneg %p137
    // Predicated region
    $region9: #{d_net128_forward.7} parent=5 // pred_check
      _
    $region10: #{d_net128_forward.7} parent=5 // pred_check_branch
      %140 = sbr.rel (%p137) target = $region12
    $region11: #{d_net128_forward.7} parent=5 // pred_region
      %s141 = ssub.s32 %s9, 1
      // Predicated region
      $region13: #{d_net128_forward.7} parent=11 // pred_check
        %p142 = pneg %p73
      $region14: #{d_net128_forward.7} parent=11 // pred_check_branch
        %144 = sbr.rel (%p142) target = $region16
      $region15: #{d_net128_forward.7} parent=11 // pred_region
        %p145 = scmp.lt.s32.totalorder %s18, 0
        %s146 = scalar_select %p145, %s18, 0
        %s147 = smul.addr %s146, 4
        %s148 = scalar_lea.vmem %s1, %s147
      $region16: #{d_net128_forward.7} parent=11 // pred_fallthru
        _
      // Predicated region
      $region17: #{d_net128_forward.7} parent=11 // pred_check
        %p149 = pneg %p99
      $region18: #{d_net128_forward.7} parent=11 // pred_check_branch
        %151 = sbr.rel (%p149) target = $region20
      $region19: #{d_net128_forward.7} parent=11 // pred_region
        %p152 = scmp.lt.s32.totalorder %s18, 0
        %s153 = scalar_select %p152, %s18, 0
        %s154 = scalar_lea.vmem %s2, %s153
      $region20: #{d_net128_forward.7} parent=11 // pred_fallthru
        _
    $region12: #{d_net128_forward.7} parent=5 // pred_fallthru
      _
    %p155 = scmp.lt.s32.totalorder %s9, 2
    // Predicated region
    $region21: #{d_net128_forward.7} parent=5 // pred_check
      %p156 = pneg %p155
    $region22: #{d_net128_forward.7} parent=5 // pred_check_branch
      %158 = sbr.rel (%p156) target = $region24
    $region23: #{d_net128_forward.7} parent=5 // pred_region
      // Predicated region
      $region25: #{d_net128_forward.7} parent=23 // pred_check
        %p159 = pneg %p41
      $region26: #{d_net128_forward.7} parent=23 // pred_check_branch
        %161 = sbr.rel (%p159) target = $region28
      $region27: #{d_net128_forward.7} parent=23 // pred_region
        %p162 = scmp.lt.s32.totalorder %s17, 1
        %s163 = scalar_select %p162, %s17, 1
        %s164 = smul.addr %s163, 39
        %s165 = smul.addr %s164, 4
        %s166 = scalar_lea.vmem %s0, %s165
      $region28: #{d_net128_forward.7} parent=23 // pred_fallthru
        _
    $region24: #{d_net128_forward.7} parent=5 // pred_fallthru
      _
    %p167 = scmp.le.s32.totalorder 1, %s9
    %p168 = scmp.lt.s32.totalorder %s9, 3
    %p169 = pnand %p167, %p168
    %p170 = pneg %p169
    // Predicated region
    $region29: #{d_net128_forward.7} parent=5 // pred_check
      _
    $region30: #{d_net128_forward.7} parent=5 // pred_check_branch
      %172 = sbr.rel (%p169) target = $region32
    $region31: #{d_net128_forward.7} parent=5 // pred_region
      %s173 = ssub.s32 %s9, 1
      %p174 = scmp.lt.s32.totalorder %s19, 1
      %s175 = scalar_select %p174, %s19, 1
      %s176 = smul.addr %s175, 39
      %s177 = smul.addr %s176, 4
      %s178 = scalar_lea.vmem %s0, %s177
      %p179 = pneg %p47
      %p180 = pneg %p44
      %p181 = scmp.lt.s32.totalorder %s18, 0
      %s182 = scalar_select %p181, %s18, 0
      %s183 = smul.addr %s182, 4
      %s184 = scalar_lea.vmem %s1, %s183
      %p185 = pneg %p73
      %p186 = pneg %p70
      %p187 = scmp.lt.s32.totalorder %s18, 0
      %s188 = scalar_select %p187, %s18, 0
      %s189 = scalar_lea.vmem %s2, %s188
      %p190 = pneg %p99
      %p191 = pneg %p96
      %p192 = pneg %p127
      %p193 = pneg %p124
      %p194 = scmp.lt.s32.totalorder %s19, 1
      %s195 = scalar_select %p194, %s19, 1
      %p196 = scmp.lt.s32.totalorder %s18, 0
      %s197 = scalar_select %p196, %s18, 0
      %s198 = smul.addr %s195, 34
      %s199 = sadd.s32 %s197, %s198
      %s200 = smul.addr %s199, 4
      %s201 = scalar_lea.vmem %s3, %s200
      %p202 = scmp.lt.s32.totalorder %s19, 1
      %s203 = scalar_select %p202, %s19, 1
      %s204 = smul.addr %s203, 39
      %s205 = smul.addr %s204, 4
      %s206 = scalar_lea.vmem %s0, %s205
      %p207 = scmp.lt.s32.totalorder %s18, 0
      %s208 = scalar_select %p207, %s18, 0
      %s209 = smul.addr %s208, 4
      %s210 = scalar_lea.vmem %s1, %s209
      %p211 = scmp.lt.s32.totalorder %s18, 0
      %s212 = scalar_select %p211, %s18, 0
      %s213 = scalar_lea.vmem %s2, %s212
      %p214 = scmp.lt.s32.totalorder %s19, 1
      %s215 = scalar_select %p214, %s19, 1
      %p216 = scmp.lt.s32.totalorder %s18, 0
      %s217 = scalar_select %p216, %s18, 0
      %s218 = smul.addr %s215, 34
      %s219 = sadd.s32 %s217, %s218
      %s220 = smul.addr %s219, 4
      %s221 = scalar_lea.vmem %s3, %s220
      %v223 = vld [vmem:[%s206] sm:$0xf]
      %v224 = vld [vmem:[%s206 + $0x4] sm:$0xf]
      %v225 = vld [vmem:[%s206 + $0x8] sm:$0xf]
      %v226 = vld [vmem:[%s206 + $0xc] sm:$0xf]
      %v227 = vld [vmem:[%s206 + $0x10] sm:$0xf]
      %v228 = vld [vmem:[%s206 + $0x14] sm:$0xf]
      %v229 = vld [vmem:[%s206 + $0x18] sm:$0xf]
      %v230 = vld [vmem:[%s206 + $0x1c] sm:$0xf]
      %v231 = vld [vmem:[%s206 + $0x20] sm:$0xf]
      %v232 = vld [vmem:[%s206 + $0x24] sm:$0xf]
      %v233 = vld [vmem:[%s206 + $0x28] sm:$0xf]
      %v234 = vld [vmem:[%s206 + $0x2c] sm:$0xf]
      %v235 = vld [vmem:[%s206 + $0x30] sm:$0xf]
      %v236 = vld [vmem:[%s206 + $0x34] sm:$0xf]
      %v237 = vld [vmem:[%s206 + $0x38] sm:$0xf]
      %v238 = vld [vmem:[%s206 + $0x3c] sm:$0xf]
      %v239 = vld [vmem:[%s206 + $0x40] sm:$0xf]
      %v240 = vld [vmem:[%s206 + $0x44] sm:$0xf]
      %v241 = vld [vmem:[%s206 + $0x48] sm:$0xf]
      %v242 = vld [vmem:[%s206 + $0x4c] sm:$0xf]
      %v243 = vld [vmem:[%s206 + $0x50] sm:$0xf]
      %v244 = vld [vmem:[%s206 + $0x54] sm:$0xf]
      %v245 = vld [vmem:[%s206 + $0x58] sm:$0xf]
      %v246 = vld [vmem:[%s206 + $0x5c] sm:$0xf]
      %v247 = vld [vmem:[%s206 + $0x60] sm:$0xf]
      %v248 = vld [vmem:[%s206 + $0x64] sm:$0xf]
      %v249 = vld [vmem:[%s206 + $0x68] sm:$0xf]
      %v250 = vld [vmem:[%s206 + $0x6c] sm:$0xf]
      %v251 = vld [vmem:[%s206 + $0x70] sm:$0xf]
      %v252 = vld [vmem:[%s206 + $0x74] sm:$0xf]
      %v253 = vld [vmem:[%s206 + $0x78] sm:$0xf]
      %v254 = vld [vmem:[%s206 + $0x7c] sm:$0xf]
      %v255 = vld [vmem:[%s206 + $0x80] sm:$0xf]
      %v256 = vld [vmem:[%s206 + $0x84] sm:$0xf]
      %v257 = vld [vmem:[%s210] sm:$0xf]
      %v258 = vld [vmem:[%s210 + $0x4] sm:$0xf]
      %v259 = vld [vmem:[%s210 + $0x8] sm:$0xf]
      %v260 = vld [vmem:[%s210 + $0xc] sm:$0xf]
      %v261 = vld [vmem:[%s206 + $0x88] sm:$0x1]
      %s262 = scalar_lea.vmem %s210, 16
      %v263 = vld [vmem:[%s262] sm:$0xf]
      %v264 = vld [vmem:[%s262 + $0x4] sm:$0xf]
      %v265 = vld [vmem:[%s262 + $0x8] sm:$0xf]
      %v266 = vld [vmem:[%s262 + $0xc] sm:$0xf]
      %v302 = vunpack.c.l.b16 %v223
      %v303 = vunpack.c.l.b16 %v224
      %v304 = vunpack.c.l.b16 %v225
      %v305 = vunpack.c.l.b16 %v226
      %v306 = vunpack.c.l.b16 %v227
      %v307 = vunpack.c.l.b16 %v228
      %v308 = vunpack.c.l.b16 %v229
      %v309 = vunpack.c.l.b16 %v230
      %v310 = vunpack.c.l.b16 %v231
      %v311 = vunpack.c.l.b16 %v232
      %v312 = vunpack.c.l.b16 %v233
      %v313 = vunpack.c.l.b16 %v234
      %v314 = vunpack.c.l.b16 %v235
      %v315 = vunpack.c.l.b16 %v236
      %v316 = vunpack.c.l.b16 %v237
      %v317 = vunpack.c.l.b16 %v238
      %v318 = vunpack.c.l.b16 %v239
      %v319 = vunpack.c.l.b16 %v240
      %v320 = vunpack.c.l.b16 %v241
      %v321 = vunpack.c.l.b16 %v242
      %v322 = vunpack.c.l.b16 %v243
      %v323 = vunpack.c.l.b16 %v244
      %v324 = vunpack.c.l.b16 %v245
      %v325 = vunpack.c.l.b16 %v246
      %v326 = vunpack.c.l.b16 %v247
      %v327 = vunpack.c.l.b16 %v248
      %v328 = vunpack.c.l.b16 %v249
      %v329 = vunpack.c.l.b16 %v250
      %v330 = vunpack.c.l.b16 %v251
      %v331 = vunpack.c.l.b16 %v252
      %v332 = vunpack.c.l.b16 %v253
      %v333 = vunpack.c.l.b16 %v254
      %v334 = vunpack.c.l.b16 %v255
      %v335 = vunpack.c.l.b16 %v256
      %v336 = vunpack.c.l.b16 %v261
      %v337 = vpack.c.b16 %v303, %v302
      %v338 = vpack.c.b16 %v305, %v304
      %v339 = vpack.c.b16 %v307, %v306
      %v340 = vpack.c.b16 %v309, %v308
      %v341 = vpack.c.b16 %v311, %v310
      %v342 = vpack.c.b16 %v313, %v312
      %v343 = vpack.c.b16 %v315, %v314
      %v344 = vpack.c.b16 %v317, %v316
      %v345 = vpack.c.b16 %v319, %v318
      %v346 = vpack.c.b16 %v321, %v320
      %v347 = vpack.c.b16 %v323, %v322
      %v348 = vpack.c.b16 %v325, %v324
      %v349 = vpack.c.b16 %v327, %v326
      %v350 = vpack.c.b16 %v329, %v328
      %v351 = vpack.c.b16 %v331, %v330
      %v352 = vpack.c.b16 %v333, %v332
      %v353 = vpack.c.b16 %v335, %v334
      %v354 = vpack.c.b16 %v336, %v336
      %vm355 = vsmask.f32 7424
      %v357 = vshrl.u32 %v337, 16
      %v359 = vshll.u32 %v337, 16
      %v361 = vrot.slane %v359, 1
      %v362 = vor.u32 %v357, %v361
      %v364 = vshll.u32 %v338, 16
      %v366 = vrot.slane %v364, 1
      %v367 = vsel %vm355, %v362, %v366
      %v368 = vshrl.u32 %v338, 16
      %v370 = vor.u32 %v368, %v366
      %v372 = vshll.u32 %v339, 16
      %v374 = vrot.slane %v372, 1
      %v375 = vsel %vm355, %v370, %v374
      %v376 = vshrl.u32 %v339, 16
      %v378 = vor.u32 %v376, %v374
      %v380 = vshll.u32 %v340, 16
      %v382 = vrot.slane %v380, 1
      %v383 = vsel %vm355, %v378, %v382
      %v384 = vshrl.u32 %v340, 16
      %v386 = vor.u32 %v384, %v382
      %v388 = vshll.u32 %v341, 16
      %v390 = vrot.slane %v388, 1
      %v391 = vsel %vm355, %v386, %v390
      %v392 = vshrl.u32 %v341, 16
      %v394 = vor.u32 %v392, %v390
      %v396 = vshll.u32 %v342, 16
      %v398 = vrot.slane %v396, 1
      %v399 = vsel %vm355, %v394, %v398
      %v400 = vshrl.u32 %v342, 16
      %v402 = vor.u32 %v400, %v398
      %v404 = vshll.u32 %v343, 16
      %v406 = vrot.slane %v404, 1
      %v407 = vsel %vm355, %v402, %v406
      %v408 = vshrl.u32 %v343, 16
      %v410 = vor.u32 %v408, %v406
      %v412 = vshll.u32 %v344, 16
      %v414 = vrot.slane %v412, 1
      %v415 = vsel %vm355, %v410, %v414
      %v416 = vshrl.u32 %v344, 16
      %v418 = vor.u32 %v416, %v414
      %v420 = vshll.u32 %v345, 16
      %v422 = vrot.slane %v420, 1
      %v423 = vsel %vm355, %v418, %v422
      %v424 = vshrl.u32 %v345, 16
      %v426 = vor.u32 %v424, %v422
      %v428 = vshll.u32 %v346, 16
      %v430 = vrot.slane %v428, 1
      %v431 = vsel %vm355, %v426, %v430
      %v432 = vshrl.u32 %v346, 16
      %v434 = vor.u32 %v432, %v430
      %v436 = vshll.u32 %v347, 16
      %v438 = vrot.slane %v436, 1
      %v439 = vsel %vm355, %v434, %v438
      %v440 = vshrl.u32 %v347, 16
      %v442 = vor.u32 %v440, %v438
      %v444 = vshll.u32 %v348, 16
      %v446 = vrot.slane %v444, 1
      %v447 = vsel %vm355, %v442, %v446
      %v448 = vshrl.u32 %v348, 16
      %v450 = vor.u32 %v448, %v446
      %v452 = vshll.u32 %v349, 16
      %v454 = vrot.slane %v452, 1
      %v455 = vsel %vm355, %v450, %v454
      %v456 = vshrl.u32 %v349, 16
      %v458 = vor.u32 %v456, %v454
      %v460 = vshll.u32 %v350, 16
      %v462 = vrot.slane %v460, 1
      %v463 = vsel %vm355, %v458, %v462
      %v464 = vshrl.u32 %v350, 16
      %v466 = vor.u32 %v464, %v462
      %v468 = vshll.u32 %v351, 16
      %v470 = vrot.slane %v468, 1
      %v471 = vsel %vm355, %v466, %v470
      %v472 = vshrl.u32 %v351, 16
      %v474 = vor.u32 %v472, %v470
      %v476 = vshll.u32 %v352, 16
      %v478 = vrot.slane %v476, 1
      %v479 = vsel %vm355, %v474, %v478
      %v480 = vshrl.u32 %v352, 16
      %v482 = vor.u32 %v480, %v478
      %v484 = vshll.u32 %v353, 16
      %v486 = vrot.slane %v484, 1
      %v487 = vsel %vm355, %v482, %v486
      %v488 = vshrl.u32 %v353, 16
      %v490 = vor.u32 %v488, %v486
      %v492 = vshll.u32 %v354, 16
      %v494 = vrot.slane %v492, 1
      %v495 = vsel %vm355, %v490, %v494
      %v500 = vunpack.c.l.b16 %v263
      %v501 = vunpack.c.l.b16 %v264
      %v502 = vunpack.c.l.b16 %v265
      %v503 = vunpack.c.l.b16 %v266
      %v504 = vpack.c.b16 %v501, %v500
      %v505 = vpack.c.b16 %v503, %v502
      %vm508 = vcmask 261120
      %v510 = vsel %vm508, %v367, 0
      %v513 = vsel %vm508, %v375, 0
      %v516 = vsel %vm508, %v383, 0
      %v519 = vsel %vm508, %v391, 0
      %v522 = vsel %vm508, %v399, 0
      %v525 = vsel %vm508, %v407, 0
      %v528 = vsel %vm508, %v415, 0
      %v531 = vsel %vm508, %v423, 0
      %v534 = vsel %vm508, %v431, 0
      %v537 = vsel %vm508, %v439, 0
      %v540 = vsel %vm508, %v447, 0
      %v543 = vsel %vm508, %v455, 0
      %v546 = vsel %vm508, %v463, 0
      %v549 = vsel %vm508, %v471, 0
      %v552 = vsel %vm508, %v479, 0
      %v555 = vsel %vm508, %v487, 0
      %v558 = vsel %vm508, %v495, 0
      %560 = vmatprep.subr.bf16.mxu0 0
      %561 = vmatpush1.bf16.msra.mxu0 0
      %562 = vmatprep.subr.bf16.mxu0 0
      %563 = vmatpush1.bf16.msra.mxu0 0
      %564 = vmatprep.subr.bf16.mxu0 0
      %565 = vmatpush1.bf16.msra.mxu0 0
      %566 = vmatprep.subr.bf16.mxu0 0
      %567 = vmatpush1.bf16.msra.mxu0 0
      %568 = vmatprep.subr.bf16.mxu0 0
      %569 = vmatpush1.bf16.msra.mxu0 0
      %570 = vmatprep.subr.bf16.mxu0 0
      %571 = vmatpush1.bf16.msra.mxu0 0
      %572 = vmatprep.subr.bf16.mxu0 0
      %573 = vmatpush1.bf16.msra.mxu0 %v505
      %574 = vmatprep.subr.bf16.mxu0 0
      %575 = vmatpush1.bf16.msra.mxu0 %v504
      %576 = vmatprep.subr.bf16.mxu0 0
      %577 = vmatpush2.bf16.msra.mxu0 0
      %578 = vmatprep.subr.bf16.mxu0 0
      %579 = vmatpush2.bf16.msra.mxu0 0
      %580 = vmatprep.subr.bf16.mxu0 0
      %581 = vmatpush2.bf16.msra.mxu0 0
      %582 = vmatprep.subr.bf16.mxu0 0
      %583 = vmatpush2.bf16.msra.mxu0 0
      %584 = vmatprep.subr.bf16.mxu0 0
      %585 = vmatpush2.bf16.msra.mxu0 0
      %586 = vmatprep.subr.bf16.mxu0 0
      %587 = vmatpush2.bf16.msra.mxu0 0
      %588 = vmatprep.subr.bf16.mxu0 0
      %589 = vmatpush2.bf16.msra.mxu0 0
      %590 = vmatprep.subr.bf16.mxu0 0
      %591 = vmatpush2.bf16.msra.mxu0 0
      %592 = vmatprep.mubr.bf16.mxu0 0
      %593 = vmatmul.mubr.bf16.gmra.mxu0 %v510
      %v594 = vpop.f32.mrf.mxu0
      %v595 = vadd.f32 0.0, %v594
      %v596 = vpop.f32.mrf.mxu0
      %v597 = vpop.f32.mrf.mxu0
      %v598 = vadd.f32 0.0, %v597
      %v599 = vpop.f32.mrf.mxu0
      %600 = vmatprep.mubr.bf16.mxu0 0
      %601 = vmatmul.mubr.bf16.gmra.mxu0 %v513
      %v602 = vpop.f32.mrf.mxu0
      %v603 = vadd.f32 0.0, %v602
      %v604 = vpop.f32.mrf.mxu0
      %v605 = vpop.f32.mrf.mxu0
      %v606 = vadd.f32 0.0, %v605
      %v607 = vpop.f32.mrf.mxu0
      %608 = vmatprep.mubr.bf16.mxu0 0
      %609 = vmatmul.mubr.bf16.gmra.mxu0 %v516
      %v610 = vpop.f32.mrf.mxu0
      %v611 = vadd.f32 0.0, %v610
      %v612 = vpop.f32.mrf.mxu0
      %v613 = vpop.f32.mrf.mxu0
      %v614 = vadd.f32 0.0, %v613
      %v615 = vpop.f32.mrf.mxu0
      %616 = vmatprep.mubr.bf16.mxu0 0
      %617 = vmatmul.mubr.bf16.gmra.mxu0 %v519
      %v618 = vpop.f32.mrf.mxu0
      %v619 = vadd.f32 0.0, %v618
      %v620 = vpop.f32.mrf.mxu0
      %v621 = vpop.f32.mrf.mxu0
      %v622 = vadd.f32 0.0, %v621
      %v623 = vpop.f32.mrf.mxu0
      %624 = vmatprep.mubr.bf16.mxu0 0
      %625 = vmatmul.mubr.bf16.gmra.mxu0 %v522
      %v626 = vpop.f32.mrf.mxu0
      %v627 = vadd.f32 0.0, %v626
      %v628 = vpop.f32.mrf.mxu0
      %v629 = vpop.f32.mrf.mxu0
      %v630 = vadd.f32 0.0, %v629
      %v631 = vpop.f32.mrf.mxu0
      %632 = vmatprep.mubr.bf16.mxu0 0
      %633 = vmatmul.mubr.bf16.gmra.mxu0 %v525
      %v634 = vpop.f32.mrf.mxu0
      %v635 = vadd.f32 0.0, %v634
      %v636 = vpop.f32.mrf.mxu0
      %v637 = vpop.f32.mrf.mxu0
      %v638 = vadd.f32 0.0, %v637
      %v639 = vpop.f32.mrf.mxu0
      %640 = vmatprep.mubr.bf16.mxu0 0
      %641 = vmatmul.mubr.bf16.gmra.mxu0 %v528
      %v642 = vpop.f32.mrf.mxu0
      %v643 = vadd.f32 0.0, %v642
      %v644 = vpop.f32.mrf.mxu0
      %v645 = vpop.f32.mrf.mxu0
      %v646 = vadd.f32 0.0, %v645
      %v647 = vpop.f32.mrf.mxu0
      %648 = vmatprep.mubr.bf16.mxu0 0
      %649 = vmatmul.mubr.bf16.gmra.mxu0 %v531
      %v650 = vpop.f32.mrf.mxu0
      %v651 = vadd.f32 0.0, %v650
      %v652 = vpop.f32.mrf.mxu0
      %v653 = vpop.f32.mrf.mxu0
      %v654 = vadd.f32 0.0, %v653
      %v655 = vpop.f32.mrf.mxu0
      %656 = vmatprep.mubr.bf16.mxu0 0
      %657 = vmatmul.mubr.bf16.gmra.mxu0 %v534
      %v658 = vpop.f32.mrf.mxu0
      %v659 = vadd.f32 0.0, %v658
      %v660 = vpop.f32.mrf.mxu0
      %v661 = vpop.f32.mrf.mxu0
      %v662 = vadd.f32 0.0, %v661
      %v663 = vpop.f32.mrf.mxu0
      %664 = vmatprep.mubr.bf16.mxu0 0
      %665 = vmatmul.mubr.bf16.gmra.mxu0 %v537
      %v666 = vpop.f32.mrf.mxu0
      %v667 = vadd.f32 0.0, %v666
      %v668 = vpop.f32.mrf.mxu0
      %v669 = vpop.f32.mrf.mxu0
      %v670 = vadd.f32 0.0, %v669
      %v671 = vpop.f32.mrf.mxu0
      %672 = vmatprep.mubr.bf16.mxu0 0
      %673 = vmatmul.mubr.bf16.gmra.mxu0 %v540
      %v674 = vpop.f32.mrf.mxu0
      %v675 = vadd.f32 0.0, %v674
      %v676 = vpop.f32.mrf.mxu0
      %v677 = vpop.f32.mrf.mxu0
      %v678 = vadd.f32 0.0, %v677
      %v679 = vpop.f32.mrf.mxu0
      %680 = vmatprep.mubr.bf16.mxu0 0
      %681 = vmatmul.mubr.bf16.gmra.mxu0 %v543
      %v682 = vpop.f32.mrf.mxu0
      %v683 = vadd.f32 0.0, %v682
      %v684 = vpop.f32.mrf.mxu0
      %v685 = vpop.f32.mrf.mxu0
      %v686 = vadd.f32 0.0, %v685
      %v687 = vpop.f32.mrf.mxu0
      %688 = vmatprep.mubr.bf16.mxu0 0
      %689 = vmatmul.mubr.bf16.gmra.mxu0 %v546
      %v690 = vpop.f32.mrf.mxu0
      %v691 = vadd.f32 0.0, %v690
      %v692 = vpop.f32.mrf.mxu0
      %v693 = vpop.f32.mrf.mxu0
      %v694 = vadd.f32 0.0, %v693
      %v695 = vpop.f32.mrf.mxu0
      %696 = vmatprep.mubr.bf16.mxu0 0
      %697 = vmatmul.mubr.bf16.gmra.mxu0 %v549
      %v698 = vpop.f32.mrf.mxu0
      %v699 = vadd.f32 0.0, %v698
      %v700 = vpop.f32.mrf.mxu0
      %v701 = vpop.f32.mrf.mxu0
      %v702 = vadd.f32 0.0, %v701
      %v703 = vpop.f32.mrf.mxu0
      %704 = vmatprep.mubr.bf16.mxu0 0
      %705 = vmatmul.mubr.bf16.gmra.mxu0 %v552
      %v706 = vpop.f32.mrf.mxu0
      %v707 = vadd.f32 0.0, %v706
      %v708 = vpop.f32.mrf.mxu0
      %v709 = vpop.f32.mrf.mxu0
      %v710 = vadd.f32 0.0, %v709
      %v711 = vpop.f32.mrf.mxu0
      %712 = vmatprep.mubr.bf16.mxu0 0
      %713 = vmatmul.mubr.bf16.gmra.mxu0 %v555
      %v714 = vpop.f32.mrf.mxu0
      %v715 = vadd.f32 0.0, %v714
      %v716 = vpop.f32.mrf.mxu0
      %v717 = vpop.f32.mrf.mxu0
      %v718 = vadd.f32 0.0, %v717
      %v719 = vpop.f32.mrf.mxu0
      %720 = vmatprep.mubr.bf16.mxu0 0
      %721 = vmatmul.mubr.bf16.gmra.mxu0 %v558
      %v722 = vpop.f32.mrf.mxu0
      %v723 = vadd.f32 0.0, %v722
      %v724 = vpop.f32.mrf.mxu0
      %v725 = vpop.f32.mrf.mxu0
      %v726 = vadd.f32 0.0, %v725
      %v727 = vpop.f32.mrf.mxu0
      %728 = vdwg.mxu0
      %v733 = vunpack.c.l.b16 %v257
      %v734 = vunpack.c.l.b16 %v258
      %v735 = vunpack.c.l.b16 %v259
      %v736 = vunpack.c.l.b16 %v260
      %v737 = vpack.c.b16 %v734, %v733
      %v738 = vpack.c.b16 %v736, %v735
      %v741 = vsel %vm508, %v337, 0
      %v743 = vsel %vm508, %v338, 0
      %v745 = vsel %vm508, %v339, 0
      %v747 = vsel %vm508, %v340, 0
      %v749 = vsel %vm508, %v341, 0
      %v751 = vsel %vm508, %v342, 0
      %v753 = vsel %vm508, %v343, 0
      %v755 = vsel %vm508, %v344, 0
      %v757 = vsel %vm508, %v345, 0
      %v759 = vsel %vm508, %v346, 0
      %v761 = vsel %vm508, %v347, 0
      %v763 = vsel %vm508, %v348, 0
      %v765 = vsel %vm508, %v349, 0
      %v767 = vsel %vm508, %v350, 0
      %v769 = vsel %vm508, %v351, 0
      %v771 = vsel %vm508, %v352, 0
      %v773 = vsel %vm508, %v353, 0
      %775 = vmatprep.subr.bf16.mxu0 0
      %776 = vmatpush1.bf16.msra.mxu0 0
      %777 = vmatprep.subr.bf16.mxu0 0
      %778 = vmatpush1.bf16.msra.mxu0 0
      %779 = vmatprep.subr.bf16.mxu0 0
      %780 = vmatpush1.bf16.msra.mxu0 0
      %781 = vmatprep.subr.bf16.mxu0 0
      %782 = vmatpush1.bf16.msra.mxu0 0
      %783 = vmatprep.subr.bf16.mxu0 0
      %784 = vmatpush1.bf16.msra.mxu0 0
      %785 = vmatprep.subr.bf16.mxu0 0
      %786 = vmatpush1.bf16.msra.mxu0 0
      %787 = vmatprep.subr.bf16.mxu0 0
      %788 = vmatpush1.bf16.msra.mxu0 %v738
      %789 = vmatprep.subr.bf16.mxu0 0
      %790 = vmatpush1.bf16.msra.mxu0 %v737
      %791 = vmatprep.subr.bf16.mxu0 0
      %792 = vmatpush2.bf16.msra.mxu0 0
      %793 = vmatprep.subr.bf16.mxu0 0
      %794 = vmatpush2.bf16.msra.mxu0 0
      %795 = vmatprep.subr.bf16.mxu0 0
      %796 = vmatpush2.bf16.msra.mxu0 0
      %797 = vmatprep.subr.bf16.mxu0 0
      %798 = vmatpush2.bf16.msra.mxu0 0
      %799 = vmatprep.subr.bf16.mxu0 0
      %800 = vmatpush2.bf16.msra.mxu0 0
      %801 = vmatprep.subr.bf16.mxu0 0
      %802 = vmatpush2.bf16.msra.mxu0 0
      %803 = vmatprep.subr.bf16.mxu0 0
      %804 = vmatpush2.bf16.msra.mxu0 0
      %805 = vmatprep.subr.bf16.mxu0 0
      %806 = vmatpush2.bf16.msra.mxu0 0
      %807 = vmatprep.mubr.bf16.mxu0 0
      %808 = vmatmul.mubr.bf16.gmra.mxu0 %v741
      %v809 = vpop.f32.mrf.mxu0
      %v810 = vadd.f32 %v595, %v809
      %v811 = vpop.f32.mrf.mxu0
      %v812 = vpop.f32.mrf.mxu0
      %v813 = vadd.f32 %v598, %v812
      %v814 = vpop.f32.mrf.mxu0
      %815 = vmatprep.mubr.bf16.mxu0 0
      %816 = vmatmul.mubr.bf16.gmra.mxu0 %v743
      %v817 = vpop.f32.mrf.mxu0
      %v818 = vadd.f32 %v603, %v817
      %v819 = vpop.f32.mrf.mxu0
      %v820 = vpop.f32.mrf.mxu0
      %v821 = vadd.f32 %v606, %v820
      %v822 = vpop.f32.mrf.mxu0
      %823 = vmatprep.mubr.bf16.mxu0 0
      %824 = vmatmul.mubr.bf16.gmra.mxu0 %v745
      %v825 = vpop.f32.mrf.mxu0
      %v826 = vadd.f32 %v611, %v825
      %v827 = vpop.f32.mrf.mxu0
      %v828 = vpop.f32.mrf.mxu0
      %v829 = vadd.f32 %v614, %v828
      %v830 = vpop.f32.mrf.mxu0
      %831 = vmatprep.mubr.bf16.mxu0 0
      %832 = vmatmul.mubr.bf16.gmra.mxu0 %v747
      %v833 = vpop.f32.mrf.mxu0
      %v834 = vadd.f32 %v619, %v833
      %v835 = vpop.f32.mrf.mxu0
      %v836 = vpop.f32.mrf.mxu0
      %v837 = vadd.f32 %v622, %v836
      %v838 = vpop.f32.mrf.mxu0
      %839 = vmatprep.mubr.bf16.mxu0 0
      %840 = vmatmul.mubr.bf16.gmra.mxu0 %v749
      %v841 = vpop.f32.mrf.mxu0
      %v842 = vadd.f32 %v627, %v841
      %v843 = vpop.f32.mrf.mxu0
      %v844 = vpop.f32.mrf.mxu0
      %v845 = vadd.f32 %v630, %v844
      %v846 = vpop.f32.mrf.mxu0
      %847 = vmatprep.mubr.bf16.mxu0 0
      %848 = vmatmul.mubr.bf16.gmra.mxu0 %v751
      %v849 = vpop.f32.mrf.mxu0
      %v850 = vadd.f32 %v635, %v849
      %v851 = vpop.f32.mrf.mxu0
      %v852 = vpop.f32.mrf.mxu0
      %v853 = vadd.f32 %v638, %v852
      %v854 = vpop.f32.mrf.mxu0
      %855 = vmatprep.mubr.bf16.mxu0 0
      %856 = vmatmul.mubr.bf16.gmra.mxu0 %v753
      %v857 = vpop.f32.mrf.mxu0
      %v858 = vadd.f32 %v643, %v857
      %v859 = vpop.f32.mrf.mxu0
      %v860 = vpop.f32.mrf.mxu0
      %v861 = vadd.f32 %v646, %v860
      %v862 = vpop.f32.mrf.mxu0
      %863 = vmatprep.mubr.bf16.mxu0 0
      %864 = vmatmul.mubr.bf16.gmra.mxu0 %v755
      %v865 = vpop.f32.mrf.mxu0
      %v866 = vadd.f32 %v651, %v865
      %v867 = vpop.f32.mrf.mxu0
      %v868 = vpop.f32.mrf.mxu0
      %v869 = vadd.f32 %v654, %v868
      %v870 = vpop.f32.mrf.mxu0
      %871 = vmatprep.mubr.bf16.mxu0 0
      %872 = vmatmul.mubr.bf16.gmra.mxu0 %v757
      %v873 = vpop.f32.mrf.mxu0
      %v874 = vadd.f32 %v659, %v873
      %v875 = vpop.f32.mrf.mxu0
      %v876 = vpop.f32.mrf.mxu0
      %v877 = vadd.f32 %v662, %v876
      %v878 = vpop.f32.mrf.mxu0
      %879 = vmatprep.mubr.bf16.mxu0 0
      %880 = vmatmul.mubr.bf16.gmra.mxu0 %v759
      %v881 = vpop.f32.mrf.mxu0
      %v882 = vadd.f32 %v667, %v881
      %v883 = vpop.f32.mrf.mxu0
      %v884 = vpop.f32.mrf.mxu0
      %v885 = vadd.f32 %v670, %v884
      %v886 = vpop.f32.mrf.mxu0
      %887 = vmatprep.mubr.bf16.mxu0 0
      %888 = vmatmul.mubr.bf16.gmra.mxu0 %v761
      %v889 = vpop.f32.mrf.mxu0
      %v890 = vadd.f32 %v675, %v889
      %v891 = vpop.f32.mrf.mxu0
      %v892 = vpop.f32.mrf.mxu0
      %v893 = vadd.f32 %v678, %v892
      %v894 = vpop.f32.mrf.mxu0
      %895 = vmatprep.mubr.bf16.mxu0 0
      %896 = vmatmul.mubr.bf16.gmra.mxu0 %v763
      %v897 = vpop.f32.mrf.mxu0
      %v898 = vadd.f32 %v683, %v897
      %v899 = vpop.f32.mrf.mxu0
      %v900 = vpop.f32.mrf.mxu0
      %v901 = vadd.f32 %v686, %v900
      %v902 = vpop.f32.mrf.mxu0
      %903 = vmatprep.mubr.bf16.mxu0 0
      %904 = vmatmul.mubr.bf16.gmra.mxu0 %v765
      %v905 = vpop.f32.mrf.mxu0
      %v906 = vadd.f32 %v691, %v905
      %v907 = vpop.f32.mrf.mxu0
      %v908 = vpop.f32.mrf.mxu0
      %v909 = vadd.f32 %v694, %v908
      %v910 = vpop.f32.mrf.mxu0
      %911 = vmatprep.mubr.bf16.mxu0 0
      %912 = vmatmul.mubr.bf16.gmra.mxu0 %v767
      %v913 = vpop.f32.mrf.mxu0
      %v914 = vadd.f32 %v699, %v913
      %v915 = vpop.f32.mrf.mxu0
      %v916 = vpop.f32.mrf.mxu0
      %v917 = vadd.f32 %v702, %v916
      %v918 = vpop.f32.mrf.mxu0
      %919 = vmatprep.mubr.bf16.mxu0 0
      %920 = vmatmul.mubr.bf16.gmra.mxu0 %v769
      %v921 = vpop.f32.mrf.mxu0
      %v922 = vadd.f32 %v707, %v921
      %v923 = vpop.f32.mrf.mxu0
      %v924 = vpop.f32.mrf.mxu0
      %v925 = vadd.f32 %v710, %v924
      %v926 = vpop.f32.mrf.mxu0
      %927 = vmatprep.mubr.bf16.mxu0 0
      %928 = vmatmul.mubr.bf16.gmra.mxu0 %v771
      %v929 = vpop.f32.mrf.mxu0
      %v930 = vadd.f32 %v715, %v929
      %v931 = vpop.f32.mrf.mxu0
      %v932 = vpop.f32.mrf.mxu0
      %v933 = vadd.f32 %v718, %v932
      %v934 = vpop.f32.mrf.mxu0
      %935 = vmatprep.mubr.bf16.mxu0 0
      %936 = vmatmul.mubr.bf16.gmra.mxu0 %v773
      %v937 = vpop.f32.mrf.mxu0
      %v938 = vadd.f32 %v723, %v937
      %v939 = vpop.f32.mrf.mxu0
      %v940 = vpop.f32.mrf.mxu0
      %v941 = vadd.f32 %v726, %v940
      %v942 = vpop.f32.mrf.mxu0
      %943 = vdwg.mxu0
      %v944 = vld [vmem:[%s206 + $0x8] sm:$0xf]
      %v945 = vld [vmem:[%s206 + $0xc] sm:$0xf]
      %v946 = vld [vmem:[%s206 + $0x10] sm:$0xf]
      %v947 = vld [vmem:[%s206 + $0x14] sm:$0xf]
      %v948 = vld [vmem:[%s206 + $0x18] sm:$0xf]
      %v949 = vld [vmem:[%s206 + $0x1c] sm:$0xf]
      %v950 = vld [vmem:[%s206 + $0x20] sm:$0xf]
      %v951 = vld [vmem:[%s206 + $0x24] sm:$0xf]
      %v952 = vld [vmem:[%s206 + $0x28] sm:$0xf]
      %v953 = vld [vmem:[%s206 + $0x2c] sm:$0xf]
      %v954 = vld [vmem:[%s206 + $0x30] sm:$0xf]
      %v955 = vld [vmem:[%s206 + $0x34] sm:$0xf]
      %v956 = vld [vmem:[%s206 + $0x38] sm:$0xf]
      %v957 = vld [vmem:[%s206 + $0x3c] sm:$0xf]
      %v958 = vld [vmem:[%s206 + $0x40] sm:$0xf]
      %v959 = vld [vmem:[%s206 + $0x44] sm:$0xf]
      %v960 = vld [vmem:[%s206 + $0x48] sm:$0xf]
      %v961 = vld [vmem:[%s206 + $0x4c] sm:$0xf]
      %v962 = vld [vmem:[%s206 + $0x50] sm:$0xf]
      %v963 = vld [vmem:[%s206 + $0x54] sm:$0xf]
      %v964 = vld [vmem:[%s206 + $0x58] sm:$0xf]
      %v965 = vld [vmem:[%s206 + $0x5c] sm:$0xf]
      %v966 = vld [vmem:[%s206 + $0x60] sm:$0xf]
      %v967 = vld [vmem:[%s206 + $0x64] sm:$0xf]
      %v968 = vld [vmem:[%s206 + $0x68] sm:$0xf]
      %v969 = vld [vmem:[%s206 + $0x6c] sm:$0xf]
      %v970 = vld [vmem:[%s206 + $0x70] sm:$0xf]
      %v971 = vld [vmem:[%s206 + $0x74] sm:$0xf]
      %v972 = vld [vmem:[%s206 + $0x78] sm:$0xf]
      %v973 = vld [vmem:[%s206 + $0x7c] sm:$0xf]
      %v974 = vld [vmem:[%s206 + $0x80] sm:$0xf]
      %v975 = vld [vmem:[%s206 + $0x84] sm:$0xf]
      %v976 = vld [vmem:[%s206 + $0x88] sm:$0xf]
      %v977 = vld [vmem:[%s206 + $0x8c] sm:$0xf]
      %v978 = vld [vmem:[%s206 + $0x90] sm:$0x1]
      %s979 = scalar_lea.vmem %s210, 32
      %v980 = vld [vmem:[%s979] sm:$0xf]
      %v981 = vld [vmem:[%s979 + $0x4] sm:$0xf]
      %v982 = vld [vmem:[%s979 + $0x8] sm:$0xf]
      %v983 = vld [vmem:[%s979 + $0xc] sm:$0xf]
      %v1019 = vunpack.c.l.b16 %v944
      %v1020 = vunpack.c.l.b16 %v945
      %v1021 = vunpack.c.l.b16 %v946
      %v1022 = vunpack.c.l.b16 %v947
      %v1023 = vunpack.c.l.b16 %v948
      %v1024 = vunpack.c.l.b16 %v949
      %v1025 = vunpack.c.l.b16 %v950
      %v1026 = vunpack.c.l.b16 %v951
      %v1027 = vunpack.c.l.b16 %v952
      %v1028 = vunpack.c.l.b16 %v953
      %v1029 = vunpack.c.l.b16 %v954
      %v1030 = vunpack.c.l.b16 %v955
      %v1031 = vunpack.c.l.b16 %v956
      %v1032 = vunpack.c.l.b16 %v957
      %v1033 = vunpack.c.l.b16 %v958
      %v1034 = vunpack.c.l.b16 %v959
      %v1035 = vunpack.c.l.b16 %v960
      %v1036 = vunpack.c.l.b16 %v961
      %v1037 = vunpack.c.l.b16 %v962
      %v1038 = vunpack.c.l.b16 %v963
      %v1039 = vunpack.c.l.b16 %v964
      %v1040 = vunpack.c.l.b16 %v965
      %v1041 = vunpack.c.l.b16 %v966
      %v1042 = vunpack.c.l.b16 %v967
      %v1043 = vunpack.c.l.b16 %v968
      %v1044 = vunpack.c.l.b16 %v969
      %v1045 = vunpack.c.l.b16 %v970
      %v1046 = vunpack.c.l.b16 %v971
      %v1047 = vunpack.c.l.b16 %v972
      %v1048 = vunpack.c.l.b16 %v973
      %v1049 = vunpack.c.l.b16 %v974
      %v1050 = vunpack.c.l.b16 %v975
      %v1051 = vunpack.c.l.b16 %v976
      %v1052 = vunpack.c.l.b16 %v977
      %v1053 = vunpack.c.l.b16 %v978
      %v1054 = vpack.c.b16 %v1020, %v1019
      %v1055 = vpack.c.b16 %v1022, %v1021
      %v1056 = vpack.c.b16 %v1024, %v1023
      %v1057 = vpack.c.b16 %v1026, %v1025
      %v1058 = vpack.c.b16 %v1028, %v1027
      %v1059 = vpack.c.b16 %v1030, %v1029
      %v1060 = vpack.c.b16 %v1032, %v1031
      %v1061 = vpack.c.b16 %v1034, %v1033
      %v1062 = vpack.c.b16 %v1036, %v1035
      %v1063 = vpack.c.b16 %v1038, %v1037
      %v1064 = vpack.c.b16 %v1040, %v1039
      %v1065 = vpack.c.b16 %v1042, %v1041
      %v1066 = vpack.c.b16 %v1044, %v1043
      %v1067 = vpack.c.b16 %v1046, %v1045
      %v1068 = vpack.c.b16 %v1048, %v1047
      %v1069 = vpack.c.b16 %v1050, %v1049
      %v1070 = vpack.c.b16 %v1052, %v1051
      %v1071 = vpack.c.b16 %v1053, %v1053
      %v1073 = vshrl.u32 %v1054, 16
      %v1075 = vshll.u32 %v1054, 16
      %v1077 = vrot.slane %v1075, 1
      %v1078 = vor.u32 %v1073, %v1077
      %v1080 = vshll.u32 %v1055, 16
      %v1082 = vrot.slane %v1080, 1
      %v1083 = vsel %vm355, %v1078, %v1082
      %v1084 = vshrl.u32 %v1055, 16
      %v1086 = vor.u32 %v1084, %v1082
      %v1088 = vshll.u32 %v1056, 16
      %v1090 = vrot.slane %v1088, 1
      %v1091 = vsel %vm355, %v1086, %v1090
      %v1092 = vshrl.u32 %v1056, 16
      %v1094 = vor.u32 %v1092, %v1090
      %v1096 = vshll.u32 %v1057, 16
      %v1098 = vrot.slane %v1096, 1
      %v1099 = vsel %vm355, %v1094, %v1098
      %v1100 = vshrl.u32 %v1057, 16
      %v1102 = vor.u32 %v1100, %v1098
      %v1104 = vshll.u32 %v1058, 16
      %v1106 = vrot.slane %v1104, 1
      %v1107 = vsel %vm355, %v1102, %v1106
      %v1108 = vshrl.u32 %v1058, 16
      %v1110 = vor.u32 %v1108, %v1106
      %v1112 = vshll.u32 %v1059, 16
      %v1114 = vrot.slane %v1112, 1
      %v1115 = vsel %vm355, %v1110, %v1114
      %v1116 = vshrl.u32 %v1059, 16
      %v1118 = vor.u32 %v1116, %v1114
      %v1120 = vshll.u32 %v1060, 16
      %v1122 = vrot.slane %v1120, 1
      %v1123 = vsel %vm355, %v1118, %v1122
      %v1124 = vshrl.u32 %v1060, 16
      %v1126 = vor.u32 %v1124, %v1122
      %v1128 = vshll.u32 %v1061, 16
      %v1130 = vrot.slane %v1128, 1
      %v1131 = vsel %vm355, %v1126, %v1130
      %v1132 = vshrl.u32 %v1061, 16
      %v1134 = vor.u32 %v1132, %v1130
      %v1136 = vshll.u32 %v1062, 16
      %v1138 = vrot.slane %v1136, 1
      %v1139 = vsel %vm355, %v1134, %v1138
      %v1140 = vshrl.u32 %v1062, 16
      %v1142 = vor.u32 %v1140, %v1138
      %v1144 = vshll.u32 %v1063, 16
      %v1146 = vrot.slane %v1144, 1
      %v1147 = vsel %vm355, %v1142, %v1146
      %v1148 = vshrl.u32 %v1063, 16
      %v1150 = vor.u32 %v1148, %v1146
      %v1152 = vshll.u32 %v1064, 16
      %v1154 = vrot.slane %v1152, 1
      %v1155 = vsel %vm355, %v1150, %v1154
      %v1156 = vshrl.u32 %v1064, 16
      %v1158 = vor.u32 %v1156, %v1154
      %v1160 = vshll.u32 %v1065, 16
      %v1162 = vrot.slane %v1160, 1
      %v1163 = vsel %vm355, %v1158, %v1162
      %v1164 = vshrl.u32 %v1065, 16
      %v1166 = vor.u32 %v1164, %v1162
      %v1168 = vshll.u32 %v1066, 16
      %v1170 = vrot.slane %v1168, 1
      %v1171 = vsel %vm355, %v1166, %v1170
      %v1172 = vshrl.u32 %v1066, 16
      %v1174 = vor.u32 %v1172, %v1170
      %v1176 = vshll.u32 %v1067, 16
      %v1178 = vrot.slane %v1176, 1
      %v1179 = vsel %vm355, %v1174, %v1178
      %v1180 = vshrl.u32 %v1067, 16
      %v1182 = vor.u32 %v1180, %v1178
      %v1184 = vshll.u32 %v1068, 16
      %v1186 = vrot.slane %v1184, 1
      %v1187 = vsel %vm355, %v1182, %v1186
      %v1188 = vshrl.u32 %v1068, 16
      %v1190 = vor.u32 %v1188, %v1186
      %v1192 = vshll.u32 %v1069, 16
      %v1194 = vrot.slane %v1192, 1
      %v1195 = vsel %vm355, %v1190, %v1194
      %v1196 = vshrl.u32 %v1069, 16
      %v1198 = vor.u32 %v1196, %v1194
      %v1200 = vshll.u32 %v1070, 16
      %v1202 = vrot.slane %v1200, 1
      %v1203 = vsel %vm355, %v1198, %v1202
      %v1204 = vshrl.u32 %v1070, 16
      %v1206 = vor.u32 %v1204, %v1202
      %v1208 = vshll.u32 %v1071, 16
      %v1210 = vrot.slane %v1208, 1
      %v1211 = vsel %vm355, %v1206, %v1210
      %v1216 = vunpack.c.l.b16 %v980
      %v1217 = vunpack.c.l.b16 %v981
      %v1218 = vunpack.c.l.b16 %v982
      %v1219 = vunpack.c.l.b16 %v983
      %v1220 = vpack.c.b16 %v1217, %v1216
      %v1221 = vpack.c.b16 %v1219, %v1218
      %v1225 = vsel %vm508, %v1083, 0
      %v1228 = vsel %vm508, %v1091, 0
      %v1231 = vsel %vm508, %v1099, 0
      %v1234 = vsel %vm508, %v1107, 0
      %v1237 = vsel %vm508, %v1115, 0
      %v1240 = vsel %vm508, %v1123, 0
      %v1243 = vsel %vm508, %v1131, 0
      %v1246 = vsel %vm508, %v1139, 0
      %v1249 = vsel %vm508, %v1147, 0
      %v1252 = vsel %vm508, %v1155, 0
      %v1255 = vsel %vm508, %v1163, 0
      %v1258 = vsel %vm508, %v1171, 0
      %v1261 = vsel %vm508, %v1179, 0
      %v1264 = vsel %vm508, %v1187, 0
      %v1267 = vsel %vm508, %v1195, 0
      %v1270 = vsel %vm508, %v1203, 0
      %v1273 = vsel %vm508, %v1211, 0
      %1275 = vmatprep.subr.bf16.mxu0 0
      %1276 = vmatpush1.bf16.msra.mxu0 0
      %1277 = vmatprep.subr.bf16.mxu0 0
      %1278 = vmatpush1.bf16.msra.mxu0 0
      %1279 = vmatprep.subr.bf16.mxu0 0
      %1280 = vmatpush1.bf16.msra.mxu0 0
      %1281 = vmatprep.subr.bf16.mxu0 0
      %1282 = vmatpush1.bf16.msra.mxu0 0
      %1283 = vmatprep.subr.bf16.mxu0 0
      %1284 = vmatpush1.bf16.msra.mxu0 0
      %1285 = vmatprep.subr.bf16.mxu0 0
      %1286 = vmatpush1.bf16.msra.mxu0 0
      %1287 = vmatprep.subr.bf16.mxu0 0
      %1288 = vmatpush1.bf16.msra.mxu0 %v1221
      %1289 = vmatprep.subr.bf16.mxu0 0
      %1290 = vmatpush1.bf16.msra.mxu0 %v1220
      %1291 = vmatprep.subr.bf16.mxu0 0
      %1292 = vmatpush2.bf16.msra.mxu0 0
      %1293 = vmatprep.subr.bf16.mxu0 0
      %1294 = vmatpush2.bf16.msra.mxu0 0
      %1295 = vmatprep.subr.bf16.mxu0 0
      %1296 = vmatpush2.bf16.msra.mxu0 0
      %1297 = vmatprep.subr.bf16.mxu0 0
      %1298 = vmatpush2.bf16.msra.mxu0 0
      %1299 = vmatprep.subr.bf16.mxu0 0
      %1300 = vmatpush2.bf16.msra.mxu0 0
      %1301 = vmatprep.subr.bf16.mxu0 0
      %1302 = vmatpush2.bf16.msra.mxu0 0
      %1303 = vmatprep.subr.bf16.mxu0 0
      %1304 = vmatpush2.bf16.msra.mxu0 0
      %1305 = vmatprep.subr.bf16.mxu0 0
      %1306 = vmatpush2.bf16.msra.mxu0 0
      %1307 = vmatprep.mubr.bf16.mxu0 0
      %1308 = vmatmul.mubr.bf16.gmra.mxu0 %v1225
      %v1309 = vpop.f32.mrf.mxu0
      %v1310 = vadd.f32 0.0, %v1309
      %v1311 = vpop.f32.mrf.mxu0
      %v1312 = vpop.f32.mrf.mxu0
      %v1313 = vadd.f32 0.0, %v1312
      %v1314 = vpop.f32.mrf.mxu0
      %1315 = vmatprep.mubr.bf16.mxu0 0
      %1316 = vmatmul.mubr.bf16.gmra.mxu0 %v1228
      %v1317 = vpop.f32.mrf.mxu0
      %v1318 = vadd.f32 0.0, %v1317
      %v1319 = vpop.f32.mrf.mxu0
      %v1320 = vpop.f32.mrf.mxu0
      %v1321 = vadd.f32 0.0, %v1320
      %v1322 = vpop.f32.mrf.mxu0
      %1323 = vmatprep.mubr.bf16.mxu0 0
      %1324 = vmatmul.mubr.bf16.gmra.mxu0 %v1231
      %v1325 = vpop.f32.mrf.mxu0
      %v1326 = vadd.f32 0.0, %v1325
      %v1327 = vpop.f32.mrf.mxu0
      %v1328 = vpop.f32.mrf.mxu0
      %v1329 = vadd.f32 0.0, %v1328
      %v1330 = vpop.f32.mrf.mxu0
      %1331 = vmatprep.mubr.bf16.mxu0 0
      %1332 = vmatmul.mubr.bf16.gmra.mxu0 %v1234
      %v1333 = vpop.f32.mrf.mxu0
      %v1334 = vadd.f32 0.0, %v1333
      %v1335 = vpop.f32.mrf.mxu0
      %v1336 = vpop.f32.mrf.mxu0
      %v1337 = vadd.f32 0.0, %v1336
      %v1338 = vpop.f32.mrf.mxu0
      %1339 = vmatprep.mubr.bf16.mxu0 0
      %1340 = vmatmul.mubr.bf16.gmra.mxu0 %v1237
      %v1341 = vpop.f32.mrf.mxu0
      %v1342 = vadd.f32 0.0, %v1341
      %v1343 = vpop.f32.mrf.mxu0
      %v1344 = vpop.f32.mrf.mxu0
      %v1345 = vadd.f32 0.0, %v1344
      %v1346 = vpop.f32.mrf.mxu0
      %1347 = vmatprep.mubr.bf16.mxu0 0
      %1348 = vmatmul.mubr.bf16.gmra.mxu0 %v1240
      %v1349 = vpop.f32.mrf.mxu0
      %v1350 = vadd.f32 0.0, %v1349
      %v1351 = vpop.f32.mrf.mxu0
      %v1352 = vpop.f32.mrf.mxu0
      %v1353 = vadd.f32 0.0, %v1352
      %v1354 = vpop.f32.mrf.mxu0
      %1355 = vmatprep.mubr.bf16.mxu0 0
      %1356 = vmatmul.mubr.bf16.gmra.mxu0 %v1243
      %v1357 = vpop.f32.mrf.mxu0
      %v1358 = vadd.f32 0.0, %v1357
      %v1359 = vpop.f32.mrf.mxu0
      %v1360 = vpop.f32.mrf.mxu0
      %v1361 = vadd.f32 0.0, %v1360
      %v1362 = vpop.f32.mrf.mxu0
      %1363 = vmatprep.mubr.bf16.mxu0 0
      %1364 = vmatmul.mubr.bf16.gmra.mxu0 %v1246
      %v1365 = vpop.f32.mrf.mxu0
      %v1366 = vadd.f32 0.0, %v1365
      %v1367 = vpop.f32.mrf.mxu0
      %v1368 = vpop.f32.mrf.mxu0
      %v1369 = vadd.f32 0.0, %v1368
      %v1370 = vpop.f32.mrf.mxu0
      %1371 = vmatprep.mubr.bf16.mxu0 0
      %1372 = vmatmul.mubr.bf16.gmra.mxu0 %v1249
      %v1373 = vpop.f32.mrf.mxu0
      %v1374 = vadd.f32 0.0, %v1373
      %v1375 = vpop.f32.mrf.mxu0
      %v1376 = vpop.f32.mrf.mxu0
      %v1377 = vadd.f32 0.0, %v1376
      %v1378 = vpop.f32.mrf.mxu0
      %1379 = vmatprep.mubr.bf16.mxu0 0
      %1380 = vmatmul.mubr.bf16.gmra.mxu0 %v1252
      %v1381 = vpop.f32.mrf.mxu0
      %v1382 = vadd.f32 0.0, %v1381
      %v1383 = vpop.f32.mrf.mxu0
      %v1384 = vpop.f32.mrf.mxu0
      %v1385 = vadd.f32 0.0, %v1384
      %v1386 = vpop.f32.mrf.mxu0
      %1387 = vmatprep.mubr.bf16.mxu0 0
      %1388 = vmatmul.mubr.bf16.gmra.mxu0 %v1255
      %v1389 = vpop.f32.mrf.mxu0
      %v1390 = vadd.f32 0.0, %v1389
      %v1391 = vpop.f32.mrf.mxu0
      %v1392 = vpop.f32.mrf.mxu0
      %v1393 = vadd.f32 0.0, %v1392
      %v1394 = vpop.f32.mrf.mxu0
      %1395 = vmatprep.mubr.bf16.mxu0 0
      %1396 = vmatmul.mubr.bf16.gmra.mxu0 %v1258
      %v1397 = vpop.f32.mrf.mxu0
      %v1398 = vadd.f32 0.0, %v1397
      %v1399 = vpop.f32.mrf.mxu0
      %v1400 = vpop.f32.mrf.mxu0
      %v1401 = vadd.f32 0.0, %v1400
      %v1402 = vpop.f32.mrf.mxu0
      %1403 = vmatprep.mubr.bf16.mxu0 0
      %1404 = vmatmul.mubr.bf16.gmra.mxu0 %v1261
      %v1405 = vpop.f32.mrf.mxu0
      %v1406 = vadd.f32 0.0, %v1405
      %v1407 = vpop.f32.mrf.mxu0
      %v1408 = vpop.f32.mrf.mxu0
      %v1409 = vadd.f32 0.0, %v1408
      %v1410 = vpop.f32.mrf.mxu0
      %1411 = vmatprep.mubr.bf16.mxu0 0
      %1412 = vmatmul.mubr.bf16.gmra.mxu0 %v1264
      %v1413 = vpop.f32.mrf.mxu0
      %v1414 = vadd.f32 0.0, %v1413
      %v1415 = vpop.f32.mrf.mxu0
      %v1416 = vpop.f32.mrf.mxu0
      %v1417 = vadd.f32 0.0, %v1416
      %v1418 = vpop.f32.mrf.mxu0
      %1419 = vmatprep.mubr.bf16.mxu0 0
      %1420 = vmatmul.mubr.bf16.gmra.mxu0 %v1267
      %v1421 = vpop.f32.mrf.mxu0
      %v1422 = vadd.f32 0.0, %v1421
      %v1423 = vpop.f32.mrf.mxu0
      %v1424 = vpop.f32.mrf.mxu0
      %v1425 = vadd.f32 0.0, %v1424
      %v1426 = vpop.f32.mrf.mxu0
      %1427 = vmatprep.mubr.bf16.mxu0 0
      %1428 = vmatmul.mubr.bf16.gmra.mxu0 %v1270
      %v1429 = vpop.f32.mrf.mxu0
      %v1430 = vadd.f32 0.0, %v1429
      %v1431 = vpop.f32.mrf.mxu0
      %v1432 = vpop.f32.mrf.mxu0
      %v1433 = vadd.f32 0.0, %v1432
      %v1434 = vpop.f32.mrf.mxu0
      %1435 = vmatprep.mubr.bf16.mxu0 0
      %1436 = vmatmul.mubr.bf16.gmra.mxu0 %v1273
      %v1437 = vpop.f32.mrf.mxu0
      %v1438 = vadd.f32 0.0, %v1437
      %v1439 = vpop.f32.mrf.mxu0
      %v1440 = vpop.f32.mrf.mxu0
      %v1441 = vadd.f32 0.0, %v1440
      %v1442 = vpop.f32.mrf.mxu0
      %1443 = vdwg.mxu0
      %v1444 = vadd.f32 %v810, %v1310
      %v1445 = vadd.f32 %v813, %v1313
      %v1446 = vadd.f32 %v818, %v1318
      %v1447 = vadd.f32 %v821, %v1321
      %v1448 = vadd.f32 %v826, %v1326
      %v1449 = vadd.f32 %v829, %v1329
      %v1450 = vadd.f32 %v834, %v1334
      %v1451 = vadd.f32 %v837, %v1337
      %v1452 = vadd.f32 %v842, %v1342
      %v1453 = vadd.f32 %v845, %v1345
      %v1454 = vadd.f32 %v850, %v1350
      %v1455 = vadd.f32 %v853, %v1353
      %v1456 = vadd.f32 %v858, %v1358
      %v1457 = vadd.f32 %v861, %v1361
      %v1458 = vadd.f32 %v866, %v1366
      %v1459 = vadd.f32 %v869, %v1369
      %v1460 = vadd.f32 %v874, %v1374
      %v1461 = vadd.f32 %v877, %v1377
      %v1462 = vadd.f32 %v882, %v1382
      %v1463 = vadd.f32 %v885, %v1385
      %v1464 = vadd.f32 %v890, %v1390
      %v1465 = vadd.f32 %v893, %v1393
      %v1466 = vadd.f32 %v898, %v1398
      %v1467 = vadd.f32 %v901, %v1401
      %v1468 = vadd.f32 %v906, %v1406
      %v1469 = vadd.f32 %v909, %v1409
      %v1470 = vadd.f32 %v914, %v1414
      %v1471 = vadd.f32 %v917, %v1417
      %v1472 = vadd.f32 %v922, %v1422
      %v1473 = vadd.f32 %v925, %v1425
      %v1474 = vadd.f32 %v930, %v1430
      %v1475 = vadd.f32 %v933, %v1433
      %v1476 = vadd.f32 %v938, %v1438
      %v1477 = vadd.f32 %v941, %v1441
      %v1478 = vld [vmem:[%s206 + $0x8] sm:$0xe]
      %s1479 = scalar_lea.vmem %s210, 48
      %v1480 = vld [vmem:[%s1479] sm:$0xf]
      %v1481 = vld [vmem:[%s1479 + $0x4] sm:$0xf]
      %v1482 = vld [vmem:[%s1479 + $0x8] sm:$0xf]
      %v1483 = vld [vmem:[%s1479 + $0xc] sm:$0xf]
      %v1485 = vunpack.c.l.b16 %v1478
      %v1486 = vpack.c.b16 %v1020, %v1485
      %vm1487 = vcmask 1046528
      %v1488 = vrot.slane %v1486, 1
      %v1489 = vrot.slane %v1055, 1
      %v1490 = vsel %vm1487, %v1488, %v1489
      %v1491 = vrot.slane %v1056, 1
      %v1492 = vsel %vm1487, %v1489, %v1491
      %v1493 = vrot.slane %v1057, 1
      %v1494 = vsel %vm1487, %v1491, %v1493
      %v1495 = vrot.slane %v1058, 1
      %v1496 = vsel %vm1487, %v1493, %v1495
      %v1497 = vrot.slane %v1059, 1
      %v1498 = vsel %vm1487, %v1495, %v1497
      %v1499 = vrot.slane %v1060, 1
      %v1500 = vsel %vm1487, %v1497, %v1499
      %v1501 = vrot.slane %v1061, 1
      %v1502 = vsel %vm1487, %v1499, %v1501
      %v1503 = vrot.slane %v1062, 1
      %v1504 = vsel %vm1487, %v1501, %v1503
      %v1505 = vrot.slane %v1063, 1
      %v1506 = vsel %vm1487, %v1503, %v1505
      %v1507 = vrot.slane %v1064, 1
      %v1508 = vsel %vm1487, %v1505, %v1507
      %v1509 = vrot.slane %v1065, 1
      %v1510 = vsel %vm1487, %v1507, %v1509
      %v1511 = vrot.slane %v1066, 1
      %v1512 = vsel %vm1487, %v1509, %v1511
      %v1513 = vrot.slane %v1067, 1
      %v1514 = vsel %vm1487, %v1511, %v1513
      %v1515 = vrot.slane %v1068, 1
      %v1516 = vsel %vm1487, %v1513, %v1515
      %v1517 = vrot.slane %v1069, 1
      %v1518 = vsel %vm1487, %v1515, %v1517
      %v1519 = vrot.slane %v1070, 1
      %v1520 = vsel %vm1487, %v1517, %v1519
      %v1521 = vrot.slane %v1071, 1
      %v1522 = vsel %vm1487, %v1519, %v1521
      %v1527 = vunpack.c.l.b16 %v1480
      %v1528 = vunpack.c.l.b16 %v1481
      %v1529 = vunpack.c.l.b16 %v1482
      %v1530 = vunpack.c.l.b16 %v1483
      %v1531 = vpack.c.b16 %v1528, %v1527
      %v1532 = vpack.c.b16 %v1530, %v1529
      %v1536 = vsel %vm508, %v1490, 0
      %v1539 = vsel %vm508, %v1492, 0
      %v1542 = vsel %vm508, %v1494, 0
      %v1545 = vsel %vm508, %v1496, 0
      %v1548 = vsel %vm508, %v1498, 0
      %v1551 = vsel %vm508, %v1500, 0
      %v1554 = vsel %vm508, %v1502, 0
      %v1557 = vsel %vm508, %v1504, 0
      %v1560 = vsel %vm508, %v1506, 0
      %v1563 = vsel %vm508, %v1508, 0
      %v1566 = vsel %vm508, %v1510, 0
      %v1569 = vsel %vm508, %v1512, 0
      %v1572 = vsel %vm508, %v1514, 0
      %v1575 = vsel %vm508, %v1516, 0
      %v1578 = vsel %vm508, %v1518, 0
      %v1581 = vsel %vm508, %v1520, 0
      %v1584 = vsel %vm508, %v1522, 0
      %1586 = vmatprep.subr.bf16.mxu0 0
      %1587 = vmatpush1.bf16.msra.mxu0 0
      %1588 = vmatprep.subr.bf16.mxu0 0
      %1589 = vmatpush1.bf16.msra.mxu0 0
      %1590 = vmatprep.subr.bf16.mxu0 0
      %1591 = vmatpush1.bf16.msra.mxu0 0
      %1592 = vmatprep.subr.bf16.mxu0 0
      %1593 = vmatpush1.bf16.msra.mxu0 0
      %1594 = vmatprep.subr.bf16.mxu0 0
      %1595 = vmatpush1.bf16.msra.mxu0 0
      %1596 = vmatprep.subr.bf16.mxu0 0
      %1597 = vmatpush1.bf16.msra.mxu0 0
      %1598 = vmatprep.subr.bf16.mxu0 0
      %1599 = vmatpush1.bf16.msra.mxu0 %v1532
      %1600 = vmatprep.subr.bf16.mxu0 0
      %1601 = vmatpush1.bf16.msra.mxu0 %v1531
      %1602 = vmatprep.subr.bf16.mxu0 0
      %1603 = vmatpush2.bf16.msra.mxu0 0
      %1604 = vmatprep.subr.bf16.mxu0 0
      %1605 = vmatpush2.bf16.msra.mxu0 0
      %1606 = vmatprep.subr.bf16.mxu0 0
      %1607 = vmatpush2.bf16.msra.mxu0 0
      %1608 = vmatprep.subr.bf16.mxu0 0
      %1609 = vmatpush2.bf16.msra.mxu0 0
      %1610 = vmatprep.subr.bf16.mxu0 0
      %1611 = vmatpush2.bf16.msra.mxu0 0
      %1612 = vmatprep.subr.bf16.mxu0 0
      %1613 = vmatpush2.bf16.msra.mxu0 0
      %1614 = vmatprep.subr.bf16.mxu0 0
      %1615 = vmatpush2.bf16.msra.mxu0 0
      %1616 = vmatprep.subr.bf16.mxu0 0
      %1617 = vmatpush2.bf16.msra.mxu0 0
      %1618 = vmatprep.mubr.bf16.mxu0 0
      %1619 = vmatmul.mubr.bf16.gmra.mxu0 %v1536
      %v1620 = vpop.f32.mrf.mxu0
      %v1621 = vadd.f32 0.0, %v1620
      %v1622 = vpop.f32.mrf.mxu0
      %v1623 = vpop.f32.mrf.mxu0
      %v1624 = vadd.f32 0.0, %v1623
      %v1625 = vpop.f32.mrf.mxu0
      %1626 = vmatprep.mubr.bf16.mxu0 0
      %1627 = vmatmul.mubr.bf16.gmra.mxu0 %v1539
      %v1628 = vpop.f32.mrf.mxu0
      %v1629 = vadd.f32 0.0, %v1628
      %v1630 = vpop.f32.mrf.mxu0
      %v1631 = vpop.f32.mrf.mxu0
      %v1632 = vadd.f32 0.0, %v1631
      %v1633 = vpop.f32.mrf.mxu0
      %1634 = vmatprep.mubr.bf16.mxu0 0
      %1635 = vmatmul.mubr.bf16.gmra.mxu0 %v1542
      %v1636 = vpop.f32.mrf.mxu0
      %v1637 = vadd.f32 0.0, %v1636
      %v1638 = vpop.f32.mrf.mxu0
      %v1639 = vpop.f32.mrf.mxu0
      %v1640 = vadd.f32 0.0, %v1639
      %v1641 = vpop.f32.mrf.mxu0
      %1642 = vmatprep.mubr.bf16.mxu0 0
      %1643 = vmatmul.mubr.bf16.gmra.mxu0 %v1545
      %v1644 = vpop.f32.mrf.mxu0
      %v1645 = vadd.f32 0.0, %v1644
      %v1646 = vpop.f32.mrf.mxu0
      %v1647 = vpop.f32.mrf.mxu0
      %v1648 = vadd.f32 0.0, %v1647
      %v1649 = vpop.f32.mrf.mxu0
      %1650 = vmatprep.mubr.bf16.mxu0 0
      %1651 = vmatmul.mubr.bf16.gmra.mxu0 %v1548
      %v1652 = vpop.f32.mrf.mxu0
      %v1653 = vadd.f32 0.0, %v1652
      %v1654 = vpop.f32.mrf.mxu0
      %v1655 = vpop.f32.mrf.mxu0
      %v1656 = vadd.f32 0.0, %v1655
      %v1657 = vpop.f32.mrf.mxu0
      %1658 = vmatprep.mubr.bf16.mxu0 0
      %1659 = vmatmul.mubr.bf16.gmra.mxu0 %v1551
      %v1660 = vpop.f32.mrf.mxu0
      %v1661 = vadd.f32 0.0, %v1660
      %v1662 = vpop.f32.mrf.mxu0
      %v1663 = vpop.f32.mrf.mxu0
      %v1664 = vadd.f32 0.0, %v1663
      %v1665 = vpop.f32.mrf.mxu0
      %1666 = vmatprep.mubr.bf16.mxu0 0
      %1667 = vmatmul.mubr.bf16.gmra.mxu0 %v1554
      %v1668 = vpop.f32.mrf.mxu0
      %v1669 = vadd.f32 0.0, %v1668
      %v1670 = vpop.f32.mrf.mxu0
      %v1671 = vpop.f32.mrf.mxu0
      %v1672 = vadd.f32 0.0, %v1671
      %v1673 = vpop.f32.mrf.mxu0
      %1674 = vmatprep.mubr.bf16.mxu0 0
      %1675 = vmatmul.mubr.bf16.gmra.mxu0 %v1557
      %v1676 = vpop.f32.mrf.mxu0
      %v1677 = vadd.f32 0.0, %v1676
      %v1678 = vpop.f32.mrf.mxu0
      %v1679 = vpop.f32.mrf.mxu0
      %v1680 = vadd.f32 0.0, %v1679
      %v1681 = vpop.f32.mrf.mxu0
      %1682 = vmatprep.mubr.bf16.mxu0 0
      %1683 = vmatmul.mubr.bf16.gmra.mxu0 %v1560
      %v1684 = vpop.f32.mrf.mxu0
      %v1685 = vadd.f32 0.0, %v1684
      %v1686 = vpop.f32.mrf.mxu0
      %v1687 = vpop.f32.mrf.mxu0
      %v1688 = vadd.f32 0.0, %v1687
      %v1689 = vpop.f32.mrf.mxu0
      %1690 = vmatprep.mubr.bf16.mxu0 0
      %1691 = vmatmul.mubr.bf16.gmra.mxu0 %v1563
      %v1692 = vpop.f32.mrf.mxu0
      %v1693 = vadd.f32 0.0, %v1692
      %v1694 = vpop.f32.mrf.mxu0
      %v1695 = vpop.f32.mrf.mxu0
      %v1696 = vadd.f32 0.0, %v1695
      %v1697 = vpop.f32.mrf.mxu0
      %1698 = vmatprep.mubr.bf16.mxu0 0
      %1699 = vmatmul.mubr.bf16.gmra.mxu0 %v1566
      %v1700 = vpop.f32.mrf.mxu0
      %v1701 = vadd.f32 0.0, %v1700
      %v1702 = vpop.f32.mrf.mxu0
      %v1703 = vpop.f32.mrf.mxu0
      %v1704 = vadd.f32 0.0, %v1703
      %v1705 = vpop.f32.mrf.mxu0
      %1706 = vmatprep.mubr.bf16.mxu0 0
      %1707 = vmatmul.mubr.bf16.gmra.mxu0 %v1569
      %v1708 = vpop.f32.mrf.mxu0
      %v1709 = vadd.f32 0.0, %v1708
      %v1710 = vpop.f32.mrf.mxu0
      %v1711 = vpop.f32.mrf.mxu0
      %v1712 = vadd.f32 0.0, %v1711
      %v1713 = vpop.f32.mrf.mxu0
      %1714 = vmatprep.mubr.bf16.mxu0 0
      %1715 = vmatmul.mubr.bf16.gmra.mxu0 %v1572
      %v1716 = vpop.f32.mrf.mxu0
      %v1717 = vadd.f32 0.0, %v1716
      %v1718 = vpop.f32.mrf.mxu0
      %v1719 = vpop.f32.mrf.mxu0
      %v1720 = vadd.f32 0.0, %v1719
      %v1721 = vpop.f32.mrf.mxu0
      %1722 = vmatprep.mubr.bf16.mxu0 0
      %1723 = vmatmul.mubr.bf16.gmra.mxu0 %v1575
      %v1724 = vpop.f32.mrf.mxu0
      %v1725 = vadd.f32 0.0, %v1724
      %v1726 = vpop.f32.mrf.mxu0
      %v1727 = vpop.f32.mrf.mxu0
      %v1728 = vadd.f32 0.0, %v1727
      %v1729 = vpop.f32.mrf.mxu0
      %1730 = vmatprep.mubr.bf16.mxu0 0
      %1731 = vmatmul.mubr.bf16.gmra.mxu0 %v1578
      %v1732 = vpop.f32.mrf.mxu0
      %v1733 = vadd.f32 0.0, %v1732
      %v1734 = vpop.f32.mrf.mxu0
      %v1735 = vpop.f32.mrf.mxu0
      %v1736 = vadd.f32 0.0, %v1735
      %v1737 = vpop.f32.mrf.mxu0
      %1738 = vmatprep.mubr.bf16.mxu0 0
      %1739 = vmatmul.mubr.bf16.gmra.mxu0 %v1581
      %v1740 = vpop.f32.mrf.mxu0
      %v1741 = vadd.f32 0.0, %v1740
      %v1742 = vpop.f32.mrf.mxu0
      %v1743 = vpop.f32.mrf.mxu0
      %v1744 = vadd.f32 0.0, %v1743
      %v1745 = vpop.f32.mrf.mxu0
      %1746 = vmatprep.mubr.bf16.mxu0 0
      %1747 = vmatmul.mubr.bf16.gmra.mxu0 %v1584
      %v1748 = vpop.f32.mrf.mxu0
      %v1749 = vadd.f32 0.0, %v1748
      %v1750 = vpop.f32.mrf.mxu0
      %v1751 = vpop.f32.mrf.mxu0
      %v1752 = vadd.f32 0.0, %v1751
      %v1753 = vpop.f32.mrf.mxu0
      %1754 = vdwg.mxu0
      %v1755 = vadd.f32 %v1444, %v1621
      %v1756 = vadd.f32 %v1445, %v1624
      %v1757 = vadd.f32 %v1446, %v1629
      %v1758 = vadd.f32 %v1447, %v1632
      %v1759 = vadd.f32 %v1448, %v1637
      %v1760 = vadd.f32 %v1449, %v1640
      %v1761 = vadd.f32 %v1450, %v1645
      %v1762 = vadd.f32 %v1451, %v1648
      %v1763 = vadd.f32 %v1452, %v1653
      %v1764 = vadd.f32 %v1453, %v1656
      %v1765 = vadd.f32 %v1454, %v1661
      %v1766 = vadd.f32 %v1455, %v1664
      %v1767 = vadd.f32 %v1456, %v1669
      %v1768 = vadd.f32 %v1457, %v1672
      %v1769 = vadd.f32 %v1458, %v1677
      %v1770 = vadd.f32 %v1459, %v1680
      %v1771 = vadd.f32 %v1460, %v1685
      %v1772 = vadd.f32 %v1461, %v1688
      %v1773 = vadd.f32 %v1462, %v1693
      %v1774 = vadd.f32 %v1463, %v1696
      %v1775 = vadd.f32 %v1464, %v1701
      %v1776 = vadd.f32 %v1465, %v1704
      %v1777 = vadd.f32 %v1466, %v1709
      %v1778 = vadd.f32 %v1467, %v1712
      %v1779 = vadd.f32 %v1468, %v1717
      %v1780 = vadd.f32 %v1469, %v1720
      %v1781 = vadd.f32 %v1470, %v1725
      %v1782 = vadd.f32 %v1471, %v1728
      %v1783 = vadd.f32 %v1472, %v1733
      %v1784 = vadd.f32 %v1473, %v1736
      %v1785 = vadd.f32 %v1474, %v1741
      %v1786 = vadd.f32 %v1475, %v1744
      %v1787 = vadd.f32 %v1476, %v1749
      %v1788 = vadd.f32 %v1477, %v1752
      %v1789 = vld [vmem:[%s213] sm:$0x1]
      %v1791 = vlaneseq
      %v1792 = vshrl.u32 %v1791, 7
      %v1793 = vsub.s32 0, %v1792
      %v1794 = vrot.slane %v1789, %v1793
      %v1796 = vadd.f32 %v1755, %v1794
      %v1797 = vadd.f32 %v1756, %v1794
      %v1798 = vadd.f32 %v1757, %v1794
      %v1799 = vadd.f32 %v1758, %v1794
      %v1800 = vadd.f32 %v1759, %v1794
      %v1801 = vadd.f32 %v1760, %v1794
      %v1802 = vadd.f32 %v1761, %v1794
      %v1803 = vadd.f32 %v1762, %v1794
      %v1804 = vadd.f32 %v1763, %v1794
      %v1805 = vadd.f32 %v1764, %v1794
      %v1806 = vadd.f32 %v1765, %v1794
      %v1807 = vadd.f32 %v1766, %v1794
      %v1808 = vadd.f32 %v1767, %v1794
      %v1809 = vadd.f32 %v1768, %v1794
      %v1810 = vadd.f32 %v1769, %v1794
      %v1811 = vadd.f32 %v1770, %v1794
      %v1812 = vadd.f32 %v1771, %v1794
      %v1813 = vadd.f32 %v1772, %v1794
      %v1814 = vadd.f32 %v1773, %v1794
      %v1815 = vadd.f32 %v1774, %v1794
      %v1816 = vadd.f32 %v1775, %v1794
      %v1817 = vadd.f32 %v1776, %v1794
      %v1818 = vadd.f32 %v1777, %v1794
      %v1819 = vadd.f32 %v1778, %v1794
      %v1820 = vadd.f32 %v1779, %v1794
      %v1821 = vadd.f32 %v1780, %v1794
      %v1822 = vadd.f32 %v1781, %v1794
      %v1823 = vadd.f32 %v1782, %v1794
      %v1824 = vadd.f32 %v1783, %v1794
      %v1825 = vadd.f32 %v1784, %v1794
      %v1826 = vadd.f32 %v1785, %v1794
      %v1827 = vadd.f32 %v1786, %v1794
      %v1828 = vadd.f32 %v1787, %v1794
      %v1829 = vadd.f32 %v1788, %v1794
      %vm1830 = vcmp.gt.f32.partialorder %v1796, 0.0
      %vm1831 = vcmp.gt.f32.partialorder %v1797, 0.0
      %vm1832 = vcmp.gt.f32.partialorder %v1798, 0.0
      %vm1833 = vcmp.gt.f32.partialorder %v1799, 0.0
      %vm1834 = vcmp.gt.f32.partialorder %v1800, 0.0
      %vm1835 = vcmp.gt.f32.partialorder %v1801, 0.0
      %vm1836 = vcmp.gt.f32.partialorder %v1802, 0.0
      %vm1837 = vcmp.gt.f32.partialorder %v1803, 0.0
      %vm1838 = vcmp.gt.f32.partialorder %v1804, 0.0
      %vm1839 = vcmp.gt.f32.partialorder %v1805, 0.0
      %vm1840 = vcmp.gt.f32.partialorder %v1806, 0.0
      %vm1841 = vcmp.gt.f32.partialorder %v1807, 0.0
      %vm1842 = vcmp.gt.f32.partialorder %v1808, 0.0
      %vm1843 = vcmp.gt.f32.partialorder %v1809, 0.0
      %vm1844 = vcmp.gt.f32.partialorder %v1810, 0.0
      %vm1845 = vcmp.gt.f32.partialorder %v1811, 0.0
      %vm1846 = vcmp.gt.f32.partialorder %v1812, 0.0
      %vm1847 = vcmp.gt.f32.partialorder %v1813, 0.0
      %vm1848 = vcmp.gt.f32.partialorder %v1814, 0.0
      %vm1849 = vcmp.gt.f32.partialorder %v1815, 0.0
      %vm1850 = vcmp.gt.f32.partialorder %v1816, 0.0
      %vm1851 = vcmp.gt.f32.partialorder %v1817, 0.0
      %vm1852 = vcmp.gt.f32.partialorder %v1818, 0.0
      %vm1853 = vcmp.gt.f32.partialorder %v1819, 0.0
      %vm1854 = vcmp.gt.f32.partialorder %v1820, 0.0
      %vm1855 = vcmp.gt.f32.partialorder %v1821, 0.0
      %vm1856 = vcmp.gt.f32.partialorder %v1822, 0.0
      %vm1857 = vcmp.gt.f32.partialorder %v1823, 0.0
      %vm1858 = vcmp.gt.f32.partialorder %v1824, 0.0
      %vm1859 = vcmp.gt.f32.partialorder %v1825, 0.0
      %vm1860 = vcmp.gt.f32.partialorder %v1826, 0.0
      %vm1861 = vcmp.gt.f32.partialorder %v1827, 0.0
      %vm1862 = vcmp.gt.f32.partialorder %v1828, 0.0
      %vm1863 = vcmp.gt.f32.partialorder %v1829, 0.0
      %v1864 = vmul.f32 %v1796, 0.2
      %v1865 = vmul.f32 %v1797, 0.2
      %v1866 = vmul.f32 %v1798, 0.2
      %v1867 = vmul.f32 %v1799, 0.2
      %v1868 = vmul.f32 %v1800, 0.2
      %v1869 = vmul.f32 %v1801, 0.2
      %v1870 = vmul.f32 %v1802, 0.2
      %v1871 = vmul.f32 %v1803, 0.2
      %v1872 = vmul.f32 %v1804, 0.2
      %v1873 = vmul.f32 %v1805, 0.2
      %v1874 = vmul.f32 %v1806, 0.2
      %v1875 = vmul.f32 %v1807, 0.2
      %v1876 = vmul.f32 %v1808, 0.2
      %v1877 = vmul.f32 %v1809, 0.2
      %v1878 = vmul.f32 %v1810, 0.2
      %v1879 = vmul.f32 %v1811, 0.2
      %v1880 = vmul.f32 %v1812, 0.2
      %v1881 = vmul.f32 %v1813, 0.2
      %v1882 = vmul.f32 %v1814, 0.2
      %v1883 = vmul.f32 %v1815, 0.2
      %v1884 = vmul.f32 %v1816, 0.2
      %v1885 = vmul.f32 %v1817, 0.2
      %v1886 = vmul.f32 %v1818, 0.2
      %v1887 = vmul.f32 %v1819, 0.2
      %v1888 = vmul.f32 %v1820, 0.2
      %v1889 = vmul.f32 %v1821, 0.2
      %v1890 = vmul.f32 %v1822, 0.2
      %v1891 = vmul.f32 %v1823, 0.2
      %v1892 = vmul.f32 %v1824, 0.2
      %v1893 = vmul.f32 %v1825, 0.2
      %v1894 = vmul.f32 %v1826, 0.2
      %v1895 = vmul.f32 %v1827, 0.2
      %v1896 = vmul.f32 %v1828, 0.2
      %v1897 = vmul.f32 %v1829, 0.2
      %v1898 = vsel %vm1830, %v1796, %v1864
      %v1899 = vsel %vm1831, %v1797, %v1865
      %v1900 = vsel %vm1832, %v1798, %v1866
      %v1901 = vsel %vm1833, %v1799, %v1867
      %v1902 = vsel %vm1834, %v1800, %v1868
      %v1903 = vsel %vm1835, %v1801, %v1869
      %v1904 = vsel %vm1836, %v1802, %v1870
      %v1905 = vsel %vm1837, %v1803, %v1871
      %v1906 = vsel %vm1838, %v1804, %v1872
      %v1907 = vsel %vm1839, %v1805, %v1873
      %v1908 = vsel %vm1840, %v1806, %v1874
      %v1909 = vsel %vm1841, %v1807, %v1875
      %v1910 = vsel %vm1842, %v1808, %v1876
      %v1911 = vsel %vm1843, %v1809, %v1877
      %v1912 = vsel %vm1844, %v1810, %v1878
      %v1913 = vsel %vm1845, %v1811, %v1879
      %v1914 = vsel %vm1846, %v1812, %v1880
      %v1915 = vsel %vm1847, %v1813, %v1881
      %v1916 = vsel %vm1848, %v1814, %v1882
      %v1917 = vsel %vm1849, %v1815, %v1883
      %v1918 = vsel %vm1850, %v1816, %v1884
      %v1919 = vsel %vm1851, %v1817, %v1885
      %v1920 = vsel %vm1852, %v1818, %v1886
      %v1921 = vsel %vm1853, %v1819, %v1887
      %v1922 = vsel %vm1854, %v1820, %v1888
      %v1923 = vsel %vm1855, %v1821, %v1889
      %v1924 = vsel %vm1856, %v1822, %v1890
      %v1925 = vsel %vm1857, %v1823, %v1891
      %v1926 = vsel %vm1858, %v1824, %v1892
      %v1927 = vsel %vm1859, %v1825, %v1893
      %v1928 = vsel %vm1860, %v1826, %v1894
      %v1929 = vsel %vm1861, %v1827, %v1895
      %v1930 = vsel %vm1862, %v1828, %v1896
      %v1931 = vsel %vm1863, %v1829, %v1897
      %v1932 = vpack.c.bf16 %v1899, %v1898
      %v1933 = vpack.c.bf16 %v1901, %v1900
      %v1934 = vpack.c.bf16 %v1903, %v1902
      %v1935 = vpack.c.bf16 %v1905, %v1904
      %v1936 = vpack.c.bf16 %v1907, %v1906
      %v1937 = vpack.c.bf16 %v1909, %v1908
      %v1938 = vpack.c.bf16 %v1911, %v1910
      %v1939 = vpack.c.bf16 %v1913, %v1912
      %v1940 = vpack.c.bf16 %v1915, %v1914
      %v1941 = vpack.c.bf16 %v1917, %v1916
      %v1942 = vpack.c.bf16 %v1919, %v1918
      %v1943 = vpack.c.bf16 %v1921, %v1920
      %v1944 = vpack.c.bf16 %v1923, %v1922
      %v1945 = vpack.c.bf16 %v1925, %v1924
      %v1946 = vpack.c.bf16 %v1927, %v1926
      %v1947 = vpack.c.bf16 %v1929, %v1928
      %v1948 = vpack.c.bf16 %v1931, %v1930
      %v1966 = vunpack.c.l.b16 %v1932
      %v1967 = vunpack.c.h.b16 %v1932
      %v1968 = vunpack.c.l.b16 %v1933
      %v1969 = vunpack.c.h.b16 %v1933
      %v1970 = vunpack.c.l.b16 %v1934
      %v1971 = vunpack.c.h.b16 %v1934
      %v1972 = vunpack.c.l.b16 %v1935
      %v1973 = vunpack.c.h.b16 %v1935
      %v1974 = vunpack.c.l.b16 %v1936
      %v1975 = vunpack.c.h.b16 %v1936
      %v1976 = vunpack.c.l.b16 %v1937
      %v1977 = vunpack.c.h.b16 %v1937
      %v1978 = vunpack.c.l.b16 %v1938
      %v1979 = vunpack.c.h.b16 %v1938
      %v1980 = vunpack.c.l.b16 %v1939
      %v1981 = vunpack.c.h.b16 %v1939
      %v1982 = vunpack.c.l.b16 %v1940
      %v1983 = vunpack.c.h.b16 %v1940
      %v1984 = vunpack.c.l.b16 %v1941
      %v1985 = vunpack.c.h.b16 %v1941
      %v1986 = vunpack.c.l.b16 %v1942
      %v1987 = vunpack.c.h.b16 %v1942
      %v1988 = vunpack.c.l.b16 %v1943
      %v1989 = vunpack.c.h.b16 %v1943
      %v1990 = vunpack.c.l.b16 %v1944
      %v1991 = vunpack.c.h.b16 %v1944
      %v1992 = vunpack.c.l.b16 %v1945
      %v1993 = vunpack.c.h.b16 %v1945
      %v1994 = vunpack.c.l.b16 %v1946
      %v1995 = vunpack.c.h.b16 %v1946
      %v1996 = vunpack.c.l.b16 %v1947
      %v1997 = vunpack.c.h.b16 %v1947
      %v1998 = vunpack.c.l.b16 %v1948
      %v1999 = vunpack.c.h.b16 %v1948
      %v2000 = vpack.c.b16 %v1966, %v1966
      %v2001 = vpack.c.b16 %v1967, %v1967
      %v2002 = vpack.c.b16 %v1968, %v1968
      %v2003 = vpack.c.b16 %v1969, %v1969
      %v2004 = vpack.c.b16 %v1970, %v1970
      %v2005 = vpack.c.b16 %v1971, %v1971
      %v2006 = vpack.c.b16 %v1972, %v1972
      %v2007 = vpack.c.b16 %v1973, %v1973
      %v2008 = vpack.c.b16 %v1974, %v1974
      %v2009 = vpack.c.b16 %v1975, %v1975
      %v2010 = vpack.c.b16 %v1976, %v1976
      %v2011 = vpack.c.b16 %v1977, %v1977
      %v2012 = vpack.c.b16 %v1978, %v1978
      %v2013 = vpack.c.b16 %v1979, %v1979
      %v2014 = vpack.c.b16 %v1980, %v1980
      %v2015 = vpack.c.b16 %v1981, %v1981
      %v2016 = vpack.c.b16 %v1982, %v1982
      %v2017 = vpack.c.b16 %v1983, %v1983
      %v2018 = vpack.c.b16 %v1984, %v1984
      %v2019 = vpack.c.b16 %v1985, %v1985
      %v2020 = vpack.c.b16 %v1986, %v1986
      %v2021 = vpack.c.b16 %v1987, %v1987
      %v2022 = vpack.c.b16 %v1988, %v1988
      %v2023 = vpack.c.b16 %v1989, %v1989
      %v2024 = vpack.c.b16 %v1990, %v1990
      %v2025 = vpack.c.b16 %v1991, %v1991
      %v2026 = vpack.c.b16 %v1992, %v1992
      %v2027 = vpack.c.b16 %v1993, %v1993
      %v2028 = vpack.c.b16 %v1994, %v1994
      %v2029 = vpack.c.b16 %v1995, %v1995
      %v2030 = vpack.c.b16 %v1996, %v1996
      %v2031 = vpack.c.b16 %v1997, %v1997
      %v2032 = vpack.c.b16 %v1998, %v1998
      %v2033 = vpack.c.b16 %v1999, %v1999
      %2068 = vst [vmem:[%s221] sm:$0xf] %v2000
      %2069 = vst [vmem:[%s221 + $0x4] sm:$0xf] %v2001
      %2070 = vst [vmem:[%s221 + $0x8] sm:$0xf] %v2002
      %2071 = vst [vmem:[%s221 + $0xc] sm:$0xf] %v2003
      %2072 = vst [vmem:[%s221 + $0x10] sm:$0xf] %v2004
      %2073 = vst [vmem:[%s221 + $0x14] sm:$0xf] %v2005
      %2074 = vst [vmem:[%s221 + $0x18] sm:$0xf] %v2006
      %2075 = vst [vmem:[%s221 + $0x1c] sm:$0xf] %v2007
      %2076 = vst [vmem:[%s221 + $0x20] sm:$0xf] %v2008
      %2077 = vst [vmem:[%s221 + $0x24] sm:$0xf] %v2009
      %2078 = vst [vmem:[%s221 + $0x28] sm:$0xf] %v2010
      %2079 = vst [vmem:[%s221 + $0x2c] sm:$0xf] %v2011
      %2080 = vst [vmem:[%s221 + $0x30] sm:$0xf] %v2012
      %2081 = vst [vmem:[%s221 + $0x34] sm:$0xf] %v2013
      %2082 = vst [vmem:[%s221 + $0x38] sm:$0xf] %v2014
      %2083 = vst [vmem:[%s221 + $0x3c] sm:$0xf] %v2015
      %2084 = vst [vmem:[%s221 + $0x40] sm:$0xf] %v2016
      %2085 = vst [vmem:[%s221 + $0x44] sm:$0xf] %v2017
      %2086 = vst [vmem:[%s221 + $0x48] sm:$0xf] %v2018
      %2087 = vst [vmem:[%s221 + $0x4c] sm:$0xf] %v2019
      %2088 = vst [vmem:[%s221 + $0x50] sm:$0xf] %v2020
      %2089 = vst [vmem:[%s221 + $0x54] sm:$0xf] %v2021
      %2090 = vst [vmem:[%s221 + $0x58] sm:$0xf] %v2022
      %2091 = vst [vmem:[%s221 + $0x5c] sm:$0xf] %v2023
      %2092 = vst [vmem:[%s221 + $0x60] sm:$0xf] %v2024
      %2093 = vst [vmem:[%s221 + $0x64] sm:$0xf] %v2025
      %2094 = vst [vmem:[%s221 + $0x68] sm:$0xf] %v2026
      %2095 = vst [vmem:[%s221 + $0x6c] sm:$0xf] %v2027
      %2096 = vst [vmem:[%s221 + $0x70] sm:$0xf] %v2028
      %2097 = vst [vmem:[%s221 + $0x74] sm:$0xf] %v2029
      %2098 = vst [vmem:[%s221 + $0x78] sm:$0xf] %v2030
      %2099 = vst [vmem:[%s221 + $0x7c] sm:$0xf] %v2031
      %2100 = vst [vmem:[%s221 + $0x80] sm:$0xf] %v2032
      %2101 = vst [vmem:[%s221 + $0x84] sm:$0xf] %v2033
      %p2102 = scmp.lt.s32.totalorder %s19, 1
      %s2103 = scalar_select %p2102, %s19, 1
      %p2104 = scmp.lt.s32.totalorder %s18, 0
      %s2105 = scalar_select %p2104, %s18, 0
      %s2106 = smul.addr %s2103, 34
      %s2107 = sadd.s32 %s2105, %s2106
      %s2108 = smul.addr %s2107, 4
      %s2109 = scalar_lea.vmem %s3, %s2108
      // Predicated region
      $region33: #{d_net128_forward.7} parent=31 // pred_check
        %p2110 = pneg %p124
      $region34: #{d_net128_forward.7} parent=31 // pred_check_branch
        %2112 = sbr.rel (%p2110) target = $region36
      $region35: #{d_net128_forward.7} parent=31 // pred_region
        _
      $region36: #{d_net128_forward.7} parent=31 // pred_fallthru
        _
    $region32: #{d_net128_forward.7} parent=5 // pred_fallthru
      _
    %p2113 = scmp.le.s32.totalorder 2, %s9
    // Predicated region
    $region37: #{d_net128_forward.7} parent=5 // pred_check
      %p2114 = pneg %p2113
    $region38: #{d_net128_forward.7} parent=5 // pred_check_branch
      %2116 = sbr.rel (%p2114) target = $region40
    $region39: #{d_net128_forward.7} parent=5 // pred_region
      %s2117 = ssub.s32 %s9, 2
      // Predicated region
      $region41: #{d_net128_forward.7} parent=39 // pred_check
        %p2118 = pneg %p130
      $region42: #{d_net128_forward.7} parent=39 // pred_check_branch
        %2120 = sbr.rel (%p2118) target = $region44
      $region43: #{d_net128_forward.7} parent=39 // pred_region
        %p2121 = scmp.lt.s32.totalorder %s21, 1
        %s2122 = scalar_select %p2121, %s21, 1
        %p2123 = scmp.lt.s32.totalorder %s20, 0
        %s2124 = scalar_select %p2123, %s20, 0
        %s2125 = smul.addr %s2122, 34
        %s2126 = sadd.s32 %s2124, %s2125
        %s2127 = smul.addr %s2126, 4
        %s2128 = scalar_lea.vmem %s3, %s2127
      $region44: #{d_net128_forward.7} parent=39 // pred_fallthru
        _
    $region40: #{d_net128_forward.7} parent=5 // pred_fallthru
      _
  $region6: #{d_net128_forward.7} parent=0 // loop_footer
    %s13 = sadd.s32 1, %s9
  $region7: #{d_net128_forward.7} parent=0 // loop_footer_branch
    %8 = sbr.rel target = $region3
  $region8: #{d_net128_forward.7} parent=0 // loop_exit
    _

// kernel: d_net128_forward.8
$region0: #{d_net128_forward.8}
  #allocation0 [shape = 'u32[]', space=smem, size = 0x4, offset = 0x4, fixed_abs, tag = 'smem constant byte address 0x4 - core index']
  #allocation1 [shape = 'u32[144,128]{1,0:T(1,128)}', space=vmem, size = 0x12000, scoped, tag = 'internal scratch']
  %s0 = inlined_call_operand.vmem [shape: bf16[2,90,64], index: 0, kind: input, shape index: {}]
  %s1 = inlined_call_operand.vmem [shape: bf16[4,64,128], index: 1, kind: input, shape index: {}]
  %s2 = inlined_call_operand.vmem [shape: f32[1,128], index: 2, kind: input, shape index: {}]
  %s3 = inlined_call_operand.vmem [shape: bf16[2,72,128], index: 3, kind: output, shape index: {}]
  %s4 = sld [smem:[#allocation0]]
  $region45: #{d_net128_forward.8} parent=0
    _
  %s6 = ssub.s32 1, %s4
  %s7 = scalar_select 0, %s6, %s4
  loop: start=0, step=1, limit=4
  $region2: #{d_net128_forward.8} parent=0 // loop_pre_header
    _
  $region3: #{d_net128_forward.8} parent=0 // loop_header
    %s9 = sphi 0, %s13
    %p10 = scmp.ge.s32.totalorder %s9, 4
    %s16 = sphi 0, %s28
    %s17 = sphi 0, %s24
    %s18 = sphi 0, %s16
    %s19 = sphi 0, %s17
    %s20 = sphi 0, %s18
    %s21 = sphi 0, %s19
    %s31 = sphi 0, %s33
    %s34 = sphi 0, %s31
    %s35 = sphi 0, %s34
    %s51 = sphi 0, %s35
    %s57 = sphi 0, %s59
    %s60 = sphi 0, %s57
    %s61 = sphi 0, %s60
    %s77 = sphi 0, %s61
    %s83 = sphi 0, %s85
    %s86 = sphi 0, %s83
    %s87 = sphi 0, %s86
    %s103 = sphi 0, %s87
    %s111 = sphi 0, %s113
    %s114 = sphi 0, %s111
    %s115 = sphi 0, %s114
    %s131 = sphi 0, %s115
  $region4: #{d_net128_forward.8} parent=0 // loop_header_branch
    %12 = sbr.rel (%p10) target = $region8
  $region5: #{d_net128_forward.8} parent=0 // loop_body
    %s14 = ssub.s32 %s9, 1
    %s15 = ssub.s32 %s9, 2
    %s22 = sadd.s32 1, %s17
    %p23 = scmp.ge.s32.totalorder %s22, 2
    %s24 = scalar_select %p23, 0, %s22
    %s25 = sadd.s32 1, %s16
    %s26 = scalar_select %p23, %s25, %s16
    %p27 = scmp.ge.s32.totalorder %s26, 1
    %s28 = scalar_select %p27, 0, %s26
    %s29 = ssub.s32 %s17, %s24
    %p30 = scmp.eq.s32.totalorder %s29, 0
    %s32 = sadd.s32 %s31, 1
    %s33 = scalar_select %p30, %s31, %s32
    %p36 = pneg %p30
    %p37 = scmp.eq.s32.totalorder %s9, 1
    %p38 = por %p36, %p37
    %p39 = scmp.ne.s32.totalorder %s31, %s34
    %p40 = scmp.eq.s32.totalorder %s9, 0
    %p41 = por %p39, %p40
    %p42 = scmp.ne.s32.totalorder %s31, %s34
    %p43 = scmp.eq.s32.totalorder %s14, 1
    %p44 = por %p42, %p43
    %p45 = scmp.ne.s32.totalorder %s34, %s35
    %p46 = scmp.eq.s32.totalorder %s14, 0
    %p47 = por %p45, %p46
    %p48 = scmp.ne.s32.totalorder %s34, %s35
    %p49 = scmp.eq.s32.totalorder %s15, 1
    %p50 = por %p48, %p49
    %p52 = scmp.ne.s32.totalorder %s35, %s51
    %p53 = scmp.eq.s32.totalorder %s15, 0
    %p54 = por %p52, %p53
    %s55 = ssub.s32 %s16, %s28
    %p56 = scmp.eq.s32.totalorder %s55, 0
    %s58 = sadd.s32 %s57, 1
    %s59 = scalar_select %p56, %s57, %s58
    %p62 = pneg %p56
    %p63 = scmp.eq.s32.totalorder %s9, 1
    %p64 = por %p62, %p63
    %p65 = scmp.ne.s32.totalorder %s57, %s60
    %p66 = scmp.eq.s32.totalorder %s9, 0
    %p67 = por %p65, %p66
    %p68 = scmp.ne.s32.totalorder %s57, %s60
    %p69 = scmp.eq.s32.totalorder %s14, 1
    %p70 = por %p68, %p69
    %p71 = scmp.ne.s32.totalorder %s60, %s61
    %p72 = scmp.eq.s32.totalorder %s14, 0
    %p73 = por %p71, %p72
    %p74 = scmp.ne.s32.totalorder %s60, %s61
    %p75 = scmp.eq.s32.totalorder %s15, 1
    %p76 = por %p74, %p75
    %p78 = scmp.ne.s32.totalorder %s61, %s77
    %p79 = scmp.eq.s32.totalorder %s15, 0
    %p80 = por %p78, %p79
    %s81 = ssub.s32 %s16, %s28
    %p82 = scmp.eq.s32.totalorder %s81, 0
    %s84 = sadd.s32 %s83, 1
    %s85 = scalar_select %p82, %s83, %s84
    %p88 = pneg %p82
    %p89 = scmp.eq.s32.totalorder %s9, 1
    %p90 = por %p88, %p89
    %p91 = scmp.ne.s32.totalorder %s83, %s86
    %p92 = scmp.eq.s32.totalorder %s9, 0
    %p93 = por %p91, %p92
    %p94 = scmp.ne.s32.totalorder %s83, %s86
    %p95 = scmp.eq.s32.totalorder %s14, 1
    %p96 = por %p94, %p95
    %p97 = scmp.ne.s32.totalorder %s86, %s87
    %p98 = scmp.eq.s32.totalorder %s14, 0
    %p99 = por %p97, %p98
    %p100 = scmp.ne.s32.totalorder %s86, %s87
    %p101 = scmp.eq.s32.totalorder %s15, 1
    %p102 = por %p100, %p101
    %p104 = scmp.ne.s32.totalorder %s87, %s103
    %p105 = scmp.eq.s32.totalorder %s15, 0
    %p106 = por %p104, %p105
    %s107 = ssub.s32 %s17, %s24
    %s108 = ssub.s32 %s16, %s28
    %s109 = sor.u32 %s107, %s108
    %p110 = scmp.eq.s32.totalorder %s109, 0
    %s112 = sadd.s32 %s111, 1
    %s113 = scalar_select %p110, %s111, %s112
    %p116 = pneg %p110
    %p117 = scmp.eq.s32.totalorder %s9, 1
    %p118 = por %p116, %p117
    %p119 = scmp.ne.s32.totalorder %s111, %s114
    %p120 = scmp.eq.s32.totalorder %s9, 0
    %p121 = por %p119, %p120
    %p122 = scmp.ne.s32.totalorder %s111, %s114
    %p123 = scmp.eq.s32.totalorder %s14, 1
    %p124 = por %p122, %p123
    %p125 = scmp.ne.s32.totalorder %s114, %s115
    %p126 = scmp.eq.s32.totalorder %s14, 0
    %p127 = por %p125, %p126
    %p128 = scmp.ne.s32.totalorder %s114, %s115
    %p129 = scmp.eq.s32.totalorder %s15, 1
    %p130 = por %p128, %p129
    %p132 = scmp.ne.s32.totalorder %s115, %s131
    %p133 = scmp.eq.s32.totalorder %s15, 0
    %p134 = por %p132, %p133
    %p135 = scmp.le.s32.totalorder 1, %s9
    %p136 = scmp.lt.s32.totalorder %s9, 3
    %p137 = pnand %p135, %p136
    %p138 = pneg %p137
    // Predicated region
    $region9: #{d_net128_forward.8} parent=5 // pred_check
      _
    $region10: #{d_net128_forward.8} parent=5 // pred_check_branch
      %140 = sbr.rel (%p137) target = $region12
    $region11: #{d_net128_forward.8} parent=5 // pred_region
      %s141 = ssub.s32 %s9, 1
      // Predicated region
      $region13: #{d_net128_forward.8} parent=11 // pred_check
        %p142 = pneg %p73
      $region14: #{d_net128_forward.8} parent=11 // pred_check_branch
        %144 = sbr.rel (%p142) target = $region16
      $region15: #{d_net128_forward.8} parent=11 // pred_region
        %p145 = scmp.lt.s32.totalorder %s18, 0
        %s146 = scalar_select %p145, %s18, 0
        %s147 = smul.addr %s146, 4
        %s148 = scalar_lea.vmem %s1, %s147
      $region16: #{d_net128_forward.8} parent=11 // pred_fallthru
        _
      // Predicated region
      $region17: #{d_net128_forward.8} parent=11 // pred_check
        %p149 = pneg %p99
      $region18: #{d_net128_forward.8} parent=11 // pred_check_branch
        %151 = sbr.rel (%p149) target = $region20
      $region19: #{d_net128_forward.8} parent=11 // pred_region
        %p152 = scmp.lt.s32.totalorder %s18, 0
        %s153 = scalar_select %p152, %s18, 0
        %s154 = scalar_lea.vmem %s2, %s153
      $region20: #{d_net128_forward.8} parent=11 // pred_fallthru
        _
    $region12: #{d_net128_forward.8} parent=5 // pred_fallthru
      _
    %p155 = scmp.lt.s32.totalorder %s9, 2
    // Predicated region
    $region21: #{d_net128_forward.8} parent=5 // pred_check
      %p156 = pneg %p155
    $region22: #{d_net128_forward.8} parent=5 // pred_check_branch
      %158 = sbr.rel (%p156) target = $region24
    $region23: #{d_net128_forward.8} parent=5 // pred_region
      // Predicated region
      $region25: #{d_net128_forward.8} parent=23 // pred_check
        %p159 = pneg %p41
      $region26: #{d_net128_forward.8} parent=23 // pred_check_branch
        %161 = sbr.rel (%p159) target = $region28
      $region27: #{d_net128_forward.8} parent=23 // pred_region
        %p162 = scmp.lt.s32.totalorder %s17, 1
        %s163 = scalar_select %p162, %s17, 1
        %s164 = smul.addr %s163, 12
        %s165 = smul.addr %s164, 4
        %s166 = scalar_lea.vmem %s0, %s165
      $region28: #{d_net128_forward.8} parent=23 // pred_fallthru
        _
    $region24: #{d_net128_forward.8} parent=5 // pred_fallthru
      _
    %p167 = scmp.le.s32.totalorder 1, %s9
    %p168 = scmp.lt.s32.totalorder %s9, 3
    %p169 = pnand %p167, %p168
    %p170 = pneg %p169
    // Predicated region
    $region29: #{d_net128_forward.8} parent=5 // pred_check
      _
    $region30: #{d_net128_forward.8} parent=5 // pred_check_branch
      %172 = sbr.rel (%p169) target = $region32
    $region31: #{d_net128_forward.8} parent=5 // pred_region
      %s173 = ssub.s32 %s9, 1
      %p174 = scmp.lt.s32.totalorder %s19, 1
      %s175 = scalar_select %p174, %s19, 1
      %s176 = smul.addr %s175, 12
      %s177 = smul.addr %s176, 4
      %s178 = scalar_lea.vmem %s0, %s177
      %p179 = pneg %p47
      %p180 = pneg %p44
      %p181 = scmp.lt.s32.totalorder %s18, 0
      %s182 = scalar_select %p181, %s18, 0
      %s183 = smul.addr %s182, 4
      %s184 = scalar_lea.vmem %s1, %s183
      %p185 = pneg %p73
      %p186 = pneg %p70
      %p187 = scmp.lt.s32.totalorder %s18, 0
      %s188 = scalar_select %p187, %s18, 0
      %s189 = scalar_lea.vmem %s2, %s188
      %p190 = pneg %p99
      %p191 = pneg %p96
      %p192 = pneg %p127
      %p193 = pneg %p124
      %p194 = scmp.lt.s32.totalorder %s19, 1
      %s195 = scalar_select %p194, %s19, 1
      %p196 = scmp.lt.s32.totalorder %s18, 0
      %s197 = scalar_select %p196, %s18, 0
      %s198 = smul.addr %s195, 9
      %s199 = sadd.s32 %s197, %s198
      %s200 = smul.addr %s199, 4
      %s201 = scalar_lea.vmem %s3, %s200
      %p202 = scmp.lt.s32.totalorder %s19, 1
      %s203 = scalar_select %p202, %s19, 1
      %s204 = smul.addr %s203, 12
      %s205 = smul.addr %s204, 4
      %s206 = scalar_lea.vmem %s0, %s205
      %p207 = scmp.lt.s32.totalorder %s18, 0
      %s208 = scalar_select %p207, %s18, 0
      %s209 = smul.addr %s208, 4
      %s210 = scalar_lea.vmem %s1, %s209
      %p211 = scmp.lt.s32.totalorder %s18, 0
      %s212 = scalar_select %p211, %s18, 0
      %s213 = scalar_lea.vmem %s2, %s212
      %p214 = scmp.lt.s32.totalorder %s19, 1
      %s215 = scalar_select %p214, %s19, 1
      %p216 = scmp.lt.s32.totalorder %s18, 0
      %s217 = scalar_select %p216, %s18, 0
      %s218 = smul.addr %s215, 9
      %s219 = sadd.s32 %s217, %s218
      %s220 = smul.addr %s219, 4
      %s221 = scalar_lea.vmem %s3, %s220
      %v223 = vld [vmem:[%s206] sm:$0xf]
      %v224 = vld [vmem:[%s206 + $0x4] sm:$0xf]
      %v225 = vld [vmem:[%s206 + $0x8] sm:$0xf]
      %v226 = vld [vmem:[%s206 + $0xc] sm:$0xf]
      %v227 = vld [vmem:[%s206 + $0x10] sm:$0xf]
      %v228 = vld [vmem:[%s206 + $0x14] sm:$0xf]
      %v229 = vld [vmem:[%s206 + $0x18] sm:$0xf]
      %v230 = vld [vmem:[%s206 + $0x1c] sm:$0xf]
      %v231 = vld [vmem:[%s206 + $0x20] sm:$0xf]
      %v232 = vld [vmem:[%s210] sm:$0xf]
      %v233 = vld [vmem:[%s210 + $0x4] sm:$0xf]
      %v234 = vld [vmem:[%s210 + $0x8] sm:$0xf]
      %v235 = vld [vmem:[%s210 + $0xc] sm:$0xf]
      %v236 = vld [vmem:[%s210 + $0x10] sm:$0xf]
      %v237 = vld [vmem:[%s210 + $0x14] sm:$0xf]
      %v238 = vld [vmem:[%s210 + $0x18] sm:$0xf]
      %v239 = vld [vmem:[%s210 + $0x1c] sm:$0xf]
      %v240 = vld [vmem:[%s206 + $0x24] sm:$0x1]
      %s241 = scalar_lea.vmem %s210, 32
      %v242 = vld [vmem:[%s241] sm:$0xf]
      %v243 = vld [vmem:[%s241 + $0x4] sm:$0xf]
      %v244 = vld [vmem:[%s241 + $0x8] sm:$0xf]
      %v245 = vld [vmem:[%s241 + $0xc] sm:$0xf]
      %v246 = vld [vmem:[%s241 + $0x10] sm:$0xf]
      %v247 = vld [vmem:[%s241 + $0x14] sm:$0xf]
      %v248 = vld [vmem:[%s241 + $0x18] sm:$0xf]
      %v249 = vld [vmem:[%s241 + $0x1c] sm:$0xf]
      %v260 = vunpack.c.l.b16 %v223
      %v261 = vunpack.c.l.b16 %v224
      %v262 = vunpack.c.l.b16 %v225
      %v263 = vunpack.c.l.b16 %v226
      %v264 = vunpack.c.l.b16 %v227
      %v265 = vunpack.c.l.b16 %v228
      %v266 = vunpack.c.l.b16 %v229
      %v267 = vunpack.c.l.b16 %v230
      %v268 = vunpack.c.l.b16 %v231
      %v269 = vunpack.c.l.b16 %v240
      %v270 = vpack.c.b16 %v261, %v260
      %v271 = vpack.c.b16 %v263, %v262
      %v272 = vpack.c.b16 %v265, %v264
      %v273 = vpack.c.b16 %v267, %v266
      %v274 = vpack.c.b16 %v269, %v268
      %vm275 = vsmask.f32 7424
      %v277 = vshrl.u32 %v270, 16
      %v279 = vshll.u32 %v270, 16
      %v281 = vrot.slane %v279, 1
      %v282 = vor.u32 %v277, %v281
      %v284 = vshll.u32 %v271, 16
      %v286 = vrot.slane %v284, 1
      %v287 = vsel %vm275, %v282, %v286
      %v288 = vshrl.u32 %v271, 16
      %v290 = vor.u32 %v288, %v286
      %v292 = vshll.u32 %v272, 16
      %v294 = vrot.slane %v292, 1
      %v295 = vsel %vm275, %v290, %v294
      %v296 = vshrl.u32 %v272, 16
      %v298 = vor.u32 %v296, %v294
      %v300 = vshll.u32 %v273, 16
      %v302 = vrot.slane %v300, 1
      %v303 = vsel %vm275, %v298, %v302
      %v304 = vshrl.u32 %v273, 16
      %v306 = vor.u32 %v304, %v302
      %v308 = vshll.u32 %v274, 16
      %v310 = vrot.slane %v308, 1
      %v311 = vsel %vm275, %v306, %v310
      %v312 = vshrl.u32 %v274, 16
      %v314 = vor.u32 %v312, %v310
      %v323 = vunpack.c.l.b16 %v242
      %v324 = vunpack.c.l.b16 %v243
      %v325 = vunpack.c.l.b16 %v244
      %v326 = vunpack.c.l.b16 %v245
      %v327 = vunpack.c.l.b16 %v246
      %v328 = vunpack.c.l.b16 %v247
      %v329 = vunpack.c.l.b16 %v248
      %v330 = vunpack.c.l.b16 %v249
      %v331 = vpack.c.b16 %v324, %v323
      %v332 = vpack.c.b16 %v326, %v325
      %v333 = vpack.c.b16 %v328, %v327
      %v334 = vpack.c.b16 %v330, %v329
      %vm339 = vcmask 523264
      %v341 = vsel %vm339, %v287, 0
      %v344 = vsel %vm339, %v295, 0
      %v347 = vsel %vm339, %v303, 0
      %v350 = vsel %vm339, %v311, 0
      %v353 = vsel %vm339, %v314, 0
      %355 = vmatprep.subr.bf16.mxu0 0
      %356 = vmatpush1.bf16.msra.mxu0 0
      %357 = vmatprep.subr.bf16.mxu0 0
      %358 = vmatpush1.bf16.msra.mxu0 0
      %359 = vmatprep.subr.bf16.mxu0 0
      %360 = vmatpush1.bf16.msra.mxu0 0
      %361 = vmatprep.subr.bf16.mxu0 0
      %362 = vmatpush1.bf16.msra.mxu0 0
      %363 = vmatprep.subr.bf16.mxu0 0
      %364 = vmatpush1.bf16.msra.mxu0 %v334
      %365 = vmatprep.subr.bf16.mxu0 0
      %366 = vmatpush1.bf16.msra.mxu0 %v333
      %367 = vmatprep.subr.bf16.mxu0 0
      %368 = vmatpush1.bf16.msra.mxu0 %v332
      %369 = vmatprep.subr.bf16.mxu0 0
      %370 = vmatpush1.bf16.msra.mxu0 %v331
      %371 = vmatprep.subr.bf16.mxu0 0
      %372 = vmatpush2.bf16.msra.mxu0 0
      %373 = vmatprep.subr.bf16.mxu0 0
      %374 = vmatpush2.bf16.msra.mxu0 0
      %375 = vmatprep.subr.bf16.mxu0 0
      %376 = vmatpush2.bf16.msra.mxu0 0
      %377 = vmatprep.subr.bf16.mxu0 0
      %378 = vmatpush2.bf16.msra.mxu0 0
      %379 = vmatprep.subr.bf16.mxu0 0
      %380 = vmatpush2.bf16.msra.mxu0 0
      %381 = vmatprep.subr.bf16.mxu0 0
      %382 = vmatpush2.bf16.msra.mxu0 0
      %383 = vmatprep.subr.bf16.mxu0 0
      %384 = vmatpush2.bf16.msra.mxu0 0
      %385 = vmatprep.subr.bf16.mxu0 0
      %386 = vmatpush2.bf16.msra.mxu0 0
      %387 = vmatprep.mubr.bf16.mxu0 0
      %388 = vmatmul.mubr.bf16.gmra.mxu0 %v341
      %v389 = vpop.f32.mrf.mxu0
      %v390 = vadd.f32 0.0, %v389
      %v391 = vpop.f32.mrf.mxu0
      %v392 = vpop.f32.mrf.mxu0
      %v393 = vadd.f32 0.0, %v392
      %v394 = vpop.f32.mrf.mxu0
      %395 = vmatprep.mubr.bf16.mxu0 0
      %396 = vmatmul.mubr.bf16.gmra.mxu0 %v344
      %v397 = vpop.f32.mrf.mxu0
      %v398 = vadd.f32 0.0, %v397
      %v399 = vpop.f32.mrf.mxu0
      %v400 = vpop.f32.mrf.mxu0
      %v401 = vadd.f32 0.0, %v400
      %v402 = vpop.f32.mrf.mxu0
      %403 = vmatprep.mubr.bf16.mxu0 0
      %404 = vmatmul.mubr.bf16.gmra.mxu0 %v347
      %v405 = vpop.f32.mrf.mxu0
      %v406 = vadd.f32 0.0, %v405
      %v407 = vpop.f32.mrf.mxu0
      %v408 = vpop.f32.mrf.mxu0
      %v409 = vadd.f32 0.0, %v408
      %v410 = vpop.f32.mrf.mxu0
      %411 = vmatprep.mubr.bf16.mxu0 0
      %412 = vmatmul.mubr.bf16.gmra.mxu0 %v350
      %v413 = vpop.f32.mrf.mxu0
      %v414 = vadd.f32 0.0, %v413
      %v415 = vpop.f32.mrf.mxu0
      %v416 = vpop.f32.mrf.mxu0
      %v417 = vadd.f32 0.0, %v416
      %v418 = vpop.f32.mrf.mxu0
      %419 = vmatprep.mubr.bf16.mxu0 0
      %420 = vmatmul.mubr.bf16.gmra.mxu0 %v353
      %v421 = vpop.f32.mrf.mxu0
      %v422 = vadd.f32 0.0, %v421
      %v423 = vpop.f32.mrf.mxu0
      %v424 = vpop.f32.mrf.mxu0
      %v425 = vpop.f32.mrf.mxu0
      %426 = vdwg.mxu0
      %v427 = vpack.c.b16 %v268, %v268
      %v436 = vunpack.c.l.b16 %v232
      %v437 = vunpack.c.l.b16 %v233
      %v438 = vunpack.c.l.b16 %v234
      %v439 = vunpack.c.l.b16 %v235
      %v440 = vunpack.c.l.b16 %v236
      %v441 = vunpack.c.l.b16 %v237
      %v442 = vunpack.c.l.b16 %v238
      %v443 = vunpack.c.l.b16 %v239
      %v444 = vpack.c.b16 %v437, %v436
      %v445 = vpack.c.b16 %v439, %v438
      %v446 = vpack.c.b16 %v441, %v440
      %v447 = vpack.c.b16 %v443, %v442
      %v452 = vsel %vm339, %v270, 0
      %v454 = vsel %vm339, %v271, 0
      %v456 = vsel %vm339, %v272, 0
      %v458 = vsel %vm339, %v273, 0
      %v461 = vsel %vm339, %v427, 0
      %463 = vmatprep.subr.bf16.mxu0 0
      %464 = vmatpush1.bf16.msra.mxu0 0
      %465 = vmatprep.subr.bf16.mxu0 0
      %466 = vmatpush1.bf16.msra.mxu0 0
      %467 = vmatprep.subr.bf16.mxu0 0
      %468 = vmatpush1.bf16.msra.mxu0 0
      %469 = vmatprep.subr.bf16.mxu0 0
      %470 = vmatpush1.bf16.msra.mxu0 0
      %471 = vmatprep.subr.bf16.mxu0 0
      %472 = vmatpush1.bf16.msra.mxu0 %v447
      %473 = vmatprep.subr.bf16.mxu0 0
      %474 = vmatpush1.bf16.msra.mxu0 %v446
      %475 = vmatprep.subr.bf16.mxu0 0
      %476 = vmatpush1.bf16.msra.mxu0 %v445
      %477 = vmatprep.subr.bf16.mxu0 0
      %478 = vmatpush1.bf16.msra.mxu0 %v444
      %479 = vmatprep.subr.bf16.mxu0 0
      %480 = vmatpush2.bf16.msra.mxu0 0
      %481 = vmatprep.subr.bf16.mxu0 0
      %482 = vmatpush2.bf16.msra.mxu0 0
      %483 = vmatprep.subr.bf16.mxu0 0
      %484 = vmatpush2.bf16.msra.mxu0 0
      %485 = vmatprep.subr.bf16.mxu0 0
      %486 = vmatpush2.bf16.msra.mxu0 0
      %487 = vmatprep.subr.bf16.mxu0 0
      %488 = vmatpush2.bf16.msra.mxu0 0
      %489 = vmatprep.subr.bf16.mxu0 0
      %490 = vmatpush2.bf16.msra.mxu0 0
      %491 = vmatprep.subr.bf16.mxu0 0
      %492 = vmatpush2.bf16.msra.mxu0 0
      %493 = vmatprep.subr.bf16.mxu0 0
      %494 = vmatpush2.bf16.msra.mxu0 0
      %495 = vmatprep.mubr.bf16.mxu0 0
      %496 = vmatmul.mubr.bf16.gmra.mxu0 %v452
      %v497 = vpop.f32.mrf.mxu0
      %v498 = vadd.f32 %v390, %v497
      %v499 = vpop.f32.mrf.mxu0
      %v500 = vpop.f32.mrf.mxu0
      %v501 = vadd.f32 %v393, %v500
      %v502 = vpop.f32.mrf.mxu0
      %503 = vmatprep.mubr.bf16.mxu0 0
      %504 = vmatmul.mubr.bf16.gmra.mxu0 %v454
      %v505 = vpop.f32.mrf.mxu0
      %v506 = vadd.f32 %v398, %v505
      %v507 = vpop.f32.mrf.mxu0
      %v508 = vpop.f32.mrf.mxu0
      %v509 = vadd.f32 %v401, %v508
      %v510 = vpop.f32.mrf.mxu0
      %511 = vmatprep.mubr.bf16.mxu0 0
      %512 = vmatmul.mubr.bf16.gmra.mxu0 %v456
      %v513 = vpop.f32.mrf.mxu0
      %v514 = vadd.f32 %v406, %v513
      %v515 = vpop.f32.mrf.mxu0
      %v516 = vpop.f32.mrf.mxu0
      %v517 = vadd.f32 %v409, %v516
      %v518 = vpop.f32.mrf.mxu0
      %519 = vmatprep.mubr.bf16.mxu0 0
      %520 = vmatmul.mubr.bf16.gmra.mxu0 %v458
      %v521 = vpop.f32.mrf.mxu0
      %v522 = vadd.f32 %v414, %v521
      %v523 = vpop.f32.mrf.mxu0
      %v524 = vpop.f32.mrf.mxu0
      %v525 = vadd.f32 %v417, %v524
      %v526 = vpop.f32.mrf.mxu0
      %527 = vmatprep.mubr.bf16.mxu0 0
      %528 = vmatmul.mubr.bf16.gmra.mxu0 %v461
      %v529 = vpop.f32.mrf.mxu0
      %v530 = vadd.f32 %v422, %v529
      %v531 = vpop.f32.mrf.mxu0
      %v532 = vpop.f32.mrf.mxu0
      %v533 = vpop.f32.mrf.mxu0
      %534 = vdwg.mxu0
      %v535 = vld [vmem:[%s206 + $0x4] sm:$0xf]
      %v536 = vld [vmem:[%s206 + $0x8] sm:$0xf]
      %v537 = vld [vmem:[%s206 + $0xc] sm:$0xf]
      %v538 = vld [vmem:[%s206 + $0x10] sm:$0xf]
      %v539 = vld [vmem:[%s206 + $0x14] sm:$0xf]
      %v540 = vld [vmem:[%s206 + $0x18] sm:$0xf]
      %v541 = vld [vmem:[%s206 + $0x1c] sm:$0xf]
      %v542 = vld [vmem:[%s206 + $0x20] sm:$0xf]
      %v543 = vld [vmem:[%s206 + $0x24] sm:$0xf]
      %v544 = vld [vmem:[%s206 + $0x28] sm:$0x1]
      %s545 = scalar_lea.vmem %s210, 64
      %v546 = vld [vmem:[%s545] sm:$0xf]
      %v547 = vld [vmem:[%s545 + $0x4] sm:$0xf]
      %v548 = vld [vmem:[%s545 + $0x8] sm:$0xf]
      %v549 = vld [vmem:[%s545 + $0xc] sm:$0xf]
      %v550 = vld [vmem:[%s545 + $0x10] sm:$0xf]
      %v551 = vld [vmem:[%s545 + $0x14] sm:$0xf]
      %v552 = vld [vmem:[%s545 + $0x18] sm:$0xf]
      %v553 = vld [vmem:[%s545 + $0x1c] sm:$0xf]
      %v564 = vunpack.c.l.b16 %v535
      %v565 = vunpack.c.l.b16 %v536
      %v566 = vunpack.c.l.b16 %v537
      %v567 = vunpack.c.l.b16 %v538
      %v568 = vunpack.c.l.b16 %v539
      %v569 = vunpack.c.l.b16 %v540
      %v570 = vunpack.c.l.b16 %v541
      %v571 = vunpack.c.l.b16 %v542
      %v572 = vunpack.c.l.b16 %v543
      %v573 = vunpack.c.l.b16 %v544
      %v574 = vpack.c.b16 %v565, %v564
      %v575 = vpack.c.b16 %v567, %v566
      %v576 = vpack.c.b16 %v569, %v568
      %v577 = vpack.c.b16 %v571, %v570
      %v578 = vpack.c.b16 %v573, %v572
      %v580 = vshrl.u32 %v574, 16
      %v582 = vshll.u32 %v574, 16
      %v584 = vrot.slane %v582, 1
      %v585 = vor.u32 %v580, %v584
      %v587 = vshll.u32 %v575, 16
      %v589 = vrot.slane %v587, 1
      %v590 = vsel %vm275, %v585, %v589
      %v591 = vshrl.u32 %v575, 16
      %v593 = vor.u32 %v591, %v589
      %v595 = vshll.u32 %v576, 16
      %v597 = vrot.slane %v595, 1
      %v598 = vsel %vm275, %v593, %v597
      %v599 = vshrl.u32 %v576, 16
      %v601 = vor.u32 %v599, %v597
      %v603 = vshll.u32 %v577, 16
      %v605 = vrot.slane %v603, 1
      %v606 = vsel %vm275, %v601, %v605
      %v607 = vshrl.u32 %v577, 16
      %v609 = vor.u32 %v607, %v605
      %v611 = vshll.u32 %v578, 16
      %v613 = vrot.slane %v611, 1
      %v614 = vsel %vm275, %v609, %v613
      %v615 = vshrl.u32 %v578, 16
      %v617 = vor.u32 %v615, %v613
      %v626 = vunpack.c.l.b16 %v546
      %v627 = vunpack.c.l.b16 %v547
      %v628 = vunpack.c.l.b16 %v548
      %v629 = vunpack.c.l.b16 %v549
      %v630 = vunpack.c.l.b16 %v550
      %v631 = vunpack.c.l.b16 %v551
      %v632 = vunpack.c.l.b16 %v552
      %v633 = vunpack.c.l.b16 %v553
      %v634 = vpack.c.b16 %v627, %v626
      %v635 = vpack.c.b16 %v629, %v628
      %v636 = vpack.c.b16 %v631, %v630
      %v637 = vpack.c.b16 %v633, %v632
      %v643 = vsel %vm339, %v590, 0
      %v646 = vsel %vm339, %v598, 0
      %v649 = vsel %vm339, %v606, 0
      %v652 = vsel %vm339, %v614, 0
      %v655 = vsel %vm339, %v617, 0
      %657 = vmatprep.subr.bf16.mxu0 0
      %658 = vmatpush1.bf16.msra.mxu0 0
      %659 = vmatprep.subr.bf16.mxu0 0
      %660 = vmatpush1.bf16.msra.mxu0 0
      %661 = vmatprep.subr.bf16.mxu0 0
      %662 = vmatpush1.bf16.msra.mxu0 0
      %663 = vmatprep.subr.bf16.mxu0 0
      %664 = vmatpush1.bf16.msra.mxu0 0
      %665 = vmatprep.subr.bf16.mxu0 0
      %666 = vmatpush1.bf16.msra.mxu0 %v637
      %667 = vmatprep.subr.bf16.mxu0 0
      %668 = vmatpush1.bf16.msra.mxu0 %v636
      %669 = vmatprep.subr.bf16.mxu0 0
      %670 = vmatpush1.bf16.msra.mxu0 %v635
      %671 = vmatprep.subr.bf16.mxu0 0
      %672 = vmatpush1.bf16.msra.mxu0 %v634
      %673 = vmatprep.subr.bf16.mxu0 0
      %674 = vmatpush2.bf16.msra.mxu0 0
      %675 = vmatprep.subr.bf16.mxu0 0
      %676 = vmatpush2.bf16.msra.mxu0 0
      %677 = vmatprep.subr.bf16.mxu0 0
      %678 = vmatpush2.bf16.msra.mxu0 0
      %679 = vmatprep.subr.bf16.mxu0 0
      %680 = vmatpush2.bf16.msra.mxu0 0
      %681 = vmatprep.subr.bf16.mxu0 0
      %682 = vmatpush2.bf16.msra.mxu0 0
      %683 = vmatprep.subr.bf16.mxu0 0
      %684 = vmatpush2.bf16.msra.mxu0 0
      %685 = vmatprep.subr.bf16.mxu0 0
      %686 = vmatpush2.bf16.msra.mxu0 0
      %687 = vmatprep.subr.bf16.mxu0 0
      %688 = vmatpush2.bf16.msra.mxu0 0
      %689 = vmatprep.mubr.bf16.mxu0 0
      %690 = vmatmul.mubr.bf16.gmra.mxu0 %v643
      %v691 = vpop.f32.mrf.mxu0
      %v692 = vadd.f32 0.0, %v691
      %v693 = vpop.f32.mrf.mxu0
      %v694 = vpop.f32.mrf.mxu0
      %v695 = vadd.f32 0.0, %v694
      %v696 = vpop.f32.mrf.mxu0
      %697 = vmatprep.mubr.bf16.mxu0 0
      %698 = vmatmul.mubr.bf16.gmra.mxu0 %v646
      %v699 = vpop.f32.mrf.mxu0
      %v700 = vadd.f32 0.0, %v699
      %v701 = vpop.f32.mrf.mxu0
      %v702 = vpop.f32.mrf.mxu0
      %v703 = vadd.f32 0.0, %v702
      %v704 = vpop.f32.mrf.mxu0
      %705 = vmatprep.mubr.bf16.mxu0 0
      %706 = vmatmul.mubr.bf16.gmra.mxu0 %v649
      %v707 = vpop.f32.mrf.mxu0
      %v708 = vadd.f32 0.0, %v707
      %v709 = vpop.f32.mrf.mxu0
      %v710 = vpop.f32.mrf.mxu0
      %v711 = vadd.f32 0.0, %v710
      %v712 = vpop.f32.mrf.mxu0
      %713 = vmatprep.mubr.bf16.mxu0 0
      %714 = vmatmul.mubr.bf16.gmra.mxu0 %v652
      %v715 = vpop.f32.mrf.mxu0
      %v716 = vadd.f32 0.0, %v715
      %v717 = vpop.f32.mrf.mxu0
      %v718 = vpop.f32.mrf.mxu0
      %v719 = vadd.f32 0.0, %v718
      %v720 = vpop.f32.mrf.mxu0
      %721 = vmatprep.mubr.bf16.mxu0 0
      %722 = vmatmul.mubr.bf16.gmra.mxu0 %v655
      %v723 = vpop.f32.mrf.mxu0
      %v724 = vadd.f32 0.0, %v723
      %v725 = vpop.f32.mrf.mxu0
      %v726 = vpop.f32.mrf.mxu0
      %v727 = vpop.f32.mrf.mxu0
      %728 = vdwg.mxu0
      %v729 = vadd.f32 %v498, %v692
      %v730 = vadd.f32 %v501, %v695
      %v731 = vadd.f32 %v506, %v700
      %v732 = vadd.f32 %v509, %v703
      %v733 = vadd.f32 %v514, %v708
      %v734 = vadd.f32 %v517, %v711
      %v735 = vadd.f32 %v522, %v716
      %v736 = vadd.f32 %v525, %v719
      %v737 = vadd.f32 %v530, %v724
      %v738 = vld [vmem:[%s206 + $0x4] sm:$0xe]
      %s739 = scalar_lea.vmem %s210, 96
      %v740 = vld [vmem:[%s739] sm:$0xf]
      %v741 = vld [vmem:[%s739 + $0x4] sm:$0xf]
      %v742 = vld [vmem:[%s739 + $0x8] sm:$0xf]
      %v743 = vld [vmem:[%s739 + $0xc] sm:$0xf]
      %v744 = vld [vmem:[%s739 + $0x10] sm:$0xf]
      %v745 = vld [vmem:[%s739 + $0x14] sm:$0xf]
      %v746 = vld [vmem:[%s739 + $0x18] sm:$0xf]
      %v747 = vld [vmem:[%s739 + $0x1c] sm:$0xf]
      %v749 = vunpack.c.l.b16 %v738
      %v750 = vpack.c.b16 %v565, %v749
      %vm751 = vcmask 1046528
      %v752 = vrot.slane %v750, 1
      %v753 = vrot.slane %v575, 1
      %v754 = vsel %vm751, %v752, %v753
      %v755 = vrot.slane %v576, 1
      %v756 = vsel %vm751, %v753, %v755
      %v757 = vrot.slane %v577, 1
      %v758 = vsel %vm751, %v755, %v757
      %v759 = vrot.slane %v578, 1
      %v760 = vsel %vm751, %v757, %v759
      %v769 = vunpack.c.l.b16 %v740
      %v770 = vunpack.c.l.b16 %v741
      %v771 = vunpack.c.l.b16 %v742
      %v772 = vunpack.c.l.b16 %v743
      %v773 = vunpack.c.l.b16 %v744
      %v774 = vunpack.c.l.b16 %v745
      %v775 = vunpack.c.l.b16 %v746
      %v776 = vunpack.c.l.b16 %v747
      %v777 = vpack.c.b16 %v770, %v769
      %v778 = vpack.c.b16 %v772, %v771
      %v779 = vpack.c.b16 %v774, %v773
      %v780 = vpack.c.b16 %v776, %v775
      %v786 = vsel %vm339, %v754, 0
      %v789 = vsel %vm339, %v756, 0
      %v792 = vsel %vm339, %v758, 0
      %v795 = vsel %vm339, %v760, 0
      %v798 = vsel %vm339, %v759, 0
      %800 = vmatprep.subr.bf16.mxu0 0
      %801 = vmatpush1.bf16.msra.mxu0 0
      %802 = vmatprep.subr.bf16.mxu0 0
      %803 = vmatpush1.bf16.msra.mxu0 0
      %804 = vmatprep.subr.bf16.mxu0 0
      %805 = vmatpush1.bf16.msra.mxu0 0
      %806 = vmatprep.subr.bf16.mxu0 0
      %807 = vmatpush1.bf16.msra.mxu0 0
      %808 = vmatprep.subr.bf16.mxu0 0
      %809 = vmatpush1.bf16.msra.mxu0 %v780
      %810 = vmatprep.subr.bf16.mxu0 0
      %811 = vmatpush1.bf16.msra.mxu0 %v779
      %812 = vmatprep.subr.bf16.mxu0 0
      %813 = vmatpush1.bf16.msra.mxu0 %v778
      %814 = vmatprep.subr.bf16.mxu0 0
      %815 = vmatpush1.bf16.msra.mxu0 %v777
      %816 = vmatprep.subr.bf16.mxu0 0
      %817 = vmatpush2.bf16.msra.mxu0 0
      %818 = vmatprep.subr.bf16.mxu0 0
      %819 = vmatpush2.bf16.msra.mxu0 0
      %820 = vmatprep.subr.bf16.mxu0 0
      %821 = vmatpush2.bf16.msra.mxu0 0
      %822 = vmatprep.subr.bf16.mxu0 0
      %823 = vmatpush2.bf16.msra.mxu0 0
      %824 = vmatprep.subr.bf16.mxu0 0
      %825 = vmatpush2.bf16.msra.mxu0 0
      %826 = vmatprep.subr.bf16.mxu0 0
      %827 = vmatpush2.bf16.msra.mxu0 0
      %828 = vmatprep.subr.bf16.mxu0 0
      %829 = vmatpush2.bf16.msra.mxu0 0
      %830 = vmatprep.subr.bf16.mxu0 0
      %831 = vmatpush2.bf16.msra.mxu0 0
      %832 = vmatprep.mubr.bf16.mxu0 0
      %833 = vmatmul.mubr.bf16.gmra.mxu0 %v786
      %v834 = vpop.f32.mrf.mxu0
      %v835 = vadd.f32 0.0, %v834
      %v836 = vpop.f32.mrf.mxu0
      %v837 = vpop.f32.mrf.mxu0
      %v838 = vadd.f32 0.0, %v837
      %v839 = vpop.f32.mrf.mxu0
      %840 = vmatprep.mubr.bf16.mxu0 0
      %841 = vmatmul.mubr.bf16.gmra.mxu0 %v789
      %v842 = vpop.f32.mrf.mxu0
      %v843 = vadd.f32 0.0, %v842
      %v844 = vpop.f32.mrf.mxu0
      %v845 = vpop.f32.mrf.mxu0
      %v846 = vadd.f32 0.0, %v845
      %v847 = vpop.f32.mrf.mxu0
      %848 = vmatprep.mubr.bf16.mxu0 0
      %849 = vmatmul.mubr.bf16.gmra.mxu0 %v792
      %v850 = vpop.f32.mrf.mxu0
      %v851 = vadd.f32 0.0, %v850
      %v852 = vpop.f32.mrf.mxu0
      %v853 = vpop.f32.mrf.mxu0
      %v854 = vadd.f32 0.0, %v853
      %v855 = vpop.f32.mrf.mxu0
      %856 = vmatprep.mubr.bf16.mxu0 0
      %857 = vmatmul.mubr.bf16.gmra.mxu0 %v795
      %v858 = vpop.f32.mrf.mxu0
      %v859 = vadd.f32 0.0, %v858
      %v860 = vpop.f32.mrf.mxu0
      %v861 = vpop.f32.mrf.mxu0
      %v862 = vadd.f32 0.0, %v861
      %v863 = vpop.f32.mrf.mxu0
      %864 = vmatprep.mubr.bf16.mxu0 0
      %865 = vmatmul.mubr.bf16.gmra.mxu0 %v798
      %v866 = vpop.f32.mrf.mxu0
      %v867 = vadd.f32 0.0, %v866
      %v868 = vpop.f32.mrf.mxu0
      %v869 = vpop.f32.mrf.mxu0
      %v870 = vpop.f32.mrf.mxu0
      %871 = vdwg.mxu0
      %v872 = vadd.f32 %v729, %v835
      %v873 = vadd.f32 %v730, %v838
      %v874 = vadd.f32 %v731, %v843
      %v875 = vadd.f32 %v732, %v846
      %v876 = vadd.f32 %v733, %v851
      %v877 = vadd.f32 %v734, %v854
      %v878 = vadd.f32 %v735, %v859
      %v879 = vadd.f32 %v736, %v862
      %v880 = vadd.f32 %v737, %v867
      %v881 = vld [vmem:[%s213] sm:$0x1]
      %v883 = vlaneseq
      %v884 = vshrl.u32 %v883, 7
      %v885 = vsub.s32 0, %v884
      %v886 = vrot.slane %v881, %v885
      %v888 = vadd.f32 %v872, %v886
      %v889 = vadd.f32 %v873, %v886
      %v890 = vadd.f32 %v874, %v886
      %v891 = vadd.f32 %v875, %v886
      %v892 = vadd.f32 %v876, %v886
      %v893 = vadd.f32 %v877, %v886
      %v894 = vadd.f32 %v878, %v886
      %v895 = vadd.f32 %v879, %v886
      %v896 = vadd.f32 %v880, %v886
      %vm897 = vcmp.gt.f32.partialorder %v888, 0.0
      %vm898 = vcmp.gt.f32.partialorder %v889, 0.0
      %vm899 = vcmp.gt.f32.partialorder %v890, 0.0
      %vm900 = vcmp.gt.f32.partialorder %v891, 0.0
      %vm901 = vcmp.gt.f32.partialorder %v892, 0.0
      %vm902 = vcmp.gt.f32.partialorder %v893, 0.0
      %vm903 = vcmp.gt.f32.partialorder %v894, 0.0
      %vm904 = vcmp.gt.f32.partialorder %v895, 0.0
      %vm905 = vcmp.gt.f32.partialorder %v896, 0.0
      %v906 = vmul.f32 %v888, 0.2
      %v907 = vmul.f32 %v889, 0.2
      %v908 = vmul.f32 %v890, 0.2
      %v909 = vmul.f32 %v891, 0.2
      %v910 = vmul.f32 %v892, 0.2
      %v911 = vmul.f32 %v893, 0.2
      %v912 = vmul.f32 %v894, 0.2
      %v913 = vmul.f32 %v895, 0.2
      %v914 = vmul.f32 %v896, 0.2
      %v915 = vsel %vm897, %v888, %v906
      %v916 = vsel %vm898, %v889, %v907
      %v917 = vsel %vm899, %v890, %v908
      %v918 = vsel %vm900, %v891, %v909
      %v919 = vsel %vm901, %v892, %v910
      %v920 = vsel %vm902, %v893, %v911
      %v921 = vsel %vm903, %v894, %v912
      %v922 = vsel %vm904, %v895, %v913
      %v923 = vsel %vm905, %v896, %v914
      %v924 = vpack.c.bf16 %v916, %v915
      %v925 = vpack.c.bf16 %v918, %v917
      %v926 = vpack.c.bf16 %v920, %v919
      %v927 = vpack.c.bf16 %v922, %v921
      %v928 = vpack.c.bf16 %v923, %v923
      %v934 = vunpack.c.l.b16 %v924
      %v935 = vunpack.c.h.b16 %v924
      %v936 = vunpack.c.l.b16 %v925
      %v937 = vunpack.c.h.b16 %v925
      %v938 = vunpack.c.l.b16 %v926
      %v939 = vunpack.c.h.b16 %v926
      %v940 = vunpack.c.l.b16 %v927
      %v941 = vunpack.c.h.b16 %v927
      %v942 = vunpack.c.l.b16 %v928
      %v943 = vpack.c.b16 %v934, %v934
      %v944 = vpack.c.b16 %v935, %v935
      %v945 = vpack.c.b16 %v936, %v936
      %v946 = vpack.c.b16 %v937, %v937
      %v947 = vpack.c.b16 %v938, %v938
      %v948 = vpack.c.b16 %v939, %v939
      %v949 = vpack.c.b16 %v940, %v940
      %v950 = vpack.c.b16 %v941, %v941
      %v951 = vpack.c.b16 %v942, %v942
      %961 = vst [vmem:[%s221] sm:$0xf] %v943
      %962 = vst [vmem:[%s221 + $0x4] sm:$0xf] %v944
      %963 = vst [vmem:[%s221 + $0x8] sm:$0xf] %v945
      %964 = vst [vmem:[%s221 + $0xc] sm:$0xf] %v946
      %965 = vst [vmem:[%s221 + $0x10] sm:$0xf] %v947
      %966 = vst [vmem:[%s221 + $0x14] sm:$0xf] %v948
      %967 = vst [vmem:[%s221 + $0x18] sm:$0xf] %v949
      %968 = vst [vmem:[%s221 + $0x1c] sm:$0xf] %v950
      %969 = vst [vmem:[%s221 + $0x20] sm:$0xf] %v951
      %p970 = scmp.lt.s32.totalorder %s19, 1
      %s971 = scalar_select %p970, %s19, 1
      %p972 = scmp.lt.s32.totalorder %s18, 0
      %s973 = scalar_select %p972, %s18, 0
      %s974 = smul.addr %s971, 9
      %s975 = sadd.s32 %s973, %s974
      %s976 = smul.addr %s975, 4
      %s977 = scalar_lea.vmem %s3, %s976
      // Predicated region
      $region33: #{d_net128_forward.8} parent=31 // pred_check
        %p978 = pneg %p124
      $region34: #{d_net128_forward.8} parent=31 // pred_check_branch
        %980 = sbr.rel (%p978) target = $region36
      $region35: #{d_net128_forward.8} parent=31 // pred_region
        _
      $region36: #{d_net128_forward.8} parent=31 // pred_fallthru
        _
    $region32: #{d_net128_forward.8} parent=5 // pred_fallthru
      _
    %p981 = scmp.le.s32.totalorder 2, %s9
    // Predicated region
    $region37: #{d_net128_forward.8} parent=5 // pred_check
      %p982 = pneg %p981
    $region38: #{d_net128_forward.8} parent=5 // pred_check_branch
      %984 = sbr.rel (%p982) target = $region40
    $region39: #{d_net128_forward.8} parent=5 // pred_region
      %s985 = ssub.s32 %s9, 2
      // Predicated region
      $region41: #{d_net128_forward.8} parent=39 // pred_check
        %p986 = pneg %p130
      $region42: #{d_net128_forward.8} parent=39 // pred_check_branch
        %988 = sbr.rel (%p986) target = $region44
      $region43: #{d_net128_forward.8} parent=39 // pred_region
        %p989 = scmp.lt.s32.totalorder %s21, 1
        %s990 = scalar_select %p989, %s21, 1
        %p991 = scmp.lt.s32.totalorder %s20, 0
        %s992 = scalar_select %p991, %s20, 0
        %s993 = smul.addr %s990, 9
        %s994 = sadd.s32 %s992, %s993
        %s995 = smul.addr %s994, 4
        %s996 = scalar_lea.vmem %s3, %s995
      $region44: #{d_net128_forward.8} parent=39 // pred_fallthru
        _
    $region40: #{d_net128_forward.8} parent=5 // pred_fallthru
      _
  $region6: #{d_net128_forward.8} parent=0 // loop_footer
    %s13 = sadd.s32 1, %s9
  $region7: #{d_net128_forward.8} parent=0 // loop_footer_branch
    %8 = sbr.rel target = $region3
  $region8: #{d_net128_forward.8} parent=0 // loop_exit
    _

// kernel: d_net128_forward.9
$region0: #{d_net128_forward.9}
  #allocation0 [shape = 'u32[]', space=smem, size = 0x4, offset = 0x4, fixed_abs, tag = 'smem constant byte address 0x4 - core index']
  #allocation1 [shape = 'u32[144,128]{1,0:T(1,128)}', space=vmem, size = 0x12000, scoped, tag = 'internal scratch']
  %s0 = inlined_call_operand.vmem [shape: bf16[2,30,128], index: 0, kind: input, shape index: {}]
  %s1 = inlined_call_operand.vmem [shape: bf16[4,128,128], index: 1, kind: input, shape index: {}]
  %s2 = inlined_call_operand.vmem [shape: f32[1,128], index: 2, kind: input, shape index: {}]
  %s3 = inlined_call_operand.vmem [shape: bf16[2,20,128], index: 3, kind: output, shape index: {}]
  %s4 = sld [smem:[#allocation0]]
  $region45: #{d_net128_forward.9} parent=0
    _
  %s6 = ssub.s32 1, %s4
  %s7 = scalar_select 0, %s6, %s4
  loop: start=0, step=1, limit=4
  $region2: #{d_net128_forward.9} parent=0 // loop_pre_header
    _
  $region3: #{d_net128_forward.9} parent=0 // loop_header
    %s9 = sphi 0, %s13
    %p10 = scmp.ge.s32.totalorder %s9, 4
    %s16 = sphi 0, %s28
    %s17 = sphi 0, %s24
    %s18 = sphi 0, %s16
    %s19 = sphi 0, %s17
    %s20 = sphi 0, %s18
    %s21 = sphi 0, %s19
    %s31 = sphi 0, %s33
    %s34 = sphi 0, %s31
    %s35 = sphi 0, %s34
    %s51 = sphi 0, %s35
    %s57 = sphi 0, %s59
    %s60 = sphi 0, %s57
    %s61 = sphi 0, %s60
    %s77 = sphi 0, %s61
    %s83 = sphi 0, %s85
    %s86 = sphi 0, %s83
    %s87 = sphi 0, %s86
    %s103 = sphi 0, %s87
    %s111 = sphi 0, %s113
    %s114 = sphi 0, %s111
    %s115 = sphi 0, %s114
    %s131 = sphi 0, %s115
  $region4: #{d_net128_forward.9} parent=0 // loop_header_branch
    %12 = sbr.rel (%p10) target = $region8
  $region5: #{d_net128_forward.9} parent=0 // loop_body
    %s14 = ssub.s32 %s9, 1
    %s15 = ssub.s32 %s9, 2
    %s22 = sadd.s32 1, %s17
    %p23 = scmp.ge.s32.totalorder %s22, 2
    %s24 = scalar_select %p23, 0, %s22
    %s25 = sadd.s32 1, %s16
    %s26 = scalar_select %p23, %s25, %s16
    %p27 = scmp.ge.s32.totalorder %s26, 1
    %s28 = scalar_select %p27, 0, %s26
    %s29 = ssub.s32 %s17, %s24
    %p30 = scmp.eq.s32.totalorder %s29, 0
    %s32 = sadd.s32 %s31, 1
    %s33 = scalar_select %p30, %s31, %s32
    %p36 = pneg %p30
    %p37 = scmp.eq.s32.totalorder %s9, 1
    %p38 = por %p36, %p37
    %p39 = scmp.ne.s32.totalorder %s31, %s34
    %p40 = scmp.eq.s32.totalorder %s9, 0
    %p41 = por %p39, %p40
    %p42 = scmp.ne.s32.totalorder %s31, %s34
    %p43 = scmp.eq.s32.totalorder %s14, 1
    %p44 = por %p42, %p43
    %p45 = scmp.ne.s32.totalorder %s34, %s35
    %p46 = scmp.eq.s32.totalorder %s14, 0
    %p47 = por %p45, %p46
    %p48 = scmp.ne.s32.totalorder %s34, %s35
    %p49 = scmp.eq.s32.totalorder %s15, 1
    %p50 = por %p48, %p49
    %p52 = scmp.ne.s32.totalorder %s35, %s51
    %p53 = scmp.eq.s32.totalorder %s15, 0
    %p54 = por %p52, %p53
    %s55 = ssub.s32 %s16, %s28
    %p56 = scmp.eq.s32.totalorder %s55, 0
    %s58 = sadd.s32 %s57, 1
    %s59 = scalar_select %p56, %s57, %s58
    %p62 = pneg %p56
    %p63 = scmp.eq.s32.totalorder %s9, 1
    %p64 = por %p62, %p63
    %p65 = scmp.ne.s32.totalorder %s57, %s60
    %p66 = scmp.eq.s32.totalorder %s9, 0
    %p67 = por %p65, %p66
    %p68 = scmp.ne.s32.totalorder %s57, %s60
    %p69 = scmp.eq.s32.totalorder %s14, 1
    %p70 = por %p68, %p69
    %p71 = scmp.ne.s32.totalorder %s60, %s61
    %p72 = scmp.eq.s32.totalorder %s14, 0
    %p73 = por %p71, %p72
    %p74 = scmp.ne.s32.totalorder %s60, %s61
    %p75 = scmp.eq.s32.totalorder %s15, 1
    %p76 = por %p74, %p75
    %p78 = scmp.ne.s32.totalorder %s61, %s77
    %p79 = scmp.eq.s32.totalorder %s15, 0
    %p80 = por %p78, %p79
    %s81 = ssub.s32 %s16, %s28
    %p82 = scmp.eq.s32.totalorder %s81, 0
    %s84 = sadd.s32 %s83, 1
    %s85 = scalar_select %p82, %s83, %s84
    %p88 = pneg %p82
    %p89 = scmp.eq.s32.totalorder %s9, 1
    %p90 = por %p88, %p89
    %p91 = scmp.ne.s32.totalorder %s83, %s86
    %p92 = scmp.eq.s32.totalorder %s9, 0
    %p93 = por %p91, %p92
    %p94 = scmp.ne.s32.totalorder %s83, %s86
    %p95 = scmp.eq.s32.totalorder %s14, 1
    %p96 = por %p94, %p95
    %p97 = scmp.ne.s32.totalorder %s86, %s87
    %p98 = scmp.eq.s32.totalorder %s14, 0
    %p99 = por %p97, %p98
    %p100 = scmp.ne.s32.totalorder %s86, %s87
    %p101 = scmp.eq.s32.totalorder %s15, 1
    %p102 = por %p100, %p101
    %p104 = scmp.ne.s32.totalorder %s87, %s103
    %p105 = scmp.eq.s32.totalorder %s15, 0
    %p106 = por %p104, %p105
    %s107 = ssub.s32 %s17, %s24
    %s108 = ssub.s32 %s16, %s28
    %s109 = sor.u32 %s107, %s108
    %p110 = scmp.eq.s32.totalorder %s109, 0
    %s112 = sadd.s32 %s111, 1
    %s113 = scalar_select %p110, %s111, %s112
    %p116 = pneg %p110
    %p117 = scmp.eq.s32.totalorder %s9, 1
    %p118 = por %p116, %p117
    %p119 = scmp.ne.s32.totalorder %s111, %s114
    %p120 = scmp.eq.s32.totalorder %s9, 0
    %p121 = por %p119, %p120
    %p122 = scmp.ne.s32.totalorder %s111, %s114
    %p123 = scmp.eq.s32.totalorder %s14, 1
    %p124 = por %p122, %p123
    %p125 = scmp.ne.s32.totalorder %s114, %s115
    %p126 = scmp.eq.s32.totalorder %s14, 0
    %p127 = por %p125, %p126
    %p128 = scmp.ne.s32.totalorder %s114, %s115
    %p129 = scmp.eq.s32.totalorder %s15, 1
    %p130 = por %p128, %p129
    %p132 = scmp.ne.s32.totalorder %s115, %s131
    %p133 = scmp.eq.s32.totalorder %s15, 0
    %p134 = por %p132, %p133
    %p135 = scmp.le.s32.totalorder 1, %s9
    %p136 = scmp.lt.s32.totalorder %s9, 3
    %p137 = pnand %p135, %p136
    %p138 = pneg %p137
    // Predicated region
    $region9: #{d_net128_forward.9} parent=5 // pred_check
      _
    $region10: #{d_net128_forward.9} parent=5 // pred_check_branch
      %140 = sbr.rel (%p137) target = $region12
    $region11: #{d_net128_forward.9} parent=5 // pred_region
      %s141 = ssub.s32 %s9, 1
      // Predicated region
      $region13: #{d_net128_forward.9} parent=11 // pred_check
        %p142 = pneg %p73
      $region14: #{d_net128_forward.9} parent=11 // pred_check_branch
        %144 = sbr.rel (%p142) target = $region16
      $region15: #{d_net128_forward.9} parent=11 // pred_region
        %p145 = scmp.lt.s32.totalorder %s18, 0
        %s146 = scalar_select %p145, %s18, 0
        %s147 = smul.addr %s146, 4
        %s148 = scalar_lea.vmem %s1, %s147
      $region16: #{d_net128_forward.9} parent=11 // pred_fallthru
        _
      // Predicated region
      $region17: #{d_net128_forward.9} parent=11 // pred_check
        %p149 = pneg %p99
      $region18: #{d_net128_forward.9} parent=11 // pred_check_branch
        %151 = sbr.rel (%p149) target = $region20
      $region19: #{d_net128_forward.9} parent=11 // pred_region
        %p152 = scmp.lt.s32.totalorder %s18, 0
        %s153 = scalar_select %p152, %s18, 0
        %s154 = scalar_lea.vmem %s2, %s153
      $region20: #{d_net128_forward.9} parent=11 // pred_fallthru
        _
    $region12: #{d_net128_forward.9} parent=5 // pred_fallthru
      _
    %p155 = scmp.lt.s32.totalorder %s9, 2
    // Predicated region
    $region21: #{d_net128_forward.9} parent=5 // pred_check
      %p156 = pneg %p155
    $region22: #{d_net128_forward.9} parent=5 // pred_check_branch
      %158 = sbr.rel (%p156) target = $region24
    $region23: #{d_net128_forward.9} parent=5 // pred_region
      // Predicated region
      $region25: #{d_net128_forward.9} parent=23 // pred_check
        %p159 = pneg %p41
      $region26: #{d_net128_forward.9} parent=23 // pred_check_branch
        %161 = sbr.rel (%p159) target = $region28
      $region27: #{d_net128_forward.9} parent=23 // pred_region
        %p162 = scmp.lt.s32.totalorder %s17, 1
        %s163 = scalar_select %p162, %s17, 1
        %s164 = smul.addr %s163, 4
        %s165 = smul.addr %s164, 4
        %s166 = scalar_lea.vmem %s0, %s165
      $region28: #{d_net128_forward.9} parent=23 // pred_fallthru
        _
    $region24: #{d_net128_forward.9} parent=5 // pred_fallthru
      _
    %p167 = scmp.le.s32.totalorder 1, %s9
    %p168 = scmp.lt.s32.totalorder %s9, 3
    %p169 = pnand %p167, %p168
    %p170 = pneg %p169
    // Predicated region
    $region29: #{d_net128_forward.9} parent=5 // pred_check
      _
    $region30: #{d_net128_forward.9} parent=5 // pred_check_branch
      %172 = sbr.rel (%p169) target = $region32
    $region31: #{d_net128_forward.9} parent=5 // pred_region
      %s173 = ssub.s32 %s9, 1
      %p174 = scmp.lt.s32.totalorder %s19, 1
      %s175 = scalar_select %p174, %s19, 1
      %s176 = smul.addr %s175, 4
      %s177 = smul.addr %s176, 4
      %s178 = scalar_lea.vmem %s0, %s177
      %p179 = pneg %p47
      %p180 = pneg %p44
      %p181 = scmp.lt.s32.totalorder %s18, 0
      %s182 = scalar_select %p181, %s18, 0
      %s183 = smul.addr %s182, 4
      %s184 = scalar_lea.vmem %s1, %s183
      %p185 = pneg %p73
      %p186 = pneg %p70
      %p187 = scmp.lt.s32.totalorder %s18, 0
      %s188 = scalar_select %p187, %s18, 0
      %s189 = scalar_lea.vmem %s2, %s188
      %p190 = pneg %p99
      %p191 = pneg %p96
      %p192 = pneg %p127
      %p193 = pneg %p124
      %p194 = scmp.lt.s32.totalorder %s19, 1
      %s195 = scalar_select %p194, %s19, 1
      %p196 = scmp.lt.s32.totalorder %s18, 0
      %s197 = scalar_select %p196, %s18, 0
      %s198 = smul.addr %s195, 3
      %s199 = sadd.s32 %s197, %s198
      %s200 = smul.addr %s199, 4
      %s201 = scalar_lea.vmem %s3, %s200
      %p202 = scmp.lt.s32.totalorder %s19, 1
      %s203 = scalar_select %p202, %s19, 1
      %s204 = smul.addr %s203, 4
      %s205 = smul.addr %s204, 4
      %s206 = scalar_lea.vmem %s0, %s205
      %p207 = scmp.lt.s32.totalorder %s18, 0
      %s208 = scalar_select %p207, %s18, 0
      %s209 = smul.addr %s208, 4
      %s210 = scalar_lea.vmem %s1, %s209
      %p211 = scmp.lt.s32.totalorder %s18, 0
      %s212 = scalar_select %p211, %s18, 0
      %s213 = scalar_lea.vmem %s2, %s212
      %p214 = scmp.lt.s32.totalorder %s19, 1
      %s215 = scalar_select %p214, %s19, 1
      %p216 = scmp.lt.s32.totalorder %s18, 0
      %s217 = scalar_select %p216, %s18, 0
      %s218 = smul.addr %s215, 3
      %s219 = sadd.s32 %s217, %s218
      %s220 = smul.addr %s219, 4
      %s221 = scalar_lea.vmem %s3, %s220
      %v223 = vld [vmem:[%s206] sm:$0xf]
      %v224 = vld [vmem:[%s206 + $0x4] sm:$0xf]
      %v225 = vld [vmem:[%s206 + $0x8] sm:$0x3]
      %v226 = vld [vmem:[%s210] sm:$0xf]
      %v227 = vld [vmem:[%s210 + $0x4] sm:$0xf]
      %v228 = vld [vmem:[%s210 + $0x8] sm:$0xf]
      %v229 = vld [vmem:[%s210 + $0xc] sm:$0xf]
      %v230 = vld [vmem:[%s210 + $0x10] sm:$0xf]
      %v231 = vld [vmem:[%s210 + $0x14] sm:$0xf]
      %v232 = vld [vmem:[%s210 + $0x18] sm:$0xf]
      %v233 = vld [vmem:[%s210 + $0x1c] sm:$0xf]
      %v234 = vld [vmem:[%s210 + $0x20] sm:$0xf]
      %v235 = vld [vmem:[%s210 + $0x24] sm:$0xf]
      %v236 = vld [vmem:[%s210 + $0x28] sm:$0xf]
      %v237 = vld [vmem:[%s210 + $0x2c] sm:$0xf]
      %v238 = vld [vmem:[%s210 + $0x30] sm:$0xf]
      %v239 = vld [vmem:[%s210 + $0x34] sm:$0xf]
      %v240 = vld [vmem:[%s210 + $0x38] sm:$0xf]
      %v241 = vld [vmem:[%s210 + $0x3c] sm:$0xf]
      %v242 = vld [vmem:[%s206 + $0x8] sm:$0x7]
      %s243 = scalar_lea.vmem %s210, 64
      %v244 = vld [vmem:[%s243] sm:$0xf]
      %v245 = vld [vmem:[%s243 + $0x4] sm:$0xf]
      %v246 = vld [vmem:[%s243 + $0x8] sm:$0xf]
      %v247 = vld [vmem:[%s243 + $0xc] sm:$0xf]
      %v248 = vld [vmem:[%s243 + $0x10] sm:$0xf]
      %v249 = vld [vmem:[%s243 + $0x14] sm:$0xf]
      %v250 = vld [vmem:[%s243 + $0x18] sm:$0xf]
      %v251 = vld [vmem:[%s243 + $0x1c] sm:$0xf]
      %v252 = vld [vmem:[%s243 + $0x20] sm:$0xf]
      %v253 = vld [vmem:[%s243 + $0x24] sm:$0xf]
      %v254 = vld [vmem:[%s243 + $0x28] sm:$0xf]
      %v255 = vld [vmem:[%s243 + $0x2c] sm:$0xf]
      %v256 = vld [vmem:[%s243 + $0x30] sm:$0xf]
      %v257 = vld [vmem:[%s243 + $0x34] sm:$0xf]
      %v258 = vld [vmem:[%s243 + $0x38] sm:$0xf]
      %v259 = vld [vmem:[%s243 + $0x3c] sm:$0xf]
      %v263 = vunpack.c.l.b16 %v223
      %v264 = vunpack.c.l.b16 %v224
      %v265 = vunpack.c.l.b16 %v242
      %v266 = vpack.c.b16 %v264, %v263
      %v267 = vpack.c.b16 %v265, %v265
      %vm268 = vsmask.f32 7424
      %v270 = vshrl.u32 %v266, 16
      %v272 = vshll.u32 %v266, 16
      %v274 = vrot.slane %v272, 1
      %v275 = vor.u32 %v270, %v274
      %v277 = vshll.u32 %v267, 16
      %v279 = vrot.slane %v277, 1
      %v280 = vsel %vm268, %v275, %v279
      %v281 = vshrl.u32 %v267, 16
      %v283 = vor.u32 %v281, %v279
      %v302 = vunpack.c.l.b16 %v244
      %v303 = vunpack.c.l.b16 %v245
      %v304 = vunpack.c.l.b16 %v246
      %v305 = vunpack.c.l.b16 %v247
      %v306 = vunpack.c.l.b16 %v248
      %v307 = vunpack.c.l.b16 %v249
      %v308 = vunpack.c.l.b16 %v250
      %v309 = vunpack.c.l.b16 %v251
      %v310 = vunpack.c.l.b16 %v252
      %v311 = vunpack.c.l.b16 %v253
      %v312 = vunpack.c.l.b16 %v254
      %v313 = vunpack.c.l.b16 %v255
      %v314 = vunpack.c.l.b16 %v256
      %v315 = vunpack.c.l.b16 %v257
      %v316 = vunpack.c.l.b16 %v258
      %v317 = vunpack.c.l.b16 %v259
      %v318 = vpack.c.b16 %v303, %v302
      %v319 = vpack.c.b16 %v305, %v304
      %v320 = vpack.c.b16 %v307, %v306
      %v321 = vpack.c.b16 %v309, %v308
      %v322 = vpack.c.b16 %v311, %v310
      %v323 = vpack.c.b16 %v313, %v312
      %v324 = vpack.c.b16 %v315, %v314
      %v325 = vpack.c.b16 %v317, %v316
      %334 = vmatprep.subr.bf16.mxu0 0
      %335 = vmatpush1.bf16.msra.mxu0 %v325
      %336 = vmatprep.subr.bf16.mxu0 0
      %337 = vmatpush1.bf16.msra.mxu0 %v324
      %338 = vmatprep.subr.bf16.mxu0 0
      %339 = vmatpush1.bf16.msra.mxu0 %v323
      %340 = vmatprep.subr.bf16.mxu0 0
      %341 = vmatpush1.bf16.msra.mxu0 %v322
      %342 = vmatprep.subr.bf16.mxu0 0
      %343 = vmatpush1.bf16.msra.mxu0 %v321
      %344 = vmatprep.subr.bf16.mxu0 0
      %345 = vmatpush1.bf16.msra.mxu0 %v320
      %346 = vmatprep.subr.bf16.mxu0 0
      %347 = vmatpush1.bf16.msra.mxu0 %v319
      %348 = vmatprep.subr.bf16.mxu0 0
      %349 = vmatpush1.bf16.msra.mxu0 %v318
      %350 = vmatprep.subr.bf16.mxu0 0
      %351 = vmatpush2.bf16.msra.mxu0 0
      %352 = vmatprep.subr.bf16.mxu0 0
      %353 = vmatpush2.bf16.msra.mxu0 0
      %354 = vmatprep.subr.bf16.mxu0 0
      %355 = vmatpush2.bf16.msra.mxu0 0
      %356 = vmatprep.subr.bf16.mxu0 0
      %357 = vmatpush2.bf16.msra.mxu0 0
      %358 = vmatprep.subr.bf16.mxu0 0
      %359 = vmatpush2.bf16.msra.mxu0 0
      %360 = vmatprep.subr.bf16.mxu0 0
      %361 = vmatpush2.bf16.msra.mxu0 0
      %362 = vmatprep.subr.bf16.mxu0 0
      %363 = vmatpush2.bf16.msra.mxu0 0
      %364 = vmatprep.subr.bf16.mxu0 0
      %365 = vmatpush2.bf16.msra.mxu0 0
      %366 = vmatprep.mubr.bf16.mxu0 0
      %367 = vmatmul.mubr.bf16.gmra.mxu0 %v280
      %v368 = vpop.f32.mrf.mxu0
      %v369 = vadd.f32 0.0, %v368
      %v370 = vpop.f32.mrf.mxu0
      %v371 = vpop.f32.mrf.mxu0
      %v372 = vadd.f32 0.0, %v371
      %v373 = vpop.f32.mrf.mxu0
      %374 = vmatprep.mubr.bf16.mxu0 0
      %375 = vmatmul.mubr.bf16.gmra.mxu0 %v283
      %v376 = vpop.f32.mrf.mxu0
      %v377 = vadd.f32 0.0, %v376
      %v378 = vpop.f32.mrf.mxu0
      %v379 = vpop.f32.mrf.mxu0
      %v380 = vpop.f32.mrf.mxu0
      %381 = vdwg.mxu0
      %v383 = vunpack.c.l.b16 %v225
      %v384 = vpack.c.b16 %v383, %v383
      %v403 = vunpack.c.l.b16 %v226
      %v404 = vunpack.c.l.b16 %v227
      %v405 = vunpack.c.l.b16 %v228
      %v406 = vunpack.c.l.b16 %v229
      %v407 = vunpack.c.l.b16 %v230
      %v408 = vunpack.c.l.b16 %v231
      %v409 = vunpack.c.l.b16 %v232
      %v410 = vunpack.c.l.b16 %v233
      %v411 = vunpack.c.l.b16 %v234
      %v412 = vunpack.c.l.b16 %v235
      %v413 = vunpack.c.l.b16 %v236
      %v414 = vunpack.c.l.b16 %v237
      %v415 = vunpack.c.l.b16 %v238
      %v416 = vunpack.c.l.b16 %v239
      %v417 = vunpack.c.l.b16 %v240
      %v418 = vunpack.c.l.b16 %v241
      %v419 = vpack.c.b16 %v404, %v403
      %v420 = vpack.c.b16 %v406, %v405
      %v421 = vpack.c.b16 %v408, %v407
      %v422 = vpack.c.b16 %v410, %v409
      %v423 = vpack.c.b16 %v412, %v411
      %v424 = vpack.c.b16 %v414, %v413
      %v425 = vpack.c.b16 %v416, %v415
      %v426 = vpack.c.b16 %v418, %v417
      %435 = vmatprep.subr.bf16.mxu0 0
      %436 = vmatpush1.bf16.msra.mxu0 %v426
      %437 = vmatprep.subr.bf16.mxu0 0
      %438 = vmatpush1.bf16.msra.mxu0 %v425
      %439 = vmatprep.subr.bf16.mxu0 0
      %440 = vmatpush1.bf16.msra.mxu0 %v424
      %441 = vmatprep.subr.bf16.mxu0 0
      %442 = vmatpush1.bf16.msra.mxu0 %v423
      %443 = vmatprep.subr.bf16.mxu0 0
      %444 = vmatpush1.bf16.msra.mxu0 %v422
      %445 = vmatprep.subr.bf16.mxu0 0
      %446 = vmatpush1.bf16.msra.mxu0 %v421
      %447 = vmatprep.subr.bf16.mxu0 0
      %448 = vmatpush1.bf16.msra.mxu0 %v420
      %449 = vmatprep.subr.bf16.mxu0 0
      %450 = vmatpush1.bf16.msra.mxu0 %v419
      %451 = vmatprep.subr.bf16.mxu0 0
      %452 = vmatpush2.bf16.msra.mxu0 0
      %453 = vmatprep.subr.bf16.mxu0 0
      %454 = vmatpush2.bf16.msra.mxu0 0
      %455 = vmatprep.subr.bf16.mxu0 0
      %456 = vmatpush2.bf16.msra.mxu0 0
      %457 = vmatprep.subr.bf16.mxu0 0
      %458 = vmatpush2.bf16.msra.mxu0 0
      %459 = vmatprep.subr.bf16.mxu0 0
      %460 = vmatpush2.bf16.msra.mxu0 0
      %461 = vmatprep.subr.bf16.mxu0 0
      %462 = vmatpush2.bf16.msra.mxu0 0
      %463 = vmatprep.subr.bf16.mxu0 0
      %464 = vmatpush2.bf16.msra.mxu0 0
      %465 = vmatprep.subr.bf16.mxu0 0
      %466 = vmatpush2.bf16.msra.mxu0 0
      %467 = vmatprep.mubr.bf16.mxu0 0
      %468 = vmatmul.mubr.bf16.gmra.mxu0 %v266
      %v469 = vpop.f32.mrf.mxu0
      %v470 = vadd.f32 %v369, %v469
      %v471 = vpop.f32.mrf.mxu0
      %v472 = vpop.f32.mrf.mxu0
      %v473 = vadd.f32 %v372, %v472
      %v474 = vpop.f32.mrf.mxu0
      %475 = vmatprep.mubr.bf16.mxu0 0
      %476 = vmatmul.mubr.bf16.gmra.mxu0 %v384
      %v477 = vpop.f32.mrf.mxu0
      %v478 = vadd.f32 %v377, %v477
      %v479 = vpop.f32.mrf.mxu0
      %v480 = vpop.f32.mrf.mxu0
      %v481 = vpop.f32.mrf.mxu0
      %482 = vdwg.mxu0
      %v483 = vld [vmem:[%s206] sm:$0xc]
      %v484 = vld [vmem:[%s206 + $0x4] sm:$0xf]
      %v485 = vld [vmem:[%s206 + $0x8] sm:$0xf]
      %v486 = vld [vmem:[%s206 + $0xc] sm:$0x1]
      %s487 = scalar_lea.vmem %s210, 128
      %v488 = vld [vmem:[%s487] sm:$0xf]
      %v489 = vld [vmem:[%s487 + $0x4] sm:$0xf]
      %v490 = vld [vmem:[%s487 + $0x8] sm:$0xf]
      %v491 = vld [vmem:[%s487 + $0xc] sm:$0xf]
      %v492 = vld [vmem:[%s487 + $0x10] sm:$0xf]
      %v493 = vld [vmem:[%s487 + $0x14] sm:$0xf]
      %v494 = vld [vmem:[%s487 + $0x18] sm:$0xf]
      %v495 = vld [vmem:[%s487 + $0x1c] sm:$0xf]
      %v496 = vld [vmem:[%s487 + $0x20] sm:$0xf]
      %v497 = vld [vmem:[%s487 + $0x24] sm:$0xf]
      %v498 = vld [vmem:[%s487 + $0x28] sm:$0xf]
      %v499 = vld [vmem:[%s487 + $0x2c] sm:$0xf]
      %v500 = vld [vmem:[%s487 + $0x30] sm:$0xf]
      %v501 = vld [vmem:[%s487 + $0x34] sm:$0xf]
      %v502 = vld [vmem:[%s487 + $0x38] sm:$0xf]
      %v503 = vld [vmem:[%s487 + $0x3c] sm:$0xf]
      %v508 = vunpack.c.l.b16 %v483
      %v509 = vunpack.c.l.b16 %v484
      %v510 = vunpack.c.l.b16 %v485
      %v511 = vunpack.c.l.b16 %v486
      %v512 = vpack.c.b16 %v509, %v508
      %v513 = vpack.c.b16 %v511, %v510
      %vm514 = vsmask.f32 5376
      %v516 = vshrl.u32 %v512, 16
      %v518 = vrot.slane %v516, 2
      %v519 = vshll.u32 %v512, 16
      %v521 = vrot.slane %v519, 3
      %v522 = vor.u32 %v518, %v521
      %v524 = vshrl.u32 %v513, 16
      %v526 = vrot.slane %v524, 2
      %v527 = vshll.u32 %v513, 16
      %v529 = vrot.slane %v527, 3
      %v530 = vor.u32 %v526, %v529
      %v531 = vsel %vm514, %v522, %v530
      %v550 = vunpack.c.l.b16 %v488
      %v551 = vunpack.c.l.b16 %v489
      %v552 = vunpack.c.l.b16 %v490
      %v553 = vunpack.c.l.b16 %v491
      %v554 = vunpack.c.l.b16 %v492
      %v555 = vunpack.c.l.b16 %v493
      %v556 = vunpack.c.l.b16 %v494
      %v557 = vunpack.c.l.b16 %v495
      %v558 = vunpack.c.l.b16 %v496
      %v559 = vunpack.c.l.b16 %v497
      %v560 = vunpack.c.l.b16 %v498
      %v561 = vunpack.c.l.b16 %v499
      %v562 = vunpack.c.l.b16 %v500
      %v563 = vunpack.c.l.b16 %v501
      %v564 = vunpack.c.l.b16 %v502
      %v565 = vunpack.c.l.b16 %v503
      %v566 = vpack.c.b16 %v551, %v550
      %v567 = vpack.c.b16 %v553, %v552
      %v568 = vpack.c.b16 %v555, %v554
      %v569 = vpack.c.b16 %v557, %v556
      %v570 = vpack.c.b16 %v559, %v558
      %v571 = vpack.c.b16 %v561, %v560
      %v572 = vpack.c.b16 %v563, %v562
      %v573 = vpack.c.b16 %v565, %v564
      %582 = vmatprep.subr.bf16.mxu0 0
      %583 = vmatpush1.bf16.msra.mxu0 %v573
      %584 = vmatprep.subr.bf16.mxu0 0
      %585 = vmatpush1.bf16.msra.mxu0 %v572
      %586 = vmatprep.subr.bf16.mxu0 0
      %587 = vmatpush1.bf16.msra.mxu0 %v571
      %588 = vmatprep.subr.bf16.mxu0 0
      %589 = vmatpush1.bf16.msra.mxu0 %v570
      %590 = vmatprep.subr.bf16.mxu0 0
      %591 = vmatpush1.bf16.msra.mxu0 %v569
      %592 = vmatprep.subr.bf16.mxu0 0
      %593 = vmatpush1.bf16.msra.mxu0 %v568
      %594 = vmatprep.subr.bf16.mxu0 0
      %595 = vmatpush1.bf16.msra.mxu0 %v567
      %596 = vmatprep.subr.bf16.mxu0 0
      %597 = vmatpush1.bf16.msra.mxu0 %v566
      %598 = vmatprep.subr.bf16.mxu0 0
      %599 = vmatpush2.bf16.msra.mxu0 0
      %600 = vmatprep.subr.bf16.mxu0 0
      %601 = vmatpush2.bf16.msra.mxu0 0
      %602 = vmatprep.subr.bf16.mxu0 0
      %603 = vmatpush2.bf16.msra.mxu0 0
      %604 = vmatprep.subr.bf16.mxu0 0
      %605 = vmatpush2.bf16.msra.mxu0 0
      %606 = vmatprep.subr.bf16.mxu0 0
      %607 = vmatpush2.bf16.msra.mxu0 0
      %608 = vmatprep.subr.bf16.mxu0 0
      %609 = vmatpush2.bf16.msra.mxu0 0
      %610 = vmatprep.subr.bf16.mxu0 0
      %611 = vmatpush2.bf16.msra.mxu0 0
      %612 = vmatprep.subr.bf16.mxu0 0
      %613 = vmatpush2.bf16.msra.mxu0 0
      %614 = vmatprep.mubr.bf16.mxu0 0
      %615 = vmatmul.mubr.bf16.gmra.mxu0 %v531
      %v616 = vpop.f32.mrf.mxu0
      %v617 = vadd.f32 0.0, %v616
      %v618 = vpop.f32.mrf.mxu0
      %v619 = vpop.f32.mrf.mxu0
      %v620 = vadd.f32 0.0, %v619
      %v621 = vpop.f32.mrf.mxu0
      %622 = vmatprep.mubr.bf16.mxu0 0
      %623 = vmatmul.mubr.bf16.gmra.mxu0 %v530
      %v624 = vpop.f32.mrf.mxu0
      %v625 = vadd.f32 0.0, %v624
      %v626 = vpop.f32.mrf.mxu0
      %v627 = vpop.f32.mrf.mxu0
      %v628 = vpop.f32.mrf.mxu0
      %629 = vdwg.mxu0
      %v630 = vadd.f32 %v470, %v617
      %v631 = vadd.f32 %v473, %v620
      %v632 = vadd.f32 %v478, %v625
      %v633 = vld [vmem:[%s206] sm:$0x8]
      %s634 = scalar_lea.vmem %s210, 192
      %v635 = vld [vmem:[%s634] sm:$0xf]
      %v636 = vld [vmem:[%s634 + $0x4] sm:$0xf]
      %v637 = vld [vmem:[%s634 + $0x8] sm:$0xf]
      %v638 = vld [vmem:[%s634 + $0xc] sm:$0xf]
      %v639 = vld [vmem:[%s634 + $0x10] sm:$0xf]
      %v640 = vld [vmem:[%s634 + $0x14] sm:$0xf]
      %v641 = vld [vmem:[%s634 + $0x18] sm:$0xf]
      %v642 = vld [vmem:[%s634 + $0x1c] sm:$0xf]
      %v643 = vld [vmem:[%s634 + $0x20] sm:$0xf]
      %v644 = vld [vmem:[%s634 + $0x24] sm:$0xf]
      %v645 = vld [vmem:[%s634 + $0x28] sm:$0xf]
      %v646 = vld [vmem:[%s634 + $0x2c] sm:$0xf]
      %v647 = vld [vmem:[%s634 + $0x30] sm:$0xf]
      %v648 = vld [vmem:[%s634 + $0x34] sm:$0xf]
      %v649 = vld [vmem:[%s634 + $0x38] sm:$0xf]
      %v650 = vld [vmem:[%s634 + $0x3c] sm:$0xf]
      %v652 = vunpack.c.l.b16 %v633
      %v653 = vpack.c.b16 %v509, %v652
      %vm654 = vcmask 1044480
      %v655 = vrot.slane %v653, 3
      %v656 = vrot.slane %v513, 3
      %v657 = vsel %vm654, %v655, %v656
      %v676 = vunpack.c.l.b16 %v635
      %v677 = vunpack.c.l.b16 %v636
      %v678 = vunpack.c.l.b16 %v637
      %v679 = vunpack.c.l.b16 %v638
      %v680 = vunpack.c.l.b16 %v639
      %v681 = vunpack.c.l.b16 %v640
      %v682 = vunpack.c.l.b16 %v641
      %v683 = vunpack.c.l.b16 %v642
      %v684 = vunpack.c.l.b16 %v643
      %v685 = vunpack.c.l.b16 %v644
      %v686 = vunpack.c.l.b16 %v645
      %v687 = vunpack.c.l.b16 %v646
      %v688 = vunpack.c.l.b16 %v647
      %v689 = vunpack.c.l.b16 %v648
      %v690 = vunpack.c.l.b16 %v649
      %v691 = vunpack.c.l.b16 %v650
      %v692 = vpack.c.b16 %v677, %v676
      %v693 = vpack.c.b16 %v679, %v678
      %v694 = vpack.c.b16 %v681, %v680
      %v695 = vpack.c.b16 %v683, %v682
      %v696 = vpack.c.b16 %v685, %v684
      %v697 = vpack.c.b16 %v687, %v686
      %v698 = vpack.c.b16 %v689, %v688
      %v699 = vpack.c.b16 %v691, %v690
      %708 = vmatprep.subr.bf16.mxu0 0
      %709 = vmatpush1.bf16.msra.mxu0 %v699
      %710 = vmatprep.subr.bf16.mxu0 0
      %711 = vmatpush1.bf16.msra.mxu0 %v698
      %712 = vmatprep.subr.bf16.mxu0 0
      %713 = vmatpush1.bf16.msra.mxu0 %v697
      %714 = vmatprep.subr.bf16.mxu0 0
      %715 = vmatpush1.bf16.msra.mxu0 %v696
      %716 = vmatprep.subr.bf16.mxu0 0
      %717 = vmatpush1.bf16.msra.mxu0 %v695
      %718 = vmatprep.subr.bf16.mxu0 0
      %719 = vmatpush1.bf16.msra.mxu0 %v694
      %720 = vmatprep.subr.bf16.mxu0 0
      %721 = vmatpush1.bf16.msra.mxu0 %v693
      %722 = vmatprep.subr.bf16.mxu0 0
      %723 = vmatpush1.bf16.msra.mxu0 %v692
      %724 = vmatprep.subr.bf16.mxu0 0
      %725 = vmatpush2.bf16.msra.mxu0 0
      %726 = vmatprep.subr.bf16.mxu0 0
      %727 = vmatpush2.bf16.msra.mxu0 0
      %728 = vmatprep.subr.bf16.mxu0 0
      %729 = vmatpush2.bf16.msra.mxu0 0
      %730 = vmatprep.subr.bf16.mxu0 0
      %731 = vmatpush2.bf16.msra.mxu0 0
      %732 = vmatprep.subr.bf16.mxu0 0
      %733 = vmatpush2.bf16.msra.mxu0 0
      %734 = vmatprep.subr.bf16.mxu0 0
      %735 = vmatpush2.bf16.msra.mxu0 0
      %736 = vmatprep.subr.bf16.mxu0 0
      %737 = vmatpush2.bf16.msra.mxu0 0
      %738 = vmatprep.subr.bf16.mxu0 0
      %739 = vmatpush2.bf16.msra.mxu0 0
      %740 = vmatprep.mubr.bf16.mxu0 0
      %741 = vmatmul.mubr.bf16.gmra.mxu0 %v657
      %v742 = vpop.f32.mrf.mxu0
      %v743 = vadd.f32 0.0, %v742
      %v744 = vpop.f32.mrf.mxu0
      %v745 = vpop.f32.mrf.mxu0
      %v746 = vadd.f32 0.0, %v745
      %v747 = vpop.f32.mrf.mxu0
      %748 = vmatprep.mubr.bf16.mxu0 0
      %749 = vmatmul.mubr.bf16.gmra.mxu0 %v656
      %v750 = vpop.f32.mrf.mxu0
      %v751 = vadd.f32 0.0, %v750
      %v752 = vpop.f32.mrf.mxu0
      %v753 = vpop.f32.mrf.mxu0
      %v754 = vpop.f32.mrf.mxu0
      %755 = vdwg.mxu0
      %v756 = vadd.f32 %v630, %v743
      %v757 = vadd.f32 %v631, %v746
      %v758 = vadd.f32 %v632, %v751
      %v759 = vld [vmem:[%s213] sm:$0x1]
      %v761 = vlaneseq
      %v762 = vshrl.u32 %v761, 7
      %v763 = vsub.s32 0, %v762
      %v764 = vrot.slane %v759, %v763
      %v766 = vadd.f32 %v756, %v764
      %v767 = vadd.f32 %v757, %v764
      %v768 = vadd.f32 %v758, %v764
      %vm769 = vcmp.gt.f32.partialorder %v766, 0.0
      %vm770 = vcmp.gt.f32.partialorder %v767, 0.0
      %vm771 = vcmp.gt.f32.partialorder %v768, 0.0
      %v772 = vmul.f32 %v766, 0.2
      %v773 = vmul.f32 %v767, 0.2
      %v774 = vmul.f32 %v768, 0.2
      %v775 = vsel %vm769, %v766, %v772
      %v776 = vsel %vm770, %v767, %v773
      %v777 = vsel %vm771, %v768, %v774
      %v778 = vpack.c.bf16 %v776, %v775
      %v779 = vpack.c.bf16 %v777, %v777
      %v782 = vunpack.c.l.b16 %v778
      %v783 = vunpack.c.h.b16 %v778
      %v784 = vunpack.c.l.b16 %v779
      %v785 = vpack.c.b16 %v782, %v782
      %v786 = vpack.c.b16 %v783, %v783
      %v787 = vpack.c.b16 %v784, %v784
      %791 = vst [vmem:[%s221] sm:$0xf] %v785
      %792 = vst [vmem:[%s221 + $0x4] sm:$0xf] %v786
      %793 = vst [vmem:[%s221 + $0x8] sm:$0x3] %v787
      %p794 = scmp.lt.s32.totalorder %s19, 1
      %s795 = scalar_select %p794, %s19, 1
      %p796 = scmp.lt.s32.totalorder %s18, 0
      %s797 = scalar_select %p796, %s18, 0
      %s798 = smul.addr %s795, 3
      %s799 = sadd.s32 %s797, %s798
      %s800 = smul.addr %s799, 4
      %s801 = scalar_lea.vmem %s3, %s800
      // Predicated region
      $region33: #{d_net128_forward.9} parent=31 // pred_check
        %p802 = pneg %p124
      $region34: #{d_net128_forward.9} parent=31 // pred_check_branch
        %804 = sbr.rel (%p802) target = $region36
      $region35: #{d_net128_forward.9} parent=31 // pred_region
        _
      $region36: #{d_net128_forward.9} parent=31 // pred_fallthru
        _
    $region32: #{d_net128_forward.9} parent=5 // pred_fallthru
      _
    %p805 = scmp.le.s32.totalorder 2, %s9
    // Predicated region
    $region37: #{d_net128_forward.9} parent=5 // pred_check
      %p806 = pneg %p805
    $region38: #{d_net128_forward.9} parent=5 // pred_check_branch
      %808 = sbr.rel (%p806) target = $region40
    $region39: #{d_net128_forward.9} parent=5 // pred_region
      %s809 = ssub.s32 %s9, 2
      // Predicated region
      $region41: #{d_net128_forward.9} parent=39 // pred_check
        %p810 = pneg %p130
      $region42: #{d_net128_forward.9} parent=39 // pred_check_branch
        %812 = sbr.rel (%p810) target = $region44
      $region43: #{d_net128_forward.9} parent=39 // pred_region
        %p813 = scmp.lt.s32.totalorder %s21, 1
        %s814 = scalar_select %p813, %s21, 1
        %p815 = scmp.lt.s32.totalorder %s20, 0
        %s816 = scalar_select %p815, %s20, 0
        %s817 = smul.addr %s814, 3
        %s818 = sadd.s32 %s816, %s817
        %s819 = smul.addr %s818, 4
        %s820 = scalar_lea.vmem %s3, %s819
      $region44: #{d_net128_forward.9} parent=39 // pred_fallthru
        _
    $region40: #{d_net128_forward.9} parent=5 // pred_fallthru
      _
  $region6: #{d_net128_forward.9} parent=0 // loop_footer
    %s13 = sadd.s32 1, %s9
  $region7: #{d_net128_forward.9} parent=0 // loop_footer_branch
    %8 = sbr.rel target = $region3
  $region8: #{d_net128_forward.9} parent=0 // loop_exit
    _

// kernel: d_net128_forward.11
$region0: #{d_net128_forward.11}
  #allocation0 [shape = 'u32[]', space=smem, size = 0x4, offset = 0x4, fixed_abs, tag = 'smem constant byte address 0x4 - core index']
  #allocation1 [shape = 'u32[144,128]{1,0:T(1,128)}', space=vmem, size = 0x12000, scoped, tag = 'internal scratch']
  %s0 = inlined_call_operand.vmem [shape: bf16[2,24,128], index: 0, kind: input, shape index: {}]
  %s1 = inlined_call_operand.vmem [shape: bf16[9,128,128], index: 1, kind: input, shape index: {}]
  %s2 = inlined_call_operand.vmem [shape: f32[1,128], index: 2, kind: input, shape index: {}]
  %s3 = inlined_call_operand.vmem [shape: f32[2,8,128], index: 3, kind: output, shape index: {}]
  %s4 = sld [smem:[#allocation0]]
  $region45: #{d_net128_forward.11} parent=0
    _
  %s6 = ssub.s32 1, %s4
  %s7 = scalar_select 0, %s6, %s4
  loop: start=0, step=1, limit=4
  $region2: #{d_net128_forward.11} parent=0 // loop_pre_header
    _
  $region3: #{d_net128_forward.11} parent=0 // loop_header
    %s9 = sphi 0, %s13
    %p10 = scmp.ge.s32.totalorder %s9, 4
    %s16 = sphi 0, %s28
    %s17 = sphi 0, %s24
    %s18 = sphi 0, %s16
    %s19 = sphi 0, %s17
    %s20 = sphi 0, %s18
    %s21 = sphi 0, %s19
    %s31 = sphi 0, %s33
    %s34 = sphi 0, %s31
    %s35 = sphi 0, %s34
    %s51 = sphi 0, %s35
    %s57 = sphi 0, %s59
    %s60 = sphi 0, %s57
    %s61 = sphi 0, %s60
    %s77 = sphi 0, %s61
    %s83 = sphi 0, %s85
    %s86 = sphi 0, %s83
    %s87 = sphi 0, %s86
    %s103 = sphi 0, %s87
    %s111 = sphi 0, %s113
    %s114 = sphi 0, %s111
    %s115 = sphi 0, %s114
    %s131 = sphi 0, %s115
  $region4: #{d_net128_forward.11} parent=0 // loop_header_branch
    %12 = sbr.rel (%p10) target = $region8
  $region5: #{d_net128_forward.11} parent=0 // loop_body
    %s14 = ssub.s32 %s9, 1
    %s15 = ssub.s32 %s9, 2
    %s22 = sadd.s32 1, %s17
    %p23 = scmp.ge.s32.totalorder %s22, 2
    %s24 = scalar_select %p23, 0, %s22
    %s25 = sadd.s32 1, %s16
    %s26 = scalar_select %p23, %s25, %s16
    %p27 = scmp.ge.s32.totalorder %s26, 1
    %s28 = scalar_select %p27, 0, %s26
    %s29 = ssub.s32 %s17, %s24
    %p30 = scmp.eq.s32.totalorder %s29, 0
    %s32 = sadd.s32 %s31, 1
    %s33 = scalar_select %p30, %s31, %s32
    %p36 = pneg %p30
    %p37 = scmp.eq.s32.totalorder %s9, 1
    %p38 = por %p36, %p37
    %p39 = scmp.ne.s32.totalorder %s31, %s34
    %p40 = scmp.eq.s32.totalorder %s9, 0
    %p41 = por %p39, %p40
    %p42 = scmp.ne.s32.totalorder %s31, %s34
    %p43 = scmp.eq.s32.totalorder %s14, 1
    %p44 = por %p42, %p43
    %p45 = scmp.ne.s32.totalorder %s34, %s35
    %p46 = scmp.eq.s32.totalorder %s14, 0
    %p47 = por %p45, %p46
    %p48 = scmp.ne.s32.totalorder %s34, %s35
    %p49 = scmp.eq.s32.totalorder %s15, 1
    %p50 = por %p48, %p49
    %p52 = scmp.ne.s32.totalorder %s35, %s51
    %p53 = scmp.eq.s32.totalorder %s15, 0
    %p54 = por %p52, %p53
    %s55 = ssub.s32 %s16, %s28
    %p56 = scmp.eq.s32.totalorder %s55, 0
    %s58 = sadd.s32 %s57, 1
    %s59 = scalar_select %p56, %s57, %s58
    %p62 = pneg %p56
    %p63 = scmp.eq.s32.totalorder %s9, 1
    %p64 = por %p62, %p63
    %p65 = scmp.ne.s32.totalorder %s57, %s60
    %p66 = scmp.eq.s32.totalorder %s9, 0
    %p67 = por %p65, %p66
    %p68 = scmp.ne.s32.totalorder %s57, %s60
    %p69 = scmp.eq.s32.totalorder %s14, 1
    %p70 = por %p68, %p69
    %p71 = scmp.ne.s32.totalorder %s60, %s61
    %p72 = scmp.eq.s32.totalorder %s14, 0
    %p73 = por %p71, %p72
    %p74 = scmp.ne.s32.totalorder %s60, %s61
    %p75 = scmp.eq.s32.totalorder %s15, 1
    %p76 = por %p74, %p75
    %p78 = scmp.ne.s32.totalorder %s61, %s77
    %p79 = scmp.eq.s32.totalorder %s15, 0
    %p80 = por %p78, %p79
    %s81 = ssub.s32 %s16, %s28
    %p82 = scmp.eq.s32.totalorder %s81, 0
    %s84 = sadd.s32 %s83, 1
    %s85 = scalar_select %p82, %s83, %s84
    %p88 = pneg %p82
    %p89 = scmp.eq.s32.totalorder %s9, 1
    %p90 = por %p88, %p89
    %p91 = scmp.ne.s32.totalorder %s83, %s86
    %p92 = scmp.eq.s32.totalorder %s9, 0
    %p93 = por %p91, %p92
    %p94 = scmp.ne.s32.totalorder %s83, %s86
    %p95 = scmp.eq.s32.totalorder %s14, 1
    %p96 = por %p94, %p95
    %p97 = scmp.ne.s32.totalorder %s86, %s87
    %p98 = scmp.eq.s32.totalorder %s14, 0
    %p99 = por %p97, %p98
    %p100 = scmp.ne.s32.totalorder %s86, %s87
    %p101 = scmp.eq.s32.totalorder %s15, 1
    %p102 = por %p100, %p101
    %p104 = scmp.ne.s32.totalorder %s87, %s103
    %p105 = scmp.eq.s32.totalorder %s15, 0
    %p106 = por %p104, %p105
    %s107 = ssub.s32 %s17, %s24
    %s108 = ssub.s32 %s16, %s28
    %s109 = sor.u32 %s107, %s108
    %p110 = scmp.eq.s32.totalorder %s109, 0
    %s112 = sadd.s32 %s111, 1
    %s113 = scalar_select %p110, %s111, %s112
    %p116 = pneg %p110
    %p117 = scmp.eq.s32.totalorder %s9, 1
    %p118 = por %p116, %p117
    %p119 = scmp.ne.s32.totalorder %s111, %s114
    %p120 = scmp.eq.s32.totalorder %s9, 0
    %p121 = por %p119, %p120
    %p122 = scmp.ne.s32.totalorder %s111, %s114
    %p123 = scmp.eq.s32.totalorder %s14, 1
    %p124 = por %p122, %p123
    %p125 = scmp.ne.s32.totalorder %s114, %s115
    %p126 = scmp.eq.s32.totalorder %s14, 0
    %p127 = por %p125, %p126
    %p128 = scmp.ne.s32.totalorder %s114, %s115
    %p129 = scmp.eq.s32.totalorder %s15, 1
    %p130 = por %p128, %p129
    %p132 = scmp.ne.s32.totalorder %s115, %s131
    %p133 = scmp.eq.s32.totalorder %s15, 0
    %p134 = por %p132, %p133
    %p135 = scmp.le.s32.totalorder 1, %s9
    %p136 = scmp.lt.s32.totalorder %s9, 3
    %p137 = pnand %p135, %p136
    %p138 = pneg %p137
    // Predicated region
    $region9: #{d_net128_forward.11} parent=5 // pred_check
      _
    $region10: #{d_net128_forward.11} parent=5 // pred_check_branch
      %140 = sbr.rel (%p137) target = $region12
    $region11: #{d_net128_forward.11} parent=5 // pred_region
      %s141 = ssub.s32 %s9, 1
      // Predicated region
      $region13: #{d_net128_forward.11} parent=11 // pred_check
        %p142 = pneg %p73
      $region14: #{d_net128_forward.11} parent=11 // pred_check_branch
        %144 = sbr.rel (%p142) target = $region16
      $region15: #{d_net128_forward.11} parent=11 // pred_region
        %p145 = scmp.lt.s32.totalorder %s18, 0
        %s146 = scalar_select %p145, %s18, 0
        %s147 = smul.addr %s146, 4
        %s148 = scalar_lea.vmem %s1, %s147
      $region16: #{d_net128_forward.11} parent=11 // pred_fallthru
        _
      // Predicated region
      $region17: #{d_net128_forward.11} parent=11 // pred_check
        %p149 = pneg %p99
      $region18: #{d_net128_forward.11} parent=11 // pred_check_branch
        %151 = sbr.rel (%p149) target = $region20
      $region19: #{d_net128_forward.11} parent=11 // pred_region
        %p152 = scmp.lt.s32.totalorder %s18, 0
        %s153 = scalar_select %p152, %s18, 0
        %s154 = scalar_lea.vmem %s2, %s153
      $region20: #{d_net128_forward.11} parent=11 // pred_fallthru
        _
    $region12: #{d_net128_forward.11} parent=5 // pred_fallthru
      _
    %p155 = scmp.lt.s32.totalorder %s9, 2
    // Predicated region
    $region21: #{d_net128_forward.11} parent=5 // pred_check
      %p156 = pneg %p155
    $region22: #{d_net128_forward.11} parent=5 // pred_check_branch
      %158 = sbr.rel (%p156) target = $region24
    $region23: #{d_net128_forward.11} parent=5 // pred_region
      // Predicated region
      $region25: #{d_net128_forward.11} parent=23 // pred_check
        %p159 = pneg %p41
      $region26: #{d_net128_forward.11} parent=23 // pred_check_branch
        %161 = sbr.rel (%p159) target = $region28
      $region27: #{d_net128_forward.11} parent=23 // pred_region
        %p162 = scmp.lt.s32.totalorder %s17, 1
        %s163 = scalar_select %p162, %s17, 1
        %s164 = smul.addr %s163, 3
        %s165 = smul.addr %s164, 4
        %s166 = scalar_lea.vmem %s0, %s165
      $region28: #{d_net128_forward.11} parent=23 // pred_fallthru
        _
    $region24: #{d_net128_forward.11} parent=5 // pred_fallthru
      _
    %p167 = scmp.le.s32.totalorder 1, %s9
    %p168 = scmp.lt.s32.totalorder %s9, 3
    %p169 = pnand %p167, %p168
    %p170 = pneg %p169
    // Predicated region
    $region29: #{d_net128_forward.11} parent=5 // pred_check
      _
    $region30: #{d_net128_forward.11} parent=5 // pred_check_branch
      %172 = sbr.rel (%p169) target = $region32
    $region31: #{d_net128_forward.11} parent=5 // pred_region
      %s173 = ssub.s32 %s9, 1
      %p174 = scmp.lt.s32.totalorder %s19, 1
      %s175 = scalar_select %p174, %s19, 1
      %s176 = smul.addr %s175, 3
      %s177 = smul.addr %s176, 4
      %s178 = scalar_lea.vmem %s0, %s177
      %p179 = pneg %p47
      %p180 = pneg %p44
      %p181 = scmp.lt.s32.totalorder %s18, 0
      %s182 = scalar_select %p181, %s18, 0
      %s183 = smul.addr %s182, 4
      %s184 = scalar_lea.vmem %s1, %s183
      %p185 = pneg %p73
      %p186 = pneg %p70
      %p187 = scmp.lt.s32.totalorder %s18, 0
      %s188 = scalar_select %p187, %s18, 0
      %s189 = scalar_lea.vmem %s2, %s188
      %p190 = pneg %p99
      %p191 = pneg %p96
      %p192 = pneg %p127
      %p193 = pneg %p124
      %p194 = scmp.lt.s32.totalorder %s19, 1
      %s195 = scalar_select %p194, %s19, 1
      %p196 = scmp.lt.s32.totalorder %s18, 0
      %s197 = scalar_select %p196, %s18, 0
      %s198 = sadd.s32 %s197, %s195
      %s199 = smul.addr %s198, 8
      %s200 = scalar_lea.vmem %s3, %s199
      %p201 = scmp.lt.s32.totalorder %s19, 1
      %s202 = scalar_select %p201, %s19, 1
      %s203 = smul.addr %s202, 3
      %s204 = smul.addr %s203, 4
      %s205 = scalar_lea.vmem %s0, %s204
      %p206 = scmp.lt.s32.totalorder %s18, 0
      %s207 = scalar_select %p206, %s18, 0
      %s208 = smul.addr %s207, 4
      %s209 = scalar_lea.vmem %s1, %s208
      %p210 = scmp.lt.s32.totalorder %s18, 0
      %s211 = scalar_select %p210, %s18, 0
      %s212 = scalar_lea.vmem %s2, %s211
      %p213 = scmp.lt.s32.totalorder %s19, 1
      %s214 = scalar_select %p213, %s19, 1
      %p215 = scmp.lt.s32.totalorder %s18, 0
      %s216 = scalar_select %p215, %s18, 0
      %s217 = sadd.s32 %s216, %s214
      %s218 = smul.addr %s217, 8
      %s219 = scalar_lea.vmem %s3, %s218
      %v221 = vld [vmem:[%s205] sm:$0xf]
      %v222 = vld [vmem:[%s209] sm:$0xf]
      %v223 = vld [vmem:[%s209 + $0x4] sm:$0xf]
      %v224 = vld [vmem:[%s209 + $0x8] sm:$0xf]
      %v225 = vld [vmem:[%s209 + $0xc] sm:$0xf]
      %v226 = vld [vmem:[%s209 + $0x10] sm:$0xf]
      %v227 = vld [vmem:[%s209 + $0x14] sm:$0xf]
      %v228 = vld [vmem:[%s209 + $0x18] sm:$0xf]
      %v229 = vld [vmem:[%s209 + $0x1c] sm:$0xf]
      %v230 = vld [vmem:[%s209 + $0x20] sm:$0xf]
      %v231 = vld [vmem:[%s209 + $0x24] sm:$0xf]
      %v232 = vld [vmem:[%s209 + $0x28] sm:$0xf]
      %v233 = vld [vmem:[%s209 + $0x2c] sm:$0xf]
      %v234 = vld [vmem:[%s209 + $0x30] sm:$0xf]
      %v235 = vld [vmem:[%s209 + $0x34] sm:$0xf]
      %v236 = vld [vmem:[%s209 + $0x38] sm:$0xf]
      %v237 = vld [vmem:[%s209 + $0x3c] sm:$0xf]
      %v238 = vld [vmem:[%s205 + $0x4] sm:$0x1]
      %s239 = scalar_lea.vmem %s209, 64
      %v240 = vld [vmem:[%s239] sm:$0xf]
      %v241 = vld [vmem:[%s239 + $0x4] sm:$0xf]
      %v242 = vld [vmem:[%s239 + $0x8] sm:$0xf]
      %v243 = vld [vmem:[%s239 + $0xc] sm:$0xf]
      %v244 = vld [vmem:[%s239 + $0x10] sm:$0xf]
      %v245 = vld [vmem:[%s239 + $0x14] sm:$0xf]
      %v246 = vld [vmem:[%s239 + $0x18] sm:$0xf]
      %v247 = vld [vmem:[%s239 + $0x1c] sm:$0xf]
      %v248 = vld [vmem:[%s239 + $0x20] sm:$0xf]
      %v249 = vld [vmem:[%s239 + $0x24] sm:$0xf]
      %v250 = vld [vmem:[%s239 + $0x28] sm:$0xf]
      %v251 = vld [vmem:[%s239 + $0x2c] sm:$0xf]
      %v252 = vld [vmem:[%s239 + $0x30] sm:$0xf]
      %v253 = vld [vmem:[%s239 + $0x34] sm:$0xf]
      %v254 = vld [vmem:[%s239 + $0x38] sm:$0xf]
      %v255 = vld [vmem:[%s239 + $0x3c] sm:$0xf]
      %v258 = vunpack.c.l.b16 %v221
      %v259 = vunpack.c.l.b16 %v238
      %v260 = vpack.c.b16 %v259, %v258
      %v262 = vshrl.u32 %v260, 16
      %v264 = vshll.u32 %v260, 16
      %v266 = vrot.slane %v264, 1
      %v267 = vor.u32 %v262, %v266
      %v285 = vunpack.c.l.b16 %v240
      %v286 = vunpack.c.l.b16 %v241
      %v287 = vunpack.c.l.b16 %v242
      %v288 = vunpack.c.l.b16 %v243
      %v289 = vunpack.c.l.b16 %v244
      %v290 = vunpack.c.l.b16 %v245
      %v291 = vunpack.c.l.b16 %v246
      %v292 = vunpack.c.l.b16 %v247
      %v293 = vunpack.c.l.b16 %v248
      %v294 = vunpack.c.l.b16 %v249
      %v295 = vunpack.c.l.b16 %v250
      %v296 = vunpack.c.l.b16 %v251
      %v297 = vunpack.c.l.b16 %v252
      %v298 = vunpack.c.l.b16 %v253
      %v299 = vunpack.c.l.b16 %v254
      %v300 = vunpack.c.l.b16 %v255
      %v301 = vpack.c.b16 %v286, %v285
      %v302 = vpack.c.b16 %v288, %v287
      %v303 = vpack.c.b16 %v290, %v289
      %v304 = vpack.c.b16 %v292, %v291
      %v305 = vpack.c.b16 %v294, %v293
      %v306 = vpack.c.b16 %v296, %v295
      %v307 = vpack.c.b16 %v298, %v297
      %v308 = vpack.c.b16 %v300, %v299
      %317 = vmatprep.subr.bf16.mxu0 0
      %318 = vmatpush1.bf16.msra.mxu0 %v308
      %319 = vmatprep.subr.bf16.mxu0 0
      %320 = vmatpush1.bf16.msra.mxu0 %v307
      %321 = vmatprep.subr.bf16.mxu0 0
      %322 = vmatpush1.bf16.msra.mxu0 %v306
      %323 = vmatprep.subr.bf16.mxu0 0
      %324 = vmatpush1.bf16.msra.mxu0 %v305
      %325 = vmatprep.subr.bf16.mxu0 0
      %326 = vmatpush1.bf16.msra.mxu0 %v304
      %327 = vmatprep.subr.bf16.mxu0 0
      %328 = vmatpush1.bf16.msra.mxu0 %v303
      %329 = vmatprep.subr.bf16.mxu0 0
      %330 = vmatpush1.bf16.msra.mxu0 %v302
      %331 = vmatprep.subr.bf16.mxu0 0
      %332 = vmatpush1.bf16.msra.mxu0 %v301
      %333 = vmatprep.subr.bf16.mxu0 0
      %334 = vmatpush2.bf16.msra.mxu0 0
      %335 = vmatprep.subr.bf16.mxu0 0
      %336 = vmatpush2.bf16.msra.mxu0 0
      %337 = vmatprep.subr.bf16.mxu0 0
      %338 = vmatpush2.bf16.msra.mxu0 0
      %339 = vmatprep.subr.bf16.mxu0 0
      %340 = vmatpush2.bf16.msra.mxu0 0
      %341 = vmatprep.subr.bf16.mxu0 0
      %342 = vmatpush2.bf16.msra.mxu0 0
      %343 = vmatprep.subr.bf16.mxu0 0
      %344 = vmatpush2.bf16.msra.mxu0 0
      %345 = vmatprep.subr.bf16.mxu0 0
      %346 = vmatpush2.bf16.msra.mxu0 0
      %347 = vmatprep.subr.bf16.mxu0 0
      %348 = vmatpush2.bf16.msra.mxu0 0
      %349 = vmatprep.mubr.bf16.mxu0 0
      %350 = vmatmul.mubr.bf16.gmra.mxu0 %v267
      %v351 = vpop.f32.mrf.mxu0
      %v352 = vadd.f32 0.0, %v351
      %v353 = vpop.f32.mrf.mxu0
      %v354 = vpop.f32.mrf.mxu0
      %v355 = vpop.f32.mrf.mxu0
      %356 = vdwg.mxu0
      %v373 = vunpack.c.l.b16 %v222
      %v374 = vunpack.c.l.b16 %v223
      %v375 = vunpack.c.l.b16 %v224
      %v376 = vunpack.c.l.b16 %v225
      %v377 = vunpack.c.l.b16 %v226
      %v378 = vunpack.c.l.b16 %v227
      %v379 = vunpack.c.l.b16 %v228
      %v380 = vunpack.c.l.b16 %v229
      %v381 = vunpack.c.l.b16 %v230
      %v382 = vunpack.c.l.b16 %v231
      %v383 = vunpack.c.l.b16 %v232
      %v384 = vunpack.c.l.b16 %v233
      %v385 = vunpack.c.l.b16 %v234
      %v386 = vunpack.c.l.b16 %v235
      %v387 = vunpack.c.l.b16 %v236
      %v388 = vunpack.c.l.b16 %v237
      %v389 = vpack.c.b16 %v374, %v373
      %v390 = vpack.c.b16 %v376, %v375
      %v391 = vpack.c.b16 %v378, %v377
      %v392 = vpack.c.b16 %v380, %v379
      %v393 = vpack.c.b16 %v382, %v381
      %v394 = vpack.c.b16 %v384, %v383
      %v395 = vpack.c.b16 %v386, %v385
      %v396 = vpack.c.b16 %v388, %v387
      %405 = vmatprep.subr.bf16.mxu0 0
      %406 = vmatpush1.bf16.msra.mxu0 %v396
      %407 = vmatprep.subr.bf16.mxu0 0
      %408 = vmatpush1.bf16.msra.mxu0 %v395
      %409 = vmatprep.subr.bf16.mxu0 0
      %410 = vmatpush1.bf16.msra.mxu0 %v394
      %411 = vmatprep.subr.bf16.mxu0 0
      %412 = vmatpush1.bf16.msra.mxu0 %v393
      %413 = vmatprep.subr.bf16.mxu0 0
      %414 = vmatpush1.bf16.msra.mxu0 %v392
      %415 = vmatprep.subr.bf16.mxu0 0
      %416 = vmatpush1.bf16.msra.mxu0 %v391
      %417 = vmatprep.subr.bf16.mxu0 0
      %418 = vmatpush1.bf16.msra.mxu0 %v390
      %419 = vmatprep.subr.bf16.mxu0 0
      %420 = vmatpush1.bf16.msra.mxu0 %v389
      %421 = vmatprep.subr.bf16.mxu0 0
      %422 = vmatpush2.bf16.msra.mxu0 0
      %423 = vmatprep.subr.bf16.mxu0 0
      %424 = vmatpush2.bf16.msra.mxu0 0
      %425 = vmatprep.subr.bf16.mxu0 0
      %426 = vmatpush2.bf16.msra.mxu0 0
      %427 = vmatprep.subr.bf16.mxu0 0
      %428 = vmatpush2.bf16.msra.mxu0 0
      %429 = vmatprep.subr.bf16.mxu0 0
      %430 = vmatpush2.bf16.msra.mxu0 0
      %431 = vmatprep.subr.bf16.mxu0 0
      %432 = vmatpush2.bf16.msra.mxu0 0
      %433 = vmatprep.subr.bf16.mxu0 0
      %434 = vmatpush2.bf16.msra.mxu0 0
      %435 = vmatprep.subr.bf16.mxu0 0
      %436 = vmatpush2.bf16.msra.mxu0 0
      %437 = vmatprep.mubr.bf16.mxu0 0
      %438 = vmatmul.mubr.bf16.gmra.mxu0 %v221
      %v439 = vpop.f32.mrf.mxu0
      %v440 = vadd.f32 %v352, %v439
      %v441 = vpop.f32.mrf.mxu0
      %v442 = vpop.f32.mrf.mxu0
      %v443 = vpop.f32.mrf.mxu0
      %444 = vdwg.mxu0
      %v445 = vld [vmem:[%s205] sm:$0xe]
      %s446 = scalar_lea.vmem %s209, 128
      %v447 = vld [vmem:[%s446] sm:$0xf]
      %v448 = vld [vmem:[%s446 + $0x4] sm:$0xf]
      %v449 = vld [vmem:[%s446 + $0x8] sm:$0xf]
      %v450 = vld [vmem:[%s446 + $0xc] sm:$0xf]
      %v451 = vld [vmem:[%s446 + $0x10] sm:$0xf]
      %v452 = vld [vmem:[%s446 + $0x14] sm:$0xf]
      %v453 = vld [vmem:[%s446 + $0x18] sm:$0xf]
      %v454 = vld [vmem:[%s446 + $0x1c] sm:$0xf]
      %v455 = vld [vmem:[%s446 + $0x20] sm:$0xf]
      %v456 = vld [vmem:[%s446 + $0x24] sm:$0xf]
      %v457 = vld [vmem:[%s446 + $0x28] sm:$0xf]
      %v458 = vld [vmem:[%s446 + $0x2c] sm:$0xf]
      %v459 = vld [vmem:[%s446 + $0x30] sm:$0xf]
      %v460 = vld [vmem:[%s446 + $0x34] sm:$0xf]
      %v461 = vld [vmem:[%s446 + $0x38] sm:$0xf]
      %v462 = vld [vmem:[%s446 + $0x3c] sm:$0xf]
      %v464 = vunpack.c.l.b16 %v445
      %v465 = vpack.c.b16 %v259, %v464
      %v466 = vrot.slane %v465, 1
      %v484 = vunpack.c.l.b16 %v447
      %v485 = vunpack.c.l.b16 %v448
      %v486 = vunpack.c.l.b16 %v449
      %v487 = vunpack.c.l.b16 %v450
      %v488 = vunpack.c.l.b16 %v451
      %v489 = vunpack.c.l.b16 %v452
      %v490 = vunpack.c.l.b16 %v453
      %v491 = vunpack.c.l.b16 %v454
      %v492 = vunpack.c.l.b16 %v455
      %v493 = vunpack.c.l.b16 %v456
      %v494 = vunpack.c.l.b16 %v457
      %v495 = vunpack.c.l.b16 %v458
      %v496 = vunpack.c.l.b16 %v459
      %v497 = vunpack.c.l.b16 %v460
      %v498 = vunpack.c.l.b16 %v461
      %v499 = vunpack.c.l.b16 %v462
      %v500 = vpack.c.b16 %v485, %v484
      %v501 = vpack.c.b16 %v487, %v486
      %v502 = vpack.c.b16 %v489, %v488
      %v503 = vpack.c.b16 %v491, %v490
      %v504 = vpack.c.b16 %v493, %v492
      %v505 = vpack.c.b16 %v495, %v494
      %v506 = vpack.c.b16 %v497, %v496
      %v507 = vpack.c.b16 %v499, %v498
      %516 = vmatprep.subr.bf16.mxu0 0
      %517 = vmatpush1.bf16.msra.mxu0 %v507
      %518 = vmatprep.subr.bf16.mxu0 0
      %519 = vmatpush1.bf16.msra.mxu0 %v506
      %520 = vmatprep.subr.bf16.mxu0 0
      %521 = vmatpush1.bf16.msra.mxu0 %v505
      %522 = vmatprep.subr.bf16.mxu0 0
      %523 = vmatpush1.bf16.msra.mxu0 %v504
      %524 = vmatprep.subr.bf16.mxu0 0
      %525 = vmatpush1.bf16.msra.mxu0 %v503
      %526 = vmatprep.subr.bf16.mxu0 0
      %527 = vmatpush1.bf16.msra.mxu0 %v502
      %528 = vmatprep.subr.bf16.mxu0 0
      %529 = vmatpush1.bf16.msra.mxu0 %v501
      %530 = vmatprep.subr.bf16.mxu0 0
      %531 = vmatpush1.bf16.msra.mxu0 %v500
      %532 = vmatprep.subr.bf16.mxu0 0
      %533 = vmatpush2.bf16.msra.mxu0 0
      %534 = vmatprep.subr.bf16.mxu0 0
      %535 = vmatpush2.bf16.msra.mxu0 0
      %536 = vmatprep.subr.bf16.mxu0 0
      %537 = vmatpush2.bf16.msra.mxu0 0
      %538 = vmatprep.subr.bf16.mxu0 0
      %539 = vmatpush2.bf16.msra.mxu0 0
      %540 = vmatprep.subr.bf16.mxu0 0
      %541 = vmatpush2.bf16.msra.mxu0 0
      %542 = vmatprep.subr.bf16.mxu0 0
      %543 = vmatpush2.bf16.msra.mxu0 0
      %544 = vmatprep.subr.bf16.mxu0 0
      %545 = vmatpush2.bf16.msra.mxu0 0
      %546 = vmatprep.subr.bf16.mxu0 0
      %547 = vmatpush2.bf16.msra.mxu0 0
      %548 = vmatprep.mubr.bf16.mxu0 0
      %549 = vmatmul.mubr.bf16.gmra.mxu0 %v466
      %v550 = vpop.f32.mrf.mxu0
      %v551 = vadd.f32 0.0, %v550
      %v552 = vpop.f32.mrf.mxu0
      %v553 = vpop.f32.mrf.mxu0
      %v554 = vpop.f32.mrf.mxu0
      %555 = vdwg.mxu0
      %v556 = vadd.f32 %v440, %v551
      %v557 = vld [vmem:[%s205] sm:$0xc]
      %v558 = vld [vmem:[%s205 + $0x4] sm:$0x3]
      %s559 = scalar_lea.vmem %s209, 192
      %v560 = vld [vmem:[%s559] sm:$0xf]
      %v561 = vld [vmem:[%s559 + $0x4] sm:$0xf]
      %v562 = vld [vmem:[%s559 + $0x8] sm:$0xf]
      %v563 = vld [vmem:[%s559 + $0xc] sm:$0xf]
      %v564 = vld [vmem:[%s559 + $0x10] sm:$0xf]
      %v565 = vld [vmem:[%s559 + $0x14] sm:$0xf]
      %v566 = vld [vmem:[%s559 + $0x18] sm:$0xf]
      %v567 = vld [vmem:[%s559 + $0x1c] sm:$0xf]
      %v568 = vld [vmem:[%s559 + $0x20] sm:$0xf]
      %v569 = vld [vmem:[%s559 + $0x24] sm:$0xf]
      %v570 = vld [vmem:[%s559 + $0x28] sm:$0xf]
      %v571 = vld [vmem:[%s559 + $0x2c] sm:$0xf]
      %v572 = vld [vmem:[%s559 + $0x30] sm:$0xf]
      %v573 = vld [vmem:[%s559 + $0x34] sm:$0xf]
      %v574 = vld [vmem:[%s559 + $0x38] sm:$0xf]
      %v575 = vld [vmem:[%s559 + $0x3c] sm:$0xf]
      %v578 = vunpack.c.l.b16 %v557
      %v579 = vunpack.c.l.b16 %v558
      %v580 = vpack.c.b16 %v579, %v578
      %v581 = vrot.slane %v580, 2
      %v599 = vunpack.c.l.b16 %v560
      %v600 = vunpack.c.l.b16 %v561
      %v601 = vunpack.c.l.b16 %v562
      %v602 = vunpack.c.l.b16 %v563
      %v603 = vunpack.c.l.b16 %v564
      %v604 = vunpack.c.l.b16 %v565
      %v605 = vunpack.c.l.b16 %v566
      %v606 = vunpack.c.l.b16 %v567
      %v607 = vunpack.c.l.b16 %v568
      %v608 = vunpack.c.l.b16 %v569
      %v609 = vunpack.c.l.b16 %v570
      %v610 = vunpack.c.l.b16 %v571
      %v611 = vunpack.c.l.b16 %v572
      %v612 = vunpack.c.l.b16 %v573
      %v613 = vunpack.c.l.b16 %v574
      %v614 = vunpack.c.l.b16 %v575
      %v615 = vpack.c.b16 %v600, %v599
      %v616 = vpack.c.b16 %v602, %v601
      %v617 = vpack.c.b16 %v604, %v603
      %v618 = vpack.c.b16 %v606, %v605
      %v619 = vpack.c.b16 %v608, %v607
      %v620 = vpack.c.b16 %v610, %v609
      %v621 = vpack.c.b16 %v612, %v611
      %v622 = vpack.c.b16 %v614, %v613
      %631 = vmatprep.subr.bf16.mxu0 0
      %632 = vmatpush1.bf16.msra.mxu0 %v622
      %633 = vmatprep.subr.bf16.mxu0 0
      %634 = vmatpush1.bf16.msra.mxu0 %v621
      %635 = vmatprep.subr.bf16.mxu0 0
      %636 = vmatpush1.bf16.msra.mxu0 %v620
      %637 = vmatprep.subr.bf16.mxu0 0
      %638 = vmatpush1.bf16.msra.mxu0 %v619
      %639 = vmatprep.subr.bf16.mxu0 0
      %640 = vmatpush1.bf16.msra.mxu0 %v618
      %641 = vmatprep.subr.bf16.mxu0 0
      %642 = vmatpush1.bf16.msra.mxu0 %v617
      %643 = vmatprep.subr.bf16.mxu0 0
      %644 = vmatpush1.bf16.msra.mxu0 %v616
      %645 = vmatprep.subr.bf16.mxu0 0
      %646 = vmatpush1.bf16.msra.mxu0 %v615
      %647 = vmatprep.subr.bf16.mxu0 0
      %648 = vmatpush2.bf16.msra.mxu0 0
      %649 = vmatprep.subr.bf16.mxu0 0
      %650 = vmatpush2.bf16.msra.mxu0 0
      %651 = vmatprep.subr.bf16.mxu0 0
      %652 = vmatpush2.bf16.msra.mxu0 0
      %653 = vmatprep.subr.bf16.mxu0 0
      %654 = vmatpush2.bf16.msra.mxu0 0
      %655 = vmatprep.subr.bf16.mxu0 0
      %656 = vmatpush2.bf16.msra.mxu0 0
      %657 = vmatprep.subr.bf16.mxu0 0
      %658 = vmatpush2.bf16.msra.mxu0 0
      %659 = vmatprep.subr.bf16.mxu0 0
      %660 = vmatpush2.bf16.msra.mxu0 0
      %661 = vmatprep.subr.bf16.mxu0 0
      %662 = vmatpush2.bf16.msra.mxu0 0
      %663 = vmatprep.mubr.bf16.mxu0 0
      %664 = vmatmul.mubr.bf16.gmra.mxu0 %v581
      %v665 = vpop.f32.mrf.mxu0
      %v666 = vadd.f32 0.0, %v665
      %v667 = vpop.f32.mrf.mxu0
      %v668 = vpop.f32.mrf.mxu0
      %v669 = vpop.f32.mrf.mxu0
      %670 = vdwg.mxu0
      %v671 = vadd.f32 %v556, %v666
      %v672 = vld [vmem:[%s205 + $0x4] sm:$0x7]
      %s673 = scalar_lea.vmem %s209, 256
      %v674 = vld [vmem:[%s673] sm:$0xf]
      %v675 = vld [vmem:[%s673 + $0x4] sm:$0xf]
      %v676 = vld [vmem:[%s673 + $0x8] sm:$0xf]
      %v677 = vld [vmem:[%s673 + $0xc] sm:$0xf]
      %v678 = vld [vmem:[%s673 + $0x10] sm:$0xf]
      %v679 = vld [vmem:[%s673 + $0x14] sm:$0xf]
      %v680 = vld [vmem:[%s673 + $0x18] sm:$0xf]
      %v681 = vld [vmem:[%s673 + $0x1c] sm:$0xf]
      %v682 = vld [vmem:[%s673 + $0x20] sm:$0xf]
      %v683 = vld [vmem:[%s673 + $0x24] sm:$0xf]
      %v684 = vld [vmem:[%s673 + $0x28] sm:$0xf]
      %v685 = vld [vmem:[%s673 + $0x2c] sm:$0xf]
      %v686 = vld [vmem:[%s673 + $0x30] sm:$0xf]
      %v687 = vld [vmem:[%s673 + $0x34] sm:$0xf]
      %v688 = vld [vmem:[%s673 + $0x38] sm:$0xf]
      %v689 = vld [vmem:[%s673 + $0x3c] sm:$0xf]
      %v691 = vunpack.c.l.b16 %v672
      %v692 = vpack.c.b16 %v691, %v578
      %v694 = vshrl.u32 %v692, 16
      %v696 = vrot.slane %v694, 2
      %v697 = vshll.u32 %v692, 16
      %v699 = vrot.slane %v697, 3
      %v700 = vor.u32 %v696, %v699
      %v718 = vunpack.c.l.b16 %v674
      %v719 = vunpack.c.l.b16 %v675
      %v720 = vunpack.c.l.b16 %v676
      %v721 = vunpack.c.l.b16 %v677
      %v722 = vunpack.c.l.b16 %v678
      %v723 = vunpack.c.l.b16 %v679
      %v724 = vunpack.c.l.b16 %v680
      %v725 = vunpack.c.l.b16 %v681
      %v726 = vunpack.c.l.b16 %v682
      %v727 = vunpack.c.l.b16 %v683
      %v728 = vunpack.c.l.b16 %v684
      %v729 = vunpack.c.l.b16 %v685
      %v730 = vunpack.c.l.b16 %v686
      %v731 = vunpack.c.l.b16 %v687
      %v732 = vunpack.c.l.b16 %v688
      %v733 = vunpack.c.l.b16 %v689
      %v734 = vpack.c.b16 %v719, %v718
      %v735 = vpack.c.b16 %v721, %v720
      %v736 = vpack.c.b16 %v723, %v722
      %v737 = vpack.c.b16 %v725, %v724
      %v738 = vpack.c.b16 %v727, %v726
      %v739 = vpack.c.b16 %v729, %v728
      %v740 = vpack.c.b16 %v731, %v730
      %v741 = vpack.c.b16 %v733, %v732
      %750 = vmatprep.subr.bf16.mxu0 0
      %751 = vmatpush1.bf16.msra.mxu0 %v741
      %752 = vmatprep.subr.bf16.mxu0 0
      %753 = vmatpush1.bf16.msra.mxu0 %v740
      %754 = vmatprep.subr.bf16.mxu0 0
      %755 = vmatpush1.bf16.msra.mxu0 %v739
      %756 = vmatprep.subr.bf16.mxu0 0
      %757 = vmatpush1.bf16.msra.mxu0 %v738
      %758 = vmatprep.subr.bf16.mxu0 0
      %759 = vmatpush1.bf16.msra.mxu0 %v737
      %760 = vmatprep.subr.bf16.mxu0 0
      %761 = vmatpush1.bf16.msra.mxu0 %v736
      %762 = vmatprep.subr.bf16.mxu0 0
      %763 = vmatpush1.bf16.msra.mxu0 %v735
      %764 = vmatprep.subr.bf16.mxu0 0
      %765 = vmatpush1.bf16.msra.mxu0 %v734
      %766 = vmatprep.subr.bf16.mxu0 0
      %767 = vmatpush2.bf16.msra.mxu0 0
      %768 = vmatprep.subr.bf16.mxu0 0
      %769 = vmatpush2.bf16.msra.mxu0 0
      %770 = vmatprep.subr.bf16.mxu0 0
      %771 = vmatpush2.bf16.msra.mxu0 0
      %772 = vmatprep.subr.bf16.mxu0 0
      %773 = vmatpush2.bf16.msra.mxu0 0
      %774 = vmatprep.subr.bf16.mxu0 0
      %775 = vmatpush2.bf16.msra.mxu0 0
      %776 = vmatprep.subr.bf16.mxu0 0
      %777 = vmatpush2.bf16.msra.mxu0 0
      %778 = vmatprep.subr.bf16.mxu0 0
      %779 = vmatpush2.bf16.msra.mxu0 0
      %780 = vmatprep.subr.bf16.mxu0 0
      %781 = vmatpush2.bf16.msra.mxu0 0
      %782 = vmatprep.mubr.bf16.mxu0 0
      %783 = vmatmul.mubr.bf16.gmra.mxu0 %v700
      %v784 = vpop.f32.mrf.mxu0
      %v785 = vadd.f32 0.0, %v784
      %v786 = vpop.f32.mrf.mxu0
      %v787 = vpop.f32.mrf.mxu0
      %v788 = vpop.f32.mrf.mxu0
      %789 = vdwg.mxu0
      %v790 = vadd.f32 %v671, %v785
      %v791 = vld [vmem:[%s205] sm:$0x8]
      %s792 = scalar_lea.vmem %s209, 320
      %v793 = vld [vmem:[%s792] sm:$0xf]
      %v794 = vld [vmem:[%s792 + $0x4] sm:$0xf]
      %v795 = vld [vmem:[%s792 + $0x8] sm:$0xf]
      %v796 = vld [vmem:[%s792 + $0xc] sm:$0xf]
      %v797 = vld [vmem:[%s792 + $0x10] sm:$0xf]
      %v798 = vld [vmem:[%s792 + $0x14] sm:$0xf]
      %v799 = vld [vmem:[%s792 + $0x18] sm:$0xf]
      %v800 = vld [vmem:[%s792 + $0x1c] sm:$0xf]
      %v801 = vld [vmem:[%s792 + $0x20] sm:$0xf]
      %v802 = vld [vmem:[%s792 + $0x24] sm:$0xf]
      %v803 = vld [vmem:[%s792 + $0x28] sm:$0xf]
      %v804 = vld [vmem:[%s792 + $0x2c] sm:$0xf]
      %v805 = vld [vmem:[%s792 + $0x30] sm:$0xf]
      %v806 = vld [vmem:[%s792 + $0x34] sm:$0xf]
      %v807 = vld [vmem:[%s792 + $0x38] sm:$0xf]
      %v808 = vld [vmem:[%s792 + $0x3c] sm:$0xf]
      %v810 = vunpack.c.l.b16 %v791
      %v811 = vpack.c.b16 %v691, %v810
      %v812 = vrot.slane %v811, 3
      %v830 = vunpack.c.l.b16 %v793
      %v831 = vunpack.c.l.b16 %v794
      %v832 = vunpack.c.l.b16 %v795
      %v833 = vunpack.c.l.b16 %v796
      %v834 = vunpack.c.l.b16 %v797
      %v835 = vunpack.c.l.b16 %v798
      %v836 = vunpack.c.l.b16 %v799
      %v837 = vunpack.c.l.b16 %v800
      %v838 = vunpack.c.l.b16 %v801
      %v839 = vunpack.c.l.b16 %v802
      %v840 = vunpack.c.l.b16 %v803
      %v841 = vunpack.c.l.b16 %v804
      %v842 = vunpack.c.l.b16 %v805
      %v843 = vunpack.c.l.b16 %v806
      %v844 = vunpack.c.l.b16 %v807
      %v845 = vunpack.c.l.b16 %v808
      %v846 = vpack.c.b16 %v831, %v830
      %v847 = vpack.c.b16 %v833, %v832
      %v848 = vpack.c.b16 %v835, %v834
      %v849 = vpack.c.b16 %v837, %v836
      %v850 = vpack.c.b16 %v839, %v838
      %v851 = vpack.c.b16 %v841, %v840
      %v852 = vpack.c.b16 %v843, %v842
      %v853 = vpack.c.b16 %v845, %v844
      %862 = vmatprep.subr.bf16.mxu0 0
      %863 = vmatpush1.bf16.msra.mxu0 %v853
      %864 = vmatprep.subr.bf16.mxu0 0
      %865 = vmatpush1.bf16.msra.mxu0 %v852
      %866 = vmatprep.subr.bf16.mxu0 0
      %867 = vmatpush1.bf16.msra.mxu0 %v851
      %868 = vmatprep.subr.bf16.mxu0 0
      %869 = vmatpush1.bf16.msra.mxu0 %v850
      %870 = vmatprep.subr.bf16.mxu0 0
      %871 = vmatpush1.bf16.msra.mxu0 %v849
      %872 = vmatprep.subr.bf16.mxu0 0
      %873 = vmatpush1.bf16.msra.mxu0 %v848
      %874 = vmatprep.subr.bf16.mxu0 0
      %875 = vmatpush1.bf16.msra.mxu0 %v847
      %876 = vmatprep.subr.bf16.mxu0 0
      %877 = vmatpush1.bf16.msra.mxu0 %v846
      %878 = vmatprep.subr.bf16.mxu0 0
      %879 = vmatpush2.bf16.msra.mxu0 0
      %880 = vmatprep.subr.bf16.mxu0 0
      %881 = vmatpush2.bf16.msra.mxu0 0
      %882 = vmatprep.subr.bf16.mxu0 0
      %883 = vmatpush2.bf16.msra.mxu0 0
      %884 = vmatprep.subr.bf16.mxu0 0
      %885 = vmatpush2.bf16.msra.mxu0 0
      %886 = vmatprep.subr.bf16.mxu0 0
      %887 = vmatpush2.bf16.msra.mxu0 0
      %888 = vmatprep.subr.bf16.mxu0 0
      %889 = vmatpush2.bf16.msra.mxu0 0
      %890 = vmatprep.subr.bf16.mxu0 0
      %891 = vmatpush2.bf16.msra.mxu0 0
      %892 = vmatprep.subr.bf16.mxu0 0
      %893 = vmatpush2.bf16.msra.mxu0 0
      %894 = vmatprep.mubr.bf16.mxu0 0
      %895 = vmatmul.mubr.bf16.gmra.mxu0 %v812
      %v896 = vpop.f32.mrf.mxu0
      %v897 = vadd.f32 0.0, %v896
      %v898 = vpop.f32.mrf.mxu0
      %v899 = vpop.f32.mrf.mxu0
      %v900 = vpop.f32.mrf.mxu0
      %901 = vdwg.mxu0
      %v902 = vadd.f32 %v790, %v897
      %v903 = vld [vmem:[%s205 + $0x4] sm:$0xf]
      %s904 = scalar_lea.vmem %s209, 384
      %v905 = vld [vmem:[%s904] sm:$0xf]
      %v906 = vld [vmem:[%s904 + $0x4] sm:$0xf]
      %v907 = vld [vmem:[%s904 + $0x8] sm:$0xf]
      %v908 = vld [vmem:[%s904 + $0xc] sm:$0xf]
      %v909 = vld [vmem:[%s904 + $0x10] sm:$0xf]
      %v910 = vld [vmem:[%s904 + $0x14] sm:$0xf]
      %v911 = vld [vmem:[%s904 + $0x18] sm:$0xf]
      %v912 = vld [vmem:[%s904 + $0x1c] sm:$0xf]
      %v913 = vld [vmem:[%s904 + $0x20] sm:$0xf]
      %v914 = vld [vmem:[%s904 + $0x24] sm:$0xf]
      %v915 = vld [vmem:[%s904 + $0x28] sm:$0xf]
      %v916 = vld [vmem:[%s904 + $0x2c] sm:$0xf]
      %v917 = vld [vmem:[%s904 + $0x30] sm:$0xf]
      %v918 = vld [vmem:[%s904 + $0x34] sm:$0xf]
      %v919 = vld [vmem:[%s904 + $0x38] sm:$0xf]
      %v920 = vld [vmem:[%s904 + $0x3c] sm:$0xf]
      %v937 = vunpack.c.l.b16 %v905
      %v938 = vunpack.c.l.b16 %v906
      %v939 = vunpack.c.l.b16 %v907
      %v940 = vunpack.c.l.b16 %v908
      %v941 = vunpack.c.l.b16 %v909
      %v942 = vunpack.c.l.b16 %v910
      %v943 = vunpack.c.l.b16 %v911
      %v944 = vunpack.c.l.b16 %v912
      %v945 = vunpack.c.l.b16 %v913
      %v946 = vunpack.c.l.b16 %v914
      %v947 = vunpack.c.l.b16 %v915
      %v948 = vunpack.c.l.b16 %v916
      %v949 = vunpack.c.l.b16 %v917
      %v950 = vunpack.c.l.b16 %v918
      %v951 = vunpack.c.l.b16 %v919
      %v952 = vunpack.c.l.b16 %v920
      %v953 = vpack.c.b16 %v938, %v937
      %v954 = vpack.c.b16 %v940, %v939
      %v955 = vpack.c.b16 %v942, %v941
      %v956 = vpack.c.b16 %v944, %v943
      %v957 = vpack.c.b16 %v946, %v945
      %v958 = vpack.c.b16 %v948, %v947
      %v959 = vpack.c.b16 %v950, %v949
      %v960 = vpack.c.b16 %v952, %v951
      %969 = vmatprep.subr.bf16.mxu0 0
      %970 = vmatpush1.bf16.msra.mxu0 %v960
      %971 = vmatprep.subr.bf16.mxu0 0
      %972 = vmatpush1.bf16.msra.mxu0 %v959
      %973 = vmatprep.subr.bf16.mxu0 0
      %974 = vmatpush1.bf16.msra.mxu0 %v958
      %975 = vmatprep.subr.bf16.mxu0 0
      %976 = vmatpush1.bf16.msra.mxu0 %v957
      %977 = vmatprep.subr.bf16.mxu0 0
      %978 = vmatpush1.bf16.msra.mxu0 %v956
      %979 = vmatprep.subr.bf16.mxu0 0
      %980 = vmatpush1.bf16.msra.mxu0 %v955
      %981 = vmatprep.subr.bf16.mxu0 0
      %982 = vmatpush1.bf16.msra.mxu0 %v954
      %983 = vmatprep.subr.bf16.mxu0 0
      %984 = vmatpush1.bf16.msra.mxu0 %v953
      %985 = vmatprep.subr.bf16.mxu0 0
      %986 = vmatpush2.bf16.msra.mxu0 0
      %987 = vmatprep.subr.bf16.mxu0 0
      %988 = vmatpush2.bf16.msra.mxu0 0
      %989 = vmatprep.subr.bf16.mxu0 0
      %990 = vmatpush2.bf16.msra.mxu0 0
      %991 = vmatprep.subr.bf16.mxu0 0
      %992 = vmatpush2.bf16.msra.mxu0 0
      %993 = vmatprep.subr.bf16.mxu0 0
      %994 = vmatpush2.bf16.msra.mxu0 0
      %995 = vmatprep.subr.bf16.mxu0 0
      %996 = vmatpush2.bf16.msra.mxu0 0
      %997 = vmatprep.subr.bf16.mxu0 0
      %998 = vmatpush2.bf16.msra.mxu0 0
      %999 = vmatprep.subr.bf16.mxu0 0
      %1000 = vmatpush2.bf16.msra.mxu0 0
      %1001 = vmatprep.mubr.bf16.mxu0 0
      %1002 = vmatmul.mubr.bf16.gmra.mxu0 %v903
      %v1003 = vpop.f32.mrf.mxu0
      %v1004 = vadd.f32 0.0, %v1003
      %v1005 = vpop.f32.mrf.mxu0
      %v1006 = vpop.f32.mrf.mxu0
      %v1007 = vpop.f32.mrf.mxu0
      %1008 = vdwg.mxu0
      %v1009 = vadd.f32 %v902, %v1004
      %v1010 = vld [vmem:[%s205 + $0x4] sm:$0xf]
      %v1011 = vld [vmem:[%s205 + $0x8] sm:$0x1]
      %s1012 = scalar_lea.vmem %s209, 448
      %v1013 = vld [vmem:[%s1012] sm:$0xf]
      %v1014 = vld [vmem:[%s1012 + $0x4] sm:$0xf]
      %v1015 = vld [vmem:[%s1012 + $0x8] sm:$0xf]
      %v1016 = vld [vmem:[%s1012 + $0xc] sm:$0xf]
      %v1017 = vld [vmem:[%s1012 + $0x10] sm:$0xf]
      %v1018 = vld [vmem:[%s1012 + $0x14] sm:$0xf]
      %v1019 = vld [vmem:[%s1012 + $0x18] sm:$0xf]
      %v1020 = vld [vmem:[%s1012 + $0x1c] sm:$0xf]
      %v1021 = vld [vmem:[%s1012 + $0x20] sm:$0xf]
      %v1022 = vld [vmem:[%s1012 + $0x24] sm:$0xf]
      %v1023 = vld [vmem:[%s1012 + $0x28] sm:$0xf]
      %v1024 = vld [vmem:[%s1012 + $0x2c] sm:$0xf]
      %v1025 = vld [vmem:[%s1012 + $0x30] sm:$0xf]
      %v1026 = vld [vmem:[%s1012 + $0x34] sm:$0xf]
      %v1027 = vld [vmem:[%s1012 + $0x38] sm:$0xf]
      %v1028 = vld [vmem:[%s1012 + $0x3c] sm:$0xf]
      %v1031 = vunpack.c.l.b16 %v1010
      %v1032 = vunpack.c.l.b16 %v1011
      %v1033 = vpack.c.b16 %v1032, %v1031
      %v1035 = vshrl.u32 %v1033, 16
      %v1037 = vshll.u32 %v1033, 16
      %v1039 = vrot.slane %v1037, 1
      %v1040 = vor.u32 %v1035, %v1039
      %v1058 = vunpack.c.l.b16 %v1013
      %v1059 = vunpack.c.l.b16 %v1014
      %v1060 = vunpack.c.l.b16 %v1015
      %v1061 = vunpack.c.l.b16 %v1016
      %v1062 = vunpack.c.l.b16 %v1017
      %v1063 = vunpack.c.l.b16 %v1018
      %v1064 = vunpack.c.l.b16 %v1019
      %v1065 = vunpack.c.l.b16 %v1020
      %v1066 = vunpack.c.l.b16 %v1021
      %v1067 = vunpack.c.l.b16 %v1022
      %v1068 = vunpack.c.l.b16 %v1023
      %v1069 = vunpack.c.l.b16 %v1024
      %v1070 = vunpack.c.l.b16 %v1025
      %v1071 = vunpack.c.l.b16 %v1026
      %v1072 = vunpack.c.l.b16 %v1027
      %v1073 = vunpack.c.l.b16 %v1028
      %v1074 = vpack.c.b16 %v1059, %v1058
      %v1075 = vpack.c.b16 %v1061, %v1060
      %v1076 = vpack.c.b16 %v1063, %v1062
      %v1077 = vpack.c.b16 %v1065, %v1064
      %v1078 = vpack.c.b16 %v1067, %v1066
      %v1079 = vpack.c.b16 %v1069, %v1068
      %v1080 = vpack.c.b16 %v1071, %v1070
      %v1081 = vpack.c.b16 %v1073, %v1072
      %1090 = vmatprep.subr.bf16.mxu0 0
      %1091 = vmatpush1.bf16.msra.mxu0 %v1081
      %1092 = vmatprep.subr.bf16.mxu0 0
      %1093 = vmatpush1.bf16.msra.mxu0 %v1080
      %1094 = vmatprep.subr.bf16.mxu0 0
      %1095 = vmatpush1.bf16.msra.mxu0 %v1079
      %1096 = vmatprep.subr.bf16.mxu0 0
      %1097 = vmatpush1.bf16.msra.mxu0 %v1078
      %1098 = vmatprep.subr.bf16.mxu0 0
      %1099 = vmatpush1.bf16.msra.mxu0 %v1077
      %1100 = vmatprep.subr.bf16.mxu0 0
      %1101 = vmatpush1.bf16.msra.mxu0 %v1076
      %1102 = vmatprep.subr.bf16.mxu0 0
      %1103 = vmatpush1.bf16.msra.mxu0 %v1075
      %1104 = vmatprep.subr.bf16.mxu0 0
      %1105 = vmatpush1.bf16.msra.mxu0 %v1074
      %1106 = vmatprep.subr.bf16.mxu0 0
      %1107 = vmatpush2.bf16.msra.mxu0 0
      %1108 = vmatprep.subr.bf16.mxu0 0
      %1109 = vmatpush2.bf16.msra.mxu0 0
      %1110 = vmatprep.subr.bf16.mxu0 0
      %1111 = vmatpush2.bf16.msra.mxu0 0
      %1112 = vmatprep.subr.bf16.mxu0 0
      %1113 = vmatpush2.bf16.msra.mxu0 0
      %1114 = vmatprep.subr.bf16.mxu0 0
      %1115 = vmatpush2.bf16.msra.mxu0 0
      %1116 = vmatprep.subr.bf16.mxu0 0
      %1117 = vmatpush2.bf16.msra.mxu0 0
      %1118 = vmatprep.subr.bf16.mxu0 0
      %1119 = vmatpush2.bf16.msra.mxu0 0
      %1120 = vmatprep.subr.bf16.mxu0 0
      %1121 = vmatpush2.bf16.msra.mxu0 0
      %1122 = vmatprep.mubr.bf16.mxu0 0
      %1123 = vmatmul.mubr.bf16.gmra.mxu0 %v1040
      %v1124 = vpop.f32.mrf.mxu0
      %v1125 = vadd.f32 0.0, %v1124
      %v1126 = vpop.f32.mrf.mxu0
      %v1127 = vpop.f32.mrf.mxu0
      %v1128 = vpop.f32.mrf.mxu0
      %1129 = vdwg.mxu0
      %v1130 = vadd.f32 %v1009, %v1125
      %v1131 = vld [vmem:[%s205 + $0x4] sm:$0xe]
      %s1132 = scalar_lea.vmem %s209, 512
      %v1133 = vld [vmem:[%s1132] sm:$0xf]
      %v1134 = vld [vmem:[%s1132 + $0x4] sm:$0xf]
      %v1135 = vld [vmem:[%s1132 + $0x8] sm:$0xf]
      %v1136 = vld [vmem:[%s1132 + $0xc] sm:$0xf]
      %v1137 = vld [vmem:[%s1132 + $0x10] sm:$0xf]
      %v1138 = vld [vmem:[%s1132 + $0x14] sm:$0xf]
      %v1139 = vld [vmem:[%s1132 + $0x18] sm:$0xf]
      %v1140 = vld [vmem:[%s1132 + $0x1c] sm:$0xf]
      %v1141 = vld [vmem:[%s1132 + $0x20] sm:$0xf]
      %v1142 = vld [vmem:[%s1132 + $0x24] sm:$0xf]
      %v1143 = vld [vmem:[%s1132 + $0x28] sm:$0xf]
      %v1144 = vld [vmem:[%s1132 + $0x2c] sm:$0xf]
      %v1145 = vld [vmem:[%s1132 + $0x30] sm:$0xf]
      %v1146 = vld [vmem:[%s1132 + $0x34] sm:$0xf]
      %v1147 = vld [vmem:[%s1132 + $0x38] sm:$0xf]
      %v1148 = vld [vmem:[%s1132 + $0x3c] sm:$0xf]
      %v1150 = vunpack.c.l.b16 %v1131
      %v1151 = vpack.c.b16 %v1032, %v1150
      %v1152 = vrot.slane %v1151, 1
      %v1170 = vunpack.c.l.b16 %v1133
      %v1171 = vunpack.c.l.b16 %v1134
      %v1172 = vunpack.c.l.b16 %v1135
      %v1173 = vunpack.c.l.b16 %v1136
      %v1174 = vunpack.c.l.b16 %v1137
      %v1175 = vunpack.c.l.b16 %v1138
      %v1176 = vunpack.c.l.b16 %v1139
      %v1177 = vunpack.c.l.b16 %v1140
      %v1178 = vunpack.c.l.b16 %v1141
      %v1179 = vunpack.c.l.b16 %v1142
      %v1180 = vunpack.c.l.b16 %v1143
      %v1181 = vunpack.c.l.b16 %v1144
      %v1182 = vunpack.c.l.b16 %v1145
      %v1183 = vunpack.c.l.b16 %v1146
      %v1184 = vunpack.c.l.b16 %v1147
      %v1185 = vunpack.c.l.b16 %v1148
      %v1186 = vpack.c.b16 %v1171, %v1170
      %v1187 = vpack.c.b16 %v1173, %v1172
      %v1188 = vpack.c.b16 %v1175, %v1174
      %v1189 = vpack.c.b16 %v1177, %v1176
      %v1190 = vpack.c.b16 %v1179, %v1178
      %v1191 = vpack.c.b16 %v1181, %v1180
      %v1192 = vpack.c.b16 %v1183, %v1182
      %v1193 = vpack.c.b16 %v1185, %v1184
      %1202 = vmatprep.subr.bf16.mxu0 0
      %1203 = vmatpush1.bf16.msra.mxu0 %v1193
      %1204 = vmatprep.subr.bf16.mxu0 0
      %1205 = vmatpush1.bf16.msra.mxu0 %v1192
      %1206 = vmatprep.subr.bf16.mxu0 0
      %1207 = vmatpush1.bf16.msra.mxu0 %v1191
      %1208 = vmatprep.subr.bf16.mxu0 0
      %1209 = vmatpush1.bf16.msra.mxu0 %v1190
      %1210 = vmatprep.subr.bf16.mxu0 0
      %1211 = vmatpush1.bf16.msra.mxu0 %v1189
      %1212 = vmatprep.subr.bf16.mxu0 0
      %1213 = vmatpush1.bf16.msra.mxu0 %v1188
      %1214 = vmatprep.subr.bf16.mxu0 0
      %1215 = vmatpush1.bf16.msra.mxu0 %v1187
      %1216 = vmatprep.subr.bf16.mxu0 0
      %1217 = vmatpush1.bf16.msra.mxu0 %v1186
      %1218 = vmatprep.subr.bf16.mxu0 0
      %1219 = vmatpush2.bf16.msra.mxu0 0
      %1220 = vmatprep.subr.bf16.mxu0 0
      %1221 = vmatpush2.bf16.msra.mxu0 0
      %1222 = vmatprep.subr.bf16.mxu0 0
      %1223 = vmatpush2.bf16.msra.mxu0 0
      %1224 = vmatprep.subr.bf16.mxu0 0
      %1225 = vmatpush2.bf16.msra.mxu0 0
      %1226 = vmatprep.subr.bf16.mxu0 0
      %1227 = vmatpush2.bf16.msra.mxu0 0
      %1228 = vmatprep.subr.bf16.mxu0 0
      %1229 = vmatpush2.bf16.msra.mxu0 0
      %1230 = vmatprep.subr.bf16.mxu0 0
      %1231 = vmatpush2.bf16.msra.mxu0 0
      %1232 = vmatprep.subr.bf16.mxu0 0
      %1233 = vmatpush2.bf16.msra.mxu0 0
      %1234 = vmatprep.mubr.bf16.mxu0 0
      %1235 = vmatmul.mubr.bf16.gmra.mxu0 %v1152
      %v1236 = vpop.f32.mrf.mxu0
      %v1237 = vadd.f32 0.0, %v1236
      %v1238 = vpop.f32.mrf.mxu0
      %v1239 = vpop.f32.mrf.mxu0
      %v1240 = vpop.f32.mrf.mxu0
      %1241 = vdwg.mxu0
      %v1242 = vadd.f32 %v1130, %v1237
      %v1243 = vld [vmem:[%s212] sm:$0x1]
      %v1245 = vlaneseq
      %v1246 = vshrl.u32 %v1245, 7
      %v1247 = vsub.s32 0, %v1246
      %v1248 = vrot.slane %v1243, %v1247
      %v1250 = vadd.f32 %v1242, %v1248
      %vm1251 = vcmp.gt.f32.partialorder %v1250, 0.0
      %v1252 = vmul.f32 %v1250, 0.2
      %v1253 = vsel %vm1251, %v1250, %v1252
      %1254 = vst [vmem:[%s219] sm:$0xff] %v1253
      %p1255 = scmp.lt.s32.totalorder %s19, 1
      %s1256 = scalar_select %p1255, %s19, 1
      %p1257 = scmp.lt.s32.totalorder %s18, 0
      %s1258 = scalar_select %p1257, %s18, 0
      %s1259 = sadd.s32 %s1258, %s1256
      %s1260 = smul.addr %s1259, 8
      %s1261 = scalar_lea.vmem %s3, %s1260
      // Predicated region
      $region33: #{d_net128_forward.11} parent=31 // pred_check
        %p1262 = pneg %p124
      $region34: #{d_net128_forward.11} parent=31 // pred_check_branch
        %1264 = sbr.rel (%p1262) target = $region36
      $region35: #{d_net128_forward.11} parent=31 // pred_region
        _
      $region36: #{d_net128_forward.11} parent=31 // pred_fallthru
        _
    $region32: #{d_net128_forward.11} parent=5 // pred_fallthru
      _
    %p1265 = scmp.le.s32.totalorder 2, %s9
    // Predicated region
    $region37: #{d_net128_forward.11} parent=5 // pred_check
      %p1266 = pneg %p1265
    $region38: #{d_net128_forward.11} parent=5 // pred_check_branch
      %1268 = sbr.rel (%p1266) target = $region40
    $region39: #{d_net128_forward.11} parent=5 // pred_region
      %s1269 = ssub.s32 %s9, 2
      // Predicated region
      $region41: #{d_net128_forward.11} parent=39 // pred_check
        %p1270 = pneg %p130
      $region42: #{d_net128_forward.11} parent=39 // pred_check_branch
        %1272 = sbr.rel (%p1270) target = $region44
      $region43: #{d_net128_forward.11} parent=39 // pred_region
        %p1273 = scmp.lt.s32.totalorder %s21, 1
        %s1274 = scalar_select %p1273, %s21, 1
        %p1275 = scmp.lt.s32.totalorder %s20, 0
        %s1276 = scalar_select %p1275, %s20, 0
        %s1277 = sadd.s32 %s1276, %s1274
        %s1278 = smul.addr %s1277, 8
        %s1279 = scalar_lea.vmem %s3, %s1278
      $region44: #{d_net128_forward.11} parent=39 // pred_fallthru
        _
    $region40: #{d_net128_forward.11} parent=5 // pred_fallthru
      _
  $region6: #{d_net128_forward.11} parent=0 // loop_footer
    %s13 = sadd.s32 1, %s9
  $region7: #{d_net128_forward.11} parent=0 // loop_footer_branch
    %8 = sbr.rel target = $region3
  $region8: #{d_net128_forward.11} parent=0 // loop_exit
    _

// kernel: d_net128_forward.10
$region0: #{d_net128_forward.10}
  #allocation0 [shape = 'u32[]', space=smem, size = 0x4, offset = 0x4, fixed_abs, tag = 'smem constant byte address 0x4 - core index']
  #allocation1 [shape = 'u32[144,128]{1,0:T(1,128)}', space=vmem, size = 0x12000, scoped, tag = 'internal scratch']
  %s0 = inlined_call_operand.vmem [shape: bf16[2,12,256], index: 0, kind: input, shape index: {}]
  %s1 = inlined_call_operand.vmem [shape: bf16[4,256,128], index: 1, kind: input, shape index: {}]
  %s2 = inlined_call_operand.vmem [shape: f32[1,128], index: 2, kind: input, shape index: {}]
  %s3 = inlined_call_operand.vmem [shape: bf16[2,6,128], index: 3, kind: output, shape index: {}]
  %s4 = sld [smem:[#allocation0]]
  $region45: #{d_net128_forward.10} parent=0
    _
  %s6 = ssub.s32 1, %s4
  %s7 = scalar_select 0, %s6, %s4
  loop: start=0, step=1, limit=4
  $region2: #{d_net128_forward.10} parent=0 // loop_pre_header
    _
  $region3: #{d_net128_forward.10} parent=0 // loop_header
    %s9 = sphi 0, %s13
    %p10 = scmp.ge.s32.totalorder %s9, 4
    %s16 = sphi 0, %s28
    %s17 = sphi 0, %s24
    %s18 = sphi 0, %s16
    %s19 = sphi 0, %s17
    %s20 = sphi 0, %s18
    %s21 = sphi 0, %s19
    %s31 = sphi 0, %s33
    %s34 = sphi 0, %s31
    %s35 = sphi 0, %s34
    %s51 = sphi 0, %s35
    %s57 = sphi 0, %s59
    %s60 = sphi 0, %s57
    %s61 = sphi 0, %s60
    %s77 = sphi 0, %s61
    %s83 = sphi 0, %s85
    %s86 = sphi 0, %s83
    %s87 = sphi 0, %s86
    %s103 = sphi 0, %s87
    %s111 = sphi 0, %s113
    %s114 = sphi 0, %s111
    %s115 = sphi 0, %s114
    %s131 = sphi 0, %s115
  $region4: #{d_net128_forward.10} parent=0 // loop_header_branch
    %12 = sbr.rel (%p10) target = $region8
  $region5: #{d_net128_forward.10} parent=0 // loop_body
    %s14 = ssub.s32 %s9, 1
    %s15 = ssub.s32 %s9, 2
    %s22 = sadd.s32 1, %s17
    %p23 = scmp.ge.s32.totalorder %s22, 2
    %s24 = scalar_select %p23, 0, %s22
    %s25 = sadd.s32 1, %s16
    %s26 = scalar_select %p23, %s25, %s16
    %p27 = scmp.ge.s32.totalorder %s26, 1
    %s28 = scalar_select %p27, 0, %s26
    %s29 = ssub.s32 %s17, %s24
    %p30 = scmp.eq.s32.totalorder %s29, 0
    %s32 = sadd.s32 %s31, 1
    %s33 = scalar_select %p30, %s31, %s32
    %p36 = pneg %p30
    %p37 = scmp.eq.s32.totalorder %s9, 1
    %p38 = por %p36, %p37
    %p39 = scmp.ne.s32.totalorder %s31, %s34
    %p40 = scmp.eq.s32.totalorder %s9, 0
    %p41 = por %p39, %p40
    %p42 = scmp.ne.s32.totalorder %s31, %s34
    %p43 = scmp.eq.s32.totalorder %s14, 1
    %p44 = por %p42, %p43
    %p45 = scmp.ne.s32.totalorder %s34, %s35
    %p46 = scmp.eq.s32.totalorder %s14, 0
    %p47 = por %p45, %p46
    %p48 = scmp.ne.s32.totalorder %s34, %s35
    %p49 = scmp.eq.s32.totalorder %s15, 1
    %p50 = por %p48, %p49
    %p52 = scmp.ne.s32.totalorder %s35, %s51
    %p53 = scmp.eq.s32.totalorder %s15, 0
    %p54 = por %p52, %p53
    %s55 = ssub.s32 %s16, %s28
    %p56 = scmp.eq.s32.totalorder %s55, 0
    %s58 = sadd.s32 %s57, 1
    %s59 = scalar_select %p56, %s57, %s58
    %p62 = pneg %p56
    %p63 = scmp.eq.s32.totalorder %s9, 1
    %p64 = por %p62, %p63
    %p65 = scmp.ne.s32.totalorder %s57, %s60
    %p66 = scmp.eq.s32.totalorder %s9, 0
    %p67 = por %p65, %p66
    %p68 = scmp.ne.s32.totalorder %s57, %s60
    %p69 = scmp.eq.s32.totalorder %s14, 1
    %p70 = por %p68, %p69
    %p71 = scmp.ne.s32.totalorder %s60, %s61
    %p72 = scmp.eq.s32.totalorder %s14, 0
    %p73 = por %p71, %p72
    %p74 = scmp.ne.s32.totalorder %s60, %s61
    %p75 = scmp.eq.s32.totalorder %s15, 1
    %p76 = por %p74, %p75
    %p78 = scmp.ne.s32.totalorder %s61, %s77
    %p79 = scmp.eq.s32.totalorder %s15, 0
    %p80 = por %p78, %p79
    %s81 = ssub.s32 %s16, %s28
    %p82 = scmp.eq.s32.totalorder %s81, 0
    %s84 = sadd.s32 %s83, 1
    %s85 = scalar_select %p82, %s83, %s84
    %p88 = pneg %p82
    %p89 = scmp.eq.s32.totalorder %s9, 1
    %p90 = por %p88, %p89
    %p91 = scmp.ne.s32.totalorder %s83, %s86
    %p92 = scmp.eq.s32.totalorder %s9, 0
    %p93 = por %p91, %p92
    %p94 = scmp.ne.s32.totalorder %s83, %s86
    %p95 = scmp.eq.s32.totalorder %s14, 1
    %p96 = por %p94, %p95
    %p97 = scmp.ne.s32.totalorder %s86, %s87
    %p98 = scmp.eq.s32.totalorder %s14, 0
    %p99 = por %p97, %p98
    %p100 = scmp.ne.s32.totalorder %s86, %s87
    %p101 = scmp.eq.s32.totalorder %s15, 1
    %p102 = por %p100, %p101
    %p104 = scmp.ne.s32.totalorder %s87, %s103
    %p105 = scmp.eq.s32.totalorder %s15, 0
    %p106 = por %p104, %p105
    %s107 = ssub.s32 %s17, %s24
    %s108 = ssub.s32 %s16, %s28
    %s109 = sor.u32 %s107, %s108
    %p110 = scmp.eq.s32.totalorder %s109, 0
    %s112 = sadd.s32 %s111, 1
    %s113 = scalar_select %p110, %s111, %s112
    %p116 = pneg %p110
    %p117 = scmp.eq.s32.totalorder %s9, 1
    %p118 = por %p116, %p117
    %p119 = scmp.ne.s32.totalorder %s111, %s114
    %p120 = scmp.eq.s32.totalorder %s9, 0
    %p121 = por %p119, %p120
    %p122 = scmp.ne.s32.totalorder %s111, %s114
    %p123 = scmp.eq.s32.totalorder %s14, 1
    %p124 = por %p122, %p123
    %p125 = scmp.ne.s32.totalorder %s114, %s115
    %p126 = scmp.eq.s32.totalorder %s14, 0
    %p127 = por %p125, %p126
    %p128 = scmp.ne.s32.totalorder %s114, %s115
    %p129 = scmp.eq.s32.totalorder %s15, 1
    %p130 = por %p128, %p129
    %p132 = scmp.ne.s32.totalorder %s115, %s131
    %p133 = scmp.eq.s32.totalorder %s15, 0
    %p134 = por %p132, %p133
    %p135 = scmp.le.s32.totalorder 1, %s9
    %p136 = scmp.lt.s32.totalorder %s9, 3
    %p137 = pnand %p135, %p136
    %p138 = pneg %p137
    // Predicated region
    $region9: #{d_net128_forward.10} parent=5 // pred_check
      _
    $region10: #{d_net128_forward.10} parent=5 // pred_check_branch
      %140 = sbr.rel (%p137) target = $region12
    $region11: #{d_net128_forward.10} parent=5 // pred_region
      %s141 = ssub.s32 %s9, 1
      // Predicated region
      $region13: #{d_net128_forward.10} parent=11 // pred_check
        %p142 = pneg %p73
      $region14: #{d_net128_forward.10} parent=11 // pred_check_branch
        %144 = sbr.rel (%p142) target = $region16
      $region15: #{d_net128_forward.10} parent=11 // pred_region
        %p145 = scmp.lt.s32.totalorder %s18, 0
        %s146 = scalar_select %p145, %s18, 0
        %s147 = smul.addr %s146, 4
        %s148 = scalar_lea.vmem %s1, %s147
      $region16: #{d_net128_forward.10} parent=11 // pred_fallthru
        _
      // Predicated region
      $region17: #{d_net128_forward.10} parent=11 // pred_check
        %p149 = pneg %p99
      $region18: #{d_net128_forward.10} parent=11 // pred_check_branch
        %151 = sbr.rel (%p149) target = $region20
      $region19: #{d_net128_forward.10} parent=11 // pred_region
        %p152 = scmp.lt.s32.totalorder %s18, 0
        %s153 = scalar_select %p152, %s18, 0
        %s154 = scalar_lea.vmem %s2, %s153
      $region20: #{d_net128_forward.10} parent=11 // pred_fallthru
        _
    $region12: #{d_net128_forward.10} parent=5 // pred_fallthru
      _
    %p155 = scmp.lt.s32.totalorder %s9, 2
    // Predicated region
    $region21: #{d_net128_forward.10} parent=5 // pred_check
      %p156 = pneg %p155
    $region22: #{d_net128_forward.10} parent=5 // pred_check_branch
      %158 = sbr.rel (%p156) target = $region24
    $region23: #{d_net128_forward.10} parent=5 // pred_region
      // Predicated region
      $region25: #{d_net128_forward.10} parent=23 // pred_check
        %p159 = pneg %p41
      $region26: #{d_net128_forward.10} parent=23 // pred_check_branch
        %161 = sbr.rel (%p159) target = $region28
      $region27: #{d_net128_forward.10} parent=23 // pred_region
        %p162 = scmp.lt.s32.totalorder %s17, 1
        %s163 = scalar_select %p162, %s17, 1
        %s164 = smul.addr %s163, 4
        %s165 = smul.addr %s164, 4
        %s166 = scalar_lea.vmem %s0, %s165
      $region28: #{d_net128_forward.10} parent=23 // pred_fallthru
        _
    $region24: #{d_net128_forward.10} parent=5 // pred_fallthru
      _
    %p167 = scmp.le.s32.totalorder 1, %s9
    %p168 = scmp.lt.s32.totalorder %s9, 3
    %p169 = pnand %p167, %p168
    %p170 = pneg %p169
    // Predicated region
    $region29: #{d_net128_forward.10} parent=5 // pred_check
      _
    $region30: #{d_net128_forward.10} parent=5 // pred_check_branch
      %172 = sbr.rel (%p169) target = $region32
    $region31: #{d_net128_forward.10} parent=5 // pred_region
      %s173 = ssub.s32 %s9, 1
      %p174 = scmp.lt.s32.totalorder %s19, 1
      %s175 = scalar_select %p174, %s19, 1
      %s176 = smul.addr %s175, 4
      %s177 = smul.addr %s176, 4
      %s178 = scalar_lea.vmem %s0, %s177
      %p179 = pneg %p47
      %p180 = pneg %p44
      %p181 = scmp.lt.s32.totalorder %s18, 0
      %s182 = scalar_select %p181, %s18, 0
      %s183 = smul.addr %s182, 4
      %s184 = scalar_lea.vmem %s1, %s183
      %p185 = pneg %p73
      %p186 = pneg %p70
      %p187 = scmp.lt.s32.totalorder %s18, 0
      %s188 = scalar_select %p187, %s18, 0
      %s189 = scalar_lea.vmem %s2, %s188
      %p190 = pneg %p99
      %p191 = pneg %p96
      %p192 = pneg %p127
      %p193 = pneg %p124
      %p194 = scmp.lt.s32.totalorder %s19, 1
      %s195 = scalar_select %p194, %s19, 1
      %p196 = scmp.lt.s32.totalorder %s18, 0
      %s197 = scalar_select %p196, %s18, 0
      %s198 = sadd.s32 %s197, %s195
      %s199 = smul.addr %s198, 4
      %s200 = scalar_lea.vmem %s3, %s199
      %p201 = scmp.lt.s32.totalorder %s19, 1
      %s202 = scalar_select %p201, %s19, 1
      %s203 = smul.addr %s202, 4
      %s204 = smul.addr %s203, 4
      %s205 = scalar_lea.vmem %s0, %s204
      %p206 = scmp.lt.s32.totalorder %s18, 0
      %s207 = scalar_select %p206, %s18, 0
      %s208 = smul.addr %s207, 4
      %s209 = scalar_lea.vmem %s1, %s208
      %p210 = scmp.lt.s32.totalorder %s18, 0
      %s211 = scalar_select %p210, %s18, 0
      %s212 = scalar_lea.vmem %s2, %s211
      %p213 = scmp.lt.s32.totalorder %s19, 1
      %s214 = scalar_select %p213, %s19, 1
      %p215 = scmp.lt.s32.totalorder %s18, 0
      %s216 = scalar_select %p215, %s18, 0
      %s217 = sadd.s32 %s216, %s214
      %s218 = smul.addr %s217, 4
      %s219 = scalar_lea.vmem %s3, %s218
      %v221 = vld [vmem:[%s205] sm:$0x77]
      %v222 = vld [vmem:[%s209] sm:$0xf]
      %v223 = vld [vmem:[%s209 + $0x4] sm:$0xf]
      %v224 = vld [vmem:[%s209 + $0x8] sm:$0xf]
      %v225 = vld [vmem:[%s209 + $0xc] sm:$0xf]
      %v226 = vld [vmem:[%s209 + $0x10] sm:$0xf]
      %v227 = vld [vmem:[%s209 + $0x14] sm:$0xf]
      %v228 = vld [vmem:[%s209 + $0x18] sm:$0xf]
      %v229 = vld [vmem:[%s209 + $0x1c] sm:$0xf]
      %v230 = vld [vmem:[%s209 + $0x20] sm:$0xf]
      %v231 = vld [vmem:[%s209 + $0x24] sm:$0xf]
      %v232 = vld [vmem:[%s209 + $0x28] sm:$0xf]
      %v233 = vld [vmem:[%s209 + $0x2c] sm:$0xf]
      %v234 = vld [vmem:[%s209 + $0x30] sm:$0xf]
      %v235 = vld [vmem:[%s209 + $0x34] sm:$0xf]
      %v236 = vld [vmem:[%s209 + $0x38] sm:$0xf]
      %v237 = vld [vmem:[%s209 + $0x3c] sm:$0xf]
      %v238 = vld [vmem:[%s209 + $0x40] sm:$0xf]
      %v239 = vld [vmem:[%s209 + $0x44] sm:$0xf]
      %v240 = vld [vmem:[%s209 + $0x48] sm:$0xf]
      %v241 = vld [vmem:[%s209 + $0x4c] sm:$0xf]
      %v242 = vld [vmem:[%s209 + $0x50] sm:$0xf]
      %v243 = vld [vmem:[%s209 + $0x54] sm:$0xf]
      %v244 = vld [vmem:[%s209 + $0x58] sm:$0xf]
      %v245 = vld [vmem:[%s209 + $0x5c] sm:$0xf]
      %v246 = vld [vmem:[%s209 + $0x60] sm:$0xf]
      %v247 = vld [vmem:[%s209 + $0x64] sm:$0xf]
      %v248 = vld [vmem:[%s209 + $0x68] sm:$0xf]
      %v249 = vld [vmem:[%s209 + $0x6c] sm:$0xf]
      %v250 = vld [vmem:[%s209 + $0x70] sm:$0xf]
      %v251 = vld [vmem:[%s209 + $0x74] sm:$0xf]
      %v252 = vld [vmem:[%s209 + $0x78] sm:$0xf]
      %v253 = vld [vmem:[%s209 + $0x7c] sm:$0xf]
      %v254 = vld [vmem:[%s205] sm:$0xff]
      %s255 = scalar_lea.vmem %s209, 128
      %v256 = vld [vmem:[%s255] sm:$0xf]
      %v257 = vld [vmem:[%s255 + $0x4] sm:$0xf]
      %v258 = vld [vmem:[%s255 + $0x8] sm:$0xf]
      %v259 = vld [vmem:[%s255 + $0xc] sm:$0xf]
      %v260 = vld [vmem:[%s255 + $0x10] sm:$0xf]
      %v261 = vld [vmem:[%s255 + $0x14] sm:$0xf]
      %v262 = vld [vmem:[%s255 + $0x18] sm:$0xf]
      %v263 = vld [vmem:[%s255 + $0x1c] sm:$0xf]
      %v264 = vld [vmem:[%s255 + $0x20] sm:$0xf]
      %v265 = vld [vmem:[%s255 + $0x24] sm:$0xf]
      %v266 = vld [vmem:[%s255 + $0x28] sm:$0xf]
      %v267 = vld [vmem:[%s255 + $0x2c] sm:$0xf]
      %v268 = vld [vmem:[%s255 + $0x30] sm:$0xf]
      %v269 = vld [vmem:[%s255 + $0x34] sm:$0xf]
      %v270 = vld [vmem:[%s255 + $0x38] sm:$0xf]
      %v271 = vld [vmem:[%s255 + $0x3c] sm:$0xf]
      %v272 = vld [vmem:[%s255 + $0x40] sm:$0xf]
      %v273 = vld [vmem:[%s255 + $0x44] sm:$0xf]
      %v274 = vld [vmem:[%s255 + $0x48] sm:$0xf]
      %v275 = vld [vmem:[%s255 + $0x4c] sm:$0xf]
      %v276 = vld [vmem:[%s255 + $0x50] sm:$0xf]
      %v277 = vld [vmem:[%s255 + $0x54] sm:$0xf]
      %v278 = vld [vmem:[%s255 + $0x58] sm:$0xf]
      %v279 = vld [vmem:[%s255 + $0x5c] sm:$0xf]
      %v280 = vld [vmem:[%s255 + $0x60] sm:$0xf]
      %v281 = vld [vmem:[%s255 + $0x64] sm:$0xf]
      %v282 = vld [vmem:[%s255 + $0x68] sm:$0xf]
      %v283 = vld [vmem:[%s255 + $0x6c] sm:$0xf]
      %v284 = vld [vmem:[%s255 + $0x70] sm:$0xf]
      %v285 = vld [vmem:[%s255 + $0x74] sm:$0xf]
      %v286 = vld [vmem:[%s255 + $0x78] sm:$0xf]
      %v287 = vld [vmem:[%s255 + $0x7c] sm:$0xf]
      %v289 = vunpack.c.l.b16 %v254
      %v290 = vunpack.c.h.b16 %v254
      %v291 = vpack.c.b16 %v289, %v289
      %v292 = vpack.c.b16 %v290, %v290
      %v294 = vshrl.u32 %v291, 16
      %v296 = vshll.u32 %v291, 16
      %v298 = vrot.slane %v296, 1
      %v299 = vor.u32 %v294, %v298
      %v301 = vshrl.u32 %v292, 16
      %v303 = vshll.u32 %v292, 16
      %v305 = vrot.slane %v303, 1
      %v306 = vor.u32 %v301, %v305
      %v341 = vunpack.c.l.b16 %v256
      %v342 = vunpack.c.l.b16 %v257
      %v343 = vunpack.c.l.b16 %v258
      %v344 = vunpack.c.l.b16 %v259
      %v345 = vunpack.c.l.b16 %v260
      %v346 = vunpack.c.l.b16 %v261
      %v347 = vunpack.c.l.b16 %v262
      %v348 = vunpack.c.l.b16 %v263
      %v349 = vunpack.c.l.b16 %v264
      %v350 = vunpack.c.l.b16 %v265
      %v351 = vunpack.c.l.b16 %v266
      %v352 = vunpack.c.l.b16 %v267
      %v353 = vunpack.c.l.b16 %v268
      %v354 = vunpack.c.l.b16 %v269
      %v355 = vunpack.c.l.b16 %v270
      %v356 = vunpack.c.l.b16 %v271
      %v357 = vunpack.c.l.b16 %v272
      %v358 = vunpack.c.l.b16 %v273
      %v359 = vunpack.c.l.b16 %v274
      %v360 = vunpack.c.l.b16 %v275
      %v361 = vunpack.c.l.b16 %v276
      %v362 = vunpack.c.l.b16 %v277
      %v363 = vunpack.c.l.b16 %v278
      %v364 = vunpack.c.l.b16 %v279
      %v365 = vunpack.c.l.b16 %v280
      %v366 = vunpack.c.l.b16 %v281
      %v367 = vunpack.c.l.b16 %v282
      %v368 = vunpack.c.l.b16 %v283
      %v369 = vunpack.c.l.b16 %v284
      %v370 = vunpack.c.l.b16 %v285
      %v371 = vunpack.c.l.b16 %v286
      %v372 = vunpack.c.l.b16 %v287
      %v373 = vpack.c.b16 %v342, %v341
      %v374 = vpack.c.b16 %v344, %v343
      %v375 = vpack.c.b16 %v346, %v345
      %v376 = vpack.c.b16 %v348, %v347
      %v377 = vpack.c.b16 %v350, %v349
      %v378 = vpack.c.b16 %v352, %v351
      %v379 = vpack.c.b16 %v354, %v353
      %v380 = vpack.c.b16 %v356, %v355
      %v381 = vpack.c.b16 %v358, %v357
      %v382 = vpack.c.b16 %v360, %v359
      %v383 = vpack.c.b16 %v362, %v361
      %v384 = vpack.c.b16 %v364, %v363
      %v385 = vpack.c.b16 %v366, %v365
      %v386 = vpack.c.b16 %v368, %v367
      %v387 = vpack.c.b16 %v370, %v369
      %v388 = vpack.c.b16 %v372, %v371
      %405 = vmatprep.subr.bf16.mxu0 0
      %406 = vmatpush1.bf16.msra.mxu0 %v380
      %407 = vmatprep.subr.bf16.mxu0 0
      %408 = vmatpush1.bf16.msra.mxu0 %v379
      %409 = vmatprep.subr.bf16.mxu0 0
      %410 = vmatpush1.bf16.msra.mxu0 %v378
      %411 = vmatprep.subr.bf16.mxu0 0
      %412 = vmatpush1.bf16.msra.mxu0 %v377
      %413 = vmatprep.subr.bf16.mxu0 0
      %414 = vmatpush1.bf16.msra.mxu0 %v376
      %415 = vmatprep.subr.bf16.mxu0 0
      %416 = vmatpush1.bf16.msra.mxu0 %v375
      %417 = vmatprep.subr.bf16.mxu0 0
      %418 = vmatpush1.bf16.msra.mxu0 %v374
      %419 = vmatprep.subr.bf16.mxu0 0
      %420 = vmatpush1.bf16.msra.mxu0 %v373
      %421 = vmatprep.subr.bf16.mxu0 0
      %422 = vmatpush2.bf16.msra.mxu0 %v388
      %423 = vmatprep.subr.bf16.mxu0 0
      %424 = vmatpush2.bf16.msra.mxu0 %v387
      %425 = vmatprep.subr.bf16.mxu0 0
      %426 = vmatpush2.bf16.msra.mxu0 %v386
      %427 = vmatprep.subr.bf16.mxu0 0
      %428 = vmatpush2.bf16.msra.mxu0 %v385
      %429 = vmatprep.subr.bf16.mxu0 0
      %430 = vmatpush2.bf16.msra.mxu0 %v384
      %431 = vmatprep.subr.bf16.mxu0 0
      %432 = vmatpush2.bf16.msra.mxu0 %v383
      %433 = vmatprep.subr.bf16.mxu0 0
      %434 = vmatpush2.bf16.msra.mxu0 %v382
      %435 = vmatprep.subr.bf16.mxu0 0
      %436 = vmatpush2.bf16.msra.mxu0 %v381
      %437 = vmatprep.mubr.bf16.mxu0 %v306
      %438 = vmatmul.mubr.bf16.gmra.mxu0 %v299
      %v439 = vpop.f32.mrf.mxu0
      %v440 = vadd.f32 0.0, %v439
      %v441 = vpop.f32.mrf.mxu0
      %v442 = vpop.f32.mrf.mxu0
      %v443 = vpop.f32.mrf.mxu0
      %444 = vdwg.mxu0
      %v446 = vunpack.c.l.b16 %v221
      %v447 = vunpack.c.h.b16 %v221
      %v448 = vpack.c.b16 %v446, %v446
      %v449 = vpack.c.b16 %v447, %v447
      %v484 = vunpack.c.l.b16 %v222
      %v485 = vunpack.c.l.b16 %v223
      %v486 = vunpack.c.l.b16 %v224
      %v487 = vunpack.c.l.b16 %v225
      %v488 = vunpack.c.l.b16 %v226
      %v489 = vunpack.c.l.b16 %v227
      %v490 = vunpack.c.l.b16 %v228
      %v491 = vunpack.c.l.b16 %v229
      %v492 = vunpack.c.l.b16 %v230
      %v493 = vunpack.c.l.b16 %v231
      %v494 = vunpack.c.l.b16 %v232
      %v495 = vunpack.c.l.b16 %v233
      %v496 = vunpack.c.l.b16 %v234
      %v497 = vunpack.c.l.b16 %v235
      %v498 = vunpack.c.l.b16 %v236
      %v499 = vunpack.c.l.b16 %v237
      %v500 = vunpack.c.l.b16 %v238
      %v501 = vunpack.c.l.b16 %v239
      %v502 = vunpack.c.l.b16 %v240
      %v503 = vunpack.c.l.b16 %v241
      %v504 = vunpack.c.l.b16 %v242
      %v505 = vunpack.c.l.b16 %v243
      %v506 = vunpack.c.l.b16 %v244
      %v507 = vunpack.c.l.b16 %v245
      %v508 = vunpack.c.l.b16 %v246
      %v509 = vunpack.c.l.b16 %v247
      %v510 = vunpack.c.l.b16 %v248
      %v511 = vunpack.c.l.b16 %v249
      %v512 = vunpack.c.l.b16 %v250
      %v513 = vunpack.c.l.b16 %v251
      %v514 = vunpack.c.l.b16 %v252
      %v515 = vunpack.c.l.b16 %v253
      %v516 = vpack.c.b16 %v485, %v484
      %v517 = vpack.c.b16 %v487, %v486
      %v518 = vpack.c.b16 %v489, %v488
      %v519 = vpack.c.b16 %v491, %v490
      %v520 = vpack.c.b16 %v493, %v492
      %v521 = vpack.c.b16 %v495, %v494
      %v522 = vpack.c.b16 %v497, %v496
      %v523 = vpack.c.b16 %v499, %v498
      %v524 = vpack.c.b16 %v501, %v500
      %v525 = vpack.c.b16 %v503, %v502
      %v526 = vpack.c.b16 %v505, %v504
      %v527 = vpack.c.b16 %v507, %v506
      %v528 = vpack.c.b16 %v509, %v508
      %v529 = vpack.c.b16 %v511, %v510
      %v530 = vpack.c.b16 %v513, %v512
      %v531 = vpack.c.b16 %v515, %v514
      %548 = vmatprep.subr.bf16.mxu0 0
      %549 = vmatpush1.bf16.msra.mxu0 %v523
      %550 = vmatprep.subr.bf16.mxu0 0
      %551 = vmatpush1.bf16.msra.mxu0 %v522
      %552 = vmatprep.subr.bf16.mxu0 0
      %553 = vmatpush1.bf16.msra.mxu0 %v521
      %554 = vmatprep.subr.bf16.mxu0 0
      %555 = vmatpush1.bf16.msra.mxu0 %v520
      %556 = vmatprep.subr.bf16.mxu0 0
      %557 = vmatpush1.bf16.msra.mxu0 %v519
      %558 = vmatprep.subr.bf16.mxu0 0
      %559 = vmatpush1.bf16.msra.mxu0 %v518
      %560 = vmatprep.subr.bf16.mxu0 0
      %561 = vmatpush1.bf16.msra.mxu0 %v517
      %562 = vmatprep.subr.bf16.mxu0 0
      %563 = vmatpush1.bf16.msra.mxu0 %v516
      %564 = vmatprep.subr.bf16.mxu0 0
      %565 = vmatpush2.bf16.msra.mxu0 %v531
      %566 = vmatprep.subr.bf16.mxu0 0
      %567 = vmatpush2.bf16.msra.mxu0 %v530
      %568 = vmatprep.subr.bf16.mxu0 0
      %569 = vmatpush2.bf16.msra.mxu0 %v529
      %570 = vmatprep.subr.bf16.mxu0 0
      %571 = vmatpush2.bf16.msra.mxu0 %v528
      %572 = vmatprep.subr.bf16.mxu0 0
      %573 = vmatpush2.bf16.msra.mxu0 %v527
      %574 = vmatprep.subr.bf16.mxu0 0
      %575 = vmatpush2.bf16.msra.mxu0 %v526
      %576 = vmatprep.subr.bf16.mxu0 0
      %577 = vmatpush2.bf16.msra.mxu0 %v525
      %578 = vmatprep.subr.bf16.mxu0 0
      %579 = vmatpush2.bf16.msra.mxu0 %v524
      %580 = vmatprep.mubr.bf16.mxu0 %v449
      %581 = vmatmul.mubr.bf16.gmra.mxu0 %v448
      %v582 = vpop.f32.mrf.mxu0
      %v583 = vadd.f32 %v440, %v582
      %v584 = vpop.f32.mrf.mxu0
      %v585 = vpop.f32.mrf.mxu0
      %v586 = vpop.f32.mrf.mxu0
      %587 = vdwg.mxu0
      %v588 = vld [vmem:[%s205] sm:$0xee]
      %v589 = vld [vmem:[%s205 + $0x8] sm:$0x11]
      %s590 = scalar_lea.vmem %s209, 256
      %v591 = vld [vmem:[%s590] sm:$0xf]
      %v592 = vld [vmem:[%s590 + $0x4] sm:$0xf]
      %v593 = vld [vmem:[%s590 + $0x8] sm:$0xf]
      %v594 = vld [vmem:[%s590 + $0xc] sm:$0xf]
      %v595 = vld [vmem:[%s590 + $0x10] sm:$0xf]
      %v596 = vld [vmem:[%s590 + $0x14] sm:$0xf]
      %v597 = vld [vmem:[%s590 + $0x18] sm:$0xf]
      %v598 = vld [vmem:[%s590 + $0x1c] sm:$0xf]
      %v599 = vld [vmem:[%s590 + $0x20] sm:$0xf]
      %v600 = vld [vmem:[%s590 + $0x24] sm:$0xf]
      %v601 = vld [vmem:[%s590 + $0x28] sm:$0xf]
      %v602 = vld [vmem:[%s590 + $0x2c] sm:$0xf]
      %v603 = vld [vmem:[%s590 + $0x30] sm:$0xf]
      %v604 = vld [vmem:[%s590 + $0x34] sm:$0xf]
      %v605 = vld [vmem:[%s590 + $0x38] sm:$0xf]
      %v606 = vld [vmem:[%s590 + $0x3c] sm:$0xf]
      %v607 = vld [vmem:[%s590 + $0x40] sm:$0xf]
      %v608 = vld [vmem:[%s590 + $0x44] sm:$0xf]
      %v609 = vld [vmem:[%s590 + $0x48] sm:$0xf]
      %v610 = vld [vmem:[%s590 + $0x4c] sm:$0xf]
      %v611 = vld [vmem:[%s590 + $0x50] sm:$0xf]
      %v612 = vld [vmem:[%s590 + $0x54] sm:$0xf]
      %v613 = vld [vmem:[%s590 + $0x58] sm:$0xf]
      %v614 = vld [vmem:[%s590 + $0x5c] sm:$0xf]
      %v615 = vld [vmem:[%s590 + $0x60] sm:$0xf]
      %v616 = vld [vmem:[%s590 + $0x64] sm:$0xf]
      %v617 = vld [vmem:[%s590 + $0x68] sm:$0xf]
      %v618 = vld [vmem:[%s590 + $0x6c] sm:$0xf]
      %v619 = vld [vmem:[%s590 + $0x70] sm:$0xf]
      %v620 = vld [vmem:[%s590 + $0x74] sm:$0xf]
      %v621 = vld [vmem:[%s590 + $0x78] sm:$0xf]
      %v622 = vld [vmem:[%s590 + $0x7c] sm:$0xf]
      %v625 = vunpack.c.l.b16 %v588
      %v626 = vunpack.c.h.b16 %v588
      %v627 = vunpack.c.l.b16 %v589
      %v628 = vunpack.c.h.b16 %v589
      %v629 = vpack.c.b16 %v627, %v625
      %v630 = vpack.c.b16 %v628, %v626
      %v632 = vshrl.u32 %v629, 16
      %v634 = vrot.slane %v632, 1
      %v635 = vshll.u32 %v629, 16
      %v637 = vrot.slane %v635, 2
      %v638 = vor.u32 %v634, %v637
      %v640 = vshrl.u32 %v630, 16
      %v642 = vrot.slane %v640, 1
      %v643 = vshll.u32 %v630, 16
      %v645 = vrot.slane %v643, 2
      %v646 = vor.u32 %v642, %v645
      %v681 = vunpack.c.l.b16 %v591
      %v682 = vunpack.c.l.b16 %v592
      %v683 = vunpack.c.l.b16 %v593
      %v684 = vunpack.c.l.b16 %v594
      %v685 = vunpack.c.l.b16 %v595
      %v686 = vunpack.c.l.b16 %v596
      %v687 = vunpack.c.l.b16 %v597
      %v688 = vunpack.c.l.b16 %v598
      %v689 = vunpack.c.l.b16 %v599
      %v690 = vunpack.c.l.b16 %v600
      %v691 = vunpack.c.l.b16 %v601
      %v692 = vunpack.c.l.b16 %v602
      %v693 = vunpack.c.l.b16 %v603
      %v694 = vunpack.c.l.b16 %v604
      %v695 = vunpack.c.l.b16 %v605
      %v696 = vunpack.c.l.b16 %v606
      %v697 = vunpack.c.l.b16 %v607
      %v698 = vunpack.c.l.b16 %v608
      %v699 = vunpack.c.l.b16 %v609
      %v700 = vunpack.c.l.b16 %v610
      %v701 = vunpack.c.l.b16 %v611
      %v702 = vunpack.c.l.b16 %v612
      %v703 = vunpack.c.l.b16 %v613
      %v704 = vunpack.c.l.b16 %v614
      %v705 = vunpack.c.l.b16 %v615
      %v706 = vunpack.c.l.b16 %v616
      %v707 = vunpack.c.l.b16 %v617
      %v708 = vunpack.c.l.b16 %v618
      %v709 = vunpack.c.l.b16 %v619
      %v710 = vunpack.c.l.b16 %v620
      %v711 = vunpack.c.l.b16 %v621
      %v712 = vunpack.c.l.b16 %v622
      %v713 = vpack.c.b16 %v682, %v681
      %v714 = vpack.c.b16 %v684, %v683
      %v715 = vpack.c.b16 %v686, %v685
      %v716 = vpack.c.b16 %v688, %v687
      %v717 = vpack.c.b16 %v690, %v689
      %v718 = vpack.c.b16 %v692, %v691
      %v719 = vpack.c.b16 %v694, %v693
      %v720 = vpack.c.b16 %v696, %v695
      %v721 = vpack.c.b16 %v698, %v697
      %v722 = vpack.c.b16 %v700, %v699
      %v723 = vpack.c.b16 %v702, %v701
      %v724 = vpack.c.b16 %v704, %v703
      %v725 = vpack.c.b16 %v706, %v705
      %v726 = vpack.c.b16 %v708, %v707
      %v727 = vpack.c.b16 %v710, %v709
      %v728 = vpack.c.b16 %v712, %v711
      %745 = vmatprep.subr.bf16.mxu0 0
      %746 = vmatpush1.bf16.msra.mxu0 %v720
      %747 = vmatprep.subr.bf16.mxu0 0
      %748 = vmatpush1.bf16.msra.mxu0 %v719
      %749 = vmatprep.subr.bf16.mxu0 0
      %750 = vmatpush1.bf16.msra.mxu0 %v718
      %751 = vmatprep.subr.bf16.mxu0 0
      %752 = vmatpush1.bf16.msra.mxu0 %v717
      %753 = vmatprep.subr.bf16.mxu0 0
      %754 = vmatpush1.bf16.msra.mxu0 %v716
      %755 = vmatprep.subr.bf16.mxu0 0
      %756 = vmatpush1.bf16.msra.mxu0 %v715
      %757 = vmatprep.subr.bf16.mxu0 0
      %758 = vmatpush1.bf16.msra.mxu0 %v714
      %759 = vmatprep.subr.bf16.mxu0 0
      %760 = vmatpush1.bf16.msra.mxu0 %v713
      %761 = vmatprep.subr.bf16.mxu0 0
      %762 = vmatpush2.bf16.msra.mxu0 %v728
      %763 = vmatprep.subr.bf16.mxu0 0
      %764 = vmatpush2.bf16.msra.mxu0 %v727
      %765 = vmatprep.subr.bf16.mxu0 0
      %766 = vmatpush2.bf16.msra.mxu0 %v726
      %767 = vmatprep.subr.bf16.mxu0 0
      %768 = vmatpush2.bf16.msra.mxu0 %v725
      %769 = vmatprep.subr.bf16.mxu0 0
      %770 = vmatpush2.bf16.msra.mxu0 %v724
      %771 = vmatprep.subr.bf16.mxu0 0
      %772 = vmatpush2.bf16.msra.mxu0 %v723
      %773 = vmatprep.subr.bf16.mxu0 0
      %774 = vmatpush2.bf16.msra.mxu0 %v722
      %775 = vmatprep.subr.bf16.mxu0 0
      %776 = vmatpush2.bf16.msra.mxu0 %v721
      %777 = vmatprep.mubr.bf16.mxu0 %v646
      %778 = vmatmul.mubr.bf16.gmra.mxu0 %v638
      %v779 = vpop.f32.mrf.mxu0
      %v780 = vadd.f32 0.0, %v779
      %v781 = vpop.f32.mrf.mxu0
      %v782 = vpop.f32.mrf.mxu0
      %v783 = vpop.f32.mrf.mxu0
      %784 = vdwg.mxu0
      %v785 = vadd.f32 %v583, %v780
      %v786 = vld [vmem:[%s205] sm:$0xcc]
      %s787 = scalar_lea.vmem %s209, 384
      %v788 = vld [vmem:[%s787] sm:$0xf]
      %v789 = vld [vmem:[%s787 + $0x4] sm:$0xf]
      %v790 = vld [vmem:[%s787 + $0x8] sm:$0xf]
      %v791 = vld [vmem:[%s787 + $0xc] sm:$0xf]
      %v792 = vld [vmem:[%s787 + $0x10] sm:$0xf]
      %v793 = vld [vmem:[%s787 + $0x14] sm:$0xf]
      %v794 = vld [vmem:[%s787 + $0x18] sm:$0xf]
      %v795 = vld [vmem:[%s787 + $0x1c] sm:$0xf]
      %v796 = vld [vmem:[%s787 + $0x20] sm:$0xf]
      %v797 = vld [vmem:[%s787 + $0x24] sm:$0xf]
      %v798 = vld [vmem:[%s787 + $0x28] sm:$0xf]
      %v799 = vld [vmem:[%s787 + $0x2c] sm:$0xf]
      %v800 = vld [vmem:[%s787 + $0x30] sm:$0xf]
      %v801 = vld [vmem:[%s787 + $0x34] sm:$0xf]
      %v802 = vld [vmem:[%s787 + $0x38] sm:$0xf]
      %v803 = vld [vmem:[%s787 + $0x3c] sm:$0xf]
      %v804 = vld [vmem:[%s787 + $0x40] sm:$0xf]
      %v805 = vld [vmem:[%s787 + $0x44] sm:$0xf]
      %v806 = vld [vmem:[%s787 + $0x48] sm:$0xf]
      %v807 = vld [vmem:[%s787 + $0x4c] sm:$0xf]
      %v808 = vld [vmem:[%s787 + $0x50] sm:$0xf]
      %v809 = vld [vmem:[%s787 + $0x54] sm:$0xf]
      %v810 = vld [vmem:[%s787 + $0x58] sm:$0xf]
      %v811 = vld [vmem:[%s787 + $0x5c] sm:$0xf]
      %v812 = vld [vmem:[%s787 + $0x60] sm:$0xf]
      %v813 = vld [vmem:[%s787 + $0x64] sm:$0xf]
      %v814 = vld [vmem:[%s787 + $0x68] sm:$0xf]
      %v815 = vld [vmem:[%s787 + $0x6c] sm:$0xf]
      %v816 = vld [vmem:[%s787 + $0x70] sm:$0xf]
      %v817 = vld [vmem:[%s787 + $0x74] sm:$0xf]
      %v818 = vld [vmem:[%s787 + $0x78] sm:$0xf]
      %v819 = vld [vmem:[%s787 + $0x7c] sm:$0xf]
      %v821 = vunpack.c.l.b16 %v786
      %v822 = vunpack.c.h.b16 %v786
      %v823 = vpack.c.b16 %v627, %v821
      %v824 = vpack.c.b16 %v628, %v822
      %v825 = vrot.slane %v823, 2
      %v826 = vrot.slane %v824, 2
      %v861 = vunpack.c.l.b16 %v788
      %v862 = vunpack.c.l.b16 %v789
      %v863 = vunpack.c.l.b16 %v790
      %v864 = vunpack.c.l.b16 %v791
      %v865 = vunpack.c.l.b16 %v792
      %v866 = vunpack.c.l.b16 %v793
      %v867 = vunpack.c.l.b16 %v794
      %v868 = vunpack.c.l.b16 %v795
      %v869 = vunpack.c.l.b16 %v796
      %v870 = vunpack.c.l.b16 %v797
      %v871 = vunpack.c.l.b16 %v798
      %v872 = vunpack.c.l.b16 %v799
      %v873 = vunpack.c.l.b16 %v800
      %v874 = vunpack.c.l.b16 %v801
      %v875 = vunpack.c.l.b16 %v802
      %v876 = vunpack.c.l.b16 %v803
      %v877 = vunpack.c.l.b16 %v804
      %v878 = vunpack.c.l.b16 %v805
      %v879 = vunpack.c.l.b16 %v806
      %v880 = vunpack.c.l.b16 %v807
      %v881 = vunpack.c.l.b16 %v808
      %v882 = vunpack.c.l.b16 %v809
      %v883 = vunpack.c.l.b16 %v810
      %v884 = vunpack.c.l.b16 %v811
      %v885 = vunpack.c.l.b16 %v812
      %v886 = vunpack.c.l.b16 %v813
      %v887 = vunpack.c.l.b16 %v814
      %v888 = vunpack.c.l.b16 %v815
      %v889 = vunpack.c.l.b16 %v816
      %v890 = vunpack.c.l.b16 %v817
      %v891 = vunpack.c.l.b16 %v818
      %v892 = vunpack.c.l.b16 %v819
      %v893 = vpack.c.b16 %v862, %v861
      %v894 = vpack.c.b16 %v864, %v863
      %v895 = vpack.c.b16 %v866, %v865
      %v896 = vpack.c.b16 %v868, %v867
      %v897 = vpack.c.b16 %v870, %v869
      %v898 = vpack.c.b16 %v872, %v871
      %v899 = vpack.c.b16 %v874, %v873
      %v900 = vpack.c.b16 %v876, %v875
      %v901 = vpack.c.b16 %v878, %v877
      %v902 = vpack.c.b16 %v880, %v879
      %v903 = vpack.c.b16 %v882, %v881
      %v904 = vpack.c.b16 %v884, %v883
      %v905 = vpack.c.b16 %v886, %v885
      %v906 = vpack.c.b16 %v888, %v887
      %v907 = vpack.c.b16 %v890, %v889
      %v908 = vpack.c.b16 %v892, %v891
      %925 = vmatprep.subr.bf16.mxu0 0
      %926 = vmatpush1.bf16.msra.mxu0 %v900
      %927 = vmatprep.subr.bf16.mxu0 0
      %928 = vmatpush1.bf16.msra.mxu0 %v899
      %929 = vmatprep.subr.bf16.mxu0 0
      %930 = vmatpush1.bf16.msra.mxu0 %v898
      %931 = vmatprep.subr.bf16.mxu0 0
      %932 = vmatpush1.bf16.msra.mxu0 %v897
      %933 = vmatprep.subr.bf16.mxu0 0
      %934 = vmatpush1.bf16.msra.mxu0 %v896
      %935 = vmatprep.subr.bf16.mxu0 0
      %936 = vmatpush1.bf16.msra.mxu0 %v895
      %937 = vmatprep.subr.bf16.mxu0 0
      %938 = vmatpush1.bf16.msra.mxu0 %v894
      %939 = vmatprep.subr.bf16.mxu0 0
      %940 = vmatpush1.bf16.msra.mxu0 %v893
      %941 = vmatprep.subr.bf16.mxu0 0
      %942 = vmatpush2.bf16.msra.mxu0 %v908
      %943 = vmatprep.subr.bf16.mxu0 0
      %944 = vmatpush2.bf16.msra.mxu0 %v907
      %945 = vmatprep.subr.bf16.mxu0 0
      %946 = vmatpush2.bf16.msra.mxu0 %v906
      %947 = vmatprep.subr.bf16.mxu0 0
      %948 = vmatpush2.bf16.msra.mxu0 %v905
      %949 = vmatprep.subr.bf16.mxu0 0
      %950 = vmatpush2.bf16.msra.mxu0 %v904
      %951 = vmatprep.subr.bf16.mxu0 0
      %952 = vmatpush2.bf16.msra.mxu0 %v903
      %953 = vmatprep.subr.bf16.mxu0 0
      %954 = vmatpush2.bf16.msra.mxu0 %v902
      %955 = vmatprep.subr.bf16.mxu0 0
      %956 = vmatpush2.bf16.msra.mxu0 %v901
      %957 = vmatprep.mubr.bf16.mxu0 %v826
      %958 = vmatmul.mubr.bf16.gmra.mxu0 %v825
      %v959 = vpop.f32.mrf.mxu0
      %v960 = vadd.f32 0.0, %v959
      %v961 = vpop.f32.mrf.mxu0
      %v962 = vpop.f32.mrf.mxu0
      %v963 = vpop.f32.mrf.mxu0
      %964 = vdwg.mxu0
      %v965 = vadd.f32 %v785, %v960
      %v966 = vld [vmem:[%s212] sm:$0x1]
      %v968 = vlaneseq
      %v969 = vshrl.u32 %v968, 7
      %v970 = vsub.s32 0, %v969
      %v971 = vrot.slane %v966, %v970
      %v973 = vadd.f32 %v965, %v971
      %vm974 = vcmp.gt.f32.partialorder %v973, 0.0
      %v975 = vmul.f32 %v973, 0.2
      %v976 = vsel %vm974, %v973, %v975
      %v977 = vpack.c.bf16 %v976, %v976
      %978 = vst [vmem:[%s219] sm:$0x7] %v977
      %p979 = scmp.lt.s32.totalorder %s19, 1
      %s980 = scalar_select %p979, %s19, 1
      %p981 = scmp.lt.s32.totalorder %s18, 0
      %s982 = scalar_select %p981, %s18, 0
      %s983 = sadd.s32 %s982, %s980
      %s984 = smul.addr %s983, 4
      %s985 = scalar_lea.vmem %s3, %s984
      // Predicated region
      $region33: #{d_net128_forward.10} parent=31 // pred_check
        %p986 = pneg %p124
      $region34: #{d_net128_forward.10} parent=31 // pred_check_branch
        %988 = sbr.rel (%p986) target = $region36
      $region35: #{d_net128_forward.10} parent=31 // pred_region
        _
      $region36: #{d_net128_forward.10} parent=31 // pred_fallthru
        _
    $region32: #{d_net128_forward.10} parent=5 // pred_fallthru
      _
    %p989 = scmp.le.s32.totalorder 2, %s9
    // Predicated region
    $region37: #{d_net128_forward.10} parent=5 // pred_check
      %p990 = pneg %p989
    $region38: #{d_net128_forward.10} parent=5 // pred_check_branch
      %992 = sbr.rel (%p990) target = $region40
    $region39: #{d_net128_forward.10} parent=5 // pred_region
      %s993 = ssub.s32 %s9, 2
      // Predicated region
      $region41: #{d_net128_forward.10} parent=39 // pred_check
        %p994 = pneg %p130
      $region42: #{d_net128_forward.10} parent=39 // pred_check_branch
        %996 = sbr.rel (%p994) target = $region44
      $region43: #{d_net128_forward.10} parent=39 // pred_region
        %p997 = scmp.lt.s32.totalorder %s21, 1
        %s998 = scalar_select %p997, %s21, 1
        %p999 = scmp.lt.s32.totalorder %s20, 0
        %s1000 = scalar_select %p999, %s20, 0
        %s1001 = sadd.s32 %s1000, %s998
        %s1002 = smul.addr %s1001, 4
        %s1003 = scalar_lea.vmem %s3, %s1002
      $region44: #{d_net128_forward.10} parent=39 // pred_fallthru
        _
    $region40: #{d_net128_forward.10} parent=5 // pred_fallthru
      _
  $region6: #{d_net128_forward.10} parent=0 // loop_footer
    %s13 = sadd.s32 1, %s9
  $region7: #{d_net128_forward.10} parent=0 // loop_footer_branch
    %8 = sbr.rel target = $region3
  $region8: #{d_net128_forward.10} parent=0 // loop_exit
    _

</llo_original>
